<compile_context>
chip_gen: v5e
topology: v5e:2x2
jax: 0.10.0
libtpu: 0.0.40
codegen_flags: <defaults>
</compile_context>

<pallas_src>
import math

import numpy as np
import jax
import jax.numpy as jnp
from jax.experimental import pallas as pl
from jax.experimental.pallas import tpu as pltpu

NUM_HEADS = 6        # hard-coded in the PyTorch SelfAttention (view(..., 3, 6, C//6))
LN_EPS = 1e-5        # PyTorch nn.LayerNorm default


def _layernorm(x, gamma, beta):
    mu = jnp.mean(x, axis=-1, keepdims=True)
    var = jnp.mean((x - mu) ** 2, axis=-1, keepdims=True)
    return (x - mu) * jax.lax.rsqrt(var + LN_EPS) * gamma + beta


# ----------------------------- Pallas kernels -----------------------------

def _conv3x3_kernel(x_ref, w_ref, b_ref, o_ref):
    # x_ref: (1, H+2, W+2, C) zero-padded image (one batch element)
    # w_ref: (9, Cin, Cout) taps ordered (ky*3+kx, Cin, Cout)
    # b_ref: (1, C), o_ref: (1, H, W, C)
    # Per-tap whole-image matmuls: 9 x (H*W, C) @ (C, C), accumulated in f32.
    _, H, W, C = o_ref.shape
    acc = jnp.zeros((H * W, C), jnp.float32)
    for ky in range(3):
        for kx in range(3):
            patch = x_ref[0, ky:ky + H, kx:kx + W, :].reshape(H * W, C)
            acc = acc + jnp.dot(patch, w_ref[ky * 3 + kx],
                                preferred_element_type=jnp.float32)
    # bias added once (hoisted out of any per-tap work)
    o_ref[0] = (acc + b_ref[0]).reshape(H, W, C)


def _stl_kernel(x_ref, bias_ref, ln1_g_ref, ln1_b_ref, wqkv_ref, wproj_ref, bproj_ref,
                ln2_g_ref, ln2_b_ref, w1_ref, b1_ref, w2_ref, b2_ref, o_ref):
    # Fully fused Swin Transformer Layer on the window-token layout of ONE batch
    # element:
    #   x_ref:    (nW, N, C) raw (pre-LN) window tokens
    #   bias_ref: (NUM_HEADS, nWb, N, N)   nWb==nW for shifted layers (rel-bias +
    #             shift mask), nWb==1 for non-shifted (rel-bias only; broadcast here)
    #   o_ref:    (nW, N, C) = STL(x) in window-token layout
    #             (= MLP(LN(z)) + z, z = MSA(LN(x)) + x — both residuals fused)
    nW, N, C = x_ref.shape
    hd = C // NUM_HEADS
    T = nW * N
    scale = 1.0 / math.sqrt(hd)

    x = x_ref[...].reshape(T, C)

    # --- LN1 + windowed multi-head self-attention (+ residual) ---
    xn = _layernorm(x, ln1_g_ref[0], ln1_b_ref[0])
    qkv = jnp.dot(xn, wqkv_ref[...], preferred_element_type=jnp.float32)   # (T, 3C)
    wproj = wproj_ref[...]
    bias_all = bias_ref[...]                                               # (H, nWb, N, N)

    acc = jnp.zeros((T, C), jnp.float32)
    for h in range(NUM_HEADS):
        q = qkv[:, h * hd:(h + 1) * hd].reshape(nW, N, hd)
        k = qkv[:, C + h * hd:C + (h + 1) * hd].reshape(nW, N, hd)
        v = qkv[:, 2 * C + h * hd:2 * C + (h + 1) * hd].reshape(nW, N, hd)
        # window-batched scores + single combined (rel-bias [+ shift mask]) add
        s = jnp.einsum('wnd,wmd->wnm', q, k,
                       preferred_element_type=jnp.float32) * scale
        s = s + bias_all[h]                           # (nWb,N,N) broadcasts to (nW,N,N)
        s = s - jnp.max(s, axis=-1, keepdims=True)
        p = jnp.exp(s)
        p = p * pl.reciprocal(jnp.sum(p, axis=-1, keepdims=True), approx=True)
        oh = jnp.einsum('wnm,wmd->wnd', p, v,
                        preferred_element_type=jnp.float32).reshape(T, hd)
        # fold head-concat into the output projection: z @ Wproj == sum_h oh @ Wproj[h]
        acc = acc + jnp.dot(oh, wproj[h * hd:(h + 1) * hd, :],
                            preferred_element_type=jnp.float32)
    z = acc + bproj_ref[0] + x                        # MSA(LN(x)) + x

    # --- LN2 + MLP (+ residual) — per-token, so commutes with un-partition/un-roll ---
    zn = _layernorm(z, ln2_g_ref[0], ln2_b_ref[0])
    hmid = jnp.dot(zn, w1_ref[...], preferred_element_type=jnp.float32) + b1_ref[0]
    # exact (erf-based) GELU, matching PyTorch nn.GELU() default
    hmid = 0.5 * hmid * (1.0 + jax.lax.erf(hmid * (2.0 ** -0.5)))
    out = jnp.dot(hmid, w2_ref[...], preferred_element_type=jnp.float32) + b2_ref[0]
    o_ref[...] = (out + z).reshape(nW, N, C)


# ----------------------------- pallas_call wrappers -----------------------------

def conv3x3(x, w, b):
    # x: (B, H, W, C) NHWC; w: (9, Cin, Cout); b: (1, C)
    B, H, W, C = x.shape
    xp = jnp.pad(x, ((0, 0), (1, 1), (1, 1), (0, 0)))
    return pl.pallas_call(
        _conv3x3_kernel,
        out_shape=jax.ShapeDtypeStruct((B, H, W, C), jnp.float32),
        grid=(B,),
        in_specs=[
            pl.BlockSpec((1, H + 2, W + 2, C), lambda bi: (bi, 0, 0, 0)),
            pl.BlockSpec((9, C, C), lambda bi: (0, 0, 0)),
            pl.BlockSpec((1, C), lambda bi: (0, 0)),
        ],
        out_specs=pl.BlockSpec((1, H, W, C), lambda bi: (bi, 0, 0, 0)),
        compiler_params=pltpu.CompilerParams(dimension_semantics=("parallel",)),
    )(xp, w, b)


def stl_layer(x, lp, ws, shifted, sh_mask):
    # One fused Pallas call per STL layer; grid = batch (one step per element,
    # all nW windows processed inside the step).
    B, H, W, C = x.shape
    nW = (H // ws) * (W // ws)
    N = ws * ws

    xi = jnp.roll(x, (-ws // 2, -ws // 2), axis=(1, 2)) if shifted else x
    windows = window_partition(xi, ws)                           # (B*nW, N, C)

    rel = lp["rel_bias"]                                         # (6, N, N)
    if shifted:
        bias = rel[:, None, :, :] + sh_mask[None]                # (6, nW, N, N)
    else:
        bias = rel[:, None, :, :]                                # (6, 1, N, N)
    nWb = bias.shape[1]

    out_w = pl.pallas_call(
        _stl_kernel,
        out_shape=jax.ShapeDtypeStruct((B * nW, N, C), jnp.float32),
        grid=(B,),
        in_specs=[
            pl.BlockSpec((nW, N, C), lambda bi: (bi, 0, 0)),
            pl.BlockSpec((NUM_HEADS, nWb, N, N), lambda bi: (0, 0, 0, 0)),
            pl.BlockSpec((1, C), lambda bi: (0, 0)),
            pl.BlockSpec((1, C), lambda bi: (0, 0)),
            pl.BlockSpec((C, 3 * C), lambda bi: (0, 0)),
            pl.BlockSpec((C, C), lambda bi: (0, 0)),
            pl.BlockSpec((1, C), lambda bi: (0, 0)),
            pl.BlockSpec((1, C), lambda bi: (0, 0)),
            pl.BlockSpec((1, C), lambda bi: (0, 0)),
            pl.BlockSpec((C, 2 * C), lambda bi: (0, 0)),
            pl.BlockSpec((1, 2 * C), lambda bi: (0, 0)),
            pl.BlockSpec((2 * C, C), lambda bi: (0, 0)),
            pl.BlockSpec((1, C), lambda bi: (0, 0)),
        ],
        out_specs=pl.BlockSpec((nW, N, C), lambda bi: (bi, 0, 0)),
        compiler_params=pltpu.CompilerParams(dimension_semantics=("parallel",)),
    )(windows, bias, lp["ln1_g"], lp["ln1_b"], lp["w_qkv"], lp["w_proj"], lp["b_proj"],
      lp["ln2_g"], lp["ln2_b"], lp["w_mlp1"], lp["b_mlp1"], lp["w_mlp2"], lp["b_mlp2"])

    # Per-token outputs -> un-partition / un-roll (pure permutations) is exact here.
    z = window_unpartition(out_w, B, H, W, C, ws)
    if shifted:
        z = jnp.roll(z, (ws // 2, ws // 2), axis=(1, 2))
    return z


# ----------------------------- JAX glue (reshapes / roll / masks) -----------------------------

def window_partition(x, ws):
    B, H, W, C = x.shape
    x = x.reshape(B, H // ws, ws, W // ws, ws, C)
    x = x.transpose(0, 1, 3, 2, 4, 5)
    return x.reshape(B * (H // ws) * (W // ws), ws * ws, C)


def window_unpartition(wins, B, H, W, C, ws):
    x = wins.reshape(B, H // ws, W // ws, ws, ws, C)
    x = x.transpose(0, 1, 3, 2, 4, 5)
    return x.reshape(B, H, W, C)


def relative_index(ws):
    coords = np.stack(np.meshgrid(np.arange(ws), np.arange(ws), indexing="ij"))
    coords = coords.reshape(2, -1).astype(np.int64)             # (2, N)
    rel = coords[:, :, None] - coords[:, None, :]               # (2, N, N)
    rel[0] += ws - 1
    rel[0] *= 2 * ws - 1
    rel[1] += ws - 1
    return (rel[0] + rel[1]).reshape(-1)                        # (N*N,)


def shift_mask(H, W, ws):
    att = np.zeros((H, W), np.float32)
    slices = [slice(0, -ws), slice(-ws, -ws // 2), slice(-ws // 2, None)]
    idx = 0
    for hs in slices:
        for wss in slices:
            att[hs, wss] = idx
            idx += 1
    att = att.reshape(H // ws, ws, W // ws, ws).transpose(0, 2, 1, 3).reshape(-1, ws * ws)
    diff = att[:, None, :] - att[:, :, None]
    return np.where(diff != 0, -100.0, 0.0).astype(np.float32)  # (nW, N, N)


# ----------------------------- parameters -----------------------------

def make_params(key, C, ws, n, fuse, fuse_num):
    assert C % NUM_HEADS == 0, "channel must be divisible by 6 (heads)"
    N = ws * ws
    keys = iter(jax.random.split(key, 128))

    def nrm(shape, s):
        return (s * jax.random.normal(next(keys), shape)).astype(jnp.float32)

    rel_idx = relative_index(ws)
    params = {
        "conv1_w": nrm((9, C, C), 0.15), "conv1_b": nrm((1, C), 0.05),
        "conv2_w": nrm((9, C, C), 0.15), "conv2_b": nrm((1, C), 0.05),
        "stl": [], "adj": [],
    }
    for _ in range(n):
        bias_table = nrm(((2 * ws - 1) ** 2, NUM_HEADS), 0.1)
        rel_bias = bias_table[rel_idx].reshape(N, N, NUM_HEADS).transpose(2, 0, 1)
        params["stl"].append({
            "ln1_g": 1.0 + nrm((1, C), 0.1), "ln1_b": nrm((1, C), 0.1),
            "w_qkv": nrm((C, 3 * C), 0.2),                   # qkv has bias=False in the spec
            "rel_bias": jnp.asarray(rel_bias, jnp.float32),  # (6, N, N)
            "w_proj": nrm((C, C), 0.2), "b_proj": nrm((1, C), 0.05),
            "ln2_g": 1.0 + nrm((1, C), 0.1), "ln2_b": nrm((1, C), 0.1),
            "w_mlp1": nrm((C, 2 * C), 0.2), "b_mlp1": nrm((1, 2 * C), 0.05),
            "w_mlp2": nrm((2 * C, C), 0.2), "b_mlp2": nrm((1, C), 0.05),
        })
    if fuse:
        for _ in range(fuse_num):
            params["adj"].append(nrm((N, C), 0.2))
    return params


# ----------------------------- CRSTB forward -----------------------------

def crstb_forward(img_nchw, params, ws, fuse):
    x = jnp.transpose(img_nchw, (0, 2, 3, 1)).astype(jnp.float32)   # NHWC
    B, H, W, C = x.shape

    if fuse:
        adj_sum = params["adj"][0]
        for a in params["adj"][1:]:
            adj_sum = adj_sum + a
        adj_img = adj_sum.reshape(ws, ws, C)
        x = x + jnp.tile(adj_img, (H // ws, W // ws, 1))[None]      # per-window add

    x = conv3x3(x, params["conv1_w"], params["conv1_b"])

    sh_mask = jnp.asarray(shift_mask(H, W, ws))                     # (nW, N, N)

    for i, lp in enumerate(params["stl"]):
        x = stl_layer(x, lp, ws, shifted=(i % 2 != 0), sh_mask=sh_mask)

    x = conv3x3(x, params["conv2_w"], params["conv2_b"])
    return jnp.transpose(x, (0, 3, 1, 2))                           # back to NCHW


# ----------------------------- main -----------------------------

if __name__ == "__main__":
    B, C, H, W = 2, 12, 8, 8          # C must be a multiple of 6; H, W multiples of wsize
    wsize, n_stl, fuse, fuse_num = 4, 2, True, 2

    key = jax.random.PRNGKey(0)
    pkey, xkey = jax.random.split(key)
    params = make_params(pkey, C, wsize, n_stl, fuse, fuse_num)
    img = jax.random.normal(xkey, (B, C, H, W), jnp.float32)

    fwd = jax.jit(lambda im: crstb_forward(im, params, wsize, fuse))
    out = fwd(img)
    out = jax.block_until_ready(out)

    assert out.shape == (B, C, H, W)
    assert bool(jnp.all(jnp.isfinite(out)))
    print("KERNEL_OK")
</pallas_src>

<mosaic_0001>
module attributes {stable_mosaic.version = 11 : i64} {
  func.func @_conv3x3_kernel(%arg0: i32, %arg1: memref<1x10x10x12xf32, #tpu.memory_space<vmem>>, %arg2: memref<9x12x12xf32, #tpu.memory_space<vmem>>, %arg3: memref<1x12xf32, #tpu.memory_space<vmem>>, %arg4: memref<1x8x8x12xf32, #tpu.memory_space<vmem>>) attributes {dimension_semantics = [#tpu.dimension_semantics<parallel>], iteration_bounds = array<i64: 2>, scalar_prefetch = 0 : i64, scratch_operands = 0 : i64, tpu.core_type = #tpu.core_type<tc>, window_params = [{transform_indices = @transform_0, window_bounds = array<i64: 1, 10, 10, 12>}, {pipeline_mode = #tpu.pipeline_mode<synchronous>, transform_indices = @transform_1, window_bounds = array<i64: 9, 12, 12>}, {pipeline_mode = #tpu.pipeline_mode<synchronous>, transform_indices = @transform_2, window_bounds = array<i64: 1, 12>}, {transform_indices = @transform_3, window_bounds = array<i64: 1, 8, 8, 12>}]} {
    %cst = arith.constant 0.000000e+00 : f32
    %0 = vector.broadcast %cst : f32 to vector<64x12xf32>
    %c0 = arith.constant 0 : index
    %c0_0 = arith.constant 0 : index
    %c0_1 = arith.constant 0 : index
    %c0_2 = arith.constant 0 : index
    %1 = vector.load %arg1[%c0, %c0_0, %c0_1, %c0_2] : memref<1x10x10x12xf32, #tpu.memory_space<vmem>>, vector<1x8x8x12xf32>
    %2 = vector.shape_cast %1 : vector<1x8x8x12xf32> to vector<8x8x12xf32>
    %3 = vector.shape_cast %2 : vector<8x8x12xf32> to vector<64x12xf32>
    %c0_3 = arith.constant 0 : index
    %c0_4 = arith.constant 0 : index
    %c0_5 = arith.constant 0 : index
    %4 = vector.load %arg2[%c0_3, %c0_4, %c0_5] : memref<9x12x12xf32, #tpu.memory_space<vmem>>, vector<1x12x12xf32>
    %5 = vector.shape_cast %4 : vector<1x12x12xf32> to vector<12x12xf32>
    %cst_6 = arith.constant dense<0.000000e+00> : vector<64x12xf32>
    %6 = tpu.matmul %3, %5, %cst_6 {dimension_numbers = #tpu.dot_dimension_numbers<[1], [0], [0], [1], [0, 0, 1, 1], [], []>} : vector<64x12xf32>, vector<12x12xf32>, vector<64x12xf32> -> vector<64x12xf32>
    %7 = arith.addf %0, %6 : vector<64x12xf32>
    %c0_7 = arith.constant 0 : index
    %c0_8 = arith.constant 0 : index
    %c1 = arith.constant 1 : index
    %c0_9 = arith.constant 0 : index
    %8 = vector.load %arg1[%c0_7, %c0_8, %c1, %c0_9] : memref<1x10x10x12xf32, #tpu.memory_space<vmem>>, vector<1x8x8x12xf32>
    %9 = vector.shape_cast %8 : vector<1x8x8x12xf32> to vector<8x8x12xf32>
    %10 = vector.shape_cast %9 : vector<8x8x12xf32> to vector<64x12xf32>
    %c1_10 = arith.constant 1 : index
    %c0_11 = arith.constant 0 : index
    %c0_12 = arith.constant 0 : index
    %11 = vector.load %arg2[%c1_10, %c0_11, %c0_12] : memref<9x12x12xf32, #tpu.memory_space<vmem>>, vector<1x12x12xf32>
    %12 = vector.shape_cast %11 : vector<1x12x12xf32> to vector<12x12xf32>
    %cst_13 = arith.constant dense<0.000000e+00> : vector<64x12xf32>
    %13 = tpu.matmul %10, %12, %cst_13 {dimension_numbers = #tpu.dot_dimension_numbers<[1], [0], [0], [1], [0, 0, 1, 1], [], []>} : vector<64x12xf32>, vector<12x12xf32>, vector<64x12xf32> -> vector<64x12xf32>
    %14 = arith.addf %7, %13 : vector<64x12xf32>
    %c0_14 = arith.constant 0 : index
    %c0_15 = arith.constant 0 : index
    %c2 = arith.constant 2 : index
    %c0_16 = arith.constant 0 : index
    %15 = vector.load %arg1[%c0_14, %c0_15, %c2, %c0_16] : memref<1x10x10x12xf32, #tpu.memory_space<vmem>>, vector<1x8x8x12xf32>
    %16 = vector.shape_cast %15 : vector<1x8x8x12xf32> to vector<8x8x12xf32>
    %17 = vector.shape_cast %16 : vector<8x8x12xf32> to vector<64x12xf32>
    %c2_17 = arith.constant 2 : index
    %c0_18 = arith.constant 0 : index
    %c0_19 = arith.constant 0 : index
    %18 = vector.load %arg2[%c2_17, %c0_18, %c0_19] : memref<9x12x12xf32, #tpu.memory_space<vmem>>, vector<1x12x12xf32>
    %19 = vector.shape_cast %18 : vector<1x12x12xf32> to vector<12x12xf32>
    %cst_20 = arith.constant dense<0.000000e+00> : vector<64x12xf32>
    %20 = tpu.matmul %17, %19, %cst_20 {dimension_numbers = #tpu.dot_dimension_numbers<[1], [0], [0], [1], [0, 0, 1, 1], [], []>} : vector<64x12xf32>, vector<12x12xf32>, vector<64x12xf32> -> vector<64x12xf32>
    %21 = arith.addf %14, %20 : vector<64x12xf32>
    %c0_21 = arith.constant 0 : index
    %c1_22 = arith.constant 1 : index
    %c0_23 = arith.constant 0 : index
    %c0_24 = arith.constant 0 : index
    %22 = vector.load %arg1[%c0_21, %c1_22, %c0_23, %c0_24] : memref<1x10x10x12xf32, #tpu.memory_space<vmem>>, vector<1x8x8x12xf32>
    %23 = vector.shape_cast %22 : vector<1x8x8x12xf32> to vector<8x8x12xf32>
    %24 = vector.shape_cast %23 : vector<8x8x12xf32> to vector<64x12xf32>
    %c3 = arith.constant 3 : index
    %c0_25 = arith.constant 0 : index
    %c0_26 = arith.constant 0 : index
    %25 = vector.load %arg2[%c3, %c0_25, %c0_26] : memref<9x12x12xf32, #tpu.memory_space<vmem>>, vector<1x12x12xf32>
    %26 = vector.shape_cast %25 : vector<1x12x12xf32> to vector<12x12xf32>
    %cst_27 = arith.constant dense<0.000000e+00> : vector<64x12xf32>
    %27 = tpu.matmul %24, %26, %cst_27 {dimension_numbers = #tpu.dot_dimension_numbers<[1], [0], [0], [1], [0, 0, 1, 1], [], []>} : vector<64x12xf32>, vector<12x12xf32>, vector<64x12xf32> -> vector<64x12xf32>
    %28 = arith.addf %21, %27 : vector<64x12xf32>
    %c0_28 = arith.constant 0 : index
    %c1_29 = arith.constant 1 : index
    %c1_30 = arith.constant 1 : index
    %c0_31 = arith.constant 0 : index
    %29 = vector.load %arg1[%c0_28, %c1_29, %c1_30, %c0_31] : memref<1x10x10x12xf32, #tpu.memory_space<vmem>>, vector<1x8x8x12xf32>
    %30 = vector.shape_cast %29 : vector<1x8x8x12xf32> to vector<8x8x12xf32>
    %31 = vector.shape_cast %30 : vector<8x8x12xf32> to vector<64x12xf32>
    %c4 = arith.constant 4 : index
    %c0_32 = arith.constant 0 : index
    %c0_33 = arith.constant 0 : index
    %32 = vector.load %arg2[%c4, %c0_32, %c0_33] : memref<9x12x12xf32, #tpu.memory_space<vmem>>, vector<1x12x12xf32>
    %33 = vector.shape_cast %32 : vector<1x12x12xf32> to vector<12x12xf32>
    %cst_34 = arith.constant dense<0.000000e+00> : vector<64x12xf32>
    %34 = tpu.matmul %31, %33, %cst_34 {dimension_numbers = #tpu.dot_dimension_numbers<[1], [0], [0], [1], [0, 0, 1, 1], [], []>} : vector<64x12xf32>, vector<12x12xf32>, vector<64x12xf32> -> vector<64x12xf32>
    %35 = arith.addf %28, %34 : vector<64x12xf32>
    %c0_35 = arith.constant 0 : index
    %c1_36 = arith.constant 1 : index
    %c2_37 = arith.constant 2 : index
    %c0_38 = arith.constant 0 : index
    %36 = vector.load %arg1[%c0_35, %c1_36, %c2_37, %c0_38] : memref<1x10x10x12xf32, #tpu.memory_space<vmem>>, vector<1x8x8x12xf32>
    %37 = vector.shape_cast %36 : vector<1x8x8x12xf32> to vector<8x8x12xf32>
    %38 = vector.shape_cast %37 : vector<8x8x12xf32> to vector<64x12xf32>
    %c5 = arith.constant 5 : index
    %c0_39 = arith.constant 0 : index
    %c0_40 = arith.constant 0 : index
    %39 = vector.load %arg2[%c5, %c0_39, %c0_40] : memref<9x12x12xf32, #tpu.memory_space<vmem>>, vector<1x12x12xf32>
    %40 = vector.shape_cast %39 : vector<1x12x12xf32> to vector<12x12xf32>
    %cst_41 = arith.constant dense<0.000000e+00> : vector<64x12xf32>
    %41 = tpu.matmul %38, %40, %cst_41 {dimension_numbers = #tpu.dot_dimension_numbers<[1], [0], [0], [1], [0, 0, 1, 1], [], []>} : vector<64x12xf32>, vector<12x12xf32>, vector<64x12xf32> -> vector<64x12xf32>
    %42 = arith.addf %35, %41 : vector<64x12xf32>
    %c0_42 = arith.constant 0 : index
    %c2_43 = arith.constant 2 : index
    %c0_44 = arith.constant 0 : index
    %c0_45 = arith.constant 0 : index
    %43 = vector.load %arg1[%c0_42, %c2_43, %c0_44, %c0_45] : memref<1x10x10x12xf32, #tpu.memory_space<vmem>>, vector<1x8x8x12xf32>
    %44 = vector.shape_cast %43 : vector<1x8x8x12xf32> to vector<8x8x12xf32>
    %45 = vector.shape_cast %44 : vector<8x8x12xf32> to vector<64x12xf32>
    %c6 = arith.constant 6 : index
    %c0_46 = arith.constant 0 : index
    %c0_47 = arith.constant 0 : index
    %46 = vector.load %arg2[%c6, %c0_46, %c0_47] : memref<9x12x12xf32, #tpu.memory_space<vmem>>, vector<1x12x12xf32>
    %47 = vector.shape_cast %46 : vector<1x12x12xf32> to vector<12x12xf32>
    %cst_48 = arith.constant dense<0.000000e+00> : vector<64x12xf32>
    %48 = tpu.matmul %45, %47, %cst_48 {dimension_numbers = #tpu.dot_dimension_numbers<[1], [0], [0], [1], [0, 0, 1, 1], [], []>} : vector<64x12xf32>, vector<12x12xf32>, vector<64x12xf32> -> vector<64x12xf32>
    %49 = arith.addf %42, %48 : vector<64x12xf32>
    %c0_49 = arith.constant 0 : index
    %c2_50 = arith.constant 2 : index
    %c1_51 = arith.constant 1 : index
    %c0_52 = arith.constant 0 : index
    %50 = vector.load %arg1[%c0_49, %c2_50, %c1_51, %c0_52] : memref<1x10x10x12xf32, #tpu.memory_space<vmem>>, vector<1x8x8x12xf32>
    %51 = vector.shape_cast %50 : vector<1x8x8x12xf32> to vector<8x8x12xf32>
    %52 = vector.shape_cast %51 : vector<8x8x12xf32> to vector<64x12xf32>
    %c7 = arith.constant 7 : index
    %c0_53 = arith.constant 0 : index
    %c0_54 = arith.constant 0 : index
    %53 = vector.load %arg2[%c7, %c0_53, %c0_54] : memref<9x12x12xf32, #tpu.memory_space<vmem>>, vector<1x12x12xf32>
    %54 = vector.shape_cast %53 : vector<1x12x12xf32> to vector<12x12xf32>
    %cst_55 = arith.constant dense<0.000000e+00> : vector<64x12xf32>
    %55 = tpu.matmul %52, %54, %cst_55 {dimension_numbers = #tpu.dot_dimension_numbers<[1], [0], [0], [1], [0, 0, 1, 1], [], []>} : vector<64x12xf32>, vector<12x12xf32>, vector<64x12xf32> -> vector<64x12xf32>
    %56 = arith.addf %49, %55 : vector<64x12xf32>
    %c0_56 = arith.constant 0 : index
    %c2_57 = arith.constant 2 : index
    %c2_58 = arith.constant 2 : index
    %c0_59 = arith.constant 0 : index
    %57 = vector.load %arg1[%c0_56, %c2_57, %c2_58, %c0_59] : memref<1x10x10x12xf32, #tpu.memory_space<vmem>>, vector<1x8x8x12xf32>
    %58 = vector.shape_cast %57 : vector<1x8x8x12xf32> to vector<8x8x12xf32>
    %59 = vector.shape_cast %58 : vector<8x8x12xf32> to vector<64x12xf32>
    %c8 = arith.constant 8 : index
    %c0_60 = arith.constant 0 : index
    %c0_61 = arith.constant 0 : index
    %60 = vector.load %arg2[%c8, %c0_60, %c0_61] : memref<9x12x12xf32, #tpu.memory_space<vmem>>, vector<1x12x12xf32>
    %61 = vector.shape_cast %60 : vector<1x12x12xf32> to vector<12x12xf32>
    %cst_62 = arith.constant dense<0.000000e+00> : vector<64x12xf32>
    %62 = tpu.matmul %59, %61, %cst_62 {dimension_numbers = #tpu.dot_dimension_numbers<[1], [0], [0], [1], [0, 0, 1, 1], [], []>} : vector<64x12xf32>, vector<12x12xf32>, vector<64x12xf32> -> vector<64x12xf32>
    %63 = arith.addf %56, %62 : vector<64x12xf32>
    %c0_63 = arith.constant 0 : index
    %c0_64 = arith.constant 0 : index
    %64 = vector.load %arg3[%c0_63, %c0_64] : memref<1x12xf32, #tpu.memory_space<vmem>>, vector<1x12xf32>
    %65 = vector.shape_cast %64 : vector<1x12xf32> to vector<12xf32>
    %66 = vector.shape_cast %65 : vector<12xf32> to vector<1x12xf32>
    %67 = vector.broadcast %66 : vector<1x12xf32> to vector<64x12xf32>
    %68 = arith.addf %63, %67 : vector<64x12xf32>
    %69 = vector.shape_cast %68 : vector<64x12xf32> to vector<8x8x12xf32>
    %c0_65 = arith.constant 0 : index
    %c0_66 = arith.constant 0 : index
    %c0_67 = arith.constant 0 : index
    %c0_68 = arith.constant 0 : index
    %70 = vector.load %arg4[%c0_65, %c0_66, %c0_67, %c0_68] : memref<1x8x8x12xf32, #tpu.memory_space<vmem>>, vector<1x8x8x12xf32>
    %71 = vector.shape_cast %70 : vector<1x8x8x12xf32> to vector<8x8x12xf32>
    %72 = vector.shape_cast %69 : vector<8x8x12xf32> to vector<1x8x8x12xf32>
    tpu.vector_store %arg4[%c0_65, %c0_66, %c0_67, %c0_68], %72 {strides = array<i32>} : memref<1x8x8x12xf32, #tpu.memory_space<vmem>>, vector<1x8x8x12xf32>,
    return
  }
  func.func @transform_0(%arg0: i32) -> (i32, i32, i32, i32) {
    %c0_i32 = arith.constant 0 : i32
    %c0_i32_0 = arith.constant 0 : i32
    %c0_i32_1 = arith.constant 0 : i32
    %c0_i32_2 = arith.constant 0 : i32
    return %arg0, %c0_i32, %c0_i32_0, %c0_i32_1 : i32, i32, i32, i32
  }
  func.func @transform_1(%arg0: i32) -> (i32, i32, i32) {
    %c0_i32 = arith.constant 0 : i32
    %c0_i32_0 = arith.constant 0 : i32
    %c0_i32_1 = arith.constant 0 : i32
    %c0_i32_2 = arith.constant 0 : i32
    return %c0_i32, %c0_i32_0, %c0_i32_1 : i32, i32, i32
  }
  func.func @transform_2(%arg0: i32) -> (i32, i32) {
    %c0_i32 = arith.constant 0 : i32
    %c0_i32_0 = arith.constant 0 : i32
    %c0_i32_1 = arith.constant 0 : i32
    return %c0_i32, %c0_i32_0 : i32, i32
  }
  func.func @transform_3(%arg0: i32) -> (i32, i32, i32, i32) {
    %c0_i32 = arith.constant 0 : i32
    %c0_i32_0 = arith.constant 0 : i32
    %c0_i32_1 = arith.constant 0 : i32
    %c0_i32_2 = arith.constant 0 : i32
    return %arg0, %c0_i32, %c0_i32_0, %c0_i32_1 : i32, i32, i32, i32
  }
}

module attributes {stable_mosaic.version = 11 : i64} {
  func.func @_stl_kernel(%arg0: i32, %arg1: memref<4x16x12xf32, #tpu.memory_space<vmem>>, %arg2: memref<6x1x16x16xf32, #tpu.memory_space<vmem>>, %arg3: memref<1x12xf32, #tpu.memory_space<vmem>>, %arg4: memref<1x12xf32, #tpu.memory_space<vmem>>, %arg5: memref<12x36xf32, #tpu.memory_space<vmem>>, %arg6: memref<12x12xf32, #tpu.memory_space<vmem>>, %arg7: memref<1x12xf32, #tpu.memory_space<vmem>>, %arg8: memref<1x12xf32, #tpu.memory_space<vmem>>, %arg9: memref<1x12xf32, #tpu.memory_space<vmem>>, %arg10: memref<12x24xf32, #tpu.memory_space<vmem>>, %arg11: memref<1x24xf32, #tpu.memory_space<vmem>>, %arg12: memref<24x12xf32, #tpu.memory_space<vmem>>, %arg13: memref<1x12xf32, #tpu.memory_space<vmem>>, %arg14: memref<4x16x12xf32, #tpu.memory_space<vmem>>) attributes {dimension_semantics = [#tpu.dimension_semantics<parallel>], iteration_bounds = array<i64: 2>, scalar_prefetch = 0 : i64, scratch_operands = 0 : i64, tpu.core_type = #tpu.core_type<tc>, window_params = [{transform_indices = @transform_0, window_bounds = array<i64: 4, 16, 12>}, {pipeline_mode = #tpu.pipeline_mode<synchronous>, transform_indices = @transform_1, window_bounds = array<i64: 6, 1, 16, 16>}, {pipeline_mode = #tpu.pipeline_mode<synchronous>, transform_indices = @transform_2, window_bounds = array<i64: 1, 12>}, {pipeline_mode = #tpu.pipeline_mode<synchronous>, transform_indices = @transform_3, window_bounds = array<i64: 1, 12>}, {pipeline_mode = #tpu.pipeline_mode<synchronous>, transform_indices = @transform_4, window_bounds = array<i64: 12, 36>}, {pipeline_mode = #tpu.pipeline_mode<synchronous>, transform_indices = @transform_5, window_bounds = array<i64: 12, 12>}, {pipeline_mode = #tpu.pipeline_mode<synchronous>, transform_indices = @transform_6, window_bounds = array<i64: 1, 12>}, {pipeline_mode = #tpu.pipeline_mode<synchronous>, transform_indices = @transform_7, window_bounds = array<i64: 1, 12>}, {pipeline_mode = #tpu.pipeline_mode<synchronous>, transform_indices = @transform_8, window_bounds = array<i64: 1, 12>}, {pipeline_mode = #tpu.pipeline_mode<synchronous>, transform_indices = @transform_9, window_bounds = array<i64: 12, 24>}, {pipeline_mode = #tpu.pipeline_mode<synchronous>, transform_indices = @transform_10, window_bounds = array<i64: 1, 24>}, {pipeline_mode = #tpu.pipeline_mode<synchronous>, transform_indices = @transform_11, window_bounds = array<i64: 24, 12>}, {pipeline_mode = #tpu.pipeline_mode<synchronous>, transform_indices = @transform_12, window_bounds = array<i64: 1, 12>}, {transform_indices = @transform_13, window_bounds = array<i64: 4, 16, 12>}]} {
    %c0 = arith.constant 0 : index
    %c0_0 = arith.constant 0 : index
    %c0_1 = arith.constant 0 : index
    %0 = vector.load %arg1[%c0, %c0_0, %c0_1] : memref<4x16x12xf32, #tpu.memory_space<vmem>>, vector<4x16x12xf32>
    %1 = vector.shape_cast %0 : vector<4x16x12xf32> to vector<64x12xf32>
    %c0_2 = arith.constant 0 : index
    %c0_3 = arith.constant 0 : index
    %2 = vector.load %arg3[%c0_2, %c0_3] : memref<1x12xf32, #tpu.memory_space<vmem>>, vector<1x12xf32>
    %3 = vector.shape_cast %2 : vector<1x12xf32> to vector<12xf32>
    %c0_4 = arith.constant 0 : index
    %c0_5 = arith.constant 0 : index
    %4 = vector.load %arg4[%c0_4, %c0_5] : memref<1x12xf32, #tpu.memory_space<vmem>>, vector<1x12xf32>
    %5 = vector.shape_cast %4 : vector<1x12xf32> to vector<12xf32>
    %cst = arith.constant dense<0.000000e+00> : vector<64xf32>
    %6 = vector.multi_reduction <add>, %1, %cst [1] : vector<64x12xf32> to vector<64xf32>
    %7 = vector.shape_cast %6 : vector<64xf32> to vector<64x1xf32>
    %cst_6 = arith.constant 1.200000e+01 : f32
    %8 = vector.broadcast %cst_6 : f32 to vector<64x1xf32>
    %9 = arith.divf %7, %8 : vector<64x1xf32>
    %10 = vector.broadcast %9 : vector<64x1xf32> to vector<64x12xf32>
    %11 = arith.subf %1, %10 : vector<64x12xf32>
    %12 = arith.mulf %11, %11 : vector<64x12xf32>
    %cst_7 = arith.constant dense<0.000000e+00> : vector<64xf32>
    %13 = vector.multi_reduction <add>, %12, %cst_7 [1] : vector<64x12xf32> to vector<64xf32>
    %14 = vector.shape_cast %13 : vector<64xf32> to vector<64x1xf32>
    %cst_8 = arith.constant 1.200000e+01 : f32
    %15 = vector.broadcast %cst_8 : f32 to vector<64x1xf32>
    %16 = arith.divf %14, %15 : vector<64x1xf32>
    %17 = vector.broadcast %9 : vector<64x1xf32> to vector<64x12xf32>
    %18 = arith.subf %1, %17 : vector<64x12xf32>
    %cst_9 = arith.constant 9.99999974E-6 : f32
    %19 = vector.broadcast %cst_9 : f32 to vector<64x1xf32>
    %20 = arith.addf %16, %19 : vector<64x1xf32>
    %21 = math.rsqrt %20 : vector<64x1xf32>
    %22 = vector.broadcast %21 : vector<64x1xf32> to vector<64x12xf32>
    %23 = arith.mulf %18, %22 : vector<64x12xf32>
    %24 = vector.shape_cast %3 : vector<12xf32> to vector<1x12xf32>
    %25 = vector.broadcast %24 : vector<1x12xf32> to vector<64x12xf32>
    %26 = arith.mulf %23, %25 : vector<64x12xf32>
    %27 = vector.shape_cast %5 : vector<12xf32> to vector<1x12xf32>
    %28 = vector.broadcast %27 : vector<1x12xf32> to vector<64x12xf32>
    %29 = arith.addf %26, %28 : vector<64x12xf32>
    %c0_10 = arith.constant 0 : index
    %c0_11 = arith.constant 0 : index
    %30 = vector.load %arg5[%c0_10, %c0_11] : memref<12x36xf32, #tpu.memory_space<vmem>>, vector<12x36xf32>
    %cst_12 = arith.constant dense<0.000000e+00> : vector<64x36xf32>
    %31 = tpu.matmul %29, %30, %cst_12 {dimension_numbers = #tpu.dot_dimension_numbers<[1], [0], [0], [1], [0, 0, 1, 1], [], []>} : vector<64x12xf32>, vector<12x36xf32>, vector<64x36xf32> -> vector<64x36xf32>
    %c0_13 = arith.constant 0 : index
    %c0_14 = arith.constant 0 : index
    %32 = vector.load %arg6[%c0_13, %c0_14] : memref<12x12xf32, #tpu.memory_space<vmem>>, vector<12x12xf32>
    %c0_15 = arith.constant 0 : index
    %c0_16 = arith.constant 0 : index
    %c0_17 = arith.constant 0 : index
    %c0_18 = arith.constant 0 : index
    %33 = vector.load %arg2[%c0_15, %c0_16, %c0_17, %c0_18] : memref<6x1x16x16xf32, #tpu.memory_space<vmem>>, vector<6x1x16x16xf32>
    %cst_19 = arith.constant 0.000000e+00 : f32
    %34 = vector.broadcast %cst_19 : f32 to vector<64x12xf32>
    %35 = vector.extract_strided_slice %31 {offsets = [0, 0], sizes = [64, 2], strides = [1, 1]} : vector<64x36xf32> to vector<64x2xf32>
    %36 = vector.shape_cast %35 : vector<64x2xf32> to vector<4x16x2xf32>
    %37 = vector.extract_strided_slice %31 {offsets = [0, 12], sizes = [64, 2], strides = [1, 1]} : vector<64x36xf32> to vector<64x2xf32>
    %38 = vector.shape_cast %37 : vector<64x2xf32> to vector<4x16x2xf32>
    %39 = vector.extract_strided_slice %31 {offsets = [0, 24], sizes = [64, 2], strides = [1, 1]} : vector<64x36xf32> to vector<64x2xf32>
    %40 = vector.shape_cast %39 : vector<64x2xf32> to vector<4x16x2xf32>
    "tpu.trace_start"() <{level = 10 : i32, message = "wnd,wmd->wnm"}> : () -> ()
    %cst_20 = arith.constant dense<0.000000e+00> : vector<4x16x16xf32>
    %41 = tpu.matmul %36, %38, %cst_20 {dimension_numbers = #tpu.dot_dimension_numbers<[2], [2], [1], [1], [0, 0, 0, 1, 1, 1], [0], [0]>} : vector<4x16x2xf32>, vector<4x16x2xf32>, vector<4x16x16xf32> -> vector<4x16x16xf32>
    "tpu.trace_stop"() : () -> ()
    %cst_21 = arith.constant 0.707106769 : f32
    %42 = vector.broadcast %cst_21 : f32 to vector<4x16x16xf32>
    %43 = arith.mulf %41, %42 : vector<4x16x16xf32>
    %44 = vector.extract_strided_slice %33 {offsets = [0, 0, 0, 0], sizes = [1, 1, 16, 16], strides = [1, 1, 1, 1]} : vector<6x1x16x16xf32> to vector<1x1x16x16xf32>
    %45 = vector.shape_cast %44 : vector<1x1x16x16xf32> to vector<1x16x16xf32>
    %46 = vector.broadcast %45 : vector<1x16x16xf32> to vector<4x16x16xf32>
    %47 = arith.addf %43, %46 : vector<4x16x16xf32>
    %cst_22 = arith.constant dense<0xFF800000> : vector<4x16xf32>
    %48 = vector.multi_reduction <maximumf>, %47, %cst_22 [2] : vector<4x16x16xf32> to vector<4x16xf32>
    %49 = vector.shape_cast %48 : vector<4x16xf32> to vector<4x16x1xf32>
    %50 = vector.broadcast %49 : vector<4x16x1xf32> to vector<4x16x16xf32>
    %51 = arith.subf %47, %50 : vector<4x16x16xf32>
    %52 = math.exp %51 : vector<4x16x16xf32>
    %cst_23 = arith.constant dense<0.000000e+00> : vector<4x16xf32>
    %53 = vector.multi_reduction <add>, %52, %cst_23 [2] : vector<4x16x16xf32> to vector<4x16xf32>
    %54 = vector.shape_cast %53 : vector<4x16xf32> to vector<4x16x1xf32>
    %55 = tpu.reciprocal %54 {approx = true} : vector<4x16x1xf32> -> vector<4x16x1xf32>
    %56 = vector.broadcast %55 : vector<4x16x1xf32> to vector<4x16x16xf32>
    %57 = arith.mulf %52, %56 : vector<4x16x16xf32>
    "tpu.trace_start"() <{level = 10 : i32, message = "wnm,wmd->wnd"}> : () -> ()
    %cst_24 = arith.constant dense<0.000000e+00> : vector<4x16x2xf32>
    %58 = tpu.matmul %57, %40, %cst_24 {dimension_numbers = #tpu.dot_dimension_numbers<[2], [1], [1], [2], [0, 0, 0, 1, 1, 2], [0], [0]>} : vector<4x16x16xf32>, vector<4x16x2xf32>, vector<4x16x2xf32> -> vector<4x16x2xf32>
    "tpu.trace_stop"() : () -> ()
    %59 = vector.shape_cast %58 : vector<4x16x2xf32> to vector<64x2xf32>
    %60 = vector.extract_strided_slice %32 {offsets = [0, 0], sizes = [2, 12], strides = [1, 1]} : vector<12x12xf32> to vector<2x12xf32>
    %cst_25 = arith.constant dense<0.000000e+00> : vector<64x12xf32>
    %61 = tpu.matmul %59, %60, %cst_25 {dimension_numbers = #tpu.dot_dimension_numbers<[1], [0], [0], [1], [0, 0, 1, 1], [], []>} : vector<64x2xf32>, vector<2x12xf32>, vector<64x12xf32> -> vector<64x12xf32>
    %62 = arith.addf %34, %61 : vector<64x12xf32>
    %63 = vector.extract_strided_slice %31 {offsets = [0, 2], sizes = [64, 2], strides = [1, 1]} : vector<64x36xf32> to vector<64x2xf32>
    %64 = vector.shape_cast %63 : vector<64x2xf32> to vector<4x16x2xf32>
    %65 = vector.extract_strided_slice %31 {offsets = [0, 14], sizes = [64, 2], strides = [1, 1]} : vector<64x36xf32> to vector<64x2xf32>
    %66 = vector.shape_cast %65 : vector<64x2xf32> to vector<4x16x2xf32>
    %67 = vector.extract_strided_slice %31 {offsets = [0, 26], sizes = [64, 2], strides = [1, 1]} : vector<64x36xf32> to vector<64x2xf32>
    %68 = vector.shape_cast %67 : vector<64x2xf32> to vector<4x16x2xf32>
    "tpu.trace_start"() <{level = 10 : i32, message = "wnd,wmd->wnm"}> : () -> ()
    %cst_26 = arith.constant dense<0.000000e+00> : vector<4x16x16xf32>
    %69 = tpu.matmul %64, %66, %cst_26 {dimension_numbers = #tpu.dot_dimension_numbers<[2], [2], [1], [1], [0, 0, 0, 1, 1, 1], [0], [0]>} : vector<4x16x2xf32>, vector<4x16x2xf32>, vector<4x16x16xf32> -> vector<4x16x16xf32>
    "tpu.trace_stop"() : () -> ()
    %cst_27 = arith.constant 0.707106769 : f32
    %70 = vector.broadcast %cst_27 : f32 to vector<4x16x16xf32>
    %71 = arith.mulf %69, %70 : vector<4x16x16xf32>
    %72 = vector.extract_strided_slice %33 {offsets = [1, 0, 0, 0], sizes = [1, 1, 16, 16], strides = [1, 1, 1, 1]} : vector<6x1x16x16xf32> to vector<1x1x16x16xf32>
    %73 = vector.shape_cast %72 : vector<1x1x16x16xf32> to vector<1x16x16xf32>
    %74 = vector.broadcast %73 : vector<1x16x16xf32> to vector<4x16x16xf32>
    %75 = arith.addf %71, %74 : vector<4x16x16xf32>
    %cst_28 = arith.constant dense<0xFF800000> : vector<4x16xf32>
    %76 = vector.multi_reduction <maximumf>, %75, %cst_28 [2] : vector<4x16x16xf32> to vector<4x16xf32>
    %77 = vector.shape_cast %76 : vector<4x16xf32> to vector<4x16x1xf32>
    %78 = vector.broadcast %77 : vector<4x16x1xf32> to vector<4x16x16xf32>
    %79 = arith.subf %75, %78 : vector<4x16x16xf32>
    %80 = math.exp %79 : vector<4x16x16xf32>
    %cst_29 = arith.constant dense<0.000000e+00> : vector<4x16xf32>
    %81 = vector.multi_reduction <add>, %80, %cst_29 [2] : vector<4x16x16xf32> to vector<4x16xf32>
    %82 = vector.shape_cast %81 : vector<4x16xf32> to vector<4x16x1xf32>
    %83 = tpu.reciprocal %82 {approx = true} : vector<4x16x1xf32> -> vector<4x16x1xf32>
    %84 = vector.broadcast %83 : vector<4x16x1xf32> to vector<4x16x16xf32>
    %85 = arith.mulf %80, %84 : vector<4x16x16xf32>
    "tpu.trace_start"() <{level = 10 : i32, message = "wnm,wmd->wnd"}> : () -> ()
    %cst_30 = arith.constant dense<0.000000e+00> : vector<4x16x2xf32>
    %86 = tpu.matmul %85, %68, %cst_30 {dimension_numbers = #tpu.dot_dimension_numbers<[2], [1], [1], [2], [0, 0, 0, 1, 1, 2], [0], [0]>} : vector<4x16x16xf32>, vector<4x16x2xf32>, vector<4x16x2xf32> -> vector<4x16x2xf32>
    "tpu.trace_stop"() : () -> ()
    %87 = vector.shape_cast %86 : vector<4x16x2xf32> to vector<64x2xf32>
    %88 = vector.extract_strided_slice %32 {offsets = [2, 0], sizes = [2, 12], strides = [1, 1]} : vector<12x12xf32> to vector<2x12xf32>
    %cst_31 = arith.constant dense<0.000000e+00> : vector<64x12xf32>
    %89 = tpu.matmul %87, %88, %cst_31 {dimension_numbers = #tpu.dot_dimension_numbers<[1], [0], [0], [1], [0, 0, 1, 1], [], []>} : vector<64x2xf32>, vector<2x12xf32>, vector<64x12xf32> -> vector<64x12xf32>
    %90 = arith.addf %62, %89 : vector<64x12xf32>
    %91 = vector.extract_strided_slice %31 {offsets = [0, 4], sizes = [64, 2], strides = [1, 1]} : vector<64x36xf32> to vector<64x2xf32>
    %92 = vector.shape_cast %91 : vector<64x2xf32> to vector<4x16x2xf32>
    %93 = vector.extract_strided_slice %31 {offsets = [0, 16], sizes = [64, 2], strides = [1, 1]} : vector<64x36xf32> to vector<64x2xf32>
    %94 = vector.shape_cast %93 : vector<64x2xf32> to vector<4x16x2xf32>
    %95 = vector.extract_strided_slice %31 {offsets = [0, 28], sizes = [64, 2], strides = [1, 1]} : vector<64x36xf32> to vector<64x2xf32>
    %96 = vector.shape_cast %95 : vector<64x2xf32> to vector<4x16x2xf32>
    "tpu.trace_start"() <{level = 10 : i32, message = "wnd,wmd->wnm"}> : () -> ()
    %cst_32 = arith.constant dense<0.000000e+00> : vector<4x16x16xf32>
    %97 = tpu.matmul %92, %94, %cst_32 {dimension_numbers = #tpu.dot_dimension_numbers<[2], [2], [1], [1], [0, 0, 0, 1, 1, 1], [0], [0]>} : vector<4x16x2xf32>, vector<4x16x2xf32>, vector<4x16x16xf32> -> vector<4x16x16xf32>
    "tpu.trace_stop"() : () -> ()
    %cst_33 = arith.constant 0.707106769 : f32
    %98 = vector.broadcast %cst_33 : f32 to vector<4x16x16xf32>
    %99 = arith.mulf %97, %98 : vector<4x16x16xf32>
    %100 = vector.extract_strided_slice %33 {offsets = [2, 0, 0, 0], sizes = [1, 1, 16, 16], strides = [1, 1, 1, 1]} : vector<6x1x16x16xf32> to vector<1x1x16x16xf32>
    %101 = vector.shape_cast %100 : vector<1x1x16x16xf32> to vector<1x16x16xf32>
    %102 = vector.broadcast %101 : vector<1x16x16xf32> to vector<4x16x16xf32>
    %103 = arith.addf %99, %102 : vector<4x16x16xf32>
    %cst_34 = arith.constant dense<0xFF800000> : vector<4x16xf32>
    %104 = vector.multi_reduction <maximumf>, %103, %cst_34 [2] : vector<4x16x16xf32> to vector<4x16xf32>
    %105 = vector.shape_cast %104 : vector<4x16xf32> to vector<4x16x1xf32>
    %106 = vector.broadcast %105 : vector<4x16x1xf32> to vector<4x16x16xf32>
    %107 = arith.subf %103, %106 : vector<4x16x16xf32>
    %108 = math.exp %107 : vector<4x16x16xf32>
    %cst_35 = arith.constant dense<0.000000e+00> : vector<4x16xf32>
    %109 = vector.multi_reduction <add>, %108, %cst_35 [2] : vector<4x16x16xf32> to vector<4x16xf32>
    %110 = vector.shape_cast %109 : vector<4x16xf32> to vector<4x16x1xf32>
    %111 = tpu.reciprocal %110 {approx = true} : vector<4x16x1xf32> -> vector<4x16x1xf32>
    %112 = vector.broadcast %111 : vector<4x16x1xf32> to vector<4x16x16xf32>
    %113 = arith.mulf %108, %112 : vector<4x16x16xf32>
    "tpu.trace_start"() <{level = 10 : i32, message = "wnm,wmd->wnd"}> : () -> ()
    %cst_36 = arith.constant dense<0.000000e+00> : vector<4x16x2xf32>
    %114 = tpu.matmul %113, %96, %cst_36 {dimension_numbers = #tpu.dot_dimension_numbers<[2], [1], [1], [2], [0, 0, 0, 1, 1, 2], [0], [0]>} : vector<4x16x16xf32>, vector<4x16x2xf32>, vector<4x16x2xf32> -> vector<4x16x2xf32>
    "tpu.trace_stop"() : () -> ()
    %115 = vector.shape_cast %114 : vector<4x16x2xf32> to vector<64x2xf32>
    %116 = vector.extract_strided_slice %32 {offsets = [4, 0], sizes = [2, 12], strides = [1, 1]} : vector<12x12xf32> to vector<2x12xf32>
    %cst_37 = arith.constant dense<0.000000e+00> : vector<64x12xf32>
    %117 = tpu.matmul %115, %116, %cst_37 {dimension_numbers = #tpu.dot_dimension_numbers<[1], [0], [0], [1], [0, 0, 1, 1], [], []>} : vector<64x2xf32>, vector<2x12xf32>, vector<64x12xf32> -> vector<64x12xf32>
    %118 = arith.addf %90, %117 : vector<64x12xf32>
    %119 = vector.extract_strided_slice %31 {offsets = [0, 6], sizes = [64, 2], strides = [1, 1]} : vector<64x36xf32> to vector<64x2xf32>
    %120 = vector.shape_cast %119 : vector<64x2xf32> to vector<4x16x2xf32>
    %121 = vector.extract_strided_slice %31 {offsets = [0, 18], sizes = [64, 2], strides = [1, 1]} : vector<64x36xf32> to vector<64x2xf32>
    %122 = vector.shape_cast %121 : vector<64x2xf32> to vector<4x16x2xf32>
    %123 = vector.extract_strided_slice %31 {offsets = [0, 30], sizes = [64, 2], strides = [1, 1]} : vector<64x36xf32> to vector<64x2xf32>
    %124 = vector.shape_cast %123 : vector<64x2xf32> to vector<4x16x2xf32>
    "tpu.trace_start"() <{level = 10 : i32, message = "wnd,wmd->wnm"}> : () -> ()
    %cst_38 = arith.constant dense<0.000000e+00> : vector<4x16x16xf32>
    %125 = tpu.matmul %120, %122, %cst_38 {dimension_numbers = #tpu.dot_dimension_numbers<[2], [2], [1], [1], [0, 0, 0, 1, 1, 1], [0], [0]>} : vector<4x16x2xf32>, vector<4x16x2xf32>, vector<4x16x16xf32> -> vector<4x16x16xf32>
    "tpu.trace_stop"() : () -> ()
    %cst_39 = arith.constant 0.707106769 : f32
    %126 = vector.broadcast %cst_39 : f32 to vector<4x16x16xf32>
    %127 = arith.mulf %125, %126 : vector<4x16x16xf32>
    %128 = vector.extract_strided_slice %33 {offsets = [3, 0, 0, 0], sizes = [1, 1, 16, 16], strides = [1, 1, 1, 1]} : vector<6x1x16x16xf32> to vector<1x1x16x16xf32>
    %129 = vector.shape_cast %128 : vector<1x1x16x16xf32> to vector<1x16x16xf32>
    %130 = vector.broadcast %129 : vector<1x16x16xf32> to vector<4x16x16xf32>
    %131 = arith.addf %127, %130 : vector<4x16x16xf32>
    %cst_40 = arith.constant dense<0xFF800000> : vector<4x16xf32>
    %132 = vector.multi_reduction <maximumf>, %131, %cst_40 [2] : vector<4x16x16xf32> to vector<4x16xf32>
    %133 = vector.shape_cast %132 : vector<4x16xf32> to vector<4x16x1xf32>
    %134 = vector.broadcast %133 : vector<4x16x1xf32> to vector<4x16x16xf32>
    %135 = arith.subf %131, %134 : vector<4x16x16xf32>
    %136 = math.exp %135 : vector<4x16x16xf32>
    %cst_41 = arith.constant dense<0.000000e+00> : vector<4x16xf32>
    %137 = vector.multi_reduction <add>, %136, %cst_41 [2] : vector<4x16x16xf32> to vector<4x16xf32>
    %138 = vector.shape_cast %137 : vector<4x16xf32> to vector<4x16x1xf32>
    %139 = tpu.reciprocal %138 {approx = true} : vector<4x16x1xf32> -> vector<4x16x1xf32>
    %140 = vector.broadcast %139 : vector<4x16x1xf32> to vector<4x16x16xf32>
    %141 = arith.mulf %136, %140 : vector<4x16x16xf32>
    "tpu.trace_start"() <{level = 10 : i32, message = "wnm,wmd->wnd"}> : () -> ()
    %cst_42 = arith.constant dense<0.000000e+00> : vector<4x16x2xf32>
    %142 = tpu.matmul %141, %124, %cst_42 {dimension_numbers = #tpu.dot_dimension_numbers<[2], [1], [1], [2], [0, 0, 0, 1, 1, 2], [0], [0]>} : vector<4x16x16xf32>, vector<4x16x2xf32>, vector<4x16x2xf32> -> vector<4x16x2xf32>
    "tpu.trace_stop"() : () -> ()
    %143 = vector.shape_cast %142 : vector<4x16x2xf32> to vector<64x2xf32>
    %144 = vector.extract_strided_slice %32 {offsets = [6, 0], sizes = [2, 12], strides = [1, 1]} : vector<12x12xf32> to vector<2x12xf32>
    %cst_43 = arith.constant dense<0.000000e+00> : vector<64x12xf32>
    %145 = tpu.matmul %143, %144, %cst_43 {dimension_numbers = #tpu.dot_dimension_numbers<[1], [0], [0], [1], [0, 0, 1, 1], [], []>} : vector<64x2xf32>, vector<2x12xf32>, vector<64x12xf32> -> vector<64x12xf32>
    %146 = arith.addf %118, %145 : vector<64x12xf32>
    %147 = vector.extract_strided_slice %31 {offsets = [0, 8], sizes = [64, 2], strides = [1, 1]} : vector<64x36xf32> to vector<64x2xf32>
    %148 = vector.shape_cast %147 : vector<64x2xf32> to vector<4x16x2xf32>
    %149 = vector.extract_strided_slice %31 {offsets = [0, 20], sizes = [64, 2], strides = [1, 1]} : vector<64x36xf32> to vector<64x2xf32>
    %150 = vector.shape_cast %149 : vector<64x2xf32> to vector<4x16x2xf32>
    %151 = vector.extract_strided_slice %31 {offsets = [0, 32], sizes = [64, 2], strides = [1, 1]} : vector<64x36xf32> to vector<64x2xf32>
    %152 = vector.shape_cast %151 : vector<64x2xf32> to vector<4x16x2xf32>
    "tpu.trace_start"() <{level = 10 : i32, message = "wnd,wmd->wnm"}> : () -> ()
    %cst_44 = arith.constant dense<0.000000e+00> : vector<4x16x16xf32>
    %153 = tpu.matmul %148, %150, %cst_44 {dimension_numbers = #tpu.dot_dimension_numbers<[2], [2], [1], [1], [0, 0, 0, 1, 1, 1], [0], [0]>} : vector<4x16x2xf32>, vector<4x16x2xf32>, vector<4x16x16xf32> -> vector<4x16x16xf32>
    "tpu.trace_stop"() : () -> ()
    %cst_45 = arith.constant 0.707106769 : f32
    %154 = vector.broadcast %cst_45 : f32 to vector<4x16x16xf32>
    %155 = arith.mulf %153, %154 : vector<4x16x16xf32>
    %156 = vector.extract_strided_slice %33 {offsets = [4, 0, 0, 0], sizes = [1, 1, 16, 16], strides = [1, 1, 1, 1]} : vector<6x1x16x16xf32> to vector<1x1x16x16xf32>
    %157 = vector.shape_cast %156 : vector<1x1x16x16xf32> to vector<1x16x16xf32>
    %158 = vector.broadcast %157 : vector<1x16x16xf32> to vector<4x16x16xf32>
    %159 = arith.addf %155, %158 : vector<4x16x16xf32>
    %cst_46 = arith.constant dense<0xFF800000> : vector<4x16xf32>
    %160 = vector.multi_reduction <maximumf>, %159, %cst_46 [2] : vector<4x16x16xf32> to vector<4x16xf32>
    %161 = vector.shape_cast %160 : vector<4x16xf32> to vector<4x16x1xf32>
    %162 = vector.broadcast %161 : vector<4x16x1xf32> to vector<4x16x16xf32>
    %163 = arith.subf %159, %162 : vector<4x16x16xf32>
    %164 = math.exp %163 : vector<4x16x16xf32>
    %cst_47 = arith.constant dense<0.000000e+00> : vector<4x16xf32>
    %165 = vector.multi_reduction <add>, %164, %cst_47 [2] : vector<4x16x16xf32> to vector<4x16xf32>
    %166 = vector.shape_cast %165 : vector<4x16xf32> to vector<4x16x1xf32>
    %167 = tpu.reciprocal %166 {approx = true} : vector<4x16x1xf32> -> vector<4x16x1xf32>
    %168 = vector.broadcast %167 : vector<4x16x1xf32> to vector<4x16x16xf32>
    %169 = arith.mulf %164, %168 : vector<4x16x16xf32>
    "tpu.trace_start"() <{level = 10 : i32, message = "wnm,wmd->wnd"}> : () -> ()
    %cst_48 = arith.constant dense<0.000000e+00> : vector<4x16x2xf32>
    %170 = tpu.matmul %169, %152, %cst_48 {dimension_numbers = #tpu.dot_dimension_numbers<[2], [1], [1], [2], [0, 0, 0, 1, 1, 2], [0], [0]>} : vector<4x16x16xf32>, vector<4x16x2xf32>, vector<4x16x2xf32> -> vector<4x16x2xf32>
    "tpu.trace_stop"() : () -> ()
    %171 = vector.shape_cast %170 : vector<4x16x2xf32> to vector<64x2xf32>
    %172 = vector.extract_strided_slice %32 {offsets = [8, 0], sizes = [2, 12], strides = [1, 1]} : vector<12x12xf32> to vector<2x12xf32>
    %cst_49 = arith.constant dense<0.000000e+00> : vector<64x12xf32>
    %173 = tpu.matmul %171, %172, %cst_49 {dimension_numbers = #tpu.dot_dimension_numbers<[1], [0], [0], [1], [0, 0, 1, 1], [], []>} : vector<64x2xf32>, vector<2x12xf32>, vector<64x12xf32> -> vector<64x12xf32>
    %174 = arith.addf %146, %173 : vector<64x12xf32>
    %175 = vector.extract_strided_slice %31 {offsets = [0, 10], sizes = [64, 2], strides = [1, 1]} : vector<64x36xf32> to vector<64x2xf32>
    %176 = vector.shape_cast %175 : vector<64x2xf32> to vector<4x16x2xf32>
    %177 = vector.extract_strided_slice %31 {offsets = [0, 22], sizes = [64, 2], strides = [1, 1]} : vector<64x36xf32> to vector<64x2xf32>
    %178 = vector.shape_cast %177 : vector<64x2xf32> to vector<4x16x2xf32>
    %179 = vector.extract_strided_slice %31 {offsets = [0, 34], sizes = [64, 2], strides = [1, 1]} : vector<64x36xf32> to vector<64x2xf32>
    %180 = vector.shape_cast %179 : vector<64x2xf32> to vector<4x16x2xf32>
    "tpu.trace_start"() <{level = 10 : i32, message = "wnd,wmd->wnm"}> : () -> ()
    %cst_50 = arith.constant dense<0.000000e+00> : vector<4x16x16xf32>
    %181 = tpu.matmul %176, %178, %cst_50 {dimension_numbers = #tpu.dot_dimension_numbers<[2], [2], [1], [1], [0, 0, 0, 1, 1, 1], [0], [0]>} : vector<4x16x2xf32>, vector<4x16x2xf32>, vector<4x16x16xf32> -> vector<4x16x16xf32>
    "tpu.trace_stop"() : () -> ()
    %cst_51 = arith.constant 0.707106769 : f32
    %182 = vector.broadcast %cst_51 : f32 to vector<4x16x16xf32>
    %183 = arith.mulf %181, %182 : vector<4x16x16xf32>
    %184 = vector.extract_strided_slice %33 {offsets = [5, 0, 0, 0], sizes = [1, 1, 16, 16], strides = [1, 1, 1, 1]} : vector<6x1x16x16xf32> to vector<1x1x16x16xf32>
    %185 = vector.shape_cast %184 : vector<1x1x16x16xf32> to vector<1x16x16xf32>
    %186 = vector.broadcast %185 : vector<1x16x16xf32> to vector<4x16x16xf32>
    %187 = arith.addf %183, %186 : vector<4x16x16xf32>
    %cst_52 = arith.constant dense<0xFF800000> : vector<4x16xf32>
    %188 = vector.multi_reduction <maximumf>, %187, %cst_52 [2] : vector<4x16x16xf32> to vector<4x16xf32>
    %189 = vector.shape_cast %188 : vector<4x16xf32> to vector<4x16x1xf32>
    %190 = vector.broadcast %189 : vector<4x16x1xf32> to vector<4x16x16xf32>
    %191 = arith.subf %187, %190 : vector<4x16x16xf32>
    %192 = math.exp %191 : vector<4x16x16xf32>
    %cst_53 = arith.constant dense<0.000000e+00> : vector<4x16xf32>
    %193 = vector.multi_reduction <add>, %192, %cst_53 [2] : vector<4x16x16xf32> to vector<4x16xf32>
    %194 = vector.shape_cast %193 : vector<4x16xf32> to vector<4x16x1xf32>
    %195 = tpu.reciprocal %194 {approx = true} : vector<4x16x1xf32> -> vector<4x16x1xf32>
    %196 = vector.broadcast %195 : vector<4x16x1xf32> to vector<4x16x16xf32>
    %197 = arith.mulf %192, %196 : vector<4x16x16xf32>
    "tpu.trace_start"() <{level = 10 : i32, message = "wnm,wmd->wnd"}> : () -> ()
    %cst_54 = arith.constant dense<0.000000e+00> : vector<4x16x2xf32>
    %198 = tpu.matmul %197, %180, %cst_54 {dimension_numbers = #tpu.dot_dimension_numbers<[2], [1], [1], [2], [0, 0, 0, 1, 1, 2], [0], [0]>} : vector<4x16x16xf32>, vector<4x16x2xf32>, vector<4x16x2xf32> -> vector<4x16x2xf32>
    "tpu.trace_stop"() : () -> ()
    %199 = vector.shape_cast %198 : vector<4x16x2xf32> to vector<64x2xf32>
    %200 = vector.extract_strided_slice %32 {offsets = [10, 0], sizes = [2, 12], strides = [1, 1]} : vector<12x12xf32> to vector<2x12xf32>
    %cst_55 = arith.constant dense<0.000000e+00> : vector<64x12xf32>
    %201 = tpu.matmul %199, %200, %cst_55 {dimension_numbers = #tpu.dot_dimension_numbers<[1], [0], [0], [1], [0, 0, 1, 1], [], []>} : vector<64x2xf32>, vector<2x12xf32>, vector<64x12xf32> -> vector<64x12xf32>
    %202 = arith.addf %174, %201 : vector<64x12xf32>
    %c0_56 = arith.constant 0 : index
    %c0_57 = arith.constant 0 : index
    %203 = vector.load %arg7[%c0_56, %c0_57] : memref<1x12xf32, #tpu.memory_space<vmem>>, vector<1x12xf32>
    %204 = vector.shape_cast %203 : vector<1x12xf32> to vector<12xf32>
    %205 = vector.shape_cast %204 : vector<12xf32> to vector<1x12xf32>
    %206 = vector.broadcast %205 : vector<1x12xf32> to vector<64x12xf32>
    %207 = arith.addf %202, %206 : vector<64x12xf32>
    %208 = arith.addf %207, %1 : vector<64x12xf32>
    %c0_58 = arith.constant 0 : index
    %c0_59 = arith.constant 0 : index
    %209 = vector.load %arg8[%c0_58, %c0_59] : memref<1x12xf32, #tpu.memory_space<vmem>>, vector<1x12xf32>
    %210 = vector.shape_cast %209 : vector<1x12xf32> to vector<12xf32>
    %c0_60 = arith.constant 0 : index
    %c0_61 = arith.constant 0 : index
    %211 = vector.load %arg9[%c0_60, %c0_61] : memref<1x12xf32, #tpu.memory_space<vmem>>, vector<1x12xf32>
    %212 = vector.shape_cast %211 : vector<1x12xf32> to vector<12xf32>
    %cst_62 = arith.constant dense<0.000000e+00> : vector<64xf32>
    %213 = vector.multi_reduction <add>, %208, %cst_62 [1] : vector<64x12xf32> to vector<64xf32>
    %214 = vector.shape_cast %213 : vector<64xf32> to vector<64x1xf32>
    %cst_63 = arith.constant 1.200000e+01 : f32
    %215 = vector.broadcast %cst_63 : f32 to vector<64x1xf32>
    %216 = arith.divf %214, %215 : vector<64x1xf32>
    %217 = vector.broadcast %216 : vector<64x1xf32> to vector<64x12xf32>
    %218 = arith.subf %208, %217 : vector<64x12xf32>
    %219 = arith.mulf %218, %218 : vector<64x12xf32>
    %cst_64 = arith.constant dense<0.000000e+00> : vector<64xf32>
    %220 = vector.multi_reduction <add>, %219, %cst_64 [1] : vector<64x12xf32> to vector<64xf32>
    %221 = vector.shape_cast %220 : vector<64xf32> to vector<64x1xf32>
    %cst_65 = arith.constant 1.200000e+01 : f32
    %222 = vector.broadcast %cst_65 : f32 to vector<64x1xf32>
    %223 = arith.divf %221, %222 : vector<64x1xf32>
    %224 = vector.broadcast %216 : vector<64x1xf32> to vector<64x12xf32>
    %225 = arith.subf %208, %224 : vector<64x12xf32>
    %cst_66 = arith.constant 9.99999974E-6 : f32
    %226 = vector.broadcast %cst_66 : f32 to vector<64x1xf32>
    %227 = arith.addf %223, %226 : vector<64x1xf32>
    %228 = math.rsqrt %227 : vector<64x1xf32>
    %229 = vector.broadcast %228 : vector<64x1xf32> to vector<64x12xf32>
    %230 = arith.mulf %225, %229 : vector<64x12xf32>
    %231 = vector.shape_cast %210 : vector<12xf32> to vector<1x12xf32>
    %232 = vector.broadcast %231 : vector<1x12xf32> to vector<64x12xf32>
    %233 = arith.mulf %230, %232 : vector<64x12xf32>
    %234 = vector.shape_cast %212 : vector<12xf32> to vector<1x12xf32>
    %235 = vector.broadcast %234 : vector<1x12xf32> to vector<64x12xf32>
    %236 = arith.addf %233, %235 : vector<64x12xf32>
    %c0_67 = arith.constant 0 : index
    %c0_68 = arith.constant 0 : index
    %237 = vector.load %arg10[%c0_67, %c0_68] : memref<12x24xf32, #tpu.memory_space<vmem>>, vector<12x24xf32>
    %cst_69 = arith.constant dense<0.000000e+00> : vector<64x24xf32>
    %238 = tpu.matmul %236, %237, %cst_69 {dimension_numbers = #tpu.dot_dimension_numbers<[1], [0], [0], [1], [0, 0, 1, 1], [], []>} : vector<64x12xf32>, vector<12x24xf32>, vector<64x24xf32> -> vector<64x24xf32>
    %c0_70 = arith.constant 0 : index
    %c0_71 = arith.constant 0 : index
    %239 = vector.load %arg11[%c0_70, %c0_71] : memref<1x24xf32, #tpu.memory_space<vmem>>, vector<1x24xf32>
    %240 = vector.shape_cast %239 : vector<1x24xf32> to vector<24xf32>
    %241 = vector.shape_cast %240 : vector<24xf32> to vector<1x24xf32>
    %242 = vector.broadcast %241 : vector<1x24xf32> to vector<64x24xf32>
    %243 = arith.addf %238, %242 : vector<64x24xf32>
    %cst_72 = arith.constant 5.000000e-01 : f32
    %244 = vector.broadcast %cst_72 : f32 to vector<64x24xf32>
    %245 = arith.mulf %244, %243 : vector<64x24xf32>
    %cst_73 = arith.constant 0.707106769 : f32
    %246 = vector.broadcast %cst_73 : f32 to vector<64x24xf32>
    %247 = arith.mulf %243, %246 : vector<64x24xf32>
    %248 = math.erf %247 : vector<64x24xf32>
    %cst_74 = arith.constant 1.000000e+00 : f32
    %249 = vector.broadcast %cst_74 : f32 to vector<64x24xf32>
    %250 = arith.addf %249, %248 : vector<64x24xf32>
    %251 = arith.mulf %245, %250 : vector<64x24xf32>
    %c0_75 = arith.constant 0 : index
    %c0_76 = arith.constant 0 : index
    %252 = vector.load %arg12[%c0_75, %c0_76] : memref<24x12xf32, #tpu.memory_space<vmem>>, vector<24x12xf32>
    %cst_77 = arith.constant dense<0.000000e+00> : vector<64x12xf32>
    %253 = tpu.matmul %251, %252, %cst_77 {dimension_numbers = #tpu.dot_dimension_numbers<[1], [0], [0], [1], [0, 0, 1, 1], [], []>} : vector<64x24xf32>, vector<24x12xf32>, vector<64x12xf32> -> vector<64x12xf32>
    %c0_78 = arith.constant 0 : index
    %c0_79 = arith.constant 0 : index
    %254 = vector.load %arg13[%c0_78, %c0_79] : memref<1x12xf32, #tpu.memory_space<vmem>>, vector<1x12xf32>
    %255 = vector.shape_cast %254 : vector<1x12xf32> to vector<12xf32>
    %256 = vector.shape_cast %255 : vector<12xf32> to vector<1x12xf32>
    %257 = vector.broadcast %256 : vector<1x12xf32> to vector<64x12xf32>
    %258 = arith.addf %253, %257 : vector<64x12xf32>
    %259 = arith.addf %258, %208 : vector<64x12xf32>
    %260 = vector.shape_cast %259 : vector<64x12xf32> to vector<4x16x12xf32>
    %c0_80 = arith.constant 0 : index
    %c0_81 = arith.constant 0 : index
    %c0_82 = arith.constant 0 : index
    %261 = vector.load %arg14[%c0_80, %c0_81, %c0_82] : memref<4x16x12xf32, #tpu.memory_space<vmem>>, vector<4x16x12xf32>
    tpu.vector_store %arg14[%c0_80, %c0_81, %c0_82], %260 {strides = array<i32>} : memref<4x16x12xf32, #tpu.memory_space<vmem>>, vector<4x16x12xf32>,
    return
  }
  func.func @transform_0(%arg0: i32) -> (i32, i32, i32) {
    %c0_i32 = arith.constant 0 : i32
    %c0_i32_0 = arith.constant 0 : i32
    %c0_i32_1 = arith.constant 0 : i32
    return %arg0, %c0_i32, %c0_i32_0 : i32, i32, i32
  }
  func.func @transform_1(%arg0: i32) -> (i32, i32, i32, i32) {
    %c0_i32 = arith.constant 0 : i32
    %c0_i32_0 = arith.constant 0 : i32
    %c0_i32_1 = arith.constant 0 : i32
    %c0_i32_2 = arith.constant 0 : i32
    %c0_i32_3 = arith.constant 0 : i32
    return %c0_i32, %c0_i32_0, %c0_i32_1, %c0_i32_2 : i32, i32, i32, i32
  }
  func.func @transform_2(%arg0: i32) -> (i32, i32) {
    %c0_i32 = arith.constant 0 : i32
    %c0_i32_0 = arith.constant 0 : i32
    %c0_i32_1 = arith.constant 0 : i32
    return %c0_i32, %c0_i32_0 : i32, i32
  }
  func.func @transform_3(%arg0: i32) -> (i32, i32) {
    %c0_i32 = arith.constant 0 : i32
    %c0_i32_0 = arith.constant 0 : i32
    %c0_i32_1 = arith.constant 0 : i32
    return %c0_i32, %c0_i32_0 : i32, i32
  }
  func.func @transform_4(%arg0: i32) -> (i32, i32) {
    %c0_i32 = arith.constant 0 : i32
    %c0_i32_0 = arith.constant 0 : i32
    %c0_i32_1 = arith.constant 0 : i32
    return %c0_i32, %c0_i32_0 : i32, i32
  }
  func.func @transform_5(%arg0: i32) -> (i32, i32) {
    %c0_i32 = arith.constant 0 : i32
    %c0_i32_0 = arith.constant 0 : i32
    %c0_i32_1 = arith.constant 0 : i32
    return %c0_i32, %c0_i32_0 : i32, i32
  }
  func.func @transform_6(%arg0: i32) -> (i32, i32) {
    %c0_i32 = arith.constant 0 : i32
    %c0_i32_0 = arith.constant 0 : i32
    %c0_i32_1 = arith.constant 0 : i32
    return %c0_i32, %c0_i32_0 : i32, i32
  }
  func.func @transform_7(%arg0: i32) -> (i32, i32) {
    %c0_i32 = arith.constant 0 : i32
    %c0_i32_0 = arith.constant 0 : i32
    %c0_i32_1 = arith.constant 0 : i32
    return %c0_i32, %c0_i32_0 : i32, i32
  }
  func.func @transform_8(%arg0: i32) -> (i32, i32) {
    %c0_i32 = arith.constant 0 : i32
    %c0_i32_0 = arith.constant 0 : i32
    %c0_i32_1 = arith.constant 0 : i32
    return %c0_i32, %c0_i32_0 : i32, i32
  }
  func.func @transform_9(%arg0: i32) -> (i32, i32) {
    %c0_i32 = arith.constant 0 : i32
    %c0_i32_0 = arith.constant 0 : i32
    %c0_i32_1 = arith.constant 0 : i32
    return %c0_i32, %c0_i32_0 : i32, i32
  }
  func.func @transform_10(%arg0: i32) -> (i32, i32) {
    %c0_i32 = arith.constant 0 : i32
    %c0_i32_0 = arith.constant 0 : i32
    %c0_i32_1 = arith.constant 0 : i32
    return %c0_i32, %c0_i32_0 : i32, i32
  }
  func.func @transform_11(%arg0: i32) -> (i32, i32) {
    %c0_i32 = arith.constant 0 : i32
    %c0_i32_0 = arith.constant 0 : i32
    %c0_i32_1 = arith.constant 0 : i32
    return %c0_i32, %c0_i32_0 : i32, i32
  }
  func.func @transform_12(%arg0: i32) -> (i32, i32) {
    %c0_i32 = arith.constant 0 : i32
    %c0_i32_0 = arith.constant 0 : i32
    %c0_i32_1 = arith.constant 0 : i32
    return %c0_i32, %c0_i32_0 : i32, i32
  }
  func.func @transform_13(%arg0: i32) -> (i32, i32, i32) {
    %c0_i32 = arith.constant 0 : i32
    %c0_i32_0 = arith.constant 0 : i32
    %c0_i32_1 = arith.constant 0 : i32
    return %arg0, %c0_i32, %c0_i32_0 : i32, i32, i32
  }
}

module attributes {stable_mosaic.version = 11 : i64} {
  func.func @_stl_kernel(%arg0: i32, %arg1: memref<4x16x12xf32, #tpu.memory_space<vmem>>, %arg2: memref<6x4x16x16xf32, #tpu.memory_space<vmem>>, %arg3: memref<1x12xf32, #tpu.memory_space<vmem>>, %arg4: memref<1x12xf32, #tpu.memory_space<vmem>>, %arg5: memref<12x36xf32, #tpu.memory_space<vmem>>, %arg6: memref<12x12xf32, #tpu.memory_space<vmem>>, %arg7: memref<1x12xf32, #tpu.memory_space<vmem>>, %arg8: memref<1x12xf32, #tpu.memory_space<vmem>>, %arg9: memref<1x12xf32, #tpu.memory_space<vmem>>, %arg10: memref<12x24xf32, #tpu.memory_space<vmem>>, %arg11: memref<1x24xf32, #tpu.memory_space<vmem>>, %arg12: memref<24x12xf32, #tpu.memory_space<vmem>>, %arg13: memref<1x12xf32, #tpu.memory_space<vmem>>, %arg14: memref<4x16x12xf32, #tpu.memory_space<vmem>>) attributes {dimension_semantics = [#tpu.dimension_semantics<parallel>], iteration_bounds = array<i64: 2>, scalar_prefetch = 0 : i64, scratch_operands = 0 : i64, tpu.core_type = #tpu.core_type<tc>, window_params = [{transform_indices = @transform_0, window_bounds = array<i64: 4, 16, 12>}, {pipeline_mode = #tpu.pipeline_mode<synchronous>, transform_indices = @transform_1, window_bounds = array<i64: 6, 4, 16, 16>}, {pipeline_mode = #tpu.pipeline_mode<synchronous>, transform_indices = @transform_2, window_bounds = array<i64: 1, 12>}, {pipeline_mode = #tpu.pipeline_mode<synchronous>, transform_indices = @transform_3, window_bounds = array<i64: 1, 12>}, {pipeline_mode = #tpu.pipeline_mode<synchronous>, transform_indices = @transform_4, window_bounds = array<i64: 12, 36>}, {pipeline_mode = #tpu.pipeline_mode<synchronous>, transform_indices = @transform_5, window_bounds = array<i64: 12, 12>}, {pipeline_mode = #tpu.pipeline_mode<synchronous>, transform_indices = @transform_6, window_bounds = array<i64: 1, 12>}, {pipeline_mode = #tpu.pipeline_mode<synchronous>, transform_indices = @transform_7, window_bounds = array<i64: 1, 12>}, {pipeline_mode = #tpu.pipeline_mode<synchronous>, transform_indices = @transform_8, window_bounds = array<i64: 1, 12>}, {pipeline_mode = #tpu.pipeline_mode<synchronous>, transform_indices = @transform_9, window_bounds = array<i64: 12, 24>}, {pipeline_mode = #tpu.pipeline_mode<synchronous>, transform_indices = @transform_10, window_bounds = array<i64: 1, 24>}, {pipeline_mode = #tpu.pipeline_mode<synchronous>, transform_indices = @transform_11, window_bounds = array<i64: 24, 12>}, {pipeline_mode = #tpu.pipeline_mode<synchronous>, transform_indices = @transform_12, window_bounds = array<i64: 1, 12>}, {transform_indices = @transform_13, window_bounds = array<i64: 4, 16, 12>}]} {
    %c0 = arith.constant 0 : index
    %c0_0 = arith.constant 0 : index
    %c0_1 = arith.constant 0 : index
    %0 = vector.load %arg1[%c0, %c0_0, %c0_1] : memref<4x16x12xf32, #tpu.memory_space<vmem>>, vector<4x16x12xf32>
    %1 = vector.shape_cast %0 : vector<4x16x12xf32> to vector<64x12xf32>
    %c0_2 = arith.constant 0 : index
    %c0_3 = arith.constant 0 : index
    %2 = vector.load %arg3[%c0_2, %c0_3] : memref<1x12xf32, #tpu.memory_space<vmem>>, vector<1x12xf32>
    %3 = vector.shape_cast %2 : vector<1x12xf32> to vector<12xf32>
    %c0_4 = arith.constant 0 : index
    %c0_5 = arith.constant 0 : index
    %4 = vector.load %arg4[%c0_4, %c0_5] : memref<1x12xf32, #tpu.memory_space<vmem>>, vector<1x12xf32>
    %5 = vector.shape_cast %4 : vector<1x12xf32> to vector<12xf32>
    %cst = arith.constant dense<0.000000e+00> : vector<64xf32>
    %6 = vector.multi_reduction <add>, %1, %cst [1] : vector<64x12xf32> to vector<64xf32>
    %7 = vector.shape_cast %6 : vector<64xf32> to vector<64x1xf32>
    %cst_6 = arith.constant 1.200000e+01 : f32
    %8 = vector.broadcast %cst_6 : f32 to vector<64x1xf32>
    %9 = arith.divf %7, %8 : vector<64x1xf32>
    %10 = vector.broadcast %9 : vector<64x1xf32> to vector<64x12xf32>
    %11 = arith.subf %1, %10 : vector<64x12xf32>
    %12 = arith.mulf %11, %11 : vector<64x12xf32>
    %cst_7 = arith.constant dense<0.000000e+00> : vector<64xf32>
    %13 = vector.multi_reduction <add>, %12, %cst_7 [1] : vector<64x12xf32> to vector<64xf32>
    %14 = vector.shape_cast %13 : vector<64xf32> to vector<64x1xf32>
    %cst_8 = arith.constant 1.200000e+01 : f32
    %15 = vector.broadcast %cst_8 : f32 to vector<64x1xf32>
    %16 = arith.divf %14, %15 : vector<64x1xf32>
    %17 = vector.broadcast %9 : vector<64x1xf32> to vector<64x12xf32>
    %18 = arith.subf %1, %17 : vector<64x12xf32>
    %cst_9 = arith.constant 9.99999974E-6 : f32
    %19 = vector.broadcast %cst_9 : f32 to vector<64x1xf32>
    %20 = arith.addf %16, %19 : vector<64x1xf32>
    %21 = math.rsqrt %20 : vector<64x1xf32>
    %22 = vector.broadcast %21 : vector<64x1xf32> to vector<64x12xf32>
    %23 = arith.mulf %18, %22 : vector<64x12xf32>
    %24 = vector.shape_cast %3 : vector<12xf32> to vector<1x12xf32>
    %25 = vector.broadcast %24 : vector<1x12xf32> to vector<64x12xf32>
    %26 = arith.mulf %23, %25 : vector<64x12xf32>
    %27 = vector.shape_cast %5 : vector<12xf32> to vector<1x12xf32>
    %28 = vector.broadcast %27 : vector<1x12xf32> to vector<64x12xf32>
    %29 = arith.addf %26, %28 : vector<64x12xf32>
    %c0_10 = arith.constant 0 : index
    %c0_11 = arith.constant 0 : index
    %30 = vector.load %arg5[%c0_10, %c0_11] : memref<12x36xf32, #tpu.memory_space<vmem>>, vector<12x36xf32>
    %cst_12 = arith.constant dense<0.000000e+00> : vector<64x36xf32>
    %31 = tpu.matmul %29, %30, %cst_12 {dimension_numbers = #tpu.dot_dimension_numbers<[1], [0], [0], [1], [0, 0, 1, 1], [], []>} : vector<64x12xf32>, vector<12x36xf32>, vector<64x36xf32> -> vector<64x36xf32>
    %c0_13 = arith.constant 0 : index
    %c0_14 = arith.constant 0 : index
    %32 = vector.load %arg6[%c0_13, %c0_14] : memref<12x12xf32, #tpu.memory_space<vmem>>, vector<12x12xf32>
    %c0_15 = arith.constant 0 : index
    %c0_16 = arith.constant 0 : index
    %c0_17 = arith.constant 0 : index
    %c0_18 = arith.constant 0 : index
    %33 = vector.load %arg2[%c0_15, %c0_16, %c0_17, %c0_18] : memref<6x4x16x16xf32, #tpu.memory_space<vmem>>, vector<6x4x16x16xf32>
    %cst_19 = arith.constant 0.000000e+00 : f32
    %34 = vector.broadcast %cst_19 : f32 to vector<64x12xf32>
    %35 = vector.extract_strided_slice %31 {offsets = [0, 0], sizes = [64, 2], strides = [1, 1]} : vector<64x36xf32> to vector<64x2xf32>
    %36 = vector.shape_cast %35 : vector<64x2xf32> to vector<4x16x2xf32>
    %37 = vector.extract_strided_slice %31 {offsets = [0, 12], sizes = [64, 2], strides = [1, 1]} : vector<64x36xf32> to vector<64x2xf32>
    %38 = vector.shape_cast %37 : vector<64x2xf32> to vector<4x16x2xf32>
    %39 = vector.extract_strided_slice %31 {offsets = [0, 24], sizes = [64, 2], strides = [1, 1]} : vector<64x36xf32> to vector<64x2xf32>
    %40 = vector.shape_cast %39 : vector<64x2xf32> to vector<4x16x2xf32>
    "tpu.trace_start"() <{level = 10 : i32, message = "wnd,wmd->wnm"}> : () -> ()
    %cst_20 = arith.constant dense<0.000000e+00> : vector<4x16x16xf32>
    %41 = tpu.matmul %36, %38, %cst_20 {dimension_numbers = #tpu.dot_dimension_numbers<[2], [2], [1], [1], [0, 0, 0, 1, 1, 1], [0], [0]>} : vector<4x16x2xf32>, vector<4x16x2xf32>, vector<4x16x16xf32> -> vector<4x16x16xf32>
    "tpu.trace_stop"() : () -> ()
    %cst_21 = arith.constant 0.707106769 : f32
    %42 = vector.broadcast %cst_21 : f32 to vector<4x16x16xf32>
    %43 = arith.mulf %41, %42 : vector<4x16x16xf32>
    %44 = vector.extract_strided_slice %33 {offsets = [0, 0, 0, 0], sizes = [1, 4, 16, 16], strides = [1, 1, 1, 1]} : vector<6x4x16x16xf32> to vector<1x4x16x16xf32>
    %45 = vector.shape_cast %44 : vector<1x4x16x16xf32> to vector<4x16x16xf32>
    %46 = arith.addf %43, %45 : vector<4x16x16xf32>
    %cst_22 = arith.constant dense<0xFF800000> : vector<4x16xf32>
    %47 = vector.multi_reduction <maximumf>, %46, %cst_22 [2] : vector<4x16x16xf32> to vector<4x16xf32>
    %48 = vector.shape_cast %47 : vector<4x16xf32> to vector<4x16x1xf32>
    %49 = vector.broadcast %48 : vector<4x16x1xf32> to vector<4x16x16xf32>
    %50 = arith.subf %46, %49 : vector<4x16x16xf32>
    %51 = math.exp %50 : vector<4x16x16xf32>
    %cst_23 = arith.constant dense<0.000000e+00> : vector<4x16xf32>
    %52 = vector.multi_reduction <add>, %51, %cst_23 [2] : vector<4x16x16xf32> to vector<4x16xf32>
    %53 = vector.shape_cast %52 : vector<4x16xf32> to vector<4x16x1xf32>
    %54 = tpu.reciprocal %53 {approx = true} : vector<4x16x1xf32> -> vector<4x16x1xf32>
    %55 = vector.broadcast %54 : vector<4x16x1xf32> to vector<4x16x16xf32>
    %56 = arith.mulf %51, %55 : vector<4x16x16xf32>
    "tpu.trace_start"() <{level = 10 : i32, message = "wnm,wmd->wnd"}> : () -> ()
    %cst_24 = arith.constant dense<0.000000e+00> : vector<4x16x2xf32>
    %57 = tpu.matmul %56, %40, %cst_24 {dimension_numbers = #tpu.dot_dimension_numbers<[2], [1], [1], [2], [0, 0, 0, 1, 1, 2], [0], [0]>} : vector<4x16x16xf32>, vector<4x16x2xf32>, vector<4x16x2xf32> -> vector<4x16x2xf32>
    "tpu.trace_stop"() : () -> ()
    %58 = vector.shape_cast %57 : vector<4x16x2xf32> to vector<64x2xf32>
    %59 = vector.extract_strided_slice %32 {offsets = [0, 0], sizes = [2, 12], strides = [1, 1]} : vector<12x12xf32> to vector<2x12xf32>
    %cst_25 = arith.constant dense<0.000000e+00> : vector<64x12xf32>
    %60 = tpu.matmul %58, %59, %cst_25 {dimension_numbers = #tpu.dot_dimension_numbers<[1], [0], [0], [1], [0, 0, 1, 1], [], []>} : vector<64x2xf32>, vector<2x12xf32>, vector<64x12xf32> -> vector<64x12xf32>
    %61 = arith.addf %34, %60 : vector<64x12xf32>
    %62 = vector.extract_strided_slice %31 {offsets = [0, 2], sizes = [64, 2], strides = [1, 1]} : vector<64x36xf32> to vector<64x2xf32>
    %63 = vector.shape_cast %62 : vector<64x2xf32> to vector<4x16x2xf32>
    %64 = vector.extract_strided_slice %31 {offsets = [0, 14], sizes = [64, 2], strides = [1, 1]} : vector<64x36xf32> to vector<64x2xf32>
    %65 = vector.shape_cast %64 : vector<64x2xf32> to vector<4x16x2xf32>
    %66 = vector.extract_strided_slice %31 {offsets = [0, 26], sizes = [64, 2], strides = [1, 1]} : vector<64x36xf32> to vector<64x2xf32>
    %67 = vector.shape_cast %66 : vector<64x2xf32> to vector<4x16x2xf32>
    "tpu.trace_start"() <{level = 10 : i32, message = "wnd,wmd->wnm"}> : () -> ()
    %cst_26 = arith.constant dense<0.000000e+00> : vector<4x16x16xf32>
    %68 = tpu.matmul %63, %65, %cst_26 {dimension_numbers = #tpu.dot_dimension_numbers<[2], [2], [1], [1], [0, 0, 0, 1, 1, 1], [0], [0]>} : vector<4x16x2xf32>, vector<4x16x2xf32>, vector<4x16x16xf32> -> vector<4x16x16xf32>
    "tpu.trace_stop"() : () -> ()
    %cst_27 = arith.constant 0.707106769 : f32
    %69 = vector.broadcast %cst_27 : f32 to vector<4x16x16xf32>
    %70 = arith.mulf %68, %69 : vector<4x16x16xf32>
    %71 = vector.extract_strided_slice %33 {offsets = [1, 0, 0, 0], sizes = [1, 4, 16, 16], strides = [1, 1, 1, 1]} : vector<6x4x16x16xf32> to vector<1x4x16x16xf32>
    %72 = vector.shape_cast %71 : vector<1x4x16x16xf32> to vector<4x16x16xf32>
    %73 = arith.addf %70, %72 : vector<4x16x16xf32>
    %cst_28 = arith.constant dense<0xFF800000> : vector<4x16xf32>
    %74 = vector.multi_reduction <maximumf>, %73, %cst_28 [2] : vector<4x16x16xf32> to vector<4x16xf32>
    %75 = vector.shape_cast %74 : vector<4x16xf32> to vector<4x16x1xf32>
    %76 = vector.broadcast %75 : vector<4x16x1xf32> to vector<4x16x16xf32>
    %77 = arith.subf %73, %76 : vector<4x16x16xf32>
    %78 = math.exp %77 : vector<4x16x16xf32>
    %cst_29 = arith.constant dense<0.000000e+00> : vector<4x16xf32>
    %79 = vector.multi_reduction <add>, %78, %cst_29 [2] : vector<4x16x16xf32> to vector<4x16xf32>
    %80 = vector.shape_cast %79 : vector<4x16xf32> to vector<4x16x1xf32>
    %81 = tpu.reciprocal %80 {approx = true} : vector<4x16x1xf32> -> vector<4x16x1xf32>
    %82 = vector.broadcast %81 : vector<4x16x1xf32> to vector<4x16x16xf32>
    %83 = arith.mulf %78, %82 : vector<4x16x16xf32>
    "tpu.trace_start"() <{level = 10 : i32, message = "wnm,wmd->wnd"}> : () -> ()
    %cst_30 = arith.constant dense<0.000000e+00> : vector<4x16x2xf32>
    %84 = tpu.matmul %83, %67, %cst_30 {dimension_numbers = #tpu.dot_dimension_numbers<[2], [1], [1], [2], [0, 0, 0, 1, 1, 2], [0], [0]>} : vector<4x16x16xf32>, vector<4x16x2xf32>, vector<4x16x2xf32> -> vector<4x16x2xf32>
    "tpu.trace_stop"() : () -> ()
    %85 = vector.shape_cast %84 : vector<4x16x2xf32> to vector<64x2xf32>
    %86 = vector.extract_strided_slice %32 {offsets = [2, 0], sizes = [2, 12], strides = [1, 1]} : vector<12x12xf32> to vector<2x12xf32>
    %cst_31 = arith.constant dense<0.000000e+00> : vector<64x12xf32>
    %87 = tpu.matmul %85, %86, %cst_31 {dimension_numbers = #tpu.dot_dimension_numbers<[1], [0], [0], [1], [0, 0, 1, 1], [], []>} : vector<64x2xf32>, vector<2x12xf32>, vector<64x12xf32> -> vector<64x12xf32>
    %88 = arith.addf %61, %87 : vector<64x12xf32>
    %89 = vector.extract_strided_slice %31 {offsets = [0, 4], sizes = [64, 2], strides = [1, 1]} : vector<64x36xf32> to vector<64x2xf32>
    %90 = vector.shape_cast %89 : vector<64x2xf32> to vector<4x16x2xf32>
    %91 = vector.extract_strided_slice %31 {offsets = [0, 16], sizes = [64, 2], strides = [1, 1]} : vector<64x36xf32> to vector<64x2xf32>
    %92 = vector.shape_cast %91 : vector<64x2xf32> to vector<4x16x2xf32>
    %93 = vector.extract_strided_slice %31 {offsets = [0, 28], sizes = [64, 2], strides = [1, 1]} : vector<64x36xf32> to vector<64x2xf32>
    %94 = vector.shape_cast %93 : vector<64x2xf32> to vector<4x16x2xf32>
    "tpu.trace_start"() <{level = 10 : i32, message = "wnd,wmd->wnm"}> : () -> ()
    %cst_32 = arith.constant dense<0.000000e+00> : vector<4x16x16xf32>
    %95 = tpu.matmul %90, %92, %cst_32 {dimension_numbers = #tpu.dot_dimension_numbers<[2], [2], [1], [1], [0, 0, 0, 1, 1, 1], [0], [0]>} : vector<4x16x2xf32>, vector<4x16x2xf32>, vector<4x16x16xf32> -> vector<4x16x16xf32>
    "tpu.trace_stop"() : () -> ()
    %cst_33 = arith.constant 0.707106769 : f32
    %96 = vector.broadcast %cst_33 : f32 to vector<4x16x16xf32>
    %97 = arith.mulf %95, %96 : vector<4x16x16xf32>
    %98 = vector.extract_strided_slice %33 {offsets = [2, 0, 0, 0], sizes = [1, 4, 16, 16], strides = [1, 1, 1, 1]} : vector<6x4x16x16xf32> to vector<1x4x16x16xf32>
    %99 = vector.shape_cast %98 : vector<1x4x16x16xf32> to vector<4x16x16xf32>
    %100 = arith.addf %97, %99 : vector<4x16x16xf32>
    %cst_34 = arith.constant dense<0xFF800000> : vector<4x16xf32>
    %101 = vector.multi_reduction <maximumf>, %100, %cst_34 [2] : vector<4x16x16xf32> to vector<4x16xf32>
    %102 = vector.shape_cast %101 : vector<4x16xf32> to vector<4x16x1xf32>
    %103 = vector.broadcast %102 : vector<4x16x1xf32> to vector<4x16x16xf32>
    %104 = arith.subf %100, %103 : vector<4x16x16xf32>
    %105 = math.exp %104 : vector<4x16x16xf32>
    %cst_35 = arith.constant dense<0.000000e+00> : vector<4x16xf32>
    %106 = vector.multi_reduction <add>, %105, %cst_35 [2] : vector<4x16x16xf32> to vector<4x16xf32>
    %107 = vector.shape_cast %106 : vector<4x16xf32> to vector<4x16x1xf32>
    %108 = tpu.reciprocal %107 {approx = true} : vector<4x16x1xf32> -> vector<4x16x1xf32>
    %109 = vector.broadcast %108 : vector<4x16x1xf32> to vector<4x16x16xf32>
    %110 = arith.mulf %105, %109 : vector<4x16x16xf32>
    "tpu.trace_start"() <{level = 10 : i32, message = "wnm,wmd->wnd"}> : () -> ()
    %cst_36 = arith.constant dense<0.000000e+00> : vector<4x16x2xf32>
    %111 = tpu.matmul %110, %94, %cst_36 {dimension_numbers = #tpu.dot_dimension_numbers<[2], [1], [1], [2], [0, 0, 0, 1, 1, 2], [0], [0]>} : vector<4x16x16xf32>, vector<4x16x2xf32>, vector<4x16x2xf32> -> vector<4x16x2xf32>
    "tpu.trace_stop"() : () -> ()
    %112 = vector.shape_cast %111 : vector<4x16x2xf32> to vector<64x2xf32>
    %113 = vector.extract_strided_slice %32 {offsets = [4, 0], sizes = [2, 12], strides = [1, 1]} : vector<12x12xf32> to vector<2x12xf32>
    %cst_37 = arith.constant dense<0.000000e+00> : vector<64x12xf32>
    %114 = tpu.matmul %112, %113, %cst_37 {dimension_numbers = #tpu.dot_dimension_numbers<[1], [0], [0], [1], [0, 0, 1, 1], [], []>} : vector<64x2xf32>, vector<2x12xf32>, vector<64x12xf32> -> vector<64x12xf32>
    %115 = arith.addf %88, %114 : vector<64x12xf32>
    %116 = vector.extract_strided_slice %31 {offsets = [0, 6], sizes = [64, 2], strides = [1, 1]} : vector<64x36xf32> to vector<64x2xf32>
    %117 = vector.shape_cast %116 : vector<64x2xf32> to vector<4x16x2xf32>
    %118 = vector.extract_strided_slice %31 {offsets = [0, 18], sizes = [64, 2], strides = [1, 1]} : vector<64x36xf32> to vector<64x2xf32>
    %119 = vector.shape_cast %118 : vector<64x2xf32> to vector<4x16x2xf32>
    %120 = vector.extract_strided_slice %31 {offsets = [0, 30], sizes = [64, 2], strides = [1, 1]} : vector<64x36xf32> to vector<64x2xf32>
    %121 = vector.shape_cast %120 : vector<64x2xf32> to vector<4x16x2xf32>
    "tpu.trace_start"() <{level = 10 : i32, message = "wnd,wmd->wnm"}> : () -> ()
    %cst_38 = arith.constant dense<0.000000e+00> : vector<4x16x16xf32>
    %122 = tpu.matmul %117, %119, %cst_38 {dimension_numbers = #tpu.dot_dimension_numbers<[2], [2], [1], [1], [0, 0, 0, 1, 1, 1], [0], [0]>} : vector<4x16x2xf32>, vector<4x16x2xf32>, vector<4x16x16xf32> -> vector<4x16x16xf32>
    "tpu.trace_stop"() : () -> ()
    %cst_39 = arith.constant 0.707106769 : f32
    %123 = vector.broadcast %cst_39 : f32 to vector<4x16x16xf32>
    %124 = arith.mulf %122, %123 : vector<4x16x16xf32>
    %125 = vector.extract_strided_slice %33 {offsets = [3, 0, 0, 0], sizes = [1, 4, 16, 16], strides = [1, 1, 1, 1]} : vector<6x4x16x16xf32> to vector<1x4x16x16xf32>
    %126 = vector.shape_cast %125 : vector<1x4x16x16xf32> to vector<4x16x16xf32>
    %127 = arith.addf %124, %126 : vector<4x16x16xf32>
    %cst_40 = arith.constant dense<0xFF800000> : vector<4x16xf32>
    %128 = vector.multi_reduction <maximumf>, %127, %cst_40 [2] : vector<4x16x16xf32> to vector<4x16xf32>
    %129 = vector.shape_cast %128 : vector<4x16xf32> to vector<4x16x1xf32>
    %130 = vector.broadcast %129 : vector<4x16x1xf32> to vector<4x16x16xf32>
    %131 = arith.subf %127, %130 : vector<4x16x16xf32>
    %132 = math.exp %131 : vector<4x16x16xf32>
    %cst_41 = arith.constant dense<0.000000e+00> : vector<4x16xf32>
    %133 = vector.multi_reduction <add>, %132, %cst_41 [2] : vector<4x16x16xf32> to vector<4x16xf32>
    %134 = vector.shape_cast %133 : vector<4x16xf32> to vector<4x16x1xf32>
    %135 = tpu.reciprocal %134 {approx = true} : vector<4x16x1xf32> -> vector<4x16x1xf32>
    %136 = vector.broadcast %135 : vector<4x16x1xf32> to vector<4x16x16xf32>
    %137 = arith.mulf %132, %136 : vector<4x16x16xf32>
    "tpu.trace_start"() <{level = 10 : i32, message = "wnm,wmd->wnd"}> : () -> ()
    %cst_42 = arith.constant dense<0.000000e+00> : vector<4x16x2xf32>
    %138 = tpu.matmul %137, %121, %cst_42 {dimension_numbers = #tpu.dot_dimension_numbers<[2], [1], [1], [2], [0, 0, 0, 1, 1, 2], [0], [0]>} : vector<4x16x16xf32>, vector<4x16x2xf32>, vector<4x16x2xf32> -> vector<4x16x2xf32>
    "tpu.trace_stop"() : () -> ()
    %139 = vector.shape_cast %138 : vector<4x16x2xf32> to vector<64x2xf32>
    %140 = vector.extract_strided_slice %32 {offsets = [6, 0], sizes = [2, 12], strides = [1, 1]} : vector<12x12xf32> to vector<2x12xf32>
    %cst_43 = arith.constant dense<0.000000e+00> : vector<64x12xf32>
    %141 = tpu.matmul %139, %140, %cst_43 {dimension_numbers = #tpu.dot_dimension_numbers<[1], [0], [0], [1], [0, 0, 1, 1], [], []>} : vector<64x2xf32>, vector<2x12xf32>, vector<64x12xf32> -> vector<64x12xf32>
    %142 = arith.addf %115, %141 : vector<64x12xf32>
    %143 = vector.extract_strided_slice %31 {offsets = [0, 8], sizes = [64, 2], strides = [1, 1]} : vector<64x36xf32> to vector<64x2xf32>
    %144 = vector.shape_cast %143 : vector<64x2xf32> to vector<4x16x2xf32>
    %145 = vector.extract_strided_slice %31 {offsets = [0, 20], sizes = [64, 2], strides = [1, 1]} : vector<64x36xf32> to vector<64x2xf32>
    %146 = vector.shape_cast %145 : vector<64x2xf32> to vector<4x16x2xf32>
    %147 = vector.extract_strided_slice %31 {offsets = [0, 32], sizes = [64, 2], strides = [1, 1]} : vector<64x36xf32> to vector<64x2xf32>
    %148 = vector.shape_cast %147 : vector<64x2xf32> to vector<4x16x2xf32>
    "tpu.trace_start"() <{level = 10 : i32, message = "wnd,wmd->wnm"}> : () -> ()
    %cst_44 = arith.constant dense<0.000000e+00> : vector<4x16x16xf32>
    %149 = tpu.matmul %144, %146, %cst_44 {dimension_numbers = #tpu.dot_dimension_numbers<[2], [2], [1], [1], [0, 0, 0, 1, 1, 1], [0], [0]>} : vector<4x16x2xf32>, vector<4x16x2xf32>, vector<4x16x16xf32> -> vector<4x16x16xf32>
    "tpu.trace_stop"() : () -> ()
    %cst_45 = arith.constant 0.707106769 : f32
    %150 = vector.broadcast %cst_45 : f32 to vector<4x16x16xf32>
    %151 = arith.mulf %149, %150 : vector<4x16x16xf32>
    %152 = vector.extract_strided_slice %33 {offsets = [4, 0, 0, 0], sizes = [1, 4, 16, 16], strides = [1, 1, 1, 1]} : vector<6x4x16x16xf32> to vector<1x4x16x16xf32>
    %153 = vector.shape_cast %152 : vector<1x4x16x16xf32> to vector<4x16x16xf32>
    %154 = arith.addf %151, %153 : vector<4x16x16xf32>
    %cst_46 = arith.constant dense<0xFF800000> : vector<4x16xf32>
    %155 = vector.multi_reduction <maximumf>, %154, %cst_46 [2] : vector<4x16x16xf32> to vector<4x16xf32>
    %156 = vector.shape_cast %155 : vector<4x16xf32> to vector<4x16x1xf32>
    %157 = vector.broadcast %156 : vector<4x16x1xf32> to vector<4x16x16xf32>
    %158 = arith.subf %154, %157 : vector<4x16x16xf32>
    %159 = math.exp %158 : vector<4x16x16xf32>
    %cst_47 = arith.constant dense<0.000000e+00> : vector<4x16xf32>
    %160 = vector.multi_reduction <add>, %159, %cst_47 [2] : vector<4x16x16xf32> to vector<4x16xf32>
    %161 = vector.shape_cast %160 : vector<4x16xf32> to vector<4x16x1xf32>
    %162 = tpu.reciprocal %161 {approx = true} : vector<4x16x1xf32> -> vector<4x16x1xf32>
    %163 = vector.broadcast %162 : vector<4x16x1xf32> to vector<4x16x16xf32>
    %164 = arith.mulf %159, %163 : vector<4x16x16xf32>
    "tpu.trace_start"() <{level = 10 : i32, message = "wnm,wmd->wnd"}> : () -> ()
    %cst_48 = arith.constant dense<0.000000e+00> : vector<4x16x2xf32>
    %165 = tpu.matmul %164, %148, %cst_48 {dimension_numbers = #tpu.dot_dimension_numbers<[2], [1], [1], [2], [0, 0, 0, 1, 1, 2], [0], [0]>} : vector<4x16x16xf32>, vector<4x16x2xf32>, vector<4x16x2xf32> -> vector<4x16x2xf32>
    "tpu.trace_stop"() : () -> ()
    %166 = vector.shape_cast %165 : vector<4x16x2xf32> to vector<64x2xf32>
    %167 = vector.extract_strided_slice %32 {offsets = [8, 0], sizes = [2, 12], strides = [1, 1]} : vector<12x12xf32> to vector<2x12xf32>
    %cst_49 = arith.constant dense<0.000000e+00> : vector<64x12xf32>
    %168 = tpu.matmul %166, %167, %cst_49 {dimension_numbers = #tpu.dot_dimension_numbers<[1], [0], [0], [1], [0, 0, 1, 1], [], []>} : vector<64x2xf32>, vector<2x12xf32>, vector<64x12xf32> -> vector<64x12xf32>
    %169 = arith.addf %142, %168 : vector<64x12xf32>
    %170 = vector.extract_strided_slice %31 {offsets = [0, 10], sizes = [64, 2], strides = [1, 1]} : vector<64x36xf32> to vector<64x2xf32>
    %171 = vector.shape_cast %170 : vector<64x2xf32> to vector<4x16x2xf32>
    %172 = vector.extract_strided_slice %31 {offsets = [0, 22], sizes = [64, 2], strides = [1, 1]} : vector<64x36xf32> to vector<64x2xf32>
    %173 = vector.shape_cast %172 : vector<64x2xf32> to vector<4x16x2xf32>
    %174 = vector.extract_strided_slice %31 {offsets = [0, 34], sizes = [64, 2], strides = [1, 1]} : vector<64x36xf32> to vector<64x2xf32>
    %175 = vector.shape_cast %174 : vector<64x2xf32> to vector<4x16x2xf32>
    "tpu.trace_start"() <{level = 10 : i32, message = "wnd,wmd->wnm"}> : () -> ()
    %cst_50 = arith.constant dense<0.000000e+00> : vector<4x16x16xf32>
    %176 = tpu.matmul %171, %173, %cst_50 {dimension_numbers = #tpu.dot_dimension_numbers<[2], [2], [1], [1], [0, 0, 0, 1, 1, 1], [0], [0]>} : vector<4x16x2xf32>, vector<4x16x2xf32>, vector<4x16x16xf32> -> vector<4x16x16xf32>
    "tpu.trace_stop"() : () -> ()
    %cst_51 = arith.constant 0.707106769 : f32
    %177 = vector.broadcast %cst_51 : f32 to vector<4x16x16xf32>
    %178 = arith.mulf %176, %177 : vector<4x16x16xf32>
    %179 = vector.extract_strided_slice %33 {offsets = [5, 0, 0, 0], sizes = [1, 4, 16, 16], strides = [1, 1, 1, 1]} : vector<6x4x16x16xf32> to vector<1x4x16x16xf32>
    %180 = vector.shape_cast %179 : vector<1x4x16x16xf32> to vector<4x16x16xf32>
    %181 = arith.addf %178, %180 : vector<4x16x16xf32>
    %cst_52 = arith.constant dense<0xFF800000> : vector<4x16xf32>
    %182 = vector.multi_reduction <maximumf>, %181, %cst_52 [2] : vector<4x16x16xf32> to vector<4x16xf32>
    %183 = vector.shape_cast %182 : vector<4x16xf32> to vector<4x16x1xf32>
    %184 = vector.broadcast %183 : vector<4x16x1xf32> to vector<4x16x16xf32>
    %185 = arith.subf %181, %184 : vector<4x16x16xf32>
    %186 = math.exp %185 : vector<4x16x16xf32>
    %cst_53 = arith.constant dense<0.000000e+00> : vector<4x16xf32>
    %187 = vector.multi_reduction <add>, %186, %cst_53 [2] : vector<4x16x16xf32> to vector<4x16xf32>
    %188 = vector.shape_cast %187 : vector<4x16xf32> to vector<4x16x1xf32>
    %189 = tpu.reciprocal %188 {approx = true} : vector<4x16x1xf32> -> vector<4x16x1xf32>
    %190 = vector.broadcast %189 : vector<4x16x1xf32> to vector<4x16x16xf32>
    %191 = arith.mulf %186, %190 : vector<4x16x16xf32>
    "tpu.trace_start"() <{level = 10 : i32, message = "wnm,wmd->wnd"}> : () -> ()
    %cst_54 = arith.constant dense<0.000000e+00> : vector<4x16x2xf32>
    %192 = tpu.matmul %191, %175, %cst_54 {dimension_numbers = #tpu.dot_dimension_numbers<[2], [1], [1], [2], [0, 0, 0, 1, 1, 2], [0], [0]>} : vector<4x16x16xf32>, vector<4x16x2xf32>, vector<4x16x2xf32> -> vector<4x16x2xf32>
    "tpu.trace_stop"() : () -> ()
    %193 = vector.shape_cast %192 : vector<4x16x2xf32> to vector<64x2xf32>
    %194 = vector.extract_strided_slice %32 {offsets = [10, 0], sizes = [2, 12], strides = [1, 1]} : vector<12x12xf32> to vector<2x12xf32>
    %cst_55 = arith.constant dense<0.000000e+00> : vector<64x12xf32>
    %195 = tpu.matmul %193, %194, %cst_55 {dimension_numbers = #tpu.dot_dimension_numbers<[1], [0], [0], [1], [0, 0, 1, 1], [], []>} : vector<64x2xf32>, vector<2x12xf32>, vector<64x12xf32> -> vector<64x12xf32>
    %196 = arith.addf %169, %195 : vector<64x12xf32>
    %c0_56 = arith.constant 0 : index
    %c0_57 = arith.constant 0 : index
    %197 = vector.load %arg7[%c0_56, %c0_57] : memref<1x12xf32, #tpu.memory_space<vmem>>, vector<1x12xf32>
    %198 = vector.shape_cast %197 : vector<1x12xf32> to vector<12xf32>
    %199 = vector.shape_cast %198 : vector<12xf32> to vector<1x12xf32>
    %200 = vector.broadcast %199 : vector<1x12xf32> to vector<64x12xf32>
    %201 = arith.addf %196, %200 : vector<64x12xf32>
    %202 = arith.addf %201, %1 : vector<64x12xf32>
    %c0_58 = arith.constant 0 : index
    %c0_59 = arith.constant 0 : index
    %203 = vector.load %arg8[%c0_58, %c0_59] : memref<1x12xf32, #tpu.memory_space<vmem>>, vector<1x12xf32>
    %204 = vector.shape_cast %203 : vector<1x12xf32> to vector<12xf32>
    %c0_60 = arith.constant 0 : index
    %c0_61 = arith.constant 0 : index
    %205 = vector.load %arg9[%c0_60, %c0_61] : memref<1x12xf32, #tpu.memory_space<vmem>>, vector<1x12xf32>
    %206 = vector.shape_cast %205 : vector<1x12xf32> to vector<12xf32>
    %cst_62 = arith.constant dense<0.000000e+00> : vector<64xf32>
    %207 = vector.multi_reduction <add>, %202, %cst_62 [1] : vector<64x12xf32> to vector<64xf32>
    %208 = vector.shape_cast %207 : vector<64xf32> to vector<64x1xf32>
    %cst_63 = arith.constant 1.200000e+01 : f32
    %209 = vector.broadcast %cst_63 : f32 to vector<64x1xf32>
    %210 = arith.divf %208, %209 : vector<64x1xf32>
    %211 = vector.broadcast %210 : vector<64x1xf32> to vector<64x12xf32>
    %212 = arith.subf %202, %211 : vector<64x12xf32>
    %213 = arith.mulf %212, %212 : vector<64x12xf32>
    %cst_64 = arith.constant dense<0.000000e+00> : vector<64xf32>
    %214 = vector.multi_reduction <add>, %213, %cst_64 [1] : vector<64x12xf32> to vector<64xf32>
    %215 = vector.shape_cast %214 : vector<64xf32> to vector<64x1xf32>
    %cst_65 = arith.constant 1.200000e+01 : f32
    %216 = vector.broadcast %cst_65 : f32 to vector<64x1xf32>
    %217 = arith.divf %215, %216 : vector<64x1xf32>
    %218 = vector.broadcast %210 : vector<64x1xf32> to vector<64x12xf32>
    %219 = arith.subf %202, %218 : vector<64x12xf32>
    %cst_66 = arith.constant 9.99999974E-6 : f32
    %220 = vector.broadcast %cst_66 : f32 to vector<64x1xf32>
    %221 = arith.addf %217, %220 : vector<64x1xf32>
    %222 = math.rsqrt %221 : vector<64x1xf32>
    %223 = vector.broadcast %222 : vector<64x1xf32> to vector<64x12xf32>
    %224 = arith.mulf %219, %223 : vector<64x12xf32>
    %225 = vector.shape_cast %204 : vector<12xf32> to vector<1x12xf32>
    %226 = vector.broadcast %225 : vector<1x12xf32> to vector<64x12xf32>
    %227 = arith.mulf %224, %226 : vector<64x12xf32>
    %228 = vector.shape_cast %206 : vector<12xf32> to vector<1x12xf32>
    %229 = vector.broadcast %228 : vector<1x12xf32> to vector<64x12xf32>
    %230 = arith.addf %227, %229 : vector<64x12xf32>
    %c0_67 = arith.constant 0 : index
    %c0_68 = arith.constant 0 : index
    %231 = vector.load %arg10[%c0_67, %c0_68] : memref<12x24xf32, #tpu.memory_space<vmem>>, vector<12x24xf32>
    %cst_69 = arith.constant dense<0.000000e+00> : vector<64x24xf32>
    %232 = tpu.matmul %230, %231, %cst_69 {dimension_numbers = #tpu.dot_dimension_numbers<[1], [0], [0], [1], [0, 0, 1, 1], [], []>} : vector<64x12xf32>, vector<12x24xf32>, vector<64x24xf32> -> vector<64x24xf32>
    %c0_70 = arith.constant 0 : index
    %c0_71 = arith.constant 0 : index
    %233 = vector.load %arg11[%c0_70, %c0_71] : memref<1x24xf32, #tpu.memory_space<vmem>>, vector<1x24xf32>
    %234 = vector.shape_cast %233 : vector<1x24xf32> to vector<24xf32>
    %235 = vector.shape_cast %234 : vector<24xf32> to vector<1x24xf32>
    %236 = vector.broadcast %235 : vector<1x24xf32> to vector<64x24xf32>
    %237 = arith.addf %232, %236 : vector<64x24xf32>
    %cst_72 = arith.constant 5.000000e-01 : f32
    %238 = vector.broadcast %cst_72 : f32 to vector<64x24xf32>
    %239 = arith.mulf %238, %237 : vector<64x24xf32>
    %cst_73 = arith.constant 0.707106769 : f32
    %240 = vector.broadcast %cst_73 : f32 to vector<64x24xf32>
    %241 = arith.mulf %237, %240 : vector<64x24xf32>
    %242 = math.erf %241 : vector<64x24xf32>
    %cst_74 = arith.constant 1.000000e+00 : f32
    %243 = vector.broadcast %cst_74 : f32 to vector<64x24xf32>
    %244 = arith.addf %243, %242 : vector<64x24xf32>
    %245 = arith.mulf %239, %244 : vector<64x24xf32>
    %c0_75 = arith.constant 0 : index
    %c0_76 = arith.constant 0 : index
    %246 = vector.load %arg12[%c0_75, %c0_76] : memref<24x12xf32, #tpu.memory_space<vmem>>, vector<24x12xf32>
    %cst_77 = arith.constant dense<0.000000e+00> : vector<64x12xf32>
    %247 = tpu.matmul %245, %246, %cst_77 {dimension_numbers = #tpu.dot_dimension_numbers<[1], [0], [0], [1], [0, 0, 1, 1], [], []>} : vector<64x24xf32>, vector<24x12xf32>, vector<64x12xf32> -> vector<64x12xf32>
    %c0_78 = arith.constant 0 : index
    %c0_79 = arith.constant 0 : index
    %248 = vector.load %arg13[%c0_78, %c0_79] : memref<1x12xf32, #tpu.memory_space<vmem>>, vector<1x12xf32>
    %249 = vector.shape_cast %248 : vector<1x12xf32> to vector<12xf32>
    %250 = vector.shape_cast %249 : vector<12xf32> to vector<1x12xf32>
    %251 = vector.broadcast %250 : vector<1x12xf32> to vector<64x12xf32>
    %252 = arith.addf %247, %251 : vector<64x12xf32>
    %253 = arith.addf %252, %202 : vector<64x12xf32>
    %254 = vector.shape_cast %253 : vector<64x12xf32> to vector<4x16x12xf32>
    %c0_80 = arith.constant 0 : index
    %c0_81 = arith.constant 0 : index
    %c0_82 = arith.constant 0 : index
    %255 = vector.load %arg14[%c0_80, %c0_81, %c0_82] : memref<4x16x12xf32, #tpu.memory_space<vmem>>, vector<4x16x12xf32>
    tpu.vector_store %arg14[%c0_80, %c0_81, %c0_82], %254 {strides = array<i32>} : memref<4x16x12xf32, #tpu.memory_space<vmem>>, vector<4x16x12xf32>,
    return
  }
  func.func @transform_0(%arg0: i32) -> (i32, i32, i32) {
    %c0_i32 = arith.constant 0 : i32
    %c0_i32_0 = arith.constant 0 : i32
    %c0_i32_1 = arith.constant 0 : i32
    return %arg0, %c0_i32, %c0_i32_0 : i32, i32, i32
  }
  func.func @transform_1(%arg0: i32) -> (i32, i32, i32, i32) {
    %c0_i32 = arith.constant 0 : i32
    %c0_i32_0 = arith.constant 0 : i32
    %c0_i32_1 = arith.constant 0 : i32
    %c0_i32_2 = arith.constant 0 : i32
    %c0_i32_3 = arith.constant 0 : i32
    return %c0_i32, %c0_i32_0, %c0_i32_1, %c0_i32_2 : i32, i32, i32, i32
  }
  func.func @transform_2(%arg0: i32) -> (i32, i32) {
    %c0_i32 = arith.constant 0 : i32
    %c0_i32_0 = arith.constant 0 : i32
    %c0_i32_1 = arith.constant 0 : i32
    return %c0_i32, %c0_i32_0 : i32, i32
  }
  func.func @transform_3(%arg0: i32) -> (i32, i32) {
    %c0_i32 = arith.constant 0 : i32
    %c0_i32_0 = arith.constant 0 : i32
    %c0_i32_1 = arith.constant 0 : i32
    return %c0_i32, %c0_i32_0 : i32, i32
  }
  func.func @transform_4(%arg0: i32) -> (i32, i32) {
    %c0_i32 = arith.constant 0 : i32
    %c0_i32_0 = arith.constant 0 : i32
    %c0_i32_1 = arith.constant 0 : i32
    return %c0_i32, %c0_i32_0 : i32, i32
  }
  func.func @transform_5(%arg0: i32) -> (i32, i32) {
    %c0_i32 = arith.constant 0 : i32
    %c0_i32_0 = arith.constant 0 : i32
    %c0_i32_1 = arith.constant 0 : i32
    return %c0_i32, %c0_i32_0 : i32, i32
  }
  func.func @transform_6(%arg0: i32) -> (i32, i32) {
    %c0_i32 = arith.constant 0 : i32
    %c0_i32_0 = arith.constant 0 : i32
    %c0_i32_1 = arith.constant 0 : i32
    return %c0_i32, %c0_i32_0 : i32, i32
  }
  func.func @transform_7(%arg0: i32) -> (i32, i32) {
    %c0_i32 = arith.constant 0 : i32
    %c0_i32_0 = arith.constant 0 : i32
    %c0_i32_1 = arith.constant 0 : i32
    return %c0_i32, %c0_i32_0 : i32, i32
  }
  func.func @transform_8(%arg0: i32) -> (i32, i32) {
    %c0_i32 = arith.constant 0 : i32
    %c0_i32_0 = arith.constant 0 : i32
    %c0_i32_1 = arith.constant 0 : i32
    return %c0_i32, %c0_i32_0 : i32, i32
  }
  func.func @transform_9(%arg0: i32) -> (i32, i32) {
    %c0_i32 = arith.constant 0 : i32
    %c0_i32_0 = arith.constant 0 : i32
    %c0_i32_1 = arith.constant 0 : i32
    return %c0_i32, %c0_i32_0 : i32, i32
  }
  func.func @transform_10(%arg0: i32) -> (i32, i32) {
    %c0_i32 = arith.constant 0 : i32
    %c0_i32_0 = arith.constant 0 : i32
    %c0_i32_1 = arith.constant 0 : i32
    return %c0_i32, %c0_i32_0 : i32, i32
  }
  func.func @transform_11(%arg0: i32) -> (i32, i32) {
    %c0_i32 = arith.constant 0 : i32
    %c0_i32_0 = arith.constant 0 : i32
    %c0_i32_1 = arith.constant 0 : i32
    return %c0_i32, %c0_i32_0 : i32, i32
  }
  func.func @transform_12(%arg0: i32) -> (i32, i32) {
    %c0_i32 = arith.constant 0 : i32
    %c0_i32_0 = arith.constant 0 : i32
    %c0_i32_1 = arith.constant 0 : i32
    return %c0_i32, %c0_i32_0 : i32, i32
  }
  func.func @transform_13(%arg0: i32) -> (i32, i32, i32) {
    %c0_i32 = arith.constant 0 : i32
    %c0_i32_0 = arith.constant 0 : i32
    %c0_i32_1 = arith.constant 0 : i32
    return %arg0, %c0_i32, %c0_i32_0 : i32, i32, i32
  }
}

module attributes {stable_mosaic.version = 11 : i64} {
  func.func @_conv3x3_kernel(%arg0: i32, %arg1: memref<1x10x10x12xf32, #tpu.memory_space<vmem>>, %arg2: memref<9x12x12xf32, #tpu.memory_space<vmem>>, %arg3: memref<1x12xf32, #tpu.memory_space<vmem>>, %arg4: memref<1x8x8x12xf32, #tpu.memory_space<vmem>>) attributes {dimension_semantics = [#tpu.dimension_semantics<parallel>], iteration_bounds = array<i64: 2>, scalar_prefetch = 0 : i64, scratch_operands = 0 : i64, tpu.core_type = #tpu.core_type<tc>, window_params = [{transform_indices = @transform_0, window_bounds = array<i64: 1, 10, 10, 12>}, {pipeline_mode = #tpu.pipeline_mode<synchronous>, transform_indices = @transform_1, window_bounds = array<i64: 9, 12, 12>}, {pipeline_mode = #tpu.pipeline_mode<synchronous>, transform_indices = @transform_2, window_bounds = array<i64: 1, 12>}, {transform_indices = @transform_3, window_bounds = array<i64: 1, 8, 8, 12>}]} {
    %cst = arith.constant 0.000000e+00 : f32
    %0 = vector.broadcast %cst : f32 to vector<64x12xf32>
    %c0 = arith.constant 0 : index
    %c0_0 = arith.constant 0 : index
    %c0_1 = arith.constant 0 : index
    %c0_2 = arith.constant 0 : index
    %1 = vector.load %arg1[%c0, %c0_0, %c0_1, %c0_2] : memref<1x10x10x12xf32, #tpu.memory_space<vmem>>, vector<1x8x8x12xf32>
    %2 = vector.shape_cast %1 : vector<1x8x8x12xf32> to vector<8x8x12xf32>
    %3 = vector.shape_cast %2 : vector<8x8x12xf32> to vector<64x12xf32>
    %c0_3 = arith.constant 0 : index
    %c0_4 = arith.constant 0 : index
    %c0_5 = arith.constant 0 : index
    %4 = vector.load %arg2[%c0_3, %c0_4, %c0_5] : memref<9x12x12xf32, #tpu.memory_space<vmem>>, vector<1x12x12xf32>
    %5 = vector.shape_cast %4 : vector<1x12x12xf32> to vector<12x12xf32>
    %cst_6 = arith.constant dense<0.000000e+00> : vector<64x12xf32>
    %6 = tpu.matmul %3, %5, %cst_6 {dimension_numbers = #tpu.dot_dimension_numbers<[1], [0], [0], [1], [0, 0, 1, 1], [], []>} : vector<64x12xf32>, vector<12x12xf32>, vector<64x12xf32> -> vector<64x12xf32>
    %7 = arith.addf %0, %6 : vector<64x12xf32>
    %c0_7 = arith.constant 0 : index
    %c0_8 = arith.constant 0 : index
    %c1 = arith.constant 1 : index
    %c0_9 = arith.constant 0 : index
    %8 = vector.load %arg1[%c0_7, %c0_8, %c1, %c0_9] : memref<1x10x10x12xf32, #tpu.memory_space<vmem>>, vector<1x8x8x12xf32>
    %9 = vector.shape_cast %8 : vector<1x8x8x12xf32> to vector<8x8x12xf32>
    %10 = vector.shape_cast %9 : vector<8x8x12xf32> to vector<64x12xf32>
    %c1_10 = arith.constant 1 : index
    %c0_11 = arith.constant 0 : index
    %c0_12 = arith.constant 0 : index
    %11 = vector.load %arg2[%c1_10, %c0_11, %c0_12] : memref<9x12x12xf32, #tpu.memory_space<vmem>>, vector<1x12x12xf32>
    %12 = vector.shape_cast %11 : vector<1x12x12xf32> to vector<12x12xf32>
    %cst_13 = arith.constant dense<0.000000e+00> : vector<64x12xf32>
    %13 = tpu.matmul %10, %12, %cst_13 {dimension_numbers = #tpu.dot_dimension_numbers<[1], [0], [0], [1], [0, 0, 1, 1], [], []>} : vector<64x12xf32>, vector<12x12xf32>, vector<64x12xf32> -> vector<64x12xf32>
    %14 = arith.addf %7, %13 : vector<64x12xf32>
    %c0_14 = arith.constant 0 : index
    %c0_15 = arith.constant 0 : index
    %c2 = arith.constant 2 : index
    %c0_16 = arith.constant 0 : index
    %15 = vector.load %arg1[%c0_14, %c0_15, %c2, %c0_16] : memref<1x10x10x12xf32, #tpu.memory_space<vmem>>, vector<1x8x8x12xf32>
    %16 = vector.shape_cast %15 : vector<1x8x8x12xf32> to vector<8x8x12xf32>
    %17 = vector.shape_cast %16 : vector<8x8x12xf32> to vector<64x12xf32>
    %c2_17 = arith.constant 2 : index
    %c0_18 = arith.constant 0 : index
    %c0_19 = arith.constant 0 : index
    %18 = vector.load %arg2[%c2_17, %c0_18, %c0_19] : memref<9x12x12xf32, #tpu.memory_space<vmem>>, vector<1x12x12xf32>
    %19 = vector.shape_cast %18 : vector<1x12x12xf32> to vector<12x12xf32>
    %cst_20 = arith.constant dense<0.000000e+00> : vector<64x12xf32>
    %20 = tpu.matmul %17, %19, %cst_20 {dimension_numbers = #tpu.dot_dimension_numbers<[1], [0], [0], [1], [0, 0, 1, 1], [], []>} : vector<64x12xf32>, vector<12x12xf32>, vector<64x12xf32> -> vector<64x12xf32>
    %21 = arith.addf %14, %20 : vector<64x12xf32>
    %c0_21 = arith.constant 0 : index
    %c1_22 = arith.constant 1 : index
    %c0_23 = arith.constant 0 : index
    %c0_24 = arith.constant 0 : index
    %22 = vector.load %arg1[%c0_21, %c1_22, %c0_23, %c0_24] : memref<1x10x10x12xf32, #tpu.memory_space<vmem>>, vector<1x8x8x12xf32>
    %23 = vector.shape_cast %22 : vector<1x8x8x12xf32> to vector<8x8x12xf32>
    %24 = vector.shape_cast %23 : vector<8x8x12xf32> to vector<64x12xf32>
    %c3 = arith.constant 3 : index
    %c0_25 = arith.constant 0 : index
    %c0_26 = arith.constant 0 : index
    %25 = vector.load %arg2[%c3, %c0_25, %c0_26] : memref<9x12x12xf32, #tpu.memory_space<vmem>>, vector<1x12x12xf32>
    %26 = vector.shape_cast %25 : vector<1x12x12xf32> to vector<12x12xf32>
    %cst_27 = arith.constant dense<0.000000e+00> : vector<64x12xf32>
    %27 = tpu.matmul %24, %26, %cst_27 {dimension_numbers = #tpu.dot_dimension_numbers<[1], [0], [0], [1], [0, 0, 1, 1], [], []>} : vector<64x12xf32>, vector<12x12xf32>, vector<64x12xf32> -> vector<64x12xf32>
    %28 = arith.addf %21, %27 : vector<64x12xf32>
    %c0_28 = arith.constant 0 : index
    %c1_29 = arith.constant 1 : index
    %c1_30 = arith.constant 1 : index
    %c0_31 = arith.constant 0 : index
    %29 = vector.load %arg1[%c0_28, %c1_29, %c1_30, %c0_31] : memref<1x10x10x12xf32, #tpu.memory_space<vmem>>, vector<1x8x8x12xf32>
    %30 = vector.shape_cast %29 : vector<1x8x8x12xf32> to vector<8x8x12xf32>
    %31 = vector.shape_cast %30 : vector<8x8x12xf32> to vector<64x12xf32>
    %c4 = arith.constant 4 : index
    %c0_32 = arith.constant 0 : index
    %c0_33 = arith.constant 0 : index
    %32 = vector.load %arg2[%c4, %c0_32, %c0_33] : memref<9x12x12xf32, #tpu.memory_space<vmem>>, vector<1x12x12xf32>
    %33 = vector.shape_cast %32 : vector<1x12x12xf32> to vector<12x12xf32>
    %cst_34 = arith.constant dense<0.000000e+00> : vector<64x12xf32>
    %34 = tpu.matmul %31, %33, %cst_34 {dimension_numbers = #tpu.dot_dimension_numbers<[1], [0], [0], [1], [0, 0, 1, 1], [], []>} : vector<64x12xf32>, vector<12x12xf32>, vector<64x12xf32> -> vector<64x12xf32>
    %35 = arith.addf %28, %34 : vector<64x12xf32>
    %c0_35 = arith.constant 0 : index
    %c1_36 = arith.constant 1 : index
    %c2_37 = arith.constant 2 : index
    %c0_38 = arith.constant 0 : index
    %36 = vector.load %arg1[%c0_35, %c1_36, %c2_37, %c0_38] : memref<1x10x10x12xf32, #tpu.memory_space<vmem>>, vector<1x8x8x12xf32>
    %37 = vector.shape_cast %36 : vector<1x8x8x12xf32> to vector<8x8x12xf32>
    %38 = vector.shape_cast %37 : vector<8x8x12xf32> to vector<64x12xf32>
    %c5 = arith.constant 5 : index
    %c0_39 = arith.constant 0 : index
    %c0_40 = arith.constant 0 : index
    %39 = vector.load %arg2[%c5, %c0_39, %c0_40] : memref<9x12x12xf32, #tpu.memory_space<vmem>>, vector<1x12x12xf32>
    %40 = vector.shape_cast %39 : vector<1x12x12xf32> to vector<12x12xf32>
    %cst_41 = arith.constant dense<0.000000e+00> : vector<64x12xf32>
    %41 = tpu.matmul %38, %40, %cst_41 {dimension_numbers = #tpu.dot_dimension_numbers<[1], [0], [0], [1], [0, 0, 1, 1], [], []>} : vector<64x12xf32>, vector<12x12xf32>, vector<64x12xf32> -> vector<64x12xf32>
    %42 = arith.addf %35, %41 : vector<64x12xf32>
    %c0_42 = arith.constant 0 : index
    %c2_43 = arith.constant 2 : index
    %c0_44 = arith.constant 0 : index
    %c0_45 = arith.constant 0 : index
    %43 = vector.load %arg1[%c0_42, %c2_43, %c0_44, %c0_45] : memref<1x10x10x12xf32, #tpu.memory_space<vmem>>, vector<1x8x8x12xf32>
    %44 = vector.shape_cast %43 : vector<1x8x8x12xf32> to vector<8x8x12xf32>
    %45 = vector.shape_cast %44 : vector<8x8x12xf32> to vector<64x12xf32>
    %c6 = arith.constant 6 : index
    %c0_46 = arith.constant 0 : index
    %c0_47 = arith.constant 0 : index
    %46 = vector.load %arg2[%c6, %c0_46, %c0_47] : memref<9x12x12xf32, #tpu.memory_space<vmem>>, vector<1x12x12xf32>
    %47 = vector.shape_cast %46 : vector<1x12x12xf32> to vector<12x12xf32>
    %cst_48 = arith.constant dense<0.000000e+00> : vector<64x12xf32>
    %48 = tpu.matmul %45, %47, %cst_48 {dimension_numbers = #tpu.dot_dimension_numbers<[1], [0], [0], [1], [0, 0, 1, 1], [], []>} : vector<64x12xf32>, vector<12x12xf32>, vector<64x12xf32> -> vector<64x12xf32>
    %49 = arith.addf %42, %48 : vector<64x12xf32>
    %c0_49 = arith.constant 0 : index
    %c2_50 = arith.constant 2 : index
    %c1_51 = arith.constant 1 : index
    %c0_52 = arith.constant 0 : index
    %50 = vector.load %arg1[%c0_49, %c2_50, %c1_51, %c0_52] : memref<1x10x10x12xf32, #tpu.memory_space<vmem>>, vector<1x8x8x12xf32>
    %51 = vector.shape_cast %50 : vector<1x8x8x12xf32> to vector<8x8x12xf32>
    %52 = vector.shape_cast %51 : vector<8x8x12xf32> to vector<64x12xf32>
    %c7 = arith.constant 7 : index
    %c0_53 = arith.constant 0 : index
    %c0_54 = arith.constant 0 : index
    %53 = vector.load %arg2[%c7, %c0_53, %c0_54] : memref<9x12x12xf32, #tpu.memory_space<vmem>>, vector<1x12x12xf32>
    %54 = vector.shape_cast %53 : vector<1x12x12xf32> to vector<12x12xf32>
    %cst_55 = arith.constant dense<0.000000e+00> : vector<64x12xf32>
    %55 = tpu.matmul %52, %54, %cst_55 {dimension_numbers = #tpu.dot_dimension_numbers<[1], [0], [0], [1], [0, 0, 1, 1], [], []>} : vector<64x12xf32>, vector<12x12xf32>, vector<64x12xf32> -> vector<64x12xf32>
    %56 = arith.addf %49, %55 : vector<64x12xf32>
    %c0_56 = arith.constant 0 : index
    %c2_57 = arith.constant 2 : index
    %c2_58 = arith.constant 2 : index
    %c0_59 = arith.constant 0 : index
    %57 = vector.load %arg1[%c0_56, %c2_57, %c2_58, %c0_59] : memref<1x10x10x12xf32, #tpu.memory_space<vmem>>, vector<1x8x8x12xf32>
    %58 = vector.shape_cast %57 : vector<1x8x8x12xf32> to vector<8x8x12xf32>
    %59 = vector.shape_cast %58 : vector<8x8x12xf32> to vector<64x12xf32>
    %c8 = arith.constant 8 : index
    %c0_60 = arith.constant 0 : index
    %c0_61 = arith.constant 0 : index
    %60 = vector.load %arg2[%c8, %c0_60, %c0_61] : memref<9x12x12xf32, #tpu.memory_space<vmem>>, vector<1x12x12xf32>
    %61 = vector.shape_cast %60 : vector<1x12x12xf32> to vector<12x12xf32>
    %cst_62 = arith.constant dense<0.000000e+00> : vector<64x12xf32>
    %62 = tpu.matmul %59, %61, %cst_62 {dimension_numbers = #tpu.dot_dimension_numbers<[1], [0], [0], [1], [0, 0, 1, 1], [], []>} : vector<64x12xf32>, vector<12x12xf32>, vector<64x12xf32> -> vector<64x12xf32>
    %63 = arith.addf %56, %62 : vector<64x12xf32>
    %c0_63 = arith.constant 0 : index
    %c0_64 = arith.constant 0 : index
    %64 = vector.load %arg3[%c0_63, %c0_64] : memref<1x12xf32, #tpu.memory_space<vmem>>, vector<1x12xf32>
    %65 = vector.shape_cast %64 : vector<1x12xf32> to vector<12xf32>
    %66 = vector.shape_cast %65 : vector<12xf32> to vector<1x12xf32>
    %67 = vector.broadcast %66 : vector<1x12xf32> to vector<64x12xf32>
    %68 = arith.addf %63, %67 : vector<64x12xf32>
    %69 = vector.shape_cast %68 : vector<64x12xf32> to vector<8x8x12xf32>
    %c0_65 = arith.constant 0 : index
    %c0_66 = arith.constant 0 : index
    %c0_67 = arith.constant 0 : index
    %c0_68 = arith.constant 0 : index
    %70 = vector.load %arg4[%c0_65, %c0_66, %c0_67, %c0_68] : memref<1x8x8x12xf32, #tpu.memory_space<vmem>>, vector<1x8x8x12xf32>
    %71 = vector.shape_cast %70 : vector<1x8x8x12xf32> to vector<8x8x12xf32>
    %72 = vector.shape_cast %69 : vector<8x8x12xf32> to vector<1x8x8x12xf32>
    tpu.vector_store %arg4[%c0_65, %c0_66, %c0_67, %c0_68], %72 {strides = array<i32>} : memref<1x8x8x12xf32, #tpu.memory_space<vmem>>, vector<1x8x8x12xf32>,
    return
  }
  func.func @transform_0(%arg0: i32) -> (i32, i32, i32, i32) {
    %c0_i32 = arith.constant 0 : i32
    %c0_i32_0 = arith.constant 0 : i32
    %c0_i32_1 = arith.constant 0 : i32
    %c0_i32_2 = arith.constant 0 : i32
    return %arg0, %c0_i32, %c0_i32_0, %c0_i32_1 : i32, i32, i32, i32
  }
  func.func @transform_1(%arg0: i32) -> (i32, i32, i32) {
    %c0_i32 = arith.constant 0 : i32
    %c0_i32_0 = arith.constant 0 : i32
    %c0_i32_1 = arith.constant 0 : i32
    %c0_i32_2 = arith.constant 0 : i32
    return %c0_i32, %c0_i32_0, %c0_i32_1 : i32, i32, i32
  }
  func.func @transform_2(%arg0: i32) -> (i32, i32) {
    %c0_i32 = arith.constant 0 : i32
    %c0_i32_0 = arith.constant 0 : i32
    %c0_i32_1 = arith.constant 0 : i32
    return %c0_i32, %c0_i32_0 : i32, i32
  }
  func.func @transform_3(%arg0: i32) -> (i32, i32, i32, i32) {
    %c0_i32 = arith.constant 0 : i32
    %c0_i32_0 = arith.constant 0 : i32
    %c0_i32_1 = arith.constant 0 : i32
    %c0_i32_2 = arith.constant 0 : i32
    return %arg0, %c0_i32, %c0_i32_0, %c0_i32_1 : i32, i32, i32, i32
  }
}

</mosaic_0001>

<llo_original>
// kernel: _lambda_.4
$region0: #{_lambda_.4}
  #allocation0 [shape = 'u32[]', space=smem, size = 0x4, offset = 0x4, fixed_abs, tag = 'smem constant byte address 0x4 - core index']
  #allocation1 [shape = 'u32[72,128]{1,0:T(1,128)}', space=vmem, size = 0x9000, scoped, tag = 'internal scratch']
  %s0 = inlined_call_operand.vmem [shape: f32[2,10,10,12], index: 0, kind: input, shape index: {}]
  %s1 = inlined_call_operand.vmem [shape: f32[9,12,12], index: 1, kind: input, shape index: {}]
  %s2 = inlined_call_operand.vmem [shape: f32[1,12], index: 2, kind: input, shape index: {}]
  %s3 = inlined_call_operand.vmem [shape: f32[2,8,8,12], index: 3, kind: output, shape index: {}]
  %s4 = sld [smem:[#allocation0]]
  $region45: #{_lambda_.4} parent=0
    _
  %s6 = ssub.s32 1, %s4
  %s7 = scalar_select 0, %s6, %s4
  loop: start=0, step=1, limit=4
  $region2: #{_lambda_.4} parent=0 // loop_pre_header
    _
  $region3: #{_lambda_.4} parent=0 // loop_header
    %s9 = sphi 0, %s13
    %p10 = scmp.ge.s32.totalorder %s9, 4
    %s19 = sphi 0, %s21
    %s22 = sphi 0, %s19
    %s23 = sphi 0, %s22
    %s39 = sphi 0, %s23
    %s43 = sphi 0, %s43
    %s45 = sphi 0, %s43
    %s46 = sphi 0, %s45
    %s60 = sphi 0, %s46
    %s64 = sphi 0, %s64
    %s66 = sphi 0, %s64
    %s67 = sphi 0, %s66
    %s81 = sphi 0, %s67
    %s87 = sphi 0, %s89
    %s90 = sphi 0, %s87
    %s91 = sphi 0, %s90
    %s107 = sphi 0, %s91
  $region4: #{_lambda_.4} parent=0 // loop_header_branch
    %12 = sbr.rel (%p10) target = $region8
  $region5: #{_lambda_.4} parent=0 // loop_body
    %s14 = ssub.s32 %s9, 1
    %s15 = ssub.s32 %s9, 2
    %s16 = sadd.s32 %s9, 1
    %s17 = ssub.s32 %s9, %s16
    %p18 = scmp.eq.s32.totalorder %s17, 0
    %s20 = sadd.s32 %s19, 1
    %s21 = scalar_select %p18, %s19, %s20
    %p24 = pneg %p18
    %p25 = scmp.eq.s32.totalorder %s9, 1
    %p26 = por %p24, %p25
    %p27 = scmp.ne.s32.totalorder %s19, %s22
    %p28 = scmp.eq.s32.totalorder %s9, 0
    %p29 = por %p27, %p28
    %p30 = scmp.ne.s32.totalorder %s19, %s22
    %p31 = scmp.eq.s32.totalorder %s14, 1
    %p32 = por %p30, %p31
    %p33 = scmp.ne.s32.totalorder %s22, %s23
    %p34 = scmp.eq.s32.totalorder %s14, 0
    %p35 = por %p33, %p34
    %p36 = scmp.ne.s32.totalorder %s22, %s23
    %p37 = scmp.eq.s32.totalorder %s15, 1
    %p38 = por %p36, %p37
    %p40 = scmp.ne.s32.totalorder %s23, %s39
    %p41 = scmp.eq.s32.totalorder %s15, 0
    %p42 = por %p40, %p41
    %s44 = sadd.s32 %s43, 1
    %p47 = scmp.eq.s32.totalorder %s9, 1
    %p48 = scmp.ne.s32.totalorder %s43, %s45
    %p49 = scmp.eq.s32.totalorder %s9, 0
    %p50 = por %p48, %p49
    %p51 = scmp.ne.s32.totalorder %s43, %s45
    %p52 = scmp.eq.s32.totalorder %s14, 1
    %p53 = por %p51, %p52
    %p54 = scmp.ne.s32.totalorder %s45, %s46
    %p55 = scmp.eq.s32.totalorder %s14, 0
    %p56 = por %p54, %p55
    %p57 = scmp.ne.s32.totalorder %s45, %s46
    %p58 = scmp.eq.s32.totalorder %s15, 1
    %p59 = por %p57, %p58
    %p61 = scmp.ne.s32.totalorder %s46, %s60
    %p62 = scmp.eq.s32.totalorder %s15, 0
    %p63 = por %p61, %p62
    %s65 = sadd.s32 %s64, 1
    %p68 = scmp.eq.s32.totalorder %s9, 1
    %p69 = scmp.ne.s32.totalorder %s64, %s66
    %p70 = scmp.eq.s32.totalorder %s9, 0
    %p71 = por %p69, %p70
    %p72 = scmp.ne.s32.totalorder %s64, %s66
    %p73 = scmp.eq.s32.totalorder %s14, 1
    %p74 = por %p72, %p73
    %p75 = scmp.ne.s32.totalorder %s66, %s67
    %p76 = scmp.eq.s32.totalorder %s14, 0
    %p77 = por %p75, %p76
    %p78 = scmp.ne.s32.totalorder %s66, %s67
    %p79 = scmp.eq.s32.totalorder %s15, 1
    %p80 = por %p78, %p79
    %p82 = scmp.ne.s32.totalorder %s67, %s81
    %p83 = scmp.eq.s32.totalorder %s15, 0
    %p84 = por %p82, %p83
    %s85 = ssub.s32 %s9, %s16
    %p86 = scmp.eq.s32.totalorder %s85, 0
    %s88 = sadd.s32 %s87, 1
    %s89 = scalar_select %p86, %s87, %s88
    %p92 = pneg %p86
    %p93 = scmp.eq.s32.totalorder %s9, 1
    %p94 = por %p92, %p93
    %p95 = scmp.ne.s32.totalorder %s87, %s90
    %p96 = scmp.eq.s32.totalorder %s9, 0
    %p97 = por %p95, %p96
    %p98 = scmp.ne.s32.totalorder %s87, %s90
    %p99 = scmp.eq.s32.totalorder %s14, 1
    %p100 = por %p98, %p99
    %p101 = scmp.ne.s32.totalorder %s90, %s91
    %p102 = scmp.eq.s32.totalorder %s14, 0
    %p103 = por %p101, %p102
    %p104 = scmp.ne.s32.totalorder %s90, %s91
    %p105 = scmp.eq.s32.totalorder %s15, 1
    %p106 = por %p104, %p105
    %p108 = scmp.ne.s32.totalorder %s91, %s107
    %p109 = scmp.eq.s32.totalorder %s15, 0
    %p110 = por %p108, %p109
    %p111 = scmp.le.s32.totalorder 1, %s9
    %p112 = scmp.lt.s32.totalorder %s9, 3
    %p113 = pnand %p111, %p112
    %p114 = pneg %p113
    // Predicated region
    $region9: #{_lambda_.4} parent=5 // pred_check
      _
    $region10: #{_lambda_.4} parent=5 // pred_check_branch
      %116 = sbr.rel (%p113) target = $region12
    $region11: #{_lambda_.4} parent=5 // pred_region
      %s117 = ssub.s32 %s9, 1
      // Predicated region
      $region13: #{_lambda_.4} parent=11 // pred_check
        %p118 = pneg %p56
      $region14: #{_lambda_.4} parent=11 // pred_check_branch
        %120 = sbr.rel (%p118) target = $region16
      $region15: #{_lambda_.4} parent=11 // pred_region
        _
      $region16: #{_lambda_.4} parent=11 // pred_fallthru
        _
      // Predicated region
      $region17: #{_lambda_.4} parent=11 // pred_check
        %p121 = pneg %p77
      $region18: #{_lambda_.4} parent=11 // pred_check_branch
        %123 = sbr.rel (%p121) target = $region20
      $region19: #{_lambda_.4} parent=11 // pred_region
        _
      $region20: #{_lambda_.4} parent=11 // pred_fallthru
        _
    $region12: #{_lambda_.4} parent=5 // pred_fallthru
      _
    %p124 = scmp.lt.s32.totalorder %s9, 2
    // Predicated region
    $region21: #{_lambda_.4} parent=5 // pred_check
      %p125 = pneg %p124
    $region22: #{_lambda_.4} parent=5 // pred_check_branch
      %127 = sbr.rel (%p125) target = $region24
    $region23: #{_lambda_.4} parent=5 // pred_region
      // Predicated region
      $region25: #{_lambda_.4} parent=23 // pred_check
        %p128 = pneg %p29
      $region26: #{_lambda_.4} parent=23 // pred_check_branch
        %130 = sbr.rel (%p128) target = $region28
      $region27: #{_lambda_.4} parent=23 // pred_region
        %p131 = scmp.lt.s32.totalorder %s9, 1
        %s132 = scalar_select %p131, %s9, 1
        %s133 = smul.addr %s132, 20
        %s134 = smul.addr %s133, 8
        %s135 = scalar_lea.vmem %s0, %s134
      $region28: #{_lambda_.4} parent=23 // pred_fallthru
        _
    $region24: #{_lambda_.4} parent=5 // pred_fallthru
      _
    %p136 = scmp.le.s32.totalorder 1, %s9
    %p137 = scmp.lt.s32.totalorder %s9, 3
    %p138 = pnand %p136, %p137
    %p139 = pneg %p138
    // Predicated region
    $region29: #{_lambda_.4} parent=5 // pred_check
      _
    $region30: #{_lambda_.4} parent=5 // pred_check_branch
      %141 = sbr.rel (%p138) target = $region32
    $region31: #{_lambda_.4} parent=5 // pred_region
      %s142 = ssub.s32 %s9, 1
      %p143 = scmp.lt.s32.totalorder %s14, 1
      %s144 = scalar_select %p143, %s14, 1
      %s145 = smul.addr %s144, 20
      %s146 = smul.addr %s145, 8
      %s147 = scalar_lea.vmem %s0, %s146
      %p148 = pneg %p35
      %p149 = pneg %p32
      %p150 = pneg %p56
      %p151 = pneg %p53
      %p152 = pneg %p77
      %p153 = pneg %p74
      %p154 = pneg %p103
      %p155 = pneg %p100
      %p156 = scmp.lt.s32.totalorder %s14, 1
      %s157 = scalar_select %p156, %s14, 1
      %s158 = smul.addr %s157, 8
      %s159 = smul.addr %s158, 8
      %s160 = scalar_lea.vmem %s3, %s159
      %p161 = scmp.lt.s32.totalorder %s14, 1
      %s162 = scalar_select %p161, %s14, 1
      %s163 = smul.addr %s162, 20
      %s164 = smul.addr %s163, 8
      %s165 = scalar_lea.vmem %s0, %s164
      %p166 = scmp.lt.s32.totalorder %s14, 1
      %s167 = scalar_select %p166, %s14, 1
      %s168 = smul.addr %s167, 8
      %s169 = smul.addr %s168, 8
      %s170 = scalar_lea.vmem %s3, %s169
      %v171 = vld [vmem:[%s165] sm:$0xff]
      %v172 = vld [vmem:[%s165 + $0x10] sm:$0xff]
      %v173 = vld [vmem:[%s165 + $0x20] sm:$0xff]
      %v174 = vld [vmem:[%s165 + $0x30] sm:$0xff]
      %v175 = vld [vmem:[%s165 + $0x40] sm:$0xff]
      %v176 = vld [vmem:[%s165 + $0x50] sm:$0xff]
      %v177 = vld [vmem:[%s165 + $0x60] sm:$0xff]
      %v178 = vld [vmem:[%s165 + $0x70] sm:$0xff]
      %v179 = vld [vmem:[%s1] sm:$0xff]
      %v180 = vld [vmem:[%s1 + $0x8] sm:$0xf]
      %v181 = vld [vmem:[%s165 + $0x1] sm:$0xff]
      %v182 = vld [vmem:[%s165 + $0x11] sm:$0xff]
      %v183 = vld [vmem:[%s165 + $0x21] sm:$0xff]
      %v184 = vld [vmem:[%s165 + $0x31] sm:$0xff]
      %v185 = vld [vmem:[%s165 + $0x41] sm:$0xff]
      %v186 = vld [vmem:[%s165 + $0x51] sm:$0xff]
      %v187 = vld [vmem:[%s165 + $0x61] sm:$0xff]
      %v188 = vld [vmem:[%s165 + $0x71] sm:$0xff]
      %s189 = scalar_lea.vmem %s1, 16
      %v190 = vld [vmem:[%s189] sm:$0xff]
      %v191 = vld [vmem:[%s189 + $0x8] sm:$0xf]
      %vm192 = vcmask 97280
      %v194 = vsel %vm192, %v181, 0
      %v197 = vsel %vm192, %v182, 0
      %v200 = vsel %vm192, %v183, 0
      %v203 = vsel %vm192, %v184, 0
      %v206 = vsel %vm192, %v185, 0
      %v209 = vsel %vm192, %v186, 0
      %v212 = vsel %vm192, %v187, 0
      %v215 = vsel %vm192, %v188, 0
      %vm217 = vcmask 1043456
      %v219 = vsel %vm217, %v191, 0
      %221 = vmatpush.msra.mxu0 0.0
      %222 = vmatpush.msra.mxu0 0.0
      %223 = vmatpush.msra.mxu0 0.0
      %224 = vmatpush.msra.mxu0 0.0
      %225 = vmatpush.msra.mxu0 0.0
      %226 = vmatpush.msra.mxu0 0.0
      %227 = vmatpush.msra.mxu0 0.0
      %228 = vmatpush.msra.mxu0 0.0
      %229 = vmatpush.msra.mxu0 0.0
      %230 = vmatpush.msra.mxu0 0.0
      %231 = vmatpush.msra.mxu0 0.0
      %232 = vmatpush.msra.mxu0 0.0
      %233 = vmatpush.msra.mxu0 0.0
      %234 = vmatpush.msra.mxu0 0.0
      %235 = vmatpush.msra.mxu0 %v219
      %236 = vmatpush.msra.mxu0 %v190
      %237 = vmatmul.f32.gmra.mxu0 %v194
      %v238 = vpop.f32.mrf.mxu0
      %v239 = vadd.f32 0.0, %v238
      %240 = vmatmul.f32.gmra.mxu0 %v197
      %v241 = vpop.f32.mrf.mxu0
      %v242 = vadd.f32 0.0, %v241
      %243 = vmatmul.f32.gmra.mxu0 %v200
      %v244 = vpop.f32.mrf.mxu0
      %v245 = vadd.f32 0.0, %v244
      %246 = vmatmul.f32.gmra.mxu0 %v203
      %v247 = vpop.f32.mrf.mxu0
      %v248 = vadd.f32 0.0, %v247
      %249 = vmatmul.f32.gmra.mxu0 %v206
      %v250 = vpop.f32.mrf.mxu0
      %v251 = vadd.f32 0.0, %v250
      %252 = vmatmul.f32.gmra.mxu0 %v209
      %v253 = vpop.f32.mrf.mxu0
      %v254 = vadd.f32 0.0, %v253
      %255 = vmatmul.f32.gmra.mxu0 %v212
      %v256 = vpop.f32.mrf.mxu0
      %v257 = vadd.f32 0.0, %v256
      %258 = vmatmul.f32.gmra.mxu0 %v215
      %v259 = vpop.f32.mrf.mxu0
      %v260 = vadd.f32 0.0, %v259
      %261 = vdwg.mxu0
      %v263 = vsel %vm192, %v171, 0
      %v266 = vsel %vm192, %v172, 0
      %v269 = vsel %vm192, %v173, 0
      %v272 = vsel %vm192, %v174, 0
      %v275 = vsel %vm192, %v175, 0
      %v278 = vsel %vm192, %v176, 0
      %v281 = vsel %vm192, %v177, 0
      %v284 = vsel %vm192, %v178, 0
      %v287 = vsel %vm217, %v180, 0
      %289 = vmatpush.msra.mxu0 0.0
      %290 = vmatpush.msra.mxu0 0.0
      %291 = vmatpush.msra.mxu0 0.0
      %292 = vmatpush.msra.mxu0 0.0
      %293 = vmatpush.msra.mxu0 0.0
      %294 = vmatpush.msra.mxu0 0.0
      %295 = vmatpush.msra.mxu0 0.0
      %296 = vmatpush.msra.mxu0 0.0
      %297 = vmatpush.msra.mxu0 0.0
      %298 = vmatpush.msra.mxu0 0.0
      %299 = vmatpush.msra.mxu0 0.0
      %300 = vmatpush.msra.mxu0 0.0
      %301 = vmatpush.msra.mxu0 0.0
      %302 = vmatpush.msra.mxu0 0.0
      %303 = vmatpush.msra.mxu0 %v287
      %304 = vmatpush.msra.mxu0 %v179
      %305 = vmatmul.f32.gmra.mxu0 %v263
      %v306 = vpop.f32.mrf.mxu0
      %v307 = vadd.f32 %v239, %v306
      %308 = vmatmul.f32.gmra.mxu0 %v266
      %v309 = vpop.f32.mrf.mxu0
      %v310 = vadd.f32 %v242, %v309
      %311 = vmatmul.f32.gmra.mxu0 %v269
      %v312 = vpop.f32.mrf.mxu0
      %v313 = vadd.f32 %v245, %v312
      %314 = vmatmul.f32.gmra.mxu0 %v272
      %v315 = vpop.f32.mrf.mxu0
      %v316 = vadd.f32 %v248, %v315
      %317 = vmatmul.f32.gmra.mxu0 %v275
      %v318 = vpop.f32.mrf.mxu0
      %v319 = vadd.f32 %v251, %v318
      %320 = vmatmul.f32.gmra.mxu0 %v278
      %v321 = vpop.f32.mrf.mxu0
      %v322 = vadd.f32 %v254, %v321
      %323 = vmatmul.f32.gmra.mxu0 %v281
      %v324 = vpop.f32.mrf.mxu0
      %v325 = vadd.f32 %v257, %v324
      %326 = vmatmul.f32.gmra.mxu0 %v284
      %v327 = vpop.f32.mrf.mxu0
      %v328 = vadd.f32 %v260, %v327
      %329 = vdwg.mxu0
      %v330 = vld [vmem:[%s165 + $0x2] sm:$0xff]
      %v331 = vld [vmem:[%s165 + $0x12] sm:$0xff]
      %v332 = vld [vmem:[%s165 + $0x22] sm:$0xff]
      %v333 = vld [vmem:[%s165 + $0x32] sm:$0xff]
      %v334 = vld [vmem:[%s165 + $0x42] sm:$0xff]
      %v335 = vld [vmem:[%s165 + $0x52] sm:$0xff]
      %v336 = vld [vmem:[%s165 + $0x62] sm:$0xff]
      %v337 = vld [vmem:[%s165 + $0x72] sm:$0xff]
      %s338 = scalar_lea.vmem %s1, 32
      %v339 = vld [vmem:[%s338] sm:$0xff]
      %v340 = vld [vmem:[%s338 + $0x8] sm:$0xf]
      %v342 = vsel %vm192, %v330, 0
      %v345 = vsel %vm192, %v331, 0
      %v348 = vsel %vm192, %v332, 0
      %v351 = vsel %vm192, %v333, 0
      %v354 = vsel %vm192, %v334, 0
      %v357 = vsel %vm192, %v335, 0
      %v360 = vsel %vm192, %v336, 0
      %v363 = vsel %vm192, %v337, 0
      %v366 = vsel %vm217, %v340, 0
      %368 = vmatpush.msra.mxu0 0.0
      %369 = vmatpush.msra.mxu0 0.0
      %370 = vmatpush.msra.mxu0 0.0
      %371 = vmatpush.msra.mxu0 0.0
      %372 = vmatpush.msra.mxu0 0.0
      %373 = vmatpush.msra.mxu0 0.0
      %374 = vmatpush.msra.mxu0 0.0
      %375 = vmatpush.msra.mxu0 0.0
      %376 = vmatpush.msra.mxu0 0.0
      %377 = vmatpush.msra.mxu0 0.0
      %378 = vmatpush.msra.mxu0 0.0
      %379 = vmatpush.msra.mxu0 0.0
      %380 = vmatpush.msra.mxu0 0.0
      %381 = vmatpush.msra.mxu0 0.0
      %382 = vmatpush.msra.mxu0 %v366
      %383 = vmatpush.msra.mxu0 %v339
      %384 = vmatmul.f32.gmra.mxu0 %v342
      %v385 = vpop.f32.mrf.mxu0
      %v386 = vadd.f32 0.0, %v385
      %387 = vmatmul.f32.gmra.mxu0 %v345
      %v388 = vpop.f32.mrf.mxu0
      %v389 = vadd.f32 0.0, %v388
      %390 = vmatmul.f32.gmra.mxu0 %v348
      %v391 = vpop.f32.mrf.mxu0
      %v392 = vadd.f32 0.0, %v391
      %393 = vmatmul.f32.gmra.mxu0 %v351
      %v394 = vpop.f32.mrf.mxu0
      %v395 = vadd.f32 0.0, %v394
      %396 = vmatmul.f32.gmra.mxu0 %v354
      %v397 = vpop.f32.mrf.mxu0
      %v398 = vadd.f32 0.0, %v397
      %399 = vmatmul.f32.gmra.mxu0 %v357
      %v400 = vpop.f32.mrf.mxu0
      %v401 = vadd.f32 0.0, %v400
      %402 = vmatmul.f32.gmra.mxu0 %v360
      %v403 = vpop.f32.mrf.mxu0
      %v404 = vadd.f32 0.0, %v403
      %405 = vmatmul.f32.gmra.mxu0 %v363
      %v406 = vpop.f32.mrf.mxu0
      %v407 = vadd.f32 0.0, %v406
      %408 = vdwg.mxu0
      %v409 = vadd.f32 %v307, %v386
      %v410 = vadd.f32 %v310, %v389
      %v411 = vadd.f32 %v313, %v392
      %v412 = vadd.f32 %v316, %v395
      %v413 = vadd.f32 %v319, %v398
      %v414 = vadd.f32 %v322, %v401
      %v415 = vadd.f32 %v325, %v404
      %v416 = vadd.f32 %v328, %v407
      %s417 = scalar_lea.vmem %s165, 16
      %v418 = vld [vmem:[%s417] sm:$0xff]
      %v419 = vld [vmem:[%s417 + $0x10] sm:$0xff]
      %v420 = vld [vmem:[%s417 + $0x20] sm:$0xff]
      %v421 = vld [vmem:[%s417 + $0x30] sm:$0xff]
      %v422 = vld [vmem:[%s417 + $0x40] sm:$0xff]
      %v423 = vld [vmem:[%s417 + $0x50] sm:$0xff]
      %v424 = vld [vmem:[%s417 + $0x60] sm:$0xff]
      %v425 = vld [vmem:[%s417 + $0x70] sm:$0xff]
      %s426 = scalar_lea.vmem %s1, 48
      %v427 = vld [vmem:[%s426] sm:$0xff]
      %v428 = vld [vmem:[%s426 + $0x8] sm:$0xf]
      %v430 = vsel %vm192, %v418, 0
      %v433 = vsel %vm192, %v419, 0
      %v436 = vsel %vm192, %v420, 0
      %v439 = vsel %vm192, %v421, 0
      %v442 = vsel %vm192, %v422, 0
      %v445 = vsel %vm192, %v423, 0
      %v448 = vsel %vm192, %v424, 0
      %v451 = vsel %vm192, %v425, 0
      %v454 = vsel %vm217, %v428, 0
      %456 = vmatpush.msra.mxu0 0.0
      %457 = vmatpush.msra.mxu0 0.0
      %458 = vmatpush.msra.mxu0 0.0
      %459 = vmatpush.msra.mxu0 0.0
      %460 = vmatpush.msra.mxu0 0.0
      %461 = vmatpush.msra.mxu0 0.0
      %462 = vmatpush.msra.mxu0 0.0
      %463 = vmatpush.msra.mxu0 0.0
      %464 = vmatpush.msra.mxu0 0.0
      %465 = vmatpush.msra.mxu0 0.0
      %466 = vmatpush.msra.mxu0 0.0
      %467 = vmatpush.msra.mxu0 0.0
      %468 = vmatpush.msra.mxu0 0.0
      %469 = vmatpush.msra.mxu0 0.0
      %470 = vmatpush.msra.mxu0 %v454
      %471 = vmatpush.msra.mxu0 %v427
      %472 = vmatmul.f32.gmra.mxu0 %v430
      %v473 = vpop.f32.mrf.mxu0
      %v474 = vadd.f32 0.0, %v473
      %475 = vmatmul.f32.gmra.mxu0 %v433
      %v476 = vpop.f32.mrf.mxu0
      %v477 = vadd.f32 0.0, %v476
      %478 = vmatmul.f32.gmra.mxu0 %v436
      %v479 = vpop.f32.mrf.mxu0
      %v480 = vadd.f32 0.0, %v479
      %481 = vmatmul.f32.gmra.mxu0 %v439
      %v482 = vpop.f32.mrf.mxu0
      %v483 = vadd.f32 0.0, %v482
      %484 = vmatmul.f32.gmra.mxu0 %v442
      %v485 = vpop.f32.mrf.mxu0
      %v486 = vadd.f32 0.0, %v485
      %487 = vmatmul.f32.gmra.mxu0 %v445
      %v488 = vpop.f32.mrf.mxu0
      %v489 = vadd.f32 0.0, %v488
      %490 = vmatmul.f32.gmra.mxu0 %v448
      %v491 = vpop.f32.mrf.mxu0
      %v492 = vadd.f32 0.0, %v491
      %493 = vmatmul.f32.gmra.mxu0 %v451
      %v494 = vpop.f32.mrf.mxu0
      %v495 = vadd.f32 0.0, %v494
      %496 = vdwg.mxu0
      %v497 = vadd.f32 %v409, %v474
      %v498 = vadd.f32 %v410, %v477
      %v499 = vadd.f32 %v411, %v480
      %v500 = vadd.f32 %v412, %v483
      %v501 = vadd.f32 %v413, %v486
      %v502 = vadd.f32 %v414, %v489
      %v503 = vadd.f32 %v415, %v492
      %v504 = vadd.f32 %v416, %v495
      %v505 = vld [vmem:[%s417 + $0x1] sm:$0xff]
      %v506 = vld [vmem:[%s417 + $0x11] sm:$0xff]
      %v507 = vld [vmem:[%s417 + $0x21] sm:$0xff]
      %v508 = vld [vmem:[%s417 + $0x31] sm:$0xff]
      %v509 = vld [vmem:[%s417 + $0x41] sm:$0xff]
      %v510 = vld [vmem:[%s417 + $0x51] sm:$0xff]
      %v511 = vld [vmem:[%s417 + $0x61] sm:$0xff]
      %v512 = vld [vmem:[%s417 + $0x71] sm:$0xff]
      %s513 = scalar_lea.vmem %s1, 64
      %v514 = vld [vmem:[%s513] sm:$0xff]
      %v515 = vld [vmem:[%s513 + $0x8] sm:$0xf]
      %v517 = vsel %vm192, %v505, 0
      %v520 = vsel %vm192, %v506, 0
      %v523 = vsel %vm192, %v507, 0
      %v526 = vsel %vm192, %v508, 0
      %v529 = vsel %vm192, %v509, 0
      %v532 = vsel %vm192, %v510, 0
      %v535 = vsel %vm192, %v511, 0
      %v538 = vsel %vm192, %v512, 0
      %v541 = vsel %vm217, %v515, 0
      %543 = vmatpush.msra.mxu0 0.0
      %544 = vmatpush.msra.mxu0 0.0
      %545 = vmatpush.msra.mxu0 0.0
      %546 = vmatpush.msra.mxu0 0.0
      %547 = vmatpush.msra.mxu0 0.0
      %548 = vmatpush.msra.mxu0 0.0
      %549 = vmatpush.msra.mxu0 0.0
      %550 = vmatpush.msra.mxu0 0.0
      %551 = vmatpush.msra.mxu0 0.0
      %552 = vmatpush.msra.mxu0 0.0
      %553 = vmatpush.msra.mxu0 0.0
      %554 = vmatpush.msra.mxu0 0.0
      %555 = vmatpush.msra.mxu0 0.0
      %556 = vmatpush.msra.mxu0 0.0
      %557 = vmatpush.msra.mxu0 %v541
      %558 = vmatpush.msra.mxu0 %v514
      %559 = vmatmul.f32.gmra.mxu0 %v517
      %v560 = vpop.f32.mrf.mxu0
      %v561 = vadd.f32 0.0, %v560
      %562 = vmatmul.f32.gmra.mxu0 %v520
      %v563 = vpop.f32.mrf.mxu0
      %v564 = vadd.f32 0.0, %v563
      %565 = vmatmul.f32.gmra.mxu0 %v523
      %v566 = vpop.f32.mrf.mxu0
      %v567 = vadd.f32 0.0, %v566
      %568 = vmatmul.f32.gmra.mxu0 %v526
      %v569 = vpop.f32.mrf.mxu0
      %v570 = vadd.f32 0.0, %v569
      %571 = vmatmul.f32.gmra.mxu0 %v529
      %v572 = vpop.f32.mrf.mxu0
      %v573 = vadd.f32 0.0, %v572
      %574 = vmatmul.f32.gmra.mxu0 %v532
      %v575 = vpop.f32.mrf.mxu0
      %v576 = vadd.f32 0.0, %v575
      %577 = vmatmul.f32.gmra.mxu0 %v535
      %v578 = vpop.f32.mrf.mxu0
      %v579 = vadd.f32 0.0, %v578
      %580 = vmatmul.f32.gmra.mxu0 %v538
      %v581 = vpop.f32.mrf.mxu0
      %v582 = vadd.f32 0.0, %v581
      %583 = vdwg.mxu0
      %v584 = vadd.f32 %v497, %v561
      %v585 = vadd.f32 %v498, %v564
      %v586 = vadd.f32 %v499, %v567
      %v587 = vadd.f32 %v500, %v570
      %v588 = vadd.f32 %v501, %v573
      %v589 = vadd.f32 %v502, %v576
      %v590 = vadd.f32 %v503, %v579
      %v591 = vadd.f32 %v504, %v582
      %v592 = vld [vmem:[%s417 + $0x2] sm:$0xff]
      %v593 = vld [vmem:[%s417 + $0x12] sm:$0xff]
      %v594 = vld [vmem:[%s417 + $0x22] sm:$0xff]
      %v595 = vld [vmem:[%s417 + $0x32] sm:$0xff]
      %v596 = vld [vmem:[%s417 + $0x42] sm:$0xff]
      %v597 = vld [vmem:[%s417 + $0x52] sm:$0xff]
      %v598 = vld [vmem:[%s417 + $0x62] sm:$0xff]
      %v599 = vld [vmem:[%s417 + $0x72] sm:$0xff]
      %s600 = scalar_lea.vmem %s1, 80
      %v601 = vld [vmem:[%s600] sm:$0xff]
      %v602 = vld [vmem:[%s600 + $0x8] sm:$0xf]
      %v604 = vsel %vm192, %v592, 0
      %v607 = vsel %vm192, %v593, 0
      %v610 = vsel %vm192, %v594, 0
      %v613 = vsel %vm192, %v595, 0
      %v616 = vsel %vm192, %v596, 0
      %v619 = vsel %vm192, %v597, 0
      %v622 = vsel %vm192, %v598, 0
      %v625 = vsel %vm192, %v599, 0
      %v628 = vsel %vm217, %v602, 0
      %630 = vmatpush.msra.mxu0 0.0
      %631 = vmatpush.msra.mxu0 0.0
      %632 = vmatpush.msra.mxu0 0.0
      %633 = vmatpush.msra.mxu0 0.0
      %634 = vmatpush.msra.mxu0 0.0
      %635 = vmatpush.msra.mxu0 0.0
      %636 = vmatpush.msra.mxu0 0.0
      %637 = vmatpush.msra.mxu0 0.0
      %638 = vmatpush.msra.mxu0 0.0
      %639 = vmatpush.msra.mxu0 0.0
      %640 = vmatpush.msra.mxu0 0.0
      %641 = vmatpush.msra.mxu0 0.0
      %642 = vmatpush.msra.mxu0 0.0
      %643 = vmatpush.msra.mxu0 0.0
      %644 = vmatpush.msra.mxu0 %v628
      %645 = vmatpush.msra.mxu0 %v601
      %646 = vmatmul.f32.gmra.mxu0 %v604
      %v647 = vpop.f32.mrf.mxu0
      %v648 = vadd.f32 0.0, %v647
      %649 = vmatmul.f32.gmra.mxu0 %v607
      %v650 = vpop.f32.mrf.mxu0
      %v651 = vadd.f32 0.0, %v650
      %652 = vmatmul.f32.gmra.mxu0 %v610
      %v653 = vpop.f32.mrf.mxu0
      %v654 = vadd.f32 0.0, %v653
      %655 = vmatmul.f32.gmra.mxu0 %v613
      %v656 = vpop.f32.mrf.mxu0
      %v657 = vadd.f32 0.0, %v656
      %658 = vmatmul.f32.gmra.mxu0 %v616
      %v659 = vpop.f32.mrf.mxu0
      %v660 = vadd.f32 0.0, %v659
      %661 = vmatmul.f32.gmra.mxu0 %v619
      %v662 = vpop.f32.mrf.mxu0
      %v663 = vadd.f32 0.0, %v662
      %664 = vmatmul.f32.gmra.mxu0 %v622
      %v665 = vpop.f32.mrf.mxu0
      %v666 = vadd.f32 0.0, %v665
      %667 = vmatmul.f32.gmra.mxu0 %v625
      %v668 = vpop.f32.mrf.mxu0
      %v669 = vadd.f32 0.0, %v668
      %670 = vdwg.mxu0
      %v671 = vadd.f32 %v584, %v648
      %v672 = vadd.f32 %v585, %v651
      %v673 = vadd.f32 %v586, %v654
      %v674 = vadd.f32 %v587, %v657
      %v675 = vadd.f32 %v588, %v660
      %v676 = vadd.f32 %v589, %v663
      %v677 = vadd.f32 %v590, %v666
      %v678 = vadd.f32 %v591, %v669
      %s679 = scalar_lea.vmem %s165, 32
      %v680 = vld [vmem:[%s679] sm:$0xff]
      %v681 = vld [vmem:[%s679 + $0x10] sm:$0xff]
      %v682 = vld [vmem:[%s679 + $0x20] sm:$0xff]
      %v683 = vld [vmem:[%s679 + $0x30] sm:$0xff]
      %v684 = vld [vmem:[%s679 + $0x40] sm:$0xff]
      %v685 = vld [vmem:[%s679 + $0x50] sm:$0xff]
      %v686 = vld [vmem:[%s679 + $0x60] sm:$0xff]
      %v687 = vld [vmem:[%s679 + $0x70] sm:$0xff]
      %s688 = scalar_lea.vmem %s1, 96
      %v689 = vld [vmem:[%s688] sm:$0xff]
      %v690 = vld [vmem:[%s688 + $0x8] sm:$0xf]
      %v692 = vsel %vm192, %v680, 0
      %v695 = vsel %vm192, %v681, 0
      %v698 = vsel %vm192, %v682, 0
      %v701 = vsel %vm192, %v683, 0
      %v704 = vsel %vm192, %v684, 0
      %v707 = vsel %vm192, %v685, 0
      %v710 = vsel %vm192, %v686, 0
      %v713 = vsel %vm192, %v687, 0
      %v716 = vsel %vm217, %v690, 0
      %718 = vmatpush.msra.mxu0 0.0
      %719 = vmatpush.msra.mxu0 0.0
      %720 = vmatpush.msra.mxu0 0.0
      %721 = vmatpush.msra.mxu0 0.0
      %722 = vmatpush.msra.mxu0 0.0
      %723 = vmatpush.msra.mxu0 0.0
      %724 = vmatpush.msra.mxu0 0.0
      %725 = vmatpush.msra.mxu0 0.0
      %726 = vmatpush.msra.mxu0 0.0
      %727 = vmatpush.msra.mxu0 0.0
      %728 = vmatpush.msra.mxu0 0.0
      %729 = vmatpush.msra.mxu0 0.0
      %730 = vmatpush.msra.mxu0 0.0
      %731 = vmatpush.msra.mxu0 0.0
      %732 = vmatpush.msra.mxu0 %v716
      %733 = vmatpush.msra.mxu0 %v689
      %734 = vmatmul.f32.gmra.mxu0 %v692
      %v735 = vpop.f32.mrf.mxu0
      %v736 = vadd.f32 0.0, %v735
      %737 = vmatmul.f32.gmra.mxu0 %v695
      %v738 = vpop.f32.mrf.mxu0
      %v739 = vadd.f32 0.0, %v738
      %740 = vmatmul.f32.gmra.mxu0 %v698
      %v741 = vpop.f32.mrf.mxu0
      %v742 = vadd.f32 0.0, %v741
      %743 = vmatmul.f32.gmra.mxu0 %v701
      %v744 = vpop.f32.mrf.mxu0
      %v745 = vadd.f32 0.0, %v744
      %746 = vmatmul.f32.gmra.mxu0 %v704
      %v747 = vpop.f32.mrf.mxu0
      %v748 = vadd.f32 0.0, %v747
      %749 = vmatmul.f32.gmra.mxu0 %v707
      %v750 = vpop.f32.mrf.mxu0
      %v751 = vadd.f32 0.0, %v750
      %752 = vmatmul.f32.gmra.mxu0 %v710
      %v753 = vpop.f32.mrf.mxu0
      %v754 = vadd.f32 0.0, %v753
      %755 = vmatmul.f32.gmra.mxu0 %v713
      %v756 = vpop.f32.mrf.mxu0
      %v757 = vadd.f32 0.0, %v756
      %758 = vdwg.mxu0
      %v759 = vadd.f32 %v671, %v736
      %v760 = vadd.f32 %v672, %v739
      %v761 = vadd.f32 %v673, %v742
      %v762 = vadd.f32 %v674, %v745
      %v763 = vadd.f32 %v675, %v748
      %v764 = vadd.f32 %v676, %v751
      %v765 = vadd.f32 %v677, %v754
      %v766 = vadd.f32 %v678, %v757
      %v767 = vld [vmem:[%s679 + $0x1] sm:$0xff]
      %v768 = vld [vmem:[%s679 + $0x11] sm:$0xff]
      %v769 = vld [vmem:[%s679 + $0x21] sm:$0xff]
      %v770 = vld [vmem:[%s679 + $0x31] sm:$0xff]
      %v771 = vld [vmem:[%s679 + $0x41] sm:$0xff]
      %v772 = vld [vmem:[%s679 + $0x51] sm:$0xff]
      %v773 = vld [vmem:[%s679 + $0x61] sm:$0xff]
      %v774 = vld [vmem:[%s679 + $0x71] sm:$0xff]
      %s775 = scalar_lea.vmem %s1, 112
      %v776 = vld [vmem:[%s775] sm:$0xff]
      %v777 = vld [vmem:[%s775 + $0x8] sm:$0xf]
      %v779 = vsel %vm192, %v767, 0
      %v782 = vsel %vm192, %v768, 0
      %v785 = vsel %vm192, %v769, 0
      %v788 = vsel %vm192, %v770, 0
      %v791 = vsel %vm192, %v771, 0
      %v794 = vsel %vm192, %v772, 0
      %v797 = vsel %vm192, %v773, 0
      %v800 = vsel %vm192, %v774, 0
      %v803 = vsel %vm217, %v777, 0
      %805 = vmatpush.msra.mxu0 0.0
      %806 = vmatpush.msra.mxu0 0.0
      %807 = vmatpush.msra.mxu0 0.0
      %808 = vmatpush.msra.mxu0 0.0
      %809 = vmatpush.msra.mxu0 0.0
      %810 = vmatpush.msra.mxu0 0.0
      %811 = vmatpush.msra.mxu0 0.0
      %812 = vmatpush.msra.mxu0 0.0
      %813 = vmatpush.msra.mxu0 0.0
      %814 = vmatpush.msra.mxu0 0.0
      %815 = vmatpush.msra.mxu0 0.0
      %816 = vmatpush.msra.mxu0 0.0
      %817 = vmatpush.msra.mxu0 0.0
      %818 = vmatpush.msra.mxu0 0.0
      %819 = vmatpush.msra.mxu0 %v803
      %820 = vmatpush.msra.mxu0 %v776
      %821 = vmatmul.f32.gmra.mxu0 %v779
      %v822 = vpop.f32.mrf.mxu0
      %v823 = vadd.f32 0.0, %v822
      %824 = vmatmul.f32.gmra.mxu0 %v782
      %v825 = vpop.f32.mrf.mxu0
      %v826 = vadd.f32 0.0, %v825
      %827 = vmatmul.f32.gmra.mxu0 %v785
      %v828 = vpop.f32.mrf.mxu0
      %v829 = vadd.f32 0.0, %v828
      %830 = vmatmul.f32.gmra.mxu0 %v788
      %v831 = vpop.f32.mrf.mxu0
      %v832 = vadd.f32 0.0, %v831
      %833 = vmatmul.f32.gmra.mxu0 %v791
      %v834 = vpop.f32.mrf.mxu0
      %v835 = vadd.f32 0.0, %v834
      %836 = vmatmul.f32.gmra.mxu0 %v794
      %v837 = vpop.f32.mrf.mxu0
      %v838 = vadd.f32 0.0, %v837
      %839 = vmatmul.f32.gmra.mxu0 %v797
      %v840 = vpop.f32.mrf.mxu0
      %v841 = vadd.f32 0.0, %v840
      %842 = vmatmul.f32.gmra.mxu0 %v800
      %v843 = vpop.f32.mrf.mxu0
      %v844 = vadd.f32 0.0, %v843
      %845 = vdwg.mxu0
      %v846 = vadd.f32 %v759, %v823
      %v847 = vadd.f32 %v760, %v826
      %v848 = vadd.f32 %v761, %v829
      %v849 = vadd.f32 %v762, %v832
      %v850 = vadd.f32 %v763, %v835
      %v851 = vadd.f32 %v764, %v838
      %v852 = vadd.f32 %v765, %v841
      %v853 = vadd.f32 %v766, %v844
      %v854 = vld [vmem:[%s679 + $0x2] sm:$0xff]
      %v855 = vld [vmem:[%s679 + $0x12] sm:$0xff]
      %v856 = vld [vmem:[%s679 + $0x22] sm:$0xff]
      %v857 = vld [vmem:[%s679 + $0x32] sm:$0xff]
      %v858 = vld [vmem:[%s679 + $0x42] sm:$0xff]
      %v859 = vld [vmem:[%s679 + $0x52] sm:$0xff]
      %v860 = vld [vmem:[%s679 + $0x62] sm:$0xff]
      %v861 = vld [vmem:[%s679 + $0x72] sm:$0xff]
      %s862 = scalar_lea.vmem %s1, 128
      %v863 = vld [vmem:[%s862] sm:$0xff]
      %v864 = vld [vmem:[%s862 + $0x8] sm:$0xf]
      %v866 = vsel %vm192, %v854, 0
      %v869 = vsel %vm192, %v855, 0
      %v872 = vsel %vm192, %v856, 0
      %v875 = vsel %vm192, %v857, 0
      %v878 = vsel %vm192, %v858, 0
      %v881 = vsel %vm192, %v859, 0
      %v884 = vsel %vm192, %v860, 0
      %v887 = vsel %vm192, %v861, 0
      %v890 = vsel %vm217, %v864, 0
      %892 = vmatpush.msra.mxu0 0.0
      %893 = vmatpush.msra.mxu0 0.0
      %894 = vmatpush.msra.mxu0 0.0
      %895 = vmatpush.msra.mxu0 0.0
      %896 = vmatpush.msra.mxu0 0.0
      %897 = vmatpush.msra.mxu0 0.0
      %898 = vmatpush.msra.mxu0 0.0
      %899 = vmatpush.msra.mxu0 0.0
      %900 = vmatpush.msra.mxu0 0.0
      %901 = vmatpush.msra.mxu0 0.0
      %902 = vmatpush.msra.mxu0 0.0
      %903 = vmatpush.msra.mxu0 0.0
      %904 = vmatpush.msra.mxu0 0.0
      %905 = vmatpush.msra.mxu0 0.0
      %906 = vmatpush.msra.mxu0 %v890
      %907 = vmatpush.msra.mxu0 %v863
      %908 = vmatmul.f32.gmra.mxu0 %v866
      %v909 = vpop.f32.mrf.mxu0
      %v910 = vadd.f32 0.0, %v909
      %911 = vmatmul.f32.gmra.mxu0 %v869
      %v912 = vpop.f32.mrf.mxu0
      %v913 = vadd.f32 0.0, %v912
      %914 = vmatmul.f32.gmra.mxu0 %v872
      %v915 = vpop.f32.mrf.mxu0
      %v916 = vadd.f32 0.0, %v915
      %917 = vmatmul.f32.gmra.mxu0 %v875
      %v918 = vpop.f32.mrf.mxu0
      %v919 = vadd.f32 0.0, %v918
      %920 = vmatmul.f32.gmra.mxu0 %v878
      %v921 = vpop.f32.mrf.mxu0
      %v922 = vadd.f32 0.0, %v921
      %923 = vmatmul.f32.gmra.mxu0 %v881
      %v924 = vpop.f32.mrf.mxu0
      %v925 = vadd.f32 0.0, %v924
      %926 = vmatmul.f32.gmra.mxu0 %v884
      %v927 = vpop.f32.mrf.mxu0
      %v928 = vadd.f32 0.0, %v927
      %929 = vmatmul.f32.gmra.mxu0 %v887
      %v930 = vpop.f32.mrf.mxu0
      %v931 = vadd.f32 0.0, %v930
      %932 = vdwg.mxu0
      %v933 = vadd.f32 %v846, %v910
      %v934 = vadd.f32 %v847, %v913
      %v935 = vadd.f32 %v848, %v916
      %v936 = vadd.f32 %v849, %v919
      %v937 = vadd.f32 %v850, %v922
      %v938 = vadd.f32 %v851, %v925
      %v939 = vadd.f32 %v852, %v928
      %v940 = vadd.f32 %v853, %v931
      %v941 = vld [vmem:[%s2] sm:$0x1]
      %v943 = vperm.slane %v941, 0
      %v945 = vadd.f32 %v933, %v943
      %v946 = vadd.f32 %v934, %v943
      %v947 = vadd.f32 %v935, %v943
      %v948 = vadd.f32 %v936, %v943
      %v949 = vadd.f32 %v937, %v943
      %v950 = vadd.f32 %v938, %v943
      %v951 = vadd.f32 %v939, %v943
      %v952 = vadd.f32 %v940, %v943
      %953 = vst.msk [vmem:[%s170] sm:$0xff] %vm192, %v945
      %954 = vst.msk [vmem:[%s170 + $0x8] sm:$0xff] %vm192, %v946
      %955 = vst.msk [vmem:[%s170 + $0x10] sm:$0xff] %vm192, %v947
      %956 = vst.msk [vmem:[%s170 + $0x18] sm:$0xff] %vm192, %v948
      %957 = vst.msk [vmem:[%s170 + $0x20] sm:$0xff] %vm192, %v949
      %958 = vst.msk [vmem:[%s170 + $0x28] sm:$0xff] %vm192, %v950
      %959 = vst.msk [vmem:[%s170 + $0x30] sm:$0xff] %vm192, %v951
      %960 = vst.msk [vmem:[%s170 + $0x38] sm:$0xff] %vm192, %v952
      %p961 = scmp.lt.s32.totalorder %s14, 1
      %s962 = scalar_select %p961, %s14, 1
      %s963 = smul.addr %s962, 8
      %s964 = smul.addr %s963, 8
      %s965 = scalar_lea.vmem %s3, %s964
      // Predicated region
      $region33: #{_lambda_.4} parent=31 // pred_check
        %p966 = pneg %p100
      $region34: #{_lambda_.4} parent=31 // pred_check_branch
        %968 = sbr.rel (%p966) target = $region36
      $region35: #{_lambda_.4} parent=31 // pred_region
        _
      $region36: #{_lambda_.4} parent=31 // pred_fallthru
        _
    $region32: #{_lambda_.4} parent=5 // pred_fallthru
      _
    %p969 = scmp.le.s32.totalorder 2, %s9
    // Predicated region
    $region37: #{_lambda_.4} parent=5 // pred_check
      %p970 = pneg %p969
    $region38: #{_lambda_.4} parent=5 // pred_check_branch
      %972 = sbr.rel (%p970) target = $region40
    $region39: #{_lambda_.4} parent=5 // pred_region
      %s973 = ssub.s32 %s9, 2
      // Predicated region
      $region41: #{_lambda_.4} parent=39 // pred_check
        %p974 = pneg %p106
      $region42: #{_lambda_.4} parent=39 // pred_check_branch
        %976 = sbr.rel (%p974) target = $region44
      $region43: #{_lambda_.4} parent=39 // pred_region
        %p977 = scmp.lt.s32.totalorder %s15, 1
        %s978 = scalar_select %p977, %s15, 1
        %s979 = smul.addr %s978, 8
        %s980 = smul.addr %s979, 8
        %s981 = scalar_lea.vmem %s3, %s980
      $region44: #{_lambda_.4} parent=39 // pred_fallthru
        _
    $region40: #{_lambda_.4} parent=5 // pred_fallthru
      _
  $region6: #{_lambda_.4} parent=0 // loop_footer
    %s13 = sadd.s32 1, %s9
  $region7: #{_lambda_.4} parent=0 // loop_footer_branch
    %8 = sbr.rel target = $region3
  $region8: #{_lambda_.4} parent=0 // loop_exit
    _

// kernel: _lambda_.5
$region0: #{_lambda_.5}
  #allocation0 [shape = 'u32[]', space=smem, size = 0x4, offset = 0x4, fixed_abs, tag = 'smem constant byte address 0x4 - core index']
  #allocation1 [shape = 'u32[72,128]{1,0:T(1,128)}', space=vmem, size = 0x9000, scoped, tag = 'internal scratch']
  %s0 = inlined_call_operand.vmem [shape: f32[8,16,12], index: 0, kind: input, shape index: {}]
  %s1 = inlined_call_operand.vmem [shape: f32[6,1,16,16], index: 1, kind: input, shape index: {}]
  %s2 = inlined_call_operand.vmem [shape: f32[1,12], index: 2, kind: input, shape index: {}]
  %s3 = inlined_call_operand.vmem [shape: f32[1,12], index: 3, kind: input, shape index: {}]
  %s4 = inlined_call_operand.vmem [shape: f32[12,36], index: 4, kind: input, shape index: {}]
  %s5 = inlined_call_operand.vmem [shape: f32[12,12], index: 5, kind: input, shape index: {}]
  %s6 = inlined_call_operand.vmem [shape: f32[1,12], index: 6, kind: input, shape index: {}]
  %s7 = inlined_call_operand.vmem [shape: f32[1,12], index: 7, kind: input, shape index: {}]
  %s8 = inlined_call_operand.vmem [shape: f32[1,12], index: 8, kind: input, shape index: {}]
  %s9 = inlined_call_operand.vmem [shape: f32[12,24], index: 9, kind: input, shape index: {}]
  %s10 = inlined_call_operand.vmem [shape: f32[1,24], index: 10, kind: input, shape index: {}]
  %s11 = inlined_call_operand.vmem [shape: f32[24,12], index: 11, kind: input, shape index: {}]
  %s12 = inlined_call_operand.vmem [shape: f32[1,12], index: 12, kind: input, shape index: {}]
  %s13 = inlined_call_operand.vmem [shape: f32[8,16,12], index: 13, kind: output, shape index: {}]
  %s14 = sld [smem:[#allocation0]]
  $region85: #{_lambda_.5} parent=0
    _
  %s16 = ssub.s32 1, %s14
  %s17 = scalar_select 0, %s16, %s14
  loop: start=0, step=1, limit=4
  $region2: #{_lambda_.5} parent=0 // loop_pre_header
    _
  $region3: #{_lambda_.5} parent=0 // loop_header
    %s19 = sphi 0, %s23
    %p20 = scmp.ge.s32.totalorder %s19, 4
    %s29 = sphi 0, %s31
    %s32 = sphi 0, %s29
    %s33 = sphi 0, %s32
    %s49 = sphi 0, %s33
    %s53 = sphi 0, %s53
    %s55 = sphi 0, %s53
    %s56 = sphi 0, %s55
    %s70 = sphi 0, %s56
    %s74 = sphi 0, %s74
    %s76 = sphi 0, %s74
    %s77 = sphi 0, %s76
    %s91 = sphi 0, %s77
    %s95 = sphi 0, %s95
    %s97 = sphi 0, %s95
    %s98 = sphi 0, %s97
    %s112 = sphi 0, %s98
    %s116 = sphi 0, %s116
    %s118 = sphi 0, %s116
    %s119 = sphi 0, %s118
    %s133 = sphi 0, %s119
    %s137 = sphi 0, %s137
    %s139 = sphi 0, %s137
    %s140 = sphi 0, %s139
    %s154 = sphi 0, %s140
    %s158 = sphi 0, %s158
    %s160 = sphi 0, %s158
    %s161 = sphi 0, %s160
    %s175 = sphi 0, %s161
    %s179 = sphi 0, %s179
    %s181 = sphi 0, %s179
    %s182 = sphi 0, %s181
    %s196 = sphi 0, %s182
    %s200 = sphi 0, %s200
    %s202 = sphi 0, %s200
    %s203 = sphi 0, %s202
    %s217 = sphi 0, %s203
    %s221 = sphi 0, %s221
    %s223 = sphi 0, %s221
    %s224 = sphi 0, %s223
    %s238 = sphi 0, %s224
    %s242 = sphi 0, %s242
    %s244 = sphi 0, %s242
    %s245 = sphi 0, %s244
    %s259 = sphi 0, %s245
    %s263 = sphi 0, %s263
    %s265 = sphi 0, %s263
    %s266 = sphi 0, %s265
    %s280 = sphi 0, %s266
    %s284 = sphi 0, %s284
    %s286 = sphi 0, %s284
    %s287 = sphi 0, %s286
    %s301 = sphi 0, %s287
    %s307 = sphi 0, %s309
    %s310 = sphi 0, %s307
    %s311 = sphi 0, %s310
    %s327 = sphi 0, %s311
  $region4: #{_lambda_.5} parent=0 // loop_header_branch
    %22 = sbr.rel (%p20) target = $region8
  $region5: #{_lambda_.5} parent=0 // loop_body
    %s24 = ssub.s32 %s19, 1
    %s25 = ssub.s32 %s19, 2
    %s26 = sadd.s32 %s19, 1
    %s27 = ssub.s32 %s19, %s26
    %p28 = scmp.eq.s32.totalorder %s27, 0
    %s30 = sadd.s32 %s29, 1
    %s31 = scalar_select %p28, %s29, %s30
    %p34 = pneg %p28
    %p35 = scmp.eq.s32.totalorder %s19, 1
    %p36 = por %p34, %p35
    %p37 = scmp.ne.s32.totalorder %s29, %s32
    %p38 = scmp.eq.s32.totalorder %s19, 0
    %p39 = por %p37, %p38
    %p40 = scmp.ne.s32.totalorder %s29, %s32
    %p41 = scmp.eq.s32.totalorder %s24, 1
    %p42 = por %p40, %p41
    %p43 = scmp.ne.s32.totalorder %s32, %s33
    %p44 = scmp.eq.s32.totalorder %s24, 0
    %p45 = por %p43, %p44
    %p46 = scmp.ne.s32.totalorder %s32, %s33
    %p47 = scmp.eq.s32.totalorder %s25, 1
    %p48 = por %p46, %p47
    %p50 = scmp.ne.s32.totalorder %s33, %s49
    %p51 = scmp.eq.s32.totalorder %s25, 0
    %p52 = por %p50, %p51
    %s54 = sadd.s32 %s53, 1
    %p57 = scmp.eq.s32.totalorder %s19, 1
    %p58 = scmp.ne.s32.totalorder %s53, %s55
    %p59 = scmp.eq.s32.totalorder %s19, 0
    %p60 = por %p58, %p59
    %p61 = scmp.ne.s32.totalorder %s53, %s55
    %p62 = scmp.eq.s32.totalorder %s24, 1
    %p63 = por %p61, %p62
    %p64 = scmp.ne.s32.totalorder %s55, %s56
    %p65 = scmp.eq.s32.totalorder %s24, 0
    %p66 = por %p64, %p65
    %p67 = scmp.ne.s32.totalorder %s55, %s56
    %p68 = scmp.eq.s32.totalorder %s25, 1
    %p69 = por %p67, %p68
    %p71 = scmp.ne.s32.totalorder %s56, %s70
    %p72 = scmp.eq.s32.totalorder %s25, 0
    %p73 = por %p71, %p72
    %s75 = sadd.s32 %s74, 1
    %p78 = scmp.eq.s32.totalorder %s19, 1
    %p79 = scmp.ne.s32.totalorder %s74, %s76
    %p80 = scmp.eq.s32.totalorder %s19, 0
    %p81 = por %p79, %p80
    %p82 = scmp.ne.s32.totalorder %s74, %s76
    %p83 = scmp.eq.s32.totalorder %s24, 1
    %p84 = por %p82, %p83
    %p85 = scmp.ne.s32.totalorder %s76, %s77
    %p86 = scmp.eq.s32.totalorder %s24, 0
    %p87 = por %p85, %p86
    %p88 = scmp.ne.s32.totalorder %s76, %s77
    %p89 = scmp.eq.s32.totalorder %s25, 1
    %p90 = por %p88, %p89
    %p92 = scmp.ne.s32.totalorder %s77, %s91
    %p93 = scmp.eq.s32.totalorder %s25, 0
    %p94 = por %p92, %p93
    %s96 = sadd.s32 %s95, 1
    %p99 = scmp.eq.s32.totalorder %s19, 1
    %p100 = scmp.ne.s32.totalorder %s95, %s97
    %p101 = scmp.eq.s32.totalorder %s19, 0
    %p102 = por %p100, %p101
    %p103 = scmp.ne.s32.totalorder %s95, %s97
    %p104 = scmp.eq.s32.totalorder %s24, 1
    %p105 = por %p103, %p104
    %p106 = scmp.ne.s32.totalorder %s97, %s98
    %p107 = scmp.eq.s32.totalorder %s24, 0
    %p108 = por %p106, %p107
    %p109 = scmp.ne.s32.totalorder %s97, %s98
    %p110 = scmp.eq.s32.totalorder %s25, 1
    %p111 = por %p109, %p110
    %p113 = scmp.ne.s32.totalorder %s98, %s112
    %p114 = scmp.eq.s32.totalorder %s25, 0
    %p115 = por %p113, %p114
    %s117 = sadd.s32 %s116, 1
    %p120 = scmp.eq.s32.totalorder %s19, 1
    %p121 = scmp.ne.s32.totalorder %s116, %s118
    %p122 = scmp.eq.s32.totalorder %s19, 0
    %p123 = por %p121, %p122
    %p124 = scmp.ne.s32.totalorder %s116, %s118
    %p125 = scmp.eq.s32.totalorder %s24, 1
    %p126 = por %p124, %p125
    %p127 = scmp.ne.s32.totalorder %s118, %s119
    %p128 = scmp.eq.s32.totalorder %s24, 0
    %p129 = por %p127, %p128
    %p130 = scmp.ne.s32.totalorder %s118, %s119
    %p131 = scmp.eq.s32.totalorder %s25, 1
    %p132 = por %p130, %p131
    %p134 = scmp.ne.s32.totalorder %s119, %s133
    %p135 = scmp.eq.s32.totalorder %s25, 0
    %p136 = por %p134, %p135
    %s138 = sadd.s32 %s137, 1
    %p141 = scmp.eq.s32.totalorder %s19, 1
    %p142 = scmp.ne.s32.totalorder %s137, %s139
    %p143 = scmp.eq.s32.totalorder %s19, 0
    %p144 = por %p142, %p143
    %p145 = scmp.ne.s32.totalorder %s137, %s139
    %p146 = scmp.eq.s32.totalorder %s24, 1
    %p147 = por %p145, %p146
    %p148 = scmp.ne.s32.totalorder %s139, %s140
    %p149 = scmp.eq.s32.totalorder %s24, 0
    %p150 = por %p148, %p149
    %p151 = scmp.ne.s32.totalorder %s139, %s140
    %p152 = scmp.eq.s32.totalorder %s25, 1
    %p153 = por %p151, %p152
    %p155 = scmp.ne.s32.totalorder %s140, %s154
    %p156 = scmp.eq.s32.totalorder %s25, 0
    %p157 = por %p155, %p156
    %s159 = sadd.s32 %s158, 1
    %p162 = scmp.eq.s32.totalorder %s19, 1
    %p163 = scmp.ne.s32.totalorder %s158, %s160
    %p164 = scmp.eq.s32.totalorder %s19, 0
    %p165 = por %p163, %p164
    %p166 = scmp.ne.s32.totalorder %s158, %s160
    %p167 = scmp.eq.s32.totalorder %s24, 1
    %p168 = por %p166, %p167
    %p169 = scmp.ne.s32.totalorder %s160, %s161
    %p170 = scmp.eq.s32.totalorder %s24, 0
    %p171 = por %p169, %p170
    %p172 = scmp.ne.s32.totalorder %s160, %s161
    %p173 = scmp.eq.s32.totalorder %s25, 1
    %p174 = por %p172, %p173
    %p176 = scmp.ne.s32.totalorder %s161, %s175
    %p177 = scmp.eq.s32.totalorder %s25, 0
    %p178 = por %p176, %p177
    %s180 = sadd.s32 %s179, 1
    %p183 = scmp.eq.s32.totalorder %s19, 1
    %p184 = scmp.ne.s32.totalorder %s179, %s181
    %p185 = scmp.eq.s32.totalorder %s19, 0
    %p186 = por %p184, %p185
    %p187 = scmp.ne.s32.totalorder %s179, %s181
    %p188 = scmp.eq.s32.totalorder %s24, 1
    %p189 = por %p187, %p188
    %p190 = scmp.ne.s32.totalorder %s181, %s182
    %p191 = scmp.eq.s32.totalorder %s24, 0
    %p192 = por %p190, %p191
    %p193 = scmp.ne.s32.totalorder %s181, %s182
    %p194 = scmp.eq.s32.totalorder %s25, 1
    %p195 = por %p193, %p194
    %p197 = scmp.ne.s32.totalorder %s182, %s196
    %p198 = scmp.eq.s32.totalorder %s25, 0
    %p199 = por %p197, %p198
    %s201 = sadd.s32 %s200, 1
    %p204 = scmp.eq.s32.totalorder %s19, 1
    %p205 = scmp.ne.s32.totalorder %s200, %s202
    %p206 = scmp.eq.s32.totalorder %s19, 0
    %p207 = por %p205, %p206
    %p208 = scmp.ne.s32.totalorder %s200, %s202
    %p209 = scmp.eq.s32.totalorder %s24, 1
    %p210 = por %p208, %p209
    %p211 = scmp.ne.s32.totalorder %s202, %s203
    %p212 = scmp.eq.s32.totalorder %s24, 0
    %p213 = por %p211, %p212
    %p214 = scmp.ne.s32.totalorder %s202, %s203
    %p215 = scmp.eq.s32.totalorder %s25, 1
    %p216 = por %p214, %p215
    %p218 = scmp.ne.s32.totalorder %s203, %s217
    %p219 = scmp.eq.s32.totalorder %s25, 0
    %p220 = por %p218, %p219
    %s222 = sadd.s32 %s221, 1
    %p225 = scmp.eq.s32.totalorder %s19, 1
    %p226 = scmp.ne.s32.totalorder %s221, %s223
    %p227 = scmp.eq.s32.totalorder %s19, 0
    %p228 = por %p226, %p227
    %p229 = scmp.ne.s32.totalorder %s221, %s223
    %p230 = scmp.eq.s32.totalorder %s24, 1
    %p231 = por %p229, %p230
    %p232 = scmp.ne.s32.totalorder %s223, %s224
    %p233 = scmp.eq.s32.totalorder %s24, 0
    %p234 = por %p232, %p233
    %p235 = scmp.ne.s32.totalorder %s223, %s224
    %p236 = scmp.eq.s32.totalorder %s25, 1
    %p237 = por %p235, %p236
    %p239 = scmp.ne.s32.totalorder %s224, %s238
    %p240 = scmp.eq.s32.totalorder %s25, 0
    %p241 = por %p239, %p240
    %s243 = sadd.s32 %s242, 1
    %p246 = scmp.eq.s32.totalorder %s19, 1
    %p247 = scmp.ne.s32.totalorder %s242, %s244
    %p248 = scmp.eq.s32.totalorder %s19, 0
    %p249 = por %p247, %p248
    %p250 = scmp.ne.s32.totalorder %s242, %s244
    %p251 = scmp.eq.s32.totalorder %s24, 1
    %p252 = por %p250, %p251
    %p253 = scmp.ne.s32.totalorder %s244, %s245
    %p254 = scmp.eq.s32.totalorder %s24, 0
    %p255 = por %p253, %p254
    %p256 = scmp.ne.s32.totalorder %s244, %s245
    %p257 = scmp.eq.s32.totalorder %s25, 1
    %p258 = por %p256, %p257
    %p260 = scmp.ne.s32.totalorder %s245, %s259
    %p261 = scmp.eq.s32.totalorder %s25, 0
    %p262 = por %p260, %p261
    %s264 = sadd.s32 %s263, 1
    %p267 = scmp.eq.s32.totalorder %s19, 1
    %p268 = scmp.ne.s32.totalorder %s263, %s265
    %p269 = scmp.eq.s32.totalorder %s19, 0
    %p270 = por %p268, %p269
    %p271 = scmp.ne.s32.totalorder %s263, %s265
    %p272 = scmp.eq.s32.totalorder %s24, 1
    %p273 = por %p271, %p272
    %p274 = scmp.ne.s32.totalorder %s265, %s266
    %p275 = scmp.eq.s32.totalorder %s24, 0
    %p276 = por %p274, %p275
    %p277 = scmp.ne.s32.totalorder %s265, %s266
    %p278 = scmp.eq.s32.totalorder %s25, 1
    %p279 = por %p277, %p278
    %p281 = scmp.ne.s32.totalorder %s266, %s280
    %p282 = scmp.eq.s32.totalorder %s25, 0
    %p283 = por %p281, %p282
    %s285 = sadd.s32 %s284, 1
    %p288 = scmp.eq.s32.totalorder %s19, 1
    %p289 = scmp.ne.s32.totalorder %s284, %s286
    %p290 = scmp.eq.s32.totalorder %s19, 0
    %p291 = por %p289, %p290
    %p292 = scmp.ne.s32.totalorder %s284, %s286
    %p293 = scmp.eq.s32.totalorder %s24, 1
    %p294 = por %p292, %p293
    %p295 = scmp.ne.s32.totalorder %s286, %s287
    %p296 = scmp.eq.s32.totalorder %s24, 0
    %p297 = por %p295, %p296
    %p298 = scmp.ne.s32.totalorder %s286, %s287
    %p299 = scmp.eq.s32.totalorder %s25, 1
    %p300 = por %p298, %p299
    %p302 = scmp.ne.s32.totalorder %s287, %s301
    %p303 = scmp.eq.s32.totalorder %s25, 0
    %p304 = por %p302, %p303
    %s305 = ssub.s32 %s19, %s26
    %p306 = scmp.eq.s32.totalorder %s305, 0
    %s308 = sadd.s32 %s307, 1
    %s309 = scalar_select %p306, %s307, %s308
    %p312 = pneg %p306
    %p313 = scmp.eq.s32.totalorder %s19, 1
    %p314 = por %p312, %p313
    %p315 = scmp.ne.s32.totalorder %s307, %s310
    %p316 = scmp.eq.s32.totalorder %s19, 0
    %p317 = por %p315, %p316
    %p318 = scmp.ne.s32.totalorder %s307, %s310
    %p319 = scmp.eq.s32.totalorder %s24, 1
    %p320 = por %p318, %p319
    %p321 = scmp.ne.s32.totalorder %s310, %s311
    %p322 = scmp.eq.s32.totalorder %s24, 0
    %p323 = por %p321, %p322
    %p324 = scmp.ne.s32.totalorder %s310, %s311
    %p325 = scmp.eq.s32.totalorder %s25, 1
    %p326 = por %p324, %p325
    %p328 = scmp.ne.s32.totalorder %s311, %s327
    %p329 = scmp.eq.s32.totalorder %s25, 0
    %p330 = por %p328, %p329
    %p331 = scmp.le.s32.totalorder 1, %s19
    %p332 = scmp.lt.s32.totalorder %s19, 3
    %p333 = pnand %p331, %p332
    %p334 = pneg %p333
    // Predicated region
    $region9: #{_lambda_.5} parent=5 // pred_check
      _
    $region10: #{_lambda_.5} parent=5 // pred_check_branch
      %336 = sbr.rel (%p333) target = $region12
    $region11: #{_lambda_.5} parent=5 // pred_region
      %s337 = ssub.s32 %s19, 1
      // Predicated region
      $region13: #{_lambda_.5} parent=11 // pred_check
        %p338 = pneg %p66
      $region14: #{_lambda_.5} parent=11 // pred_check_branch
        %340 = sbr.rel (%p338) target = $region16
      $region15: #{_lambda_.5} parent=11 // pred_region
        _
      $region16: #{_lambda_.5} parent=11 // pred_fallthru
        _
      // Predicated region
      $region17: #{_lambda_.5} parent=11 // pred_check
        %p341 = pneg %p87
      $region18: #{_lambda_.5} parent=11 // pred_check_branch
        %343 = sbr.rel (%p341) target = $region20
      $region19: #{_lambda_.5} parent=11 // pred_region
        _
      $region20: #{_lambda_.5} parent=11 // pred_fallthru
        _
      // Predicated region
      $region21: #{_lambda_.5} parent=11 // pred_check
        %p344 = pneg %p108
      $region22: #{_lambda_.5} parent=11 // pred_check_branch
        %346 = sbr.rel (%p344) target = $region24
      $region23: #{_lambda_.5} parent=11 // pred_region
        _
      $region24: #{_lambda_.5} parent=11 // pred_fallthru
        _
      // Predicated region
      $region25: #{_lambda_.5} parent=11 // pred_check
        %p347 = pneg %p129
      $region26: #{_lambda_.5} parent=11 // pred_check_branch
        %349 = sbr.rel (%p347) target = $region28
      $region27: #{_lambda_.5} parent=11 // pred_region
        _
      $region28: #{_lambda_.5} parent=11 // pred_fallthru
        _
      // Predicated region
      $region29: #{_lambda_.5} parent=11 // pred_check
        %p350 = pneg %p150
      $region30: #{_lambda_.5} parent=11 // pred_check_branch
        %352 = sbr.rel (%p350) target = $region32
      $region31: #{_lambda_.5} parent=11 // pred_region
        _
      $region32: #{_lambda_.5} parent=11 // pred_fallthru
        _
      // Predicated region
      $region33: #{_lambda_.5} parent=11 // pred_check
        %p353 = pneg %p171
      $region34: #{_lambda_.5} parent=11 // pred_check_branch
        %355 = sbr.rel (%p353) target = $region36
      $region35: #{_lambda_.5} parent=11 // pred_region
        _
      $region36: #{_lambda_.5} parent=11 // pred_fallthru
        _
      // Predicated region
      $region37: #{_lambda_.5} parent=11 // pred_check
        %p356 = pneg %p192
      $region38: #{_lambda_.5} parent=11 // pred_check_branch
        %358 = sbr.rel (%p356) target = $region40
      $region39: #{_lambda_.5} parent=11 // pred_region
        _
      $region40: #{_lambda_.5} parent=11 // pred_fallthru
        _
      // Predicated region
      $region41: #{_lambda_.5} parent=11 // pred_check
        %p359 = pneg %p213
      $region42: #{_lambda_.5} parent=11 // pred_check_branch
        %361 = sbr.rel (%p359) target = $region44
      $region43: #{_lambda_.5} parent=11 // pred_region
        _
      $region44: #{_lambda_.5} parent=11 // pred_fallthru
        _
      // Predicated region
      $region45: #{_lambda_.5} parent=11 // pred_check
        %p362 = pneg %p234
      $region46: #{_lambda_.5} parent=11 // pred_check_branch
        %364 = sbr.rel (%p362) target = $region48
      $region47: #{_lambda_.5} parent=11 // pred_region
        _
      $region48: #{_lambda_.5} parent=11 // pred_fallthru
        _
      // Predicated region
      $region49: #{_lambda_.5} parent=11 // pred_check
        %p365 = pneg %p255
      $region50: #{_lambda_.5} parent=11 // pred_check_branch
        %367 = sbr.rel (%p365) target = $region52
      $region51: #{_lambda_.5} parent=11 // pred_region
        _
      $region52: #{_lambda_.5} parent=11 // pred_fallthru
        _
      // Predicated region
      $region53: #{_lambda_.5} parent=11 // pred_check
        %p368 = pneg %p276
      $region54: #{_lambda_.5} parent=11 // pred_check_branch
        %370 = sbr.rel (%p368) target = $region56
      $region55: #{_lambda_.5} parent=11 // pred_region
        _
      $region56: #{_lambda_.5} parent=11 // pred_fallthru
        _
      // Predicated region
      $region57: #{_lambda_.5} parent=11 // pred_check
        %p371 = pneg %p297
      $region58: #{_lambda_.5} parent=11 // pred_check_branch
        %373 = sbr.rel (%p371) target = $region60
      $region59: #{_lambda_.5} parent=11 // pred_region
        _
      $region60: #{_lambda_.5} parent=11 // pred_fallthru
        _
    $region12: #{_lambda_.5} parent=5 // pred_fallthru
      _
    %p374 = scmp.lt.s32.totalorder %s19, 2
    // Predicated region
    $region61: #{_lambda_.5} parent=5 // pred_check
      %p375 = pneg %p374
    $region62: #{_lambda_.5} parent=5 // pred_check_branch
      %377 = sbr.rel (%p375) target = $region64
    $region63: #{_lambda_.5} parent=5 // pred_region
      // Predicated region
      $region65: #{_lambda_.5} parent=63 // pred_check
        %p378 = pneg %p39
      $region66: #{_lambda_.5} parent=63 // pred_check_branch
        %380 = sbr.rel (%p378) target = $region68
      $region67: #{_lambda_.5} parent=63 // pred_region
        %s381 = smul.u32 4, %s19
        %p382 = scmp.lt.s32.totalorder %s381, 7
        %s383 = scalar_select %p382, %s381, 7
        %s384 = smul.addr %s383, 2
        %s385 = smul.addr %s384, 8
        %s386 = scalar_lea.vmem %s0, %s385
        %s387 = smul.u32 4, %s19
      $region68: #{_lambda_.5} parent=63 // pred_fallthru
        _
    $region64: #{_lambda_.5} parent=5 // pred_fallthru
      _
    %p388 = scmp.le.s32.totalorder 1, %s19
    %p389 = scmp.lt.s32.totalorder %s19, 3
    %p390 = pnand %p388, %p389
    %p391 = pneg %p390
    // Predicated region
    $region69: #{_lambda_.5} parent=5 // pred_check
      _
    $region70: #{_lambda_.5} parent=5 // pred_check_branch
      %393 = sbr.rel (%p390) target = $region72
    $region71: #{_lambda_.5} parent=5 // pred_region
      %s394 = ssub.s32 %s19, 1
      %s395 = smul.u32 4, %s24
      %p396 = scmp.lt.s32.totalorder %s395, 7
      %s397 = scalar_select %p396, %s395, 7
      %s398 = smul.addr %s397, 2
      %s399 = smul.addr %s398, 8
      %s400 = scalar_lea.vmem %s0, %s399
      %p401 = pneg %p45
      %p402 = pneg %p42
      %p403 = pneg %p66
      %p404 = pneg %p63
      %p405 = pneg %p87
      %p406 = pneg %p84
      %p407 = pneg %p108
      %p408 = pneg %p105
      %p409 = pneg %p129
      %p410 = pneg %p126
      %p411 = pneg %p150
      %p412 = pneg %p147
      %p413 = pneg %p171
      %p414 = pneg %p168
      %p415 = pneg %p192
      %p416 = pneg %p189
      %p417 = pneg %p213
      %p418 = pneg %p210
      %p419 = pneg %p234
      %p420 = pneg %p231
      %p421 = pneg %p255
      %p422 = pneg %p252
      %p423 = pneg %p276
      %p424 = pneg %p273
      %p425 = pneg %p297
      %p426 = pneg %p294
      %p427 = pneg %p323
      %p428 = pneg %p320
      %s429 = smul.u32 4, %s24
      %p430 = scmp.lt.s32.totalorder %s429, 7
      %s431 = scalar_select %p430, %s429, 7
      %s432 = smul.addr %s431, 2
      %s433 = smul.addr %s432, 8
      %s434 = scalar_lea.vmem %s13, %s433
      %s435 = smul.u32 4, %s24
      %p436 = scmp.lt.s32.totalorder %s435, 7
      %s437 = scalar_select %p436, %s435, 7
      %s438 = smul.addr %s437, 2
      %s439 = smul.addr %s438, 8
      %s440 = scalar_lea.vmem %s0, %s439
      %s441 = smul.u32 4, %s24
      %s442 = smul.u32 4, %s24
      %p443 = scmp.lt.s32.totalorder %s442, 7
      %s444 = scalar_select %p443, %s442, 7
      %s445 = smul.addr %s444, 2
      %s446 = smul.addr %s445, 8
      %s447 = scalar_lea.vmem %s13, %s446
      %s448 = smul.u32 4, %s24
      %v449 = vld [vmem:[%s440] sm:$0xff]
      %v450 = vld [vmem:[%s440 + $0x8] sm:$0xff]
      %v451 = vld [vmem:[%s440 + $0x10] sm:$0xff]
      %v452 = vld [vmem:[%s440 + $0x18] sm:$0xff]
      %v453 = vld [vmem:[%s440 + $0x20] sm:$0xff]
      %v454 = vld [vmem:[%s440 + $0x28] sm:$0xff]
      %v455 = vld [vmem:[%s440 + $0x30] sm:$0xff]
      %v456 = vld [vmem:[%s440 + $0x38] sm:$0xff]
      %v457 = vld [vmem:[%s2] sm:$0x1]
      %v458 = vld [vmem:[%s3] sm:$0x1]
      %vm459 = vcmask 97280
      %v460 = vsel %vm459, %v449, 0.0
      %461 = vadd.xlane.f32.xlu0 %v460
      %v462 = vpop.xlane.xlu0 %461
      %v463 = vsel %vm459, %v450, 0.0
      %464 = vadd.xlane.f32.xlu0 %v463
      %v465 = vpop.xlane.xlu0 %464
      %v466 = vsel %vm459, %v451, 0.0
      %467 = vadd.xlane.f32.xlu0 %v466
      %v468 = vpop.xlane.xlu0 %467
      %v469 = vsel %vm459, %v452, 0.0
      %470 = vadd.xlane.f32.xlu0 %v469
      %v471 = vpop.xlane.xlu0 %470
      %v472 = vsel %vm459, %v453, 0.0
      %473 = vadd.xlane.f32.xlu0 %v472
      %v474 = vpop.xlane.xlu0 %473
      %v475 = vsel %vm459, %v454, 0.0
      %476 = vadd.xlane.f32.xlu0 %v475
      %v477 = vpop.xlane.xlu0 %476
      %v478 = vsel %vm459, %v455, 0.0
      %479 = vadd.xlane.f32.xlu0 %v478
      %v480 = vpop.xlane.xlu0 %479
      %v481 = vsel %vm459, %v456, 0.0
      %482 = vadd.xlane.f32.xlu0 %v481
      %v483 = vpop.xlane.xlu0 %482
      %v484 = vrcp.pop 12.0
      %v485 = vmul.f32 12.0, %v484
      %v486 = vsub.f32 1.0, %v485
      %v487 = vmul.f32 %v484, %v486
      %v488 = vadd.f32 %v484, %v487
      %vm489 = vweird.f32 %v484
      %v490 = vsel %vm489, %v484, %v488
      %v491 = vmul.f32 %v462, %v490
      %v492 = vmul.f32 %v465, %v490
      %v493 = vmul.f32 %v468, %v490
      %v494 = vmul.f32 %v471, %v490
      %v495 = vmul.f32 %v474, %v490
      %v496 = vmul.f32 %v477, %v490
      %v497 = vmul.f32 %v480, %v490
      %v498 = vmul.f32 %v483, %v490
      %v499 = vsub.f32 %v449, %v491
      %v500 = vsub.f32 %v450, %v492
      %v501 = vsub.f32 %v451, %v493
      %v502 = vsub.f32 %v452, %v494
      %v503 = vsub.f32 %v453, %v495
      %v504 = vsub.f32 %v454, %v496
      %v505 = vsub.f32 %v455, %v497
      %v506 = vsub.f32 %v456, %v498
      %v507 = vmul.f32 %v499, %v499
      %v508 = vmul.f32 %v500, %v500
      %v509 = vmul.f32 %v501, %v501
      %v510 = vmul.f32 %v502, %v502
      %v511 = vmul.f32 %v503, %v503
      %v512 = vmul.f32 %v504, %v504
      %v513 = vmul.f32 %v505, %v505
      %v514 = vmul.f32 %v506, %v506
      %v515 = vsel %vm459, %v507, 0.0
      %516 = vadd.xlane.f32.xlu0 %v515
      %v517 = vpop.xlane.xlu0 %516
      %v518 = vsel %vm459, %v508, 0.0
      %519 = vadd.xlane.f32.xlu0 %v518
      %v520 = vpop.xlane.xlu0 %519
      %v521 = vsel %vm459, %v509, 0.0
      %522 = vadd.xlane.f32.xlu0 %v521
      %v523 = vpop.xlane.xlu0 %522
      %v524 = vsel %vm459, %v510, 0.0
      %525 = vadd.xlane.f32.xlu0 %v524
      %v526 = vpop.xlane.xlu0 %525
      %v527 = vsel %vm459, %v511, 0.0
      %528 = vadd.xlane.f32.xlu0 %v527
      %v529 = vpop.xlane.xlu0 %528
      %v530 = vsel %vm459, %v512, 0.0
      %531 = vadd.xlane.f32.xlu0 %v530
      %v532 = vpop.xlane.xlu0 %531
      %v533 = vsel %vm459, %v513, 0.0
      %534 = vadd.xlane.f32.xlu0 %v533
      %v535 = vpop.xlane.xlu0 %534
      %v536 = vsel %vm459, %v514, 0.0
      %537 = vadd.xlane.f32.xlu0 %v536
      %v538 = vpop.xlane.xlu0 %537
      %v539 = vmul.f32 %v517, %v490
      %v540 = vmul.f32 %v520, %v490
      %v541 = vmul.f32 %v523, %v490
      %v542 = vmul.f32 %v526, %v490
      %v543 = vmul.f32 %v529, %v490
      %v544 = vmul.f32 %v532, %v490
      %v545 = vmul.f32 %v535, %v490
      %v546 = vmul.f32 %v538, %v490
      %v547 = vadd.f32 %v539, 1e-05
      %v548 = vadd.f32 %v540, 1e-05
      %v549 = vadd.f32 %v541, 1e-05
      %v550 = vadd.f32 %v542, 1e-05
      %v551 = vadd.f32 %v543, 1e-05
      %v552 = vadd.f32 %v544, 1e-05
      %v553 = vadd.f32 %v545, 1e-05
      %v554 = vadd.f32 %v546, 1e-05
      %v555 = vrsqrt.pop %v547
      %v556 = vmul.f32 %v555, %v547
      %v557 = vmul.f32 %v556, %v555
      %v558 = vmul.f32 0.5, %v557
      %v559 = vsub.f32 1.5, %v558
      %v560 = vmul.f32 %v555, %v559
      %vm561 = vweird.f32 %v547
      %vm562 = vweird.f32 %v555
      %vm563 = vmor %vm561, %vm562
      %v564 = vsel %vm563, %v555, %v560
      %v565 = vrsqrt.pop %v548
      %v566 = vmul.f32 %v565, %v548
      %v567 = vmul.f32 %v566, %v565
      %v568 = vmul.f32 0.5, %v567
      %v569 = vsub.f32 1.5, %v568
      %v570 = vmul.f32 %v565, %v569
      %vm571 = vweird.f32 %v548
      %vm572 = vweird.f32 %v565
      %vm573 = vmor %vm571, %vm572
      %v574 = vsel %vm573, %v565, %v570
      %v575 = vrsqrt.pop %v549
      %v576 = vmul.f32 %v575, %v549
      %v577 = vmul.f32 %v576, %v575
      %v578 = vmul.f32 0.5, %v577
      %v579 = vsub.f32 1.5, %v578
      %v580 = vmul.f32 %v575, %v579
      %vm581 = vweird.f32 %v549
      %vm582 = vweird.f32 %v575
      %vm583 = vmor %vm581, %vm582
      %v584 = vsel %vm583, %v575, %v580
      %v585 = vrsqrt.pop %v550
      %v586 = vmul.f32 %v585, %v550
      %v587 = vmul.f32 %v586, %v585
      %v588 = vmul.f32 0.5, %v587
      %v589 = vsub.f32 1.5, %v588
      %v590 = vmul.f32 %v585, %v589
      %vm591 = vweird.f32 %v550
      %vm592 = vweird.f32 %v585
      %vm593 = vmor %vm591, %vm592
      %v594 = vsel %vm593, %v585, %v590
      %v595 = vrsqrt.pop %v551
      %v596 = vmul.f32 %v595, %v551
      %v597 = vmul.f32 %v596, %v595
      %v598 = vmul.f32 0.5, %v597
      %v599 = vsub.f32 1.5, %v598
      %v600 = vmul.f32 %v595, %v599
      %vm601 = vweird.f32 %v551
      %vm602 = vweird.f32 %v595
      %vm603 = vmor %vm601, %vm602
      %v604 = vsel %vm603, %v595, %v600
      %v605 = vrsqrt.pop %v552
      %v606 = vmul.f32 %v605, %v552
      %v607 = vmul.f32 %v606, %v605
      %v608 = vmul.f32 0.5, %v607
      %v609 = vsub.f32 1.5, %v608
      %v610 = vmul.f32 %v605, %v609
      %vm611 = vweird.f32 %v552
      %vm612 = vweird.f32 %v605
      %vm613 = vmor %vm611, %vm612
      %v614 = vsel %vm613, %v605, %v610
      %v615 = vrsqrt.pop %v553
      %v616 = vmul.f32 %v615, %v553
      %v617 = vmul.f32 %v616, %v615
      %v618 = vmul.f32 0.5, %v617
      %v619 = vsub.f32 1.5, %v618
      %v620 = vmul.f32 %v615, %v619
      %vm621 = vweird.f32 %v553
      %vm622 = vweird.f32 %v615
      %vm623 = vmor %vm621, %vm622
      %v624 = vsel %vm623, %v615, %v620
      %v625 = vrsqrt.pop %v554
      %v626 = vmul.f32 %v625, %v554
      %v627 = vmul.f32 %v626, %v625
      %v628 = vmul.f32 0.5, %v627
      %v629 = vsub.f32 1.5, %v628
      %v630 = vmul.f32 %v625, %v629
      %vm631 = vweird.f32 %v554
      %vm632 = vweird.f32 %v625
      %vm633 = vmor %vm631, %vm632
      %v634 = vsel %vm633, %v625, %v630
      %v635 = vmul.f32 %v499, %v564
      %v636 = vmul.f32 %v500, %v574
      %v637 = vmul.f32 %v501, %v584
      %v638 = vmul.f32 %v502, %v594
      %v639 = vmul.f32 %v503, %v604
      %v640 = vmul.f32 %v504, %v614
      %v641 = vmul.f32 %v505, %v624
      %v642 = vmul.f32 %v506, %v634
      %v644 = vperm.slane %v457, 0
      %v646 = vmul.f32 %v635, %v644
      %v647 = vmul.f32 %v636, %v644
      %v648 = vmul.f32 %v637, %v644
      %v649 = vmul.f32 %v638, %v644
      %v650 = vmul.f32 %v639, %v644
      %v651 = vmul.f32 %v640, %v644
      %v652 = vmul.f32 %v641, %v644
      %v653 = vmul.f32 %v642, %v644
      %v655 = vperm.slane %v458, 0
      %v657 = vadd.f32 %v646, %v655
      %v658 = vadd.f32 %v647, %v655
      %v659 = vadd.f32 %v648, %v655
      %v660 = vadd.f32 %v649, %v655
      %v661 = vadd.f32 %v650, %v655
      %v662 = vadd.f32 %v651, %v655
      %v663 = vadd.f32 %v652, %v655
      %v664 = vadd.f32 %v653, %v655
      %v665 = vld [vmem:[%s4] sm:$0xff]
      %v666 = vld [vmem:[%s4 + $0x8] sm:$0xf]
      %v668 = vsel %vm459, %v657, 0
      %v671 = vsel %vm459, %v658, 0
      %v674 = vsel %vm459, %v659, 0
      %v677 = vsel %vm459, %v660, 0
      %v680 = vsel %vm459, %v661, 0
      %v683 = vsel %vm459, %v662, 0
      %v686 = vsel %vm459, %v663, 0
      %v689 = vsel %vm459, %v664, 0
      %vm691 = vcmask 1043456
      %v693 = vsel %vm691, %v666, 0
      %695 = vmatpush.msra.mxu0 0.0
      %696 = vmatpush.msra.mxu0 0.0
      %697 = vmatpush.msra.mxu0 0.0
      %698 = vmatpush.msra.mxu0 0.0
      %699 = vmatpush.msra.mxu0 0.0
      %700 = vmatpush.msra.mxu0 0.0
      %701 = vmatpush.msra.mxu0 0.0
      %702 = vmatpush.msra.mxu0 0.0
      %703 = vmatpush.msra.mxu0 0.0
      %704 = vmatpush.msra.mxu0 0.0
      %705 = vmatpush.msra.mxu0 0.0
      %706 = vmatpush.msra.mxu0 0.0
      %707 = vmatpush.msra.mxu0 0.0
      %708 = vmatpush.msra.mxu0 0.0
      %709 = vmatpush.msra.mxu0 %v693
      %710 = vmatpush.msra.mxu0 %v665
      %711 = vmatmul.f32.gmra.mxu0 %v668
      %v712 = vpop.f32.mrf.mxu0
      %v713 = vadd.f32 0.0, %v712
      %714 = vmatmul.f32.gmra.mxu0 %v671
      %v715 = vpop.f32.mrf.mxu0
      %v716 = vadd.f32 0.0, %v715
      %717 = vmatmul.f32.gmra.mxu0 %v674
      %v718 = vpop.f32.mrf.mxu0
      %v719 = vadd.f32 0.0, %v718
      %720 = vmatmul.f32.gmra.mxu0 %v677
      %v721 = vpop.f32.mrf.mxu0
      %v722 = vadd.f32 0.0, %v721
      %723 = vmatmul.f32.gmra.mxu0 %v680
      %v724 = vpop.f32.mrf.mxu0
      %v725 = vadd.f32 0.0, %v724
      %726 = vmatmul.f32.gmra.mxu0 %v683
      %v727 = vpop.f32.mrf.mxu0
      %v728 = vadd.f32 0.0, %v727
      %729 = vmatmul.f32.gmra.mxu0 %v686
      %v730 = vpop.f32.mrf.mxu0
      %v731 = vadd.f32 0.0, %v730
      %732 = vmatmul.f32.gmra.mxu0 %v689
      %v733 = vpop.f32.mrf.mxu0
      %v734 = vadd.f32 0.0, %v733
      %735 = vdwg.mxu0
      %v736 = vld [vmem:[%s5] sm:$0xff]
      %v737 = vld [vmem:[%s5 + $0x8] sm:$0xf]
      %v738 = vld [vmem:[%s1] sm:$0xff]
      %v739 = vld [vmem:[%s1 + $0x8] sm:$0xff]
      %v740 = vld [vmem:[%s1 + $0x10] sm:$0xff]
      %v741 = vld [vmem:[%s1 + $0x18] sm:$0xff]
      %v742 = vld [vmem:[%s1 + $0x20] sm:$0xff]
      %v743 = vld [vmem:[%s1 + $0x28] sm:$0xff]
      %v744 = vld [vmem:[%s1 + $0x30] sm:$0xff]
      %v745 = vld [vmem:[%s1 + $0x38] sm:$0xff]
      %v746 = vld [vmem:[%s1 + $0x40] sm:$0xff]
      %v747 = vld [vmem:[%s1 + $0x48] sm:$0xff]
      %v748 = vld [vmem:[%s1 + $0x50] sm:$0xff]
      %v749 = vld [vmem:[%s1 + $0x58] sm:$0xff]
      %752 = vrot.lane.b32.xlu0 %v713, 116
      %v753 = vpop.permute.xlu0 %752
      %754 = vrot.lane.b32.xlu0 %v716, 116
      %v755 = vpop.permute.xlu0 %754
      %vm756 = vcmask 15360
      %v757 = vsel %vm756, %v713, 0
      %v759 = vsel %vm756, %v716, 0
      %v761 = vsel %vm756, %v753, 0
      %v763 = vsel %vm756, %v755, 0
      %765 = vmatpush.xpose.msra.mxu0 0.0
      %766 = vmatpush.xpose.msra.mxu0 0.0
      %767 = vmatpush.xpose.msra.mxu0 0.0
      %768 = vmatpush.xpose.msra.mxu0 0.0
      %769 = vmatpush.xpose.msra.mxu0 0.0
      %770 = vmatpush.xpose.msra.mxu0 0.0
      %771 = vmatpush.xpose.msra.mxu0 0.0
      %772 = vmatpush.xpose.msra.mxu0 0.0
      %773 = vmatpush.xpose.msra.mxu0 0.0
      %774 = vmatpush.xpose.msra.mxu0 0.0
      %775 = vmatpush.xpose.msra.mxu0 0.0
      %776 = vmatpush.xpose.msra.mxu0 0.0
      %777 = vmatpush.xpose.msra.mxu0 0.0
      %778 = vmatpush.xpose.msra.mxu0 0.0
      %779 = vmatpush.xpose.msra.mxu0 %v763
      %780 = vmatpush.xpose.msra.mxu0 %v761
      %781 = vmatmul.f32.gmra.mxu0 %v757
      %v782 = vpop.f32.mrf.mxu0
      %v783 = vadd.f32 0.0, %v782
      %784 = vmatmul.f32.gmra.mxu0 %v759
      %v785 = vpop.f32.mrf.mxu0
      %v786 = vadd.f32 0.0, %v785
      %787 = vdwg.mxu0
      %790 = vrot.lane.b32.xlu0 %v719, 116
      %v791 = vpop.permute.xlu0 %790
      %792 = vrot.lane.b32.xlu0 %v722, 116
      %v793 = vpop.permute.xlu0 %792
      %v794 = vsel %vm756, %v719, 0
      %v796 = vsel %vm756, %v722, 0
      %v798 = vsel %vm756, %v791, 0
      %v800 = vsel %vm756, %v793, 0
      %802 = vmatpush.xpose.msra.mxu0 0.0
      %803 = vmatpush.xpose.msra.mxu0 0.0
      %804 = vmatpush.xpose.msra.mxu0 0.0
      %805 = vmatpush.xpose.msra.mxu0 0.0
      %806 = vmatpush.xpose.msra.mxu0 0.0
      %807 = vmatpush.xpose.msra.mxu0 0.0
      %808 = vmatpush.xpose.msra.mxu0 0.0
      %809 = vmatpush.xpose.msra.mxu0 0.0
      %810 = vmatpush.xpose.msra.mxu0 0.0
      %811 = vmatpush.xpose.msra.mxu0 0.0
      %812 = vmatpush.xpose.msra.mxu0 0.0
      %813 = vmatpush.xpose.msra.mxu0 0.0
      %814 = vmatpush.xpose.msra.mxu0 0.0
      %815 = vmatpush.xpose.msra.mxu0 0.0
      %816 = vmatpush.xpose.msra.mxu0 %v800
      %817 = vmatpush.xpose.msra.mxu0 %v798
      %818 = vmatmul.f32.gmra.mxu0 %v794
      %v819 = vpop.f32.mrf.mxu0
      %v820 = vadd.f32 0.0, %v819
      %821 = vmatmul.f32.gmra.mxu0 %v796
      %v822 = vpop.f32.mrf.mxu0
      %v823 = vadd.f32 0.0, %v822
      %824 = vdwg.mxu0
      %827 = vrot.lane.b32.xlu0 %v725, 116
      %v828 = vpop.permute.xlu0 %827
      %829 = vrot.lane.b32.xlu0 %v728, 116
      %v830 = vpop.permute.xlu0 %829
      %v831 = vsel %vm756, %v725, 0
      %v833 = vsel %vm756, %v728, 0
      %v835 = vsel %vm756, %v828, 0
      %v837 = vsel %vm756, %v830, 0
      %839 = vmatpush.xpose.msra.mxu0 0.0
      %840 = vmatpush.xpose.msra.mxu0 0.0
      %841 = vmatpush.xpose.msra.mxu0 0.0
      %842 = vmatpush.xpose.msra.mxu0 0.0
      %843 = vmatpush.xpose.msra.mxu0 0.0
      %844 = vmatpush.xpose.msra.mxu0 0.0
      %845 = vmatpush.xpose.msra.mxu0 0.0
      %846 = vmatpush.xpose.msra.mxu0 0.0
      %847 = vmatpush.xpose.msra.mxu0 0.0
      %848 = vmatpush.xpose.msra.mxu0 0.0
      %849 = vmatpush.xpose.msra.mxu0 0.0
      %850 = vmatpush.xpose.msra.mxu0 0.0
      %851 = vmatpush.xpose.msra.mxu0 0.0
      %852 = vmatpush.xpose.msra.mxu0 0.0
      %853 = vmatpush.xpose.msra.mxu0 %v837
      %854 = vmatpush.xpose.msra.mxu0 %v835
      %855 = vmatmul.f32.gmra.mxu0 %v831
      %v856 = vpop.f32.mrf.mxu0
      %v857 = vadd.f32 0.0, %v856
      %858 = vmatmul.f32.gmra.mxu0 %v833
      %v859 = vpop.f32.mrf.mxu0
      %v860 = vadd.f32 0.0, %v859
      %861 = vdwg.mxu0
      %864 = vrot.lane.b32.xlu0 %v731, 116
      %v865 = vpop.permute.xlu0 %864
      %866 = vrot.lane.b32.xlu0 %v734, 116
      %v867 = vpop.permute.xlu0 %866
      %v868 = vsel %vm756, %v731, 0
      %v870 = vsel %vm756, %v734, 0
      %v872 = vsel %vm756, %v865, 0
      %v874 = vsel %vm756, %v867, 0
      %876 = vmatpush.xpose.msra.mxu0 0.0
      %877 = vmatpush.xpose.msra.mxu0 0.0
      %878 = vmatpush.xpose.msra.mxu0 0.0
      %879 = vmatpush.xpose.msra.mxu0 0.0
      %880 = vmatpush.xpose.msra.mxu0 0.0
      %881 = vmatpush.xpose.msra.mxu0 0.0
      %882 = vmatpush.xpose.msra.mxu0 0.0
      %883 = vmatpush.xpose.msra.mxu0 0.0
      %884 = vmatpush.xpose.msra.mxu0 0.0
      %885 = vmatpush.xpose.msra.mxu0 0.0
      %886 = vmatpush.xpose.msra.mxu0 0.0
      %887 = vmatpush.xpose.msra.mxu0 0.0
      %888 = vmatpush.xpose.msra.mxu0 0.0
      %889 = vmatpush.xpose.msra.mxu0 0.0
      %890 = vmatpush.xpose.msra.mxu0 %v874
      %891 = vmatpush.xpose.msra.mxu0 %v872
      %892 = vmatmul.f32.gmra.mxu0 %v868
      %v893 = vpop.f32.mrf.mxu0
      %v894 = vadd.f32 0.0, %v893
      %895 = vmatmul.f32.gmra.mxu0 %v870
      %v896 = vpop.f32.mrf.mxu0
      %v897 = vadd.f32 0.0, %v896
      %898 = vdwg.mxu0
      %v899 = vmul.f32 %v783, 0.70710677
      %v900 = vmul.f32 %v786, 0.70710677
      %v901 = vmul.f32 %v820, 0.70710677
      %v902 = vmul.f32 %v823, 0.70710677
      %v903 = vmul.f32 %v857, 0.70710677
      %v904 = vmul.f32 %v860, 0.70710677
      %v905 = vmul.f32 %v894, 0.70710677
      %v906 = vmul.f32 %v897, 0.70710677
      %v907 = vadd.f32 %v899, %v738
      %v908 = vadd.f32 %v900, %v739
      %v909 = vadd.f32 %v901, %v738
      %v910 = vadd.f32 %v902, %v739
      %v911 = vadd.f32 %v903, %v738
      %v912 = vadd.f32 %v904, %v739
      %v913 = vadd.f32 %v905, %v738
      %v914 = vadd.f32 %v906, %v739
      %vm915 = vcmask 130048
      %v916 = vsel %vm915, %v907, -inf
      %917 = vmax.xlane.f32.xlu0 %v916
      %v918 = vpop.xlane.xlu0 %917
      %v919 = vsel %vm915, %v908, -inf
      %920 = vmax.xlane.f32.xlu0 %v919
      %v921 = vpop.xlane.xlu0 %920
      %v922 = vsel %vm915, %v909, -inf
      %923 = vmax.xlane.f32.xlu0 %v922
      %v924 = vpop.xlane.xlu0 %923
      %v925 = vsel %vm915, %v910, -inf
      %926 = vmax.xlane.f32.xlu0 %v925
      %v927 = vpop.xlane.xlu0 %926
      %v928 = vsel %vm915, %v911, -inf
      %929 = vmax.xlane.f32.xlu0 %v928
      %v930 = vpop.xlane.xlu0 %929
      %v931 = vsel %vm915, %v912, -inf
      %932 = vmax.xlane.f32.xlu0 %v931
      %v933 = vpop.xlane.xlu0 %932
      %v934 = vsel %vm915, %v913, -inf
      %935 = vmax.xlane.f32.xlu0 %v934
      %v936 = vpop.xlane.xlu0 %935
      %v937 = vsel %vm915, %v914, -inf
      %938 = vmax.xlane.f32.xlu0 %v937
      %v939 = vpop.xlane.xlu0 %938
      %v940 = vsub.f32 %v907, %v918
      %v941 = vsub.f32 %v908, %v921
      %v942 = vsub.f32 %v909, %v924
      %v943 = vsub.f32 %v910, %v927
      %v944 = vsub.f32 %v911, %v930
      %v945 = vsub.f32 %v912, %v933
      %v946 = vsub.f32 %v913, %v936
      %v947 = vsub.f32 %v914, %v939
      %v948 = vmul.f32 %v940, 1.442695
      %v949 = vpow.pop %v948
      %v950 = vmul.f32 %v941, 1.442695
      %v951 = vpow.pop %v950
      %v952 = vmul.f32 %v942, 1.442695
      %v953 = vpow.pop %v952
      %v954 = vmul.f32 %v943, 1.442695
      %v955 = vpow.pop %v954
      %v956 = vmul.f32 %v944, 1.442695
      %v957 = vpow.pop %v956
      %v958 = vmul.f32 %v945, 1.442695
      %v959 = vpow.pop %v958
      %v960 = vmul.f32 %v946, 1.442695
      %v961 = vpow.pop %v960
      %v962 = vmul.f32 %v947, 1.442695
      %v963 = vpow.pop %v962
      %v964 = vsel %vm915, %v949, 0.0
      %965 = vadd.xlane.f32.xlu0 %v964
      %v966 = vpop.xlane.xlu0 %965
      %v967 = vsel %vm915, %v951, 0.0
      %968 = vadd.xlane.f32.xlu0 %v967
      %v969 = vpop.xlane.xlu0 %968
      %v970 = vsel %vm915, %v953, 0.0
      %971 = vadd.xlane.f32.xlu0 %v970
      %v972 = vpop.xlane.xlu0 %971
      %v973 = vsel %vm915, %v955, 0.0
      %974 = vadd.xlane.f32.xlu0 %v973
      %v975 = vpop.xlane.xlu0 %974
      %v976 = vsel %vm915, %v957, 0.0
      %977 = vadd.xlane.f32.xlu0 %v976
      %v978 = vpop.xlane.xlu0 %977
      %v979 = vsel %vm915, %v959, 0.0
      %980 = vadd.xlane.f32.xlu0 %v979
      %v981 = vpop.xlane.xlu0 %980
      %v982 = vsel %vm915, %v961, 0.0
      %983 = vadd.xlane.f32.xlu0 %v982
      %v984 = vpop.xlane.xlu0 %983
      %v985 = vsel %vm915, %v963, 0.0
      %986 = vadd.xlane.f32.xlu0 %v985
      %v987 = vpop.xlane.xlu0 %986
      %v988 = vrcp.pop %v966
      %v989 = vrcp.pop %v969
      %v990 = vrcp.pop %v972
      %v991 = vrcp.pop %v975
      %v992 = vrcp.pop %v978
      %v993 = vrcp.pop %v981
      %v994 = vrcp.pop %v984
      %v995 = vrcp.pop %v987
      %v996 = vmul.f32 %v949, %v988
      %v997 = vmul.f32 %v951, %v989
      %v998 = vmul.f32 %v953, %v990
      %v999 = vmul.f32 %v955, %v991
      %v1000 = vmul.f32 %v957, %v992
      %v1001 = vmul.f32 %v959, %v993
      %v1002 = vmul.f32 %v961, %v994
      %v1003 = vmul.f32 %v963, %v995
      %1004 = vrot.lane.b32.xlu0 %v713, 104
      %v1005 = vpop.permute.xlu0 %1004
      %1006 = vrot.lane.b32.xlu0 %v716, 104
      %v1007 = vpop.permute.xlu0 %1006
      %v1011 = vsel %vm915, %v996, 0
      %v1014 = vsel %vm915, %v997, 0
      %1016 = vmatpush.msra.mxu0 0.0
      %1017 = vmatpush.msra.mxu0 0.0
      %1018 = vmatpush.msra.mxu0 0.0
      %1019 = vmatpush.msra.mxu0 0.0
      %1020 = vmatpush.msra.mxu0 0.0
      %1021 = vmatpush.msra.mxu0 0.0
      %1022 = vmatpush.msra.mxu0 0.0
      %1023 = vmatpush.msra.mxu0 0.0
      %1024 = vmatpush.msra.mxu0 0.0
      %1025 = vmatpush.msra.mxu0 0.0
      %1026 = vmatpush.msra.mxu0 0.0
      %1027 = vmatpush.msra.mxu0 0.0
      %1028 = vmatpush.msra.mxu0 0.0
      %1029 = vmatpush.msra.mxu0 0.0
      %1030 = vmatpush.msra.mxu0 %v1007
      %1031 = vmatpush.msra.mxu0 %v1005
      %1032 = vmatmul.f32.gmra.mxu0 %v1011
      %v1033 = vpop.f32.mrf.mxu0
      %v1034 = vadd.f32 0.0, %v1033
      %1035 = vmatmul.f32.gmra.mxu0 %v1014
      %v1036 = vpop.f32.mrf.mxu0
      %v1037 = vadd.f32 0.0, %v1036
      %1038 = vdwg.mxu0
      %1039 = vrot.lane.b32.xlu0 %v719, 104
      %v1040 = vpop.permute.xlu0 %1039
      %1041 = vrot.lane.b32.xlu0 %v722, 104
      %v1042 = vpop.permute.xlu0 %1041
      %v1046 = vsel %vm915, %v998, 0
      %v1049 = vsel %vm915, %v999, 0
      %1051 = vmatpush.msra.mxu0 0.0
      %1052 = vmatpush.msra.mxu0 0.0
      %1053 = vmatpush.msra.mxu0 0.0
      %1054 = vmatpush.msra.mxu0 0.0
      %1055 = vmatpush.msra.mxu0 0.0
      %1056 = vmatpush.msra.mxu0 0.0
      %1057 = vmatpush.msra.mxu0 0.0
      %1058 = vmatpush.msra.mxu0 0.0
      %1059 = vmatpush.msra.mxu0 0.0
      %1060 = vmatpush.msra.mxu0 0.0
      %1061 = vmatpush.msra.mxu0 0.0
      %1062 = vmatpush.msra.mxu0 0.0
      %1063 = vmatpush.msra.mxu0 0.0
      %1064 = vmatpush.msra.mxu0 0.0
      %1065 = vmatpush.msra.mxu0 %v1042
      %1066 = vmatpush.msra.mxu0 %v1040
      %1067 = vmatmul.f32.gmra.mxu0 %v1046
      %v1068 = vpop.f32.mrf.mxu0
      %v1069 = vadd.f32 0.0, %v1068
      %1070 = vmatmul.f32.gmra.mxu0 %v1049
      %v1071 = vpop.f32.mrf.mxu0
      %v1072 = vadd.f32 0.0, %v1071
      %1073 = vdwg.mxu0
      %1074 = vrot.lane.b32.xlu0 %v725, 104
      %v1075 = vpop.permute.xlu0 %1074
      %1076 = vrot.lane.b32.xlu0 %v728, 104
      %v1077 = vpop.permute.xlu0 %1076
      %v1081 = vsel %vm915, %v1000, 0
      %v1084 = vsel %vm915, %v1001, 0
      %1086 = vmatpush.msra.mxu0 0.0
      %1087 = vmatpush.msra.mxu0 0.0
      %1088 = vmatpush.msra.mxu0 0.0
      %1089 = vmatpush.msra.mxu0 0.0
      %1090 = vmatpush.msra.mxu0 0.0
      %1091 = vmatpush.msra.mxu0 0.0
      %1092 = vmatpush.msra.mxu0 0.0
      %1093 = vmatpush.msra.mxu0 0.0
      %1094 = vmatpush.msra.mxu0 0.0
      %1095 = vmatpush.msra.mxu0 0.0
      %1096 = vmatpush.msra.mxu0 0.0
      %1097 = vmatpush.msra.mxu0 0.0
      %1098 = vmatpush.msra.mxu0 0.0
      %1099 = vmatpush.msra.mxu0 0.0
      %1100 = vmatpush.msra.mxu0 %v1077
      %1101 = vmatpush.msra.mxu0 %v1075
      %1102 = vmatmul.f32.gmra.mxu0 %v1081
      %v1103 = vpop.f32.mrf.mxu0
      %v1104 = vadd.f32 0.0, %v1103
      %1105 = vmatmul.f32.gmra.mxu0 %v1084
      %v1106 = vpop.f32.mrf.mxu0
      %v1107 = vadd.f32 0.0, %v1106
      %1108 = vdwg.mxu0
      %1109 = vrot.lane.b32.xlu0 %v731, 104
      %v1110 = vpop.permute.xlu0 %1109
      %1111 = vrot.lane.b32.xlu0 %v734, 104
      %v1112 = vpop.permute.xlu0 %1111
      %v1116 = vsel %vm915, %v1002, 0
      %v1119 = vsel %vm915, %v1003, 0
      %1121 = vmatpush.msra.mxu0 0.0
      %1122 = vmatpush.msra.mxu0 0.0
      %1123 = vmatpush.msra.mxu0 0.0
      %1124 = vmatpush.msra.mxu0 0.0
      %1125 = vmatpush.msra.mxu0 0.0
      %1126 = vmatpush.msra.mxu0 0.0
      %1127 = vmatpush.msra.mxu0 0.0
      %1128 = vmatpush.msra.mxu0 0.0
      %1129 = vmatpush.msra.mxu0 0.0
      %1130 = vmatpush.msra.mxu0 0.0
      %1131 = vmatpush.msra.mxu0 0.0
      %1132 = vmatpush.msra.mxu0 0.0
      %1133 = vmatpush.msra.mxu0 0.0
      %1134 = vmatpush.msra.mxu0 0.0
      %1135 = vmatpush.msra.mxu0 %v1112
      %1136 = vmatpush.msra.mxu0 %v1110
      %1137 = vmatmul.f32.gmra.mxu0 %v1116
      %v1138 = vpop.f32.mrf.mxu0
      %v1139 = vadd.f32 0.0, %v1138
      %1140 = vmatmul.f32.gmra.mxu0 %v1119
      %v1141 = vpop.f32.mrf.mxu0
      %v1142 = vadd.f32 0.0, %v1141
      %1143 = vdwg.mxu0
      %1144 = vrot.lane.b32.xlu0 %v713, 126
      %v1145 = vpop.permute.xlu0 %1144
      %1146 = vrot.lane.b32.xlu0 %v716, 126
      %v1147 = vpop.permute.xlu0 %1146
      %1148 = vrot.lane.b32.xlu0 %v713, 114
      %v1149 = vpop.permute.xlu0 %1148
      %1150 = vrot.lane.b32.xlu0 %v716, 114
      %v1151 = vpop.permute.xlu0 %1150
      %v1152 = vsel %vm756, %v1145, 0
      %v1154 = vsel %vm756, %v1147, 0
      %v1156 = vsel %vm756, %v1149, 0
      %v1158 = vsel %vm756, %v1151, 0
      %1160 = vmatpush.xpose.msra.mxu0 0.0
      %1161 = vmatpush.xpose.msra.mxu0 0.0
      %1162 = vmatpush.xpose.msra.mxu0 0.0
      %1163 = vmatpush.xpose.msra.mxu0 0.0
      %1164 = vmatpush.xpose.msra.mxu0 0.0
      %1165 = vmatpush.xpose.msra.mxu0 0.0
      %1166 = vmatpush.xpose.msra.mxu0 0.0
      %1167 = vmatpush.xpose.msra.mxu0 0.0
      %1168 = vmatpush.xpose.msra.mxu0 0.0
      %1169 = vmatpush.xpose.msra.mxu0 0.0
      %1170 = vmatpush.xpose.msra.mxu0 0.0
      %1171 = vmatpush.xpose.msra.mxu0 0.0
      %1172 = vmatpush.xpose.msra.mxu0 0.0
      %1173 = vmatpush.xpose.msra.mxu0 0.0
      %1174 = vmatpush.xpose.msra.mxu0 %v1158
      %1175 = vmatpush.xpose.msra.mxu0 %v1156
      %1176 = vmatmul.f32.gmra.mxu0 %v1152
      %v1177 = vpop.f32.mrf.mxu0
      %v1178 = vadd.f32 0.0, %v1177
      %1179 = vmatmul.f32.gmra.mxu0 %v1154
      %v1180 = vpop.f32.mrf.mxu0
      %v1181 = vadd.f32 0.0, %v1180
      %1182 = vdwg.mxu0
      %1183 = vrot.lane.b32.xlu0 %v719, 126
      %v1184 = vpop.permute.xlu0 %1183
      %1185 = vrot.lane.b32.xlu0 %v722, 126
      %v1186 = vpop.permute.xlu0 %1185
      %1187 = vrot.lane.b32.xlu0 %v719, 114
      %v1188 = vpop.permute.xlu0 %1187
      %1189 = vrot.lane.b32.xlu0 %v722, 114
      %v1190 = vpop.permute.xlu0 %1189
      %v1191 = vsel %vm756, %v1184, 0
      %v1193 = vsel %vm756, %v1186, 0
      %v1195 = vsel %vm756, %v1188, 0
      %v1197 = vsel %vm756, %v1190, 0
      %1199 = vmatpush.xpose.msra.mxu0 0.0
      %1200 = vmatpush.xpose.msra.mxu0 0.0
      %1201 = vmatpush.xpose.msra.mxu0 0.0
      %1202 = vmatpush.xpose.msra.mxu0 0.0
      %1203 = vmatpush.xpose.msra.mxu0 0.0
      %1204 = vmatpush.xpose.msra.mxu0 0.0
      %1205 = vmatpush.xpose.msra.mxu0 0.0
      %1206 = vmatpush.xpose.msra.mxu0 0.0
      %1207 = vmatpush.xpose.msra.mxu0 0.0
      %1208 = vmatpush.xpose.msra.mxu0 0.0
      %1209 = vmatpush.xpose.msra.mxu0 0.0
      %1210 = vmatpush.xpose.msra.mxu0 0.0
      %1211 = vmatpush.xpose.msra.mxu0 0.0
      %1212 = vmatpush.xpose.msra.mxu0 0.0
      %1213 = vmatpush.xpose.msra.mxu0 %v1197
      %1214 = vmatpush.xpose.msra.mxu0 %v1195
      %1215 = vmatmul.f32.gmra.mxu0 %v1191
      %v1216 = vpop.f32.mrf.mxu0
      %v1217 = vadd.f32 0.0, %v1216
      %1218 = vmatmul.f32.gmra.mxu0 %v1193
      %v1219 = vpop.f32.mrf.mxu0
      %v1220 = vadd.f32 0.0, %v1219
      %1221 = vdwg.mxu0
      %1222 = vrot.lane.b32.xlu0 %v725, 126
      %v1223 = vpop.permute.xlu0 %1222
      %1224 = vrot.lane.b32.xlu0 %v728, 126
      %v1225 = vpop.permute.xlu0 %1224
      %1226 = vrot.lane.b32.xlu0 %v725, 114
      %v1227 = vpop.permute.xlu0 %1226
      %1228 = vrot.lane.b32.xlu0 %v728, 114
      %v1229 = vpop.permute.xlu0 %1228
      %v1230 = vsel %vm756, %v1223, 0
      %v1232 = vsel %vm756, %v1225, 0
      %v1234 = vsel %vm756, %v1227, 0
      %v1236 = vsel %vm756, %v1229, 0
      %1238 = vmatpush.xpose.msra.mxu0 0.0
      %1239 = vmatpush.xpose.msra.mxu0 0.0
      %1240 = vmatpush.xpose.msra.mxu0 0.0
      %1241 = vmatpush.xpose.msra.mxu0 0.0
      %1242 = vmatpush.xpose.msra.mxu0 0.0
      %1243 = vmatpush.xpose.msra.mxu0 0.0
      %1244 = vmatpush.xpose.msra.mxu0 0.0
      %1245 = vmatpush.xpose.msra.mxu0 0.0
      %1246 = vmatpush.xpose.msra.mxu0 0.0
      %1247 = vmatpush.xpose.msra.mxu0 0.0
      %1248 = vmatpush.xpose.msra.mxu0 0.0
      %1249 = vmatpush.xpose.msra.mxu0 0.0
      %1250 = vmatpush.xpose.msra.mxu0 0.0
      %1251 = vmatpush.xpose.msra.mxu0 0.0
      %1252 = vmatpush.xpose.msra.mxu0 %v1236
      %1253 = vmatpush.xpose.msra.mxu0 %v1234
      %1254 = vmatmul.f32.gmra.mxu0 %v1230
      %v1255 = vpop.f32.mrf.mxu0
      %v1256 = vadd.f32 0.0, %v1255
      %1257 = vmatmul.f32.gmra.mxu0 %v1232
      %v1258 = vpop.f32.mrf.mxu0
      %v1259 = vadd.f32 0.0, %v1258
      %1260 = vdwg.mxu0
      %1261 = vrot.lane.b32.xlu0 %v731, 126
      %v1262 = vpop.permute.xlu0 %1261
      %1263 = vrot.lane.b32.xlu0 %v734, 126
      %v1264 = vpop.permute.xlu0 %1263
      %1265 = vrot.lane.b32.xlu0 %v731, 114
      %v1266 = vpop.permute.xlu0 %1265
      %1267 = vrot.lane.b32.xlu0 %v734, 114
      %v1268 = vpop.permute.xlu0 %1267
      %v1269 = vsel %vm756, %v1262, 0
      %v1271 = vsel %vm756, %v1264, 0
      %v1273 = vsel %vm756, %v1266, 0
      %v1275 = vsel %vm756, %v1268, 0
      %1277 = vmatpush.xpose.msra.mxu0 0.0
      %1278 = vmatpush.xpose.msra.mxu0 0.0
      %1279 = vmatpush.xpose.msra.mxu0 0.0
      %1280 = vmatpush.xpose.msra.mxu0 0.0
      %1281 = vmatpush.xpose.msra.mxu0 0.0
      %1282 = vmatpush.xpose.msra.mxu0 0.0
      %1283 = vmatpush.xpose.msra.mxu0 0.0
      %1284 = vmatpush.xpose.msra.mxu0 0.0
      %1285 = vmatpush.xpose.msra.mxu0 0.0
      %1286 = vmatpush.xpose.msra.mxu0 0.0
      %1287 = vmatpush.xpose.msra.mxu0 0.0
      %1288 = vmatpush.xpose.msra.mxu0 0.0
      %1289 = vmatpush.xpose.msra.mxu0 0.0
      %1290 = vmatpush.xpose.msra.mxu0 0.0
      %1291 = vmatpush.xpose.msra.mxu0 %v1275
      %1292 = vmatpush.xpose.msra.mxu0 %v1273
      %1293 = vmatmul.f32.gmra.mxu0 %v1269
      %v1294 = vpop.f32.mrf.mxu0
      %v1295 = vadd.f32 0.0, %v1294
      %1296 = vmatmul.f32.gmra.mxu0 %v1271
      %v1297 = vpop.f32.mrf.mxu0
      %v1298 = vadd.f32 0.0, %v1297
      %1299 = vdwg.mxu0
      %v1300 = vmul.f32 %v1178, 0.70710677
      %v1301 = vmul.f32 %v1181, 0.70710677
      %v1302 = vmul.f32 %v1217, 0.70710677
      %v1303 = vmul.f32 %v1220, 0.70710677
      %v1304 = vmul.f32 %v1256, 0.70710677
      %v1305 = vmul.f32 %v1259, 0.70710677
      %v1306 = vmul.f32 %v1295, 0.70710677
      %v1307 = vmul.f32 %v1298, 0.70710677
      %v1308 = vadd.f32 %v1300, %v740
      %v1309 = vadd.f32 %v1301, %v741
      %v1310 = vadd.f32 %v1302, %v740
      %v1311 = vadd.f32 %v1303, %v741
      %v1312 = vadd.f32 %v1304, %v740
      %v1313 = vadd.f32 %v1305, %v741
      %v1314 = vadd.f32 %v1306, %v740
      %v1315 = vadd.f32 %v1307, %v741
      %v1316 = vsel %vm915, %v1308, -inf
      %1317 = vmax.xlane.f32.xlu0 %v1316
      %v1318 = vpop.xlane.xlu0 %1317
      %v1319 = vsel %vm915, %v1309, -inf
      %1320 = vmax.xlane.f32.xlu0 %v1319
      %v1321 = vpop.xlane.xlu0 %1320
      %v1322 = vsel %vm915, %v1310, -inf
      %1323 = vmax.xlane.f32.xlu0 %v1322
      %v1324 = vpop.xlane.xlu0 %1323
      %v1325 = vsel %vm915, %v1311, -inf
      %1326 = vmax.xlane.f32.xlu0 %v1325
      %v1327 = vpop.xlane.xlu0 %1326
      %v1328 = vsel %vm915, %v1312, -inf
      %1329 = vmax.xlane.f32.xlu0 %v1328
      %v1330 = vpop.xlane.xlu0 %1329
      %v1331 = vsel %vm915, %v1313, -inf
      %1332 = vmax.xlane.f32.xlu0 %v1331
      %v1333 = vpop.xlane.xlu0 %1332
      %v1334 = vsel %vm915, %v1314, -inf
      %1335 = vmax.xlane.f32.xlu0 %v1334
      %v1336 = vpop.xlane.xlu0 %1335
      %v1337 = vsel %vm915, %v1315, -inf
      %1338 = vmax.xlane.f32.xlu0 %v1337
      %v1339 = vpop.xlane.xlu0 %1338
      %v1340 = vsub.f32 %v1308, %v1318
      %v1341 = vsub.f32 %v1309, %v1321
      %v1342 = vsub.f32 %v1310, %v1324
      %v1343 = vsub.f32 %v1311, %v1327
      %v1344 = vsub.f32 %v1312, %v1330
      %v1345 = vsub.f32 %v1313, %v1333
      %v1346 = vsub.f32 %v1314, %v1336
      %v1347 = vsub.f32 %v1315, %v1339
      %v1348 = vmul.f32 %v1340, 1.442695
      %v1349 = vpow.pop %v1348
      %v1350 = vmul.f32 %v1341, 1.442695
      %v1351 = vpow.pop %v1350
      %v1352 = vmul.f32 %v1342, 1.442695
      %v1353 = vpow.pop %v1352
      %v1354 = vmul.f32 %v1343, 1.442695
      %v1355 = vpow.pop %v1354
      %v1356 = vmul.f32 %v1344, 1.442695
      %v1357 = vpow.pop %v1356
      %v1358 = vmul.f32 %v1345, 1.442695
      %v1359 = vpow.pop %v1358
      %v1360 = vmul.f32 %v1346, 1.442695
      %v1361 = vpow.pop %v1360
      %v1362 = vmul.f32 %v1347, 1.442695
      %v1363 = vpow.pop %v1362
      %v1364 = vsel %vm915, %v1349, 0.0
      %1365 = vadd.xlane.f32.xlu0 %v1364
      %v1366 = vpop.xlane.xlu0 %1365
      %v1367 = vsel %vm915, %v1351, 0.0
      %1368 = vadd.xlane.f32.xlu0 %v1367
      %v1369 = vpop.xlane.xlu0 %1368
      %v1370 = vsel %vm915, %v1353, 0.0
      %1371 = vadd.xlane.f32.xlu0 %v1370
      %v1372 = vpop.xlane.xlu0 %1371
      %v1373 = vsel %vm915, %v1355, 0.0
      %1374 = vadd.xlane.f32.xlu0 %v1373
      %v1375 = vpop.xlane.xlu0 %1374
      %v1376 = vsel %vm915, %v1357, 0.0
      %1377 = vadd.xlane.f32.xlu0 %v1376
      %v1378 = vpop.xlane.xlu0 %1377
      %v1379 = vsel %vm915, %v1359, 0.0
      %1380 = vadd.xlane.f32.xlu0 %v1379
      %v1381 = vpop.xlane.xlu0 %1380
      %v1382 = vsel %vm915, %v1361, 0.0
      %1383 = vadd.xlane.f32.xlu0 %v1382
      %v1384 = vpop.xlane.xlu0 %1383
      %v1385 = vsel %vm915, %v1363, 0.0
      %1386 = vadd.xlane.f32.xlu0 %v1385
      %v1387 = vpop.xlane.xlu0 %1386
      %v1388 = vrcp.pop %v1366
      %v1389 = vrcp.pop %v1369
      %v1390 = vrcp.pop %v1372
      %v1391 = vrcp.pop %v1375
      %v1392 = vrcp.pop %v1378
      %v1393 = vrcp.pop %v1381
      %v1394 = vrcp.pop %v1384
      %v1395 = vrcp.pop %v1387
      %v1396 = vmul.f32 %v1349, %v1388
      %v1397 = vmul.f32 %v1351, %v1389
      %v1398 = vmul.f32 %v1353, %v1390
      %v1399 = vmul.f32 %v1355, %v1391
      %v1400 = vmul.f32 %v1357, %v1392
      %v1401 = vmul.f32 %v1359, %v1393
      %v1402 = vmul.f32 %v1361, %v1394
      %v1403 = vmul.f32 %v1363, %v1395
      %1404 = vrot.lane.b32.xlu0 %v713, 102
      %v1405 = vpop.permute.xlu0 %1404
      %1406 = vrot.lane.b32.xlu0 %v716, 102
      %v1407 = vpop.permute.xlu0 %1406
      %v1411 = vsel %vm915, %v1396, 0
      %v1414 = vsel %vm915, %v1397, 0
      %1416 = vmatpush.msra.mxu0 0.0
      %1417 = vmatpush.msra.mxu0 0.0
      %1418 = vmatpush.msra.mxu0 0.0
      %1419 = vmatpush.msra.mxu0 0.0
      %1420 = vmatpush.msra.mxu0 0.0
      %1421 = vmatpush.msra.mxu0 0.0
      %1422 = vmatpush.msra.mxu0 0.0
      %1423 = vmatpush.msra.mxu0 0.0
      %1424 = vmatpush.msra.mxu0 0.0
      %1425 = vmatpush.msra.mxu0 0.0
      %1426 = vmatpush.msra.mxu0 0.0
      %1427 = vmatpush.msra.mxu0 0.0
      %1428 = vmatpush.msra.mxu0 0.0
      %1429 = vmatpush.msra.mxu0 0.0
      %1430 = vmatpush.msra.mxu0 %v1407
      %1431 = vmatpush.msra.mxu0 %v1405
      %1432 = vmatmul.f32.gmra.mxu0 %v1411
      %v1433 = vpop.f32.mrf.mxu0
      %v1434 = vadd.f32 0.0, %v1433
      %1435 = vmatmul.f32.gmra.mxu0 %v1414
      %v1436 = vpop.f32.mrf.mxu0
      %v1437 = vadd.f32 0.0, %v1436
      %1438 = vdwg.mxu0
      %1439 = vrot.lane.b32.xlu0 %v719, 102
      %v1440 = vpop.permute.xlu0 %1439
      %1441 = vrot.lane.b32.xlu0 %v722, 102
      %v1442 = vpop.permute.xlu0 %1441
      %v1446 = vsel %vm915, %v1398, 0
      %v1449 = vsel %vm915, %v1399, 0
      %1451 = vmatpush.msra.mxu0 0.0
      %1452 = vmatpush.msra.mxu0 0.0
      %1453 = vmatpush.msra.mxu0 0.0
      %1454 = vmatpush.msra.mxu0 0.0
      %1455 = vmatpush.msra.mxu0 0.0
      %1456 = vmatpush.msra.mxu0 0.0
      %1457 = vmatpush.msra.mxu0 0.0
      %1458 = vmatpush.msra.mxu0 0.0
      %1459 = vmatpush.msra.mxu0 0.0
      %1460 = vmatpush.msra.mxu0 0.0
      %1461 = vmatpush.msra.mxu0 0.0
      %1462 = vmatpush.msra.mxu0 0.0
      %1463 = vmatpush.msra.mxu0 0.0
      %1464 = vmatpush.msra.mxu0 0.0
      %1465 = vmatpush.msra.mxu0 %v1442
      %1466 = vmatpush.msra.mxu0 %v1440
      %1467 = vmatmul.f32.gmra.mxu0 %v1446
      %v1468 = vpop.f32.mrf.mxu0
      %v1469 = vadd.f32 0.0, %v1468
      %1470 = vmatmul.f32.gmra.mxu0 %v1449
      %v1471 = vpop.f32.mrf.mxu0
      %v1472 = vadd.f32 0.0, %v1471
      %1473 = vdwg.mxu0
      %1474 = vrot.lane.b32.xlu0 %v725, 102
      %v1475 = vpop.permute.xlu0 %1474
      %1476 = vrot.lane.b32.xlu0 %v728, 102
      %v1477 = vpop.permute.xlu0 %1476
      %v1481 = vsel %vm915, %v1400, 0
      %v1484 = vsel %vm915, %v1401, 0
      %1486 = vmatpush.msra.mxu0 0.0
      %1487 = vmatpush.msra.mxu0 0.0
      %1488 = vmatpush.msra.mxu0 0.0
      %1489 = vmatpush.msra.mxu0 0.0
      %1490 = vmatpush.msra.mxu0 0.0
      %1491 = vmatpush.msra.mxu0 0.0
      %1492 = vmatpush.msra.mxu0 0.0
      %1493 = vmatpush.msra.mxu0 0.0
      %1494 = vmatpush.msra.mxu0 0.0
      %1495 = vmatpush.msra.mxu0 0.0
      %1496 = vmatpush.msra.mxu0 0.0
      %1497 = vmatpush.msra.mxu0 0.0
      %1498 = vmatpush.msra.mxu0 0.0
      %1499 = vmatpush.msra.mxu0 0.0
      %1500 = vmatpush.msra.mxu0 %v1477
      %1501 = vmatpush.msra.mxu0 %v1475
      %1502 = vmatmul.f32.gmra.mxu0 %v1481
      %v1503 = vpop.f32.mrf.mxu0
      %v1504 = vadd.f32 0.0, %v1503
      %1505 = vmatmul.f32.gmra.mxu0 %v1484
      %v1506 = vpop.f32.mrf.mxu0
      %v1507 = vadd.f32 0.0, %v1506
      %1508 = vdwg.mxu0
      %1509 = vrot.lane.b32.xlu0 %v731, 102
      %v1510 = vpop.permute.xlu0 %1509
      %1511 = vrot.lane.b32.xlu0 %v734, 102
      %v1512 = vpop.permute.xlu0 %1511
      %v1516 = vsel %vm915, %v1402, 0
      %v1519 = vsel %vm915, %v1403, 0
      %1521 = vmatpush.msra.mxu0 0.0
      %1522 = vmatpush.msra.mxu0 0.0
      %1523 = vmatpush.msra.mxu0 0.0
      %1524 = vmatpush.msra.mxu0 0.0
      %1525 = vmatpush.msra.mxu0 0.0
      %1526 = vmatpush.msra.mxu0 0.0
      %1527 = vmatpush.msra.mxu0 0.0
      %1528 = vmatpush.msra.mxu0 0.0
      %1529 = vmatpush.msra.mxu0 0.0
      %1530 = vmatpush.msra.mxu0 0.0
      %1531 = vmatpush.msra.mxu0 0.0
      %1532 = vmatpush.msra.mxu0 0.0
      %1533 = vmatpush.msra.mxu0 0.0
      %1534 = vmatpush.msra.mxu0 0.0
      %1535 = vmatpush.msra.mxu0 %v1512
      %1536 = vmatpush.msra.mxu0 %v1510
      %1537 = vmatmul.f32.gmra.mxu0 %v1516
      %v1538 = vpop.f32.mrf.mxu0
      %v1539 = vadd.f32 0.0, %v1538
      %1540 = vmatmul.f32.gmra.mxu0 %v1519
      %v1541 = vpop.f32.mrf.mxu0
      %v1542 = vadd.f32 0.0, %v1541
      %1543 = vdwg.mxu0
      %v1545 = vrot.slane %v736, 2
      %v1547 = vsel %vm756, %v1434, 0
      %v1550 = vsel %vm756, %v1437, 0
      %v1553 = vsel %vm756, %v1469, 0
      %v1556 = vsel %vm756, %v1472, 0
      %v1559 = vsel %vm756, %v1504, 0
      %v1562 = vsel %vm756, %v1507, 0
      %v1565 = vsel %vm756, %v1539, 0
      %v1568 = vsel %vm756, %v1542, 0
      %vm1570 = vcmask 1041408
      %v1571 = vsel %vm1570, %v1545, 0
      %1573 = vmatpush.msra.mxu0 0.0
      %1574 = vmatpush.msra.mxu0 0.0
      %1575 = vmatpush.msra.mxu0 0.0
      %1576 = vmatpush.msra.mxu0 0.0
      %1577 = vmatpush.msra.mxu0 0.0
      %1578 = vmatpush.msra.mxu0 0.0
      %1579 = vmatpush.msra.mxu0 0.0
      %1580 = vmatpush.msra.mxu0 0.0
      %1581 = vmatpush.msra.mxu0 0.0
      %1582 = vmatpush.msra.mxu0 0.0
      %1583 = vmatpush.msra.mxu0 0.0
      %1584 = vmatpush.msra.mxu0 0.0
      %1585 = vmatpush.msra.mxu0 0.0
      %1586 = vmatpush.msra.mxu0 0.0
      %1587 = vmatpush.msra.mxu0 0.0
      %1588 = vmatpush.msra.mxu0 %v1571
      %1589 = vmatmul.f32.gmra.mxu0 %v1547
      %v1590 = vpop.f32.mrf.mxu0
      %v1591 = vadd.f32 0.0, %v1590
      %1592 = vmatmul.f32.gmra.mxu0 %v1550
      %v1593 = vpop.f32.mrf.mxu0
      %v1594 = vadd.f32 0.0, %v1593
      %1595 = vmatmul.f32.gmra.mxu0 %v1553
      %v1596 = vpop.f32.mrf.mxu0
      %v1597 = vadd.f32 0.0, %v1596
      %1598 = vmatmul.f32.gmra.mxu0 %v1556
      %v1599 = vpop.f32.mrf.mxu0
      %v1600 = vadd.f32 0.0, %v1599
      %1601 = vmatmul.f32.gmra.mxu0 %v1559
      %v1602 = vpop.f32.mrf.mxu0
      %v1603 = vadd.f32 0.0, %v1602
      %1604 = vmatmul.f32.gmra.mxu0 %v1562
      %v1605 = vpop.f32.mrf.mxu0
      %v1606 = vadd.f32 0.0, %v1605
      %1607 = vmatmul.f32.gmra.mxu0 %v1565
      %v1608 = vpop.f32.mrf.mxu0
      %v1609 = vadd.f32 0.0, %v1608
      %1610 = vmatmul.f32.gmra.mxu0 %v1568
      %v1611 = vpop.f32.mrf.mxu0
      %v1612 = vadd.f32 0.0, %v1611
      %1613 = vdwg.mxu0
      %v1615 = vsel %vm756, %v1034, 0
      %v1618 = vsel %vm756, %v1037, 0
      %v1621 = vsel %vm756, %v1069, 0
      %v1624 = vsel %vm756, %v1072, 0
      %v1627 = vsel %vm756, %v1104, 0
      %v1630 = vsel %vm756, %v1107, 0
      %v1633 = vsel %vm756, %v1139, 0
      %v1636 = vsel %vm756, %v1142, 0
      %v1638 = vsel %vm1570, %v736, 0
      %1640 = vmatpush.msra.mxu0 0.0
      %1641 = vmatpush.msra.mxu0 0.0
      %1642 = vmatpush.msra.mxu0 0.0
      %1643 = vmatpush.msra.mxu0 0.0
      %1644 = vmatpush.msra.mxu0 0.0
      %1645 = vmatpush.msra.mxu0 0.0
      %1646 = vmatpush.msra.mxu0 0.0
      %1647 = vmatpush.msra.mxu0 0.0
      %1648 = vmatpush.msra.mxu0 0.0
      %1649 = vmatpush.msra.mxu0 0.0
      %1650 = vmatpush.msra.mxu0 0.0
      %1651 = vmatpush.msra.mxu0 0.0
      %1652 = vmatpush.msra.mxu0 0.0
      %1653 = vmatpush.msra.mxu0 0.0
      %1654 = vmatpush.msra.mxu0 0.0
      %1655 = vmatpush.msra.mxu0 %v1638
      %1656 = vmatmul.f32.gmra.mxu0 %v1615
      %v1657 = vpop.f32.mrf.mxu0
      %v1658 = vadd.f32 %v1591, %v1657
      %1659 = vmatmul.f32.gmra.mxu0 %v1618
      %v1660 = vpop.f32.mrf.mxu0
      %v1661 = vadd.f32 %v1594, %v1660
      %1662 = vmatmul.f32.gmra.mxu0 %v1621
      %v1663 = vpop.f32.mrf.mxu0
      %v1664 = vadd.f32 %v1597, %v1663
      %1665 = vmatmul.f32.gmra.mxu0 %v1624
      %v1666 = vpop.f32.mrf.mxu0
      %v1667 = vadd.f32 %v1600, %v1666
      %1668 = vmatmul.f32.gmra.mxu0 %v1627
      %v1669 = vpop.f32.mrf.mxu0
      %v1670 = vadd.f32 %v1603, %v1669
      %1671 = vmatmul.f32.gmra.mxu0 %v1630
      %v1672 = vpop.f32.mrf.mxu0
      %v1673 = vadd.f32 %v1606, %v1672
      %1674 = vmatmul.f32.gmra.mxu0 %v1633
      %v1675 = vpop.f32.mrf.mxu0
      %v1676 = vadd.f32 %v1609, %v1675
      %1677 = vmatmul.f32.gmra.mxu0 %v1636
      %v1678 = vpop.f32.mrf.mxu0
      %v1679 = vadd.f32 %v1612, %v1678
      %1680 = vdwg.mxu0
      %1681 = vrot.lane.b32.xlu0 %v713, 124
      %v1682 = vpop.permute.xlu0 %1681
      %1683 = vrot.lane.b32.xlu0 %v716, 124
      %v1684 = vpop.permute.xlu0 %1683
      %1685 = vrot.lane.b32.xlu0 %v713, 112
      %v1686 = vpop.permute.xlu0 %1685
      %1687 = vrot.lane.b32.xlu0 %v716, 112
      %v1688 = vpop.permute.xlu0 %1687
      %v1689 = vsel %vm756, %v1682, 0
      %v1691 = vsel %vm756, %v1684, 0
      %v1693 = vsel %vm756, %v1686, 0
      %v1695 = vsel %vm756, %v1688, 0
      %1697 = vmatpush.xpose.msra.mxu0 0.0
      %1698 = vmatpush.xpose.msra.mxu0 0.0
      %1699 = vmatpush.xpose.msra.mxu0 0.0
      %1700 = vmatpush.xpose.msra.mxu0 0.0
      %1701 = vmatpush.xpose.msra.mxu0 0.0
      %1702 = vmatpush.xpose.msra.mxu0 0.0
      %1703 = vmatpush.xpose.msra.mxu0 0.0
      %1704 = vmatpush.xpose.msra.mxu0 0.0
      %1705 = vmatpush.xpose.msra.mxu0 0.0
      %1706 = vmatpush.xpose.msra.mxu0 0.0
      %1707 = vmatpush.xpose.msra.mxu0 0.0
      %1708 = vmatpush.xpose.msra.mxu0 0.0
      %1709 = vmatpush.xpose.msra.mxu0 0.0
      %1710 = vmatpush.xpose.msra.mxu0 0.0
      %1711 = vmatpush.xpose.msra.mxu0 %v1695
      %1712 = vmatpush.xpose.msra.mxu0 %v1693
      %1713 = vmatmul.f32.gmra.mxu0 %v1689
      %v1714 = vpop.f32.mrf.mxu0
      %v1715 = vadd.f32 0.0, %v1714
      %1716 = vmatmul.f32.gmra.mxu0 %v1691
      %v1717 = vpop.f32.mrf.mxu0
      %v1718 = vadd.f32 0.0, %v1717
      %1719 = vdwg.mxu0
      %1720 = vrot.lane.b32.xlu0 %v719, 124
      %v1721 = vpop.permute.xlu0 %1720
      %1722 = vrot.lane.b32.xlu0 %v722, 124
      %v1723 = vpop.permute.xlu0 %1722
      %1724 = vrot.lane.b32.xlu0 %v719, 112
      %v1725 = vpop.permute.xlu0 %1724
      %1726 = vrot.lane.b32.xlu0 %v722, 112
      %v1727 = vpop.permute.xlu0 %1726
      %v1728 = vsel %vm756, %v1721, 0
      %v1730 = vsel %vm756, %v1723, 0
      %v1732 = vsel %vm756, %v1725, 0
      %v1734 = vsel %vm756, %v1727, 0
      %1736 = vmatpush.xpose.msra.mxu0 0.0
      %1737 = vmatpush.xpose.msra.mxu0 0.0
      %1738 = vmatpush.xpose.msra.mxu0 0.0
      %1739 = vmatpush.xpose.msra.mxu0 0.0
      %1740 = vmatpush.xpose.msra.mxu0 0.0
      %1741 = vmatpush.xpose.msra.mxu0 0.0
      %1742 = vmatpush.xpose.msra.mxu0 0.0
      %1743 = vmatpush.xpose.msra.mxu0 0.0
      %1744 = vmatpush.xpose.msra.mxu0 0.0
      %1745 = vmatpush.xpose.msra.mxu0 0.0
      %1746 = vmatpush.xpose.msra.mxu0 0.0
      %1747 = vmatpush.xpose.msra.mxu0 0.0
      %1748 = vmatpush.xpose.msra.mxu0 0.0
      %1749 = vmatpush.xpose.msra.mxu0 0.0
      %1750 = vmatpush.xpose.msra.mxu0 %v1734
      %1751 = vmatpush.xpose.msra.mxu0 %v1732
      %1752 = vmatmul.f32.gmra.mxu0 %v1728
      %v1753 = vpop.f32.mrf.mxu0
      %v1754 = vadd.f32 0.0, %v1753
      %1755 = vmatmul.f32.gmra.mxu0 %v1730
      %v1756 = vpop.f32.mrf.mxu0
      %v1757 = vadd.f32 0.0, %v1756
      %1758 = vdwg.mxu0
      %1759 = vrot.lane.b32.xlu0 %v725, 124
      %v1760 = vpop.permute.xlu0 %1759
      %1761 = vrot.lane.b32.xlu0 %v728, 124
      %v1762 = vpop.permute.xlu0 %1761
      %1763 = vrot.lane.b32.xlu0 %v725, 112
      %v1764 = vpop.permute.xlu0 %1763
      %1765 = vrot.lane.b32.xlu0 %v728, 112
      %v1766 = vpop.permute.xlu0 %1765
      %v1767 = vsel %vm756, %v1760, 0
      %v1769 = vsel %vm756, %v1762, 0
      %v1771 = vsel %vm756, %v1764, 0
      %v1773 = vsel %vm756, %v1766, 0
      %1775 = vmatpush.xpose.msra.mxu0 0.0
      %1776 = vmatpush.xpose.msra.mxu0 0.0
      %1777 = vmatpush.xpose.msra.mxu0 0.0
      %1778 = vmatpush.xpose.msra.mxu0 0.0
      %1779 = vmatpush.xpose.msra.mxu0 0.0
      %1780 = vmatpush.xpose.msra.mxu0 0.0
      %1781 = vmatpush.xpose.msra.mxu0 0.0
      %1782 = vmatpush.xpose.msra.mxu0 0.0
      %1783 = vmatpush.xpose.msra.mxu0 0.0
      %1784 = vmatpush.xpose.msra.mxu0 0.0
      %1785 = vmatpush.xpose.msra.mxu0 0.0
      %1786 = vmatpush.xpose.msra.mxu0 0.0
      %1787 = vmatpush.xpose.msra.mxu0 0.0
      %1788 = vmatpush.xpose.msra.mxu0 0.0
      %1789 = vmatpush.xpose.msra.mxu0 %v1773
      %1790 = vmatpush.xpose.msra.mxu0 %v1771
      %1791 = vmatmul.f32.gmra.mxu0 %v1767
      %v1792 = vpop.f32.mrf.mxu0
      %v1793 = vadd.f32 0.0, %v1792
      %1794 = vmatmul.f32.gmra.mxu0 %v1769
      %v1795 = vpop.f32.mrf.mxu0
      %v1796 = vadd.f32 0.0, %v1795
      %1797 = vdwg.mxu0
      %1798 = vrot.lane.b32.xlu0 %v731, 124
      %v1799 = vpop.permute.xlu0 %1798
      %1800 = vrot.lane.b32.xlu0 %v734, 124
      %v1801 = vpop.permute.xlu0 %1800
      %1802 = vrot.lane.b32.xlu0 %v731, 112
      %v1803 = vpop.permute.xlu0 %1802
      %1804 = vrot.lane.b32.xlu0 %v734, 112
      %v1805 = vpop.permute.xlu0 %1804
      %v1806 = vsel %vm756, %v1799, 0
      %v1808 = vsel %vm756, %v1801, 0
      %v1810 = vsel %vm756, %v1803, 0
      %v1812 = vsel %vm756, %v1805, 0
      %1814 = vmatpush.xpose.msra.mxu0 0.0
      %1815 = vmatpush.xpose.msra.mxu0 0.0
      %1816 = vmatpush.xpose.msra.mxu0 0.0
      %1817 = vmatpush.xpose.msra.mxu0 0.0
      %1818 = vmatpush.xpose.msra.mxu0 0.0
      %1819 = vmatpush.xpose.msra.mxu0 0.0
      %1820 = vmatpush.xpose.msra.mxu0 0.0
      %1821 = vmatpush.xpose.msra.mxu0 0.0
      %1822 = vmatpush.xpose.msra.mxu0 0.0
      %1823 = vmatpush.xpose.msra.mxu0 0.0
      %1824 = vmatpush.xpose.msra.mxu0 0.0
      %1825 = vmatpush.xpose.msra.mxu0 0.0
      %1826 = vmatpush.xpose.msra.mxu0 0.0
      %1827 = vmatpush.xpose.msra.mxu0 0.0
      %1828 = vmatpush.xpose.msra.mxu0 %v1812
      %1829 = vmatpush.xpose.msra.mxu0 %v1810
      %1830 = vmatmul.f32.gmra.mxu0 %v1806
      %v1831 = vpop.f32.mrf.mxu0
      %v1832 = vadd.f32 0.0, %v1831
      %1833 = vmatmul.f32.gmra.mxu0 %v1808
      %v1834 = vpop.f32.mrf.mxu0
      %v1835 = vadd.f32 0.0, %v1834
      %1836 = vdwg.mxu0
      %v1837 = vmul.f32 %v1715, 0.70710677
      %v1838 = vmul.f32 %v1718, 0.70710677
      %v1839 = vmul.f32 %v1754, 0.70710677
      %v1840 = vmul.f32 %v1757, 0.70710677
      %v1841 = vmul.f32 %v1793, 0.70710677
      %v1842 = vmul.f32 %v1796, 0.70710677
      %v1843 = vmul.f32 %v1832, 0.70710677
      %v1844 = vmul.f32 %v1835, 0.70710677
      %v1845 = vadd.f32 %v1837, %v742
      %v1846 = vadd.f32 %v1838, %v743
      %v1847 = vadd.f32 %v1839, %v742
      %v1848 = vadd.f32 %v1840, %v743
      %v1849 = vadd.f32 %v1841, %v742
      %v1850 = vadd.f32 %v1842, %v743
      %v1851 = vadd.f32 %v1843, %v742
      %v1852 = vadd.f32 %v1844, %v743
      %v1853 = vsel %vm915, %v1845, -inf
      %1854 = vmax.xlane.f32.xlu0 %v1853
      %v1855 = vpop.xlane.xlu0 %1854
      %v1856 = vsel %vm915, %v1846, -inf
      %1857 = vmax.xlane.f32.xlu0 %v1856
      %v1858 = vpop.xlane.xlu0 %1857
      %v1859 = vsel %vm915, %v1847, -inf
      %1860 = vmax.xlane.f32.xlu0 %v1859
      %v1861 = vpop.xlane.xlu0 %1860
      %v1862 = vsel %vm915, %v1848, -inf
      %1863 = vmax.xlane.f32.xlu0 %v1862
      %v1864 = vpop.xlane.xlu0 %1863
      %v1865 = vsel %vm915, %v1849, -inf
      %1866 = vmax.xlane.f32.xlu0 %v1865
      %v1867 = vpop.xlane.xlu0 %1866
      %v1868 = vsel %vm915, %v1850, -inf
      %1869 = vmax.xlane.f32.xlu0 %v1868
      %v1870 = vpop.xlane.xlu0 %1869
      %v1871 = vsel %vm915, %v1851, -inf
      %1872 = vmax.xlane.f32.xlu0 %v1871
      %v1873 = vpop.xlane.xlu0 %1872
      %v1874 = vsel %vm915, %v1852, -inf
      %1875 = vmax.xlane.f32.xlu0 %v1874
      %v1876 = vpop.xlane.xlu0 %1875
      %v1877 = vsub.f32 %v1845, %v1855
      %v1878 = vsub.f32 %v1846, %v1858
      %v1879 = vsub.f32 %v1847, %v1861
      %v1880 = vsub.f32 %v1848, %v1864
      %v1881 = vsub.f32 %v1849, %v1867
      %v1882 = vsub.f32 %v1850, %v1870
      %v1883 = vsub.f32 %v1851, %v1873
      %v1884 = vsub.f32 %v1852, %v1876
      %v1885 = vmul.f32 %v1877, 1.442695
      %v1886 = vpow.pop %v1885
      %v1887 = vmul.f32 %v1878, 1.442695
      %v1888 = vpow.pop %v1887
      %v1889 = vmul.f32 %v1879, 1.442695
      %v1890 = vpow.pop %v1889
      %v1891 = vmul.f32 %v1880, 1.442695
      %v1892 = vpow.pop %v1891
      %v1893 = vmul.f32 %v1881, 1.442695
      %v1894 = vpow.pop %v1893
      %v1895 = vmul.f32 %v1882, 1.442695
      %v1896 = vpow.pop %v1895
      %v1897 = vmul.f32 %v1883, 1.442695
      %v1898 = vpow.pop %v1897
      %v1899 = vmul.f32 %v1884, 1.442695
      %v1900 = vpow.pop %v1899
      %v1901 = vsel %vm915, %v1886, 0.0
      %1902 = vadd.xlane.f32.xlu0 %v1901
      %v1903 = vpop.xlane.xlu0 %1902
      %v1904 = vsel %vm915, %v1888, 0.0
      %1905 = vadd.xlane.f32.xlu0 %v1904
      %v1906 = vpop.xlane.xlu0 %1905
      %v1907 = vsel %vm915, %v1890, 0.0
      %1908 = vadd.xlane.f32.xlu0 %v1907
      %v1909 = vpop.xlane.xlu0 %1908
      %v1910 = vsel %vm915, %v1892, 0.0
      %1911 = vadd.xlane.f32.xlu0 %v1910
      %v1912 = vpop.xlane.xlu0 %1911
      %v1913 = vsel %vm915, %v1894, 0.0
      %1914 = vadd.xlane.f32.xlu0 %v1913
      %v1915 = vpop.xlane.xlu0 %1914
      %v1916 = vsel %vm915, %v1896, 0.0
      %1917 = vadd.xlane.f32.xlu0 %v1916
      %v1918 = vpop.xlane.xlu0 %1917
      %v1919 = vsel %vm915, %v1898, 0.0
      %1920 = vadd.xlane.f32.xlu0 %v1919
      %v1921 = vpop.xlane.xlu0 %1920
      %v1922 = vsel %vm915, %v1900, 0.0
      %1923 = vadd.xlane.f32.xlu0 %v1922
      %v1924 = vpop.xlane.xlu0 %1923
      %v1925 = vrcp.pop %v1903
      %v1926 = vrcp.pop %v1906
      %v1927 = vrcp.pop %v1909
      %v1928 = vrcp.pop %v1912
      %v1929 = vrcp.pop %v1915
      %v1930 = vrcp.pop %v1918
      %v1931 = vrcp.pop %v1921
      %v1932 = vrcp.pop %v1924
      %v1933 = vmul.f32 %v1886, %v1925
      %v1934 = vmul.f32 %v1888, %v1926
      %v1935 = vmul.f32 %v1890, %v1927
      %v1936 = vmul.f32 %v1892, %v1928
      %v1937 = vmul.f32 %v1894, %v1929
      %v1938 = vmul.f32 %v1896, %v1930
      %v1939 = vmul.f32 %v1898, %v1931
      %v1940 = vmul.f32 %v1900, %v1932
      %1941 = vrot.lane.b32.xlu0 %v713, 100
      %v1942 = vpop.permute.xlu0 %1941
      %1943 = vrot.lane.b32.xlu0 %v716, 100
      %v1944 = vpop.permute.xlu0 %1943
      %v1948 = vsel %vm915, %v1933, 0
      %v1951 = vsel %vm915, %v1934, 0
      %1953 = vmatpush.msra.mxu0 0.0
      %1954 = vmatpush.msra.mxu0 0.0
      %1955 = vmatpush.msra.mxu0 0.0
      %1956 = vmatpush.msra.mxu0 0.0
      %1957 = vmatpush.msra.mxu0 0.0
      %1958 = vmatpush.msra.mxu0 0.0
      %1959 = vmatpush.msra.mxu0 0.0
      %1960 = vmatpush.msra.mxu0 0.0
      %1961 = vmatpush.msra.mxu0 0.0
      %1962 = vmatpush.msra.mxu0 0.0
      %1963 = vmatpush.msra.mxu0 0.0
      %1964 = vmatpush.msra.mxu0 0.0
      %1965 = vmatpush.msra.mxu0 0.0
      %1966 = vmatpush.msra.mxu0 0.0
      %1967 = vmatpush.msra.mxu0 %v1944
      %1968 = vmatpush.msra.mxu0 %v1942
      %1969 = vmatmul.f32.gmra.mxu0 %v1948
      %v1970 = vpop.f32.mrf.mxu0
      %v1971 = vadd.f32 0.0, %v1970
      %1972 = vmatmul.f32.gmra.mxu0 %v1951
      %v1973 = vpop.f32.mrf.mxu0
      %v1974 = vadd.f32 0.0, %v1973
      %1975 = vdwg.mxu0
      %1976 = vrot.lane.b32.xlu0 %v719, 100
      %v1977 = vpop.permute.xlu0 %1976
      %1978 = vrot.lane.b32.xlu0 %v722, 100
      %v1979 = vpop.permute.xlu0 %1978
      %v1983 = vsel %vm915, %v1935, 0
      %v1986 = vsel %vm915, %v1936, 0
      %1988 = vmatpush.msra.mxu0 0.0
      %1989 = vmatpush.msra.mxu0 0.0
      %1990 = vmatpush.msra.mxu0 0.0
      %1991 = vmatpush.msra.mxu0 0.0
      %1992 = vmatpush.msra.mxu0 0.0
      %1993 = vmatpush.msra.mxu0 0.0
      %1994 = vmatpush.msra.mxu0 0.0
      %1995 = vmatpush.msra.mxu0 0.0
      %1996 = vmatpush.msra.mxu0 0.0
      %1997 = vmatpush.msra.mxu0 0.0
      %1998 = vmatpush.msra.mxu0 0.0
      %1999 = vmatpush.msra.mxu0 0.0
      %2000 = vmatpush.msra.mxu0 0.0
      %2001 = vmatpush.msra.mxu0 0.0
      %2002 = vmatpush.msra.mxu0 %v1979
      %2003 = vmatpush.msra.mxu0 %v1977
      %2004 = vmatmul.f32.gmra.mxu0 %v1983
      %v2005 = vpop.f32.mrf.mxu0
      %v2006 = vadd.f32 0.0, %v2005
      %2007 = vmatmul.f32.gmra.mxu0 %v1986
      %v2008 = vpop.f32.mrf.mxu0
      %v2009 = vadd.f32 0.0, %v2008
      %2010 = vdwg.mxu0
      %2011 = vrot.lane.b32.xlu0 %v725, 100
      %v2012 = vpop.permute.xlu0 %2011
      %2013 = vrot.lane.b32.xlu0 %v728, 100
      %v2014 = vpop.permute.xlu0 %2013
      %v2018 = vsel %vm915, %v1937, 0
      %v2021 = vsel %vm915, %v1938, 0
      %2023 = vmatpush.msra.mxu0 0.0
      %2024 = vmatpush.msra.mxu0 0.0
      %2025 = vmatpush.msra.mxu0 0.0
      %2026 = vmatpush.msra.mxu0 0.0
      %2027 = vmatpush.msra.mxu0 0.0
      %2028 = vmatpush.msra.mxu0 0.0
      %2029 = vmatpush.msra.mxu0 0.0
      %2030 = vmatpush.msra.mxu0 0.0
      %2031 = vmatpush.msra.mxu0 0.0
      %2032 = vmatpush.msra.mxu0 0.0
      %2033 = vmatpush.msra.mxu0 0.0
      %2034 = vmatpush.msra.mxu0 0.0
      %2035 = vmatpush.msra.mxu0 0.0
      %2036 = vmatpush.msra.mxu0 0.0
      %2037 = vmatpush.msra.mxu0 %v2014
      %2038 = vmatpush.msra.mxu0 %v2012
      %2039 = vmatmul.f32.gmra.mxu0 %v2018
      %v2040 = vpop.f32.mrf.mxu0
      %v2041 = vadd.f32 0.0, %v2040
      %2042 = vmatmul.f32.gmra.mxu0 %v2021
      %v2043 = vpop.f32.mrf.mxu0
      %v2044 = vadd.f32 0.0, %v2043
      %2045 = vdwg.mxu0
      %2046 = vrot.lane.b32.xlu0 %v731, 100
      %v2047 = vpop.permute.xlu0 %2046
      %2048 = vrot.lane.b32.xlu0 %v734, 100
      %v2049 = vpop.permute.xlu0 %2048
      %v2053 = vsel %vm915, %v1939, 0
      %v2056 = vsel %vm915, %v1940, 0
      %2058 = vmatpush.msra.mxu0 0.0
      %2059 = vmatpush.msra.mxu0 0.0
      %2060 = vmatpush.msra.mxu0 0.0
      %2061 = vmatpush.msra.mxu0 0.0
      %2062 = vmatpush.msra.mxu0 0.0
      %2063 = vmatpush.msra.mxu0 0.0
      %2064 = vmatpush.msra.mxu0 0.0
      %2065 = vmatpush.msra.mxu0 0.0
      %2066 = vmatpush.msra.mxu0 0.0
      %2067 = vmatpush.msra.mxu0 0.0
      %2068 = vmatpush.msra.mxu0 0.0
      %2069 = vmatpush.msra.mxu0 0.0
      %2070 = vmatpush.msra.mxu0 0.0
      %2071 = vmatpush.msra.mxu0 0.0
      %2072 = vmatpush.msra.mxu0 %v2049
      %2073 = vmatpush.msra.mxu0 %v2047
      %2074 = vmatmul.f32.gmra.mxu0 %v2053
      %v2075 = vpop.f32.mrf.mxu0
      %v2076 = vadd.f32 0.0, %v2075
      %2077 = vmatmul.f32.gmra.mxu0 %v2056
      %v2078 = vpop.f32.mrf.mxu0
      %v2079 = vadd.f32 0.0, %v2078
      %2080 = vdwg.mxu0
      %v2081 = vrot.slane %v736, 4
      %v2083 = vsel %vm756, %v1971, 0
      %v2086 = vsel %vm756, %v1974, 0
      %v2089 = vsel %vm756, %v2006, 0
      %v2092 = vsel %vm756, %v2009, 0
      %v2095 = vsel %vm756, %v2041, 0
      %v2098 = vsel %vm756, %v2044, 0
      %v2101 = vsel %vm756, %v2076, 0
      %v2104 = vsel %vm756, %v2079, 0
      %v2106 = vsel %vm1570, %v2081, 0
      %2108 = vmatpush.msra.mxu0 0.0
      %2109 = vmatpush.msra.mxu0 0.0
      %2110 = vmatpush.msra.mxu0 0.0
      %2111 = vmatpush.msra.mxu0 0.0
      %2112 = vmatpush.msra.mxu0 0.0
      %2113 = vmatpush.msra.mxu0 0.0
      %2114 = vmatpush.msra.mxu0 0.0
      %2115 = vmatpush.msra.mxu0 0.0
      %2116 = vmatpush.msra.mxu0 0.0
      %2117 = vmatpush.msra.mxu0 0.0
      %2118 = vmatpush.msra.mxu0 0.0
      %2119 = vmatpush.msra.mxu0 0.0
      %2120 = vmatpush.msra.mxu0 0.0
      %2121 = vmatpush.msra.mxu0 0.0
      %2122 = vmatpush.msra.mxu0 0.0
      %2123 = vmatpush.msra.mxu0 %v2106
      %2124 = vmatmul.f32.gmra.mxu0 %v2083
      %v2125 = vpop.f32.mrf.mxu0
      %v2126 = vadd.f32 0.0, %v2125
      %2127 = vmatmul.f32.gmra.mxu0 %v2086
      %v2128 = vpop.f32.mrf.mxu0
      %v2129 = vadd.f32 0.0, %v2128
      %2130 = vmatmul.f32.gmra.mxu0 %v2089
      %v2131 = vpop.f32.mrf.mxu0
      %v2132 = vadd.f32 0.0, %v2131
      %2133 = vmatmul.f32.gmra.mxu0 %v2092
      %v2134 = vpop.f32.mrf.mxu0
      %v2135 = vadd.f32 0.0, %v2134
      %2136 = vmatmul.f32.gmra.mxu0 %v2095
      %v2137 = vpop.f32.mrf.mxu0
      %v2138 = vadd.f32 0.0, %v2137
      %2139 = vmatmul.f32.gmra.mxu0 %v2098
      %v2140 = vpop.f32.mrf.mxu0
      %v2141 = vadd.f32 0.0, %v2140
      %2142 = vmatmul.f32.gmra.mxu0 %v2101
      %v2143 = vpop.f32.mrf.mxu0
      %v2144 = vadd.f32 0.0, %v2143
      %2145 = vmatmul.f32.gmra.mxu0 %v2104
      %v2146 = vpop.f32.mrf.mxu0
      %v2147 = vadd.f32 0.0, %v2146
      %2148 = vdwg.mxu0
      %v2149 = vadd.f32 %v1658, %v2126
      %v2150 = vadd.f32 %v1661, %v2129
      %v2151 = vadd.f32 %v1664, %v2132
      %v2152 = vadd.f32 %v1667, %v2135
      %v2153 = vadd.f32 %v1670, %v2138
      %v2154 = vadd.f32 %v1673, %v2141
      %v2155 = vadd.f32 %v1676, %v2144
      %v2156 = vadd.f32 %v1679, %v2147
      %2157 = vrot.lane.b32.xlu0 %v713, 122
      %v2158 = vpop.permute.xlu0 %2157
      %2159 = vrot.lane.b32.xlu0 %v716, 122
      %v2160 = vpop.permute.xlu0 %2159
      %2161 = vrot.lane.b32.xlu0 %v713, 110
      %v2162 = vpop.permute.xlu0 %2161
      %2163 = vrot.lane.b32.xlu0 %v716, 110
      %v2164 = vpop.permute.xlu0 %2163
      %v2165 = vsel %vm756, %v2158, 0
      %v2167 = vsel %vm756, %v2160, 0
      %v2169 = vsel %vm756, %v2162, 0
      %v2171 = vsel %vm756, %v2164, 0
      %2173 = vmatpush.xpose.msra.mxu0 0.0
      %2174 = vmatpush.xpose.msra.mxu0 0.0
      %2175 = vmatpush.xpose.msra.mxu0 0.0
      %2176 = vmatpush.xpose.msra.mxu0 0.0
      %2177 = vmatpush.xpose.msra.mxu0 0.0
      %2178 = vmatpush.xpose.msra.mxu0 0.0
      %2179 = vmatpush.xpose.msra.mxu0 0.0
      %2180 = vmatpush.xpose.msra.mxu0 0.0
      %2181 = vmatpush.xpose.msra.mxu0 0.0
      %2182 = vmatpush.xpose.msra.mxu0 0.0
      %2183 = vmatpush.xpose.msra.mxu0 0.0
      %2184 = vmatpush.xpose.msra.mxu0 0.0
      %2185 = vmatpush.xpose.msra.mxu0 0.0
      %2186 = vmatpush.xpose.msra.mxu0 0.0
      %2187 = vmatpush.xpose.msra.mxu0 %v2171
      %2188 = vmatpush.xpose.msra.mxu0 %v2169
      %2189 = vmatmul.f32.gmra.mxu0 %v2165
      %v2190 = vpop.f32.mrf.mxu0
      %v2191 = vadd.f32 0.0, %v2190
      %2192 = vmatmul.f32.gmra.mxu0 %v2167
      %v2193 = vpop.f32.mrf.mxu0
      %v2194 = vadd.f32 0.0, %v2193
      %2195 = vdwg.mxu0
      %2196 = vrot.lane.b32.xlu0 %v719, 122
      %v2197 = vpop.permute.xlu0 %2196
      %2198 = vrot.lane.b32.xlu0 %v722, 122
      %v2199 = vpop.permute.xlu0 %2198
      %2200 = vrot.lane.b32.xlu0 %v719, 110
      %v2201 = vpop.permute.xlu0 %2200
      %2202 = vrot.lane.b32.xlu0 %v722, 110
      %v2203 = vpop.permute.xlu0 %2202
      %v2204 = vsel %vm756, %v2197, 0
      %v2206 = vsel %vm756, %v2199, 0
      %v2208 = vsel %vm756, %v2201, 0
      %v2210 = vsel %vm756, %v2203, 0
      %2212 = vmatpush.xpose.msra.mxu0 0.0
      %2213 = vmatpush.xpose.msra.mxu0 0.0
      %2214 = vmatpush.xpose.msra.mxu0 0.0
      %2215 = vmatpush.xpose.msra.mxu0 0.0
      %2216 = vmatpush.xpose.msra.mxu0 0.0
      %2217 = vmatpush.xpose.msra.mxu0 0.0
      %2218 = vmatpush.xpose.msra.mxu0 0.0
      %2219 = vmatpush.xpose.msra.mxu0 0.0
      %2220 = vmatpush.xpose.msra.mxu0 0.0
      %2221 = vmatpush.xpose.msra.mxu0 0.0
      %2222 = vmatpush.xpose.msra.mxu0 0.0
      %2223 = vmatpush.xpose.msra.mxu0 0.0
      %2224 = vmatpush.xpose.msra.mxu0 0.0
      %2225 = vmatpush.xpose.msra.mxu0 0.0
      %2226 = vmatpush.xpose.msra.mxu0 %v2210
      %2227 = vmatpush.xpose.msra.mxu0 %v2208
      %2228 = vmatmul.f32.gmra.mxu0 %v2204
      %v2229 = vpop.f32.mrf.mxu0
      %v2230 = vadd.f32 0.0, %v2229
      %2231 = vmatmul.f32.gmra.mxu0 %v2206
      %v2232 = vpop.f32.mrf.mxu0
      %v2233 = vadd.f32 0.0, %v2232
      %2234 = vdwg.mxu0
      %2235 = vrot.lane.b32.xlu0 %v725, 122
      %v2236 = vpop.permute.xlu0 %2235
      %2237 = vrot.lane.b32.xlu0 %v728, 122
      %v2238 = vpop.permute.xlu0 %2237
      %2239 = vrot.lane.b32.xlu0 %v725, 110
      %v2240 = vpop.permute.xlu0 %2239
      %2241 = vrot.lane.b32.xlu0 %v728, 110
      %v2242 = vpop.permute.xlu0 %2241
      %v2243 = vsel %vm756, %v2236, 0
      %v2245 = vsel %vm756, %v2238, 0
      %v2247 = vsel %vm756, %v2240, 0
      %v2249 = vsel %vm756, %v2242, 0
      %2251 = vmatpush.xpose.msra.mxu0 0.0
      %2252 = vmatpush.xpose.msra.mxu0 0.0
      %2253 = vmatpush.xpose.msra.mxu0 0.0
      %2254 = vmatpush.xpose.msra.mxu0 0.0
      %2255 = vmatpush.xpose.msra.mxu0 0.0
      %2256 = vmatpush.xpose.msra.mxu0 0.0
      %2257 = vmatpush.xpose.msra.mxu0 0.0
      %2258 = vmatpush.xpose.msra.mxu0 0.0
      %2259 = vmatpush.xpose.msra.mxu0 0.0
      %2260 = vmatpush.xpose.msra.mxu0 0.0
      %2261 = vmatpush.xpose.msra.mxu0 0.0
      %2262 = vmatpush.xpose.msra.mxu0 0.0
      %2263 = vmatpush.xpose.msra.mxu0 0.0
      %2264 = vmatpush.xpose.msra.mxu0 0.0
      %2265 = vmatpush.xpose.msra.mxu0 %v2249
      %2266 = vmatpush.xpose.msra.mxu0 %v2247
      %2267 = vmatmul.f32.gmra.mxu0 %v2243
      %v2268 = vpop.f32.mrf.mxu0
      %v2269 = vadd.f32 0.0, %v2268
      %2270 = vmatmul.f32.gmra.mxu0 %v2245
      %v2271 = vpop.f32.mrf.mxu0
      %v2272 = vadd.f32 0.0, %v2271
      %2273 = vdwg.mxu0
      %2274 = vrot.lane.b32.xlu0 %v731, 122
      %v2275 = vpop.permute.xlu0 %2274
      %2276 = vrot.lane.b32.xlu0 %v734, 122
      %v2277 = vpop.permute.xlu0 %2276
      %2278 = vrot.lane.b32.xlu0 %v731, 110
      %v2279 = vpop.permute.xlu0 %2278
      %2280 = vrot.lane.b32.xlu0 %v734, 110
      %v2281 = vpop.permute.xlu0 %2280
      %v2282 = vsel %vm756, %v2275, 0
      %v2284 = vsel %vm756, %v2277, 0
      %v2286 = vsel %vm756, %v2279, 0
      %v2288 = vsel %vm756, %v2281, 0
      %2290 = vmatpush.xpose.msra.mxu0 0.0
      %2291 = vmatpush.xpose.msra.mxu0 0.0
      %2292 = vmatpush.xpose.msra.mxu0 0.0
      %2293 = vmatpush.xpose.msra.mxu0 0.0
      %2294 = vmatpush.xpose.msra.mxu0 0.0
      %2295 = vmatpush.xpose.msra.mxu0 0.0
      %2296 = vmatpush.xpose.msra.mxu0 0.0
      %2297 = vmatpush.xpose.msra.mxu0 0.0
      %2298 = vmatpush.xpose.msra.mxu0 0.0
      %2299 = vmatpush.xpose.msra.mxu0 0.0
      %2300 = vmatpush.xpose.msra.mxu0 0.0
      %2301 = vmatpush.xpose.msra.mxu0 0.0
      %2302 = vmatpush.xpose.msra.mxu0 0.0
      %2303 = vmatpush.xpose.msra.mxu0 0.0
      %2304 = vmatpush.xpose.msra.mxu0 %v2288
      %2305 = vmatpush.xpose.msra.mxu0 %v2286
      %2306 = vmatmul.f32.gmra.mxu0 %v2282
      %v2307 = vpop.f32.mrf.mxu0
      %v2308 = vadd.f32 0.0, %v2307
      %2309 = vmatmul.f32.gmra.mxu0 %v2284
      %v2310 = vpop.f32.mrf.mxu0
      %v2311 = vadd.f32 0.0, %v2310
      %2312 = vdwg.mxu0
      %v2313 = vmul.f32 %v2191, 0.70710677
      %v2314 = vmul.f32 %v2194, 0.70710677
      %v2315 = vmul.f32 %v2230, 0.70710677
      %v2316 = vmul.f32 %v2233, 0.70710677
      %v2317 = vmul.f32 %v2269, 0.70710677
      %v2318 = vmul.f32 %v2272, 0.70710677
      %v2319 = vmul.f32 %v2308, 0.70710677
      %v2320 = vmul.f32 %v2311, 0.70710677
      %v2321 = vadd.f32 %v2313, %v744
      %v2322 = vadd.f32 %v2314, %v745
      %v2323 = vadd.f32 %v2315, %v744
      %v2324 = vadd.f32 %v2316, %v745
      %v2325 = vadd.f32 %v2317, %v744
      %v2326 = vadd.f32 %v2318, %v745
      %v2327 = vadd.f32 %v2319, %v744
      %v2328 = vadd.f32 %v2320, %v745
      %v2329 = vsel %vm915, %v2321, -inf
      %2330 = vmax.xlane.f32.xlu0 %v2329
      %v2331 = vpop.xlane.xlu0 %2330
      %v2332 = vsel %vm915, %v2322, -inf
      %2333 = vmax.xlane.f32.xlu0 %v2332
      %v2334 = vpop.xlane.xlu0 %2333
      %v2335 = vsel %vm915, %v2323, -inf
      %2336 = vmax.xlane.f32.xlu0 %v2335
      %v2337 = vpop.xlane.xlu0 %2336
      %v2338 = vsel %vm915, %v2324, -inf
      %2339 = vmax.xlane.f32.xlu0 %v2338
      %v2340 = vpop.xlane.xlu0 %2339
      %v2341 = vsel %vm915, %v2325, -inf
      %2342 = vmax.xlane.f32.xlu0 %v2341
      %v2343 = vpop.xlane.xlu0 %2342
      %v2344 = vsel %vm915, %v2326, -inf
      %2345 = vmax.xlane.f32.xlu0 %v2344
      %v2346 = vpop.xlane.xlu0 %2345
      %v2347 = vsel %vm915, %v2327, -inf
      %2348 = vmax.xlane.f32.xlu0 %v2347
      %v2349 = vpop.xlane.xlu0 %2348
      %v2350 = vsel %vm915, %v2328, -inf
      %2351 = vmax.xlane.f32.xlu0 %v2350
      %v2352 = vpop.xlane.xlu0 %2351
      %v2353 = vsub.f32 %v2321, %v2331
      %v2354 = vsub.f32 %v2322, %v2334
      %v2355 = vsub.f32 %v2323, %v2337
      %v2356 = vsub.f32 %v2324, %v2340
      %v2357 = vsub.f32 %v2325, %v2343
      %v2358 = vsub.f32 %v2326, %v2346
      %v2359 = vsub.f32 %v2327, %v2349
      %v2360 = vsub.f32 %v2328, %v2352
      %v2361 = vmul.f32 %v2353, 1.442695
      %v2362 = vpow.pop %v2361
      %v2363 = vmul.f32 %v2354, 1.442695
      %v2364 = vpow.pop %v2363
      %v2365 = vmul.f32 %v2355, 1.442695
      %v2366 = vpow.pop %v2365
      %v2367 = vmul.f32 %v2356, 1.442695
      %v2368 = vpow.pop %v2367
      %v2369 = vmul.f32 %v2357, 1.442695
      %v2370 = vpow.pop %v2369
      %v2371 = vmul.f32 %v2358, 1.442695
      %v2372 = vpow.pop %v2371
      %v2373 = vmul.f32 %v2359, 1.442695
      %v2374 = vpow.pop %v2373
      %v2375 = vmul.f32 %v2360, 1.442695
      %v2376 = vpow.pop %v2375
      %v2377 = vsel %vm915, %v2362, 0.0
      %2378 = vadd.xlane.f32.xlu0 %v2377
      %v2379 = vpop.xlane.xlu0 %2378
      %v2380 = vsel %vm915, %v2364, 0.0
      %2381 = vadd.xlane.f32.xlu0 %v2380
      %v2382 = vpop.xlane.xlu0 %2381
      %v2383 = vsel %vm915, %v2366, 0.0
      %2384 = vadd.xlane.f32.xlu0 %v2383
      %v2385 = vpop.xlane.xlu0 %2384
      %v2386 = vsel %vm915, %v2368, 0.0
      %2387 = vadd.xlane.f32.xlu0 %v2386
      %v2388 = vpop.xlane.xlu0 %2387
      %v2389 = vsel %vm915, %v2370, 0.0
      %2390 = vadd.xlane.f32.xlu0 %v2389
      %v2391 = vpop.xlane.xlu0 %2390
      %v2392 = vsel %vm915, %v2372, 0.0
      %2393 = vadd.xlane.f32.xlu0 %v2392
      %v2394 = vpop.xlane.xlu0 %2393
      %v2395 = vsel %vm915, %v2374, 0.0
      %2396 = vadd.xlane.f32.xlu0 %v2395
      %v2397 = vpop.xlane.xlu0 %2396
      %v2398 = vsel %vm915, %v2376, 0.0
      %2399 = vadd.xlane.f32.xlu0 %v2398
      %v2400 = vpop.xlane.xlu0 %2399
      %v2401 = vrcp.pop %v2379
      %v2402 = vrcp.pop %v2382
      %v2403 = vrcp.pop %v2385
      %v2404 = vrcp.pop %v2388
      %v2405 = vrcp.pop %v2391
      %v2406 = vrcp.pop %v2394
      %v2407 = vrcp.pop %v2397
      %v2408 = vrcp.pop %v2400
      %v2409 = vmul.f32 %v2362, %v2401
      %v2410 = vmul.f32 %v2364, %v2402
      %v2411 = vmul.f32 %v2366, %v2403
      %v2412 = vmul.f32 %v2368, %v2404
      %v2413 = vmul.f32 %v2370, %v2405
      %v2414 = vmul.f32 %v2372, %v2406
      %v2415 = vmul.f32 %v2374, %v2407
      %v2416 = vmul.f32 %v2376, %v2408
      %2417 = vrot.lane.b32.xlu0 %v713, 98
      %v2418 = vpop.permute.xlu0 %2417
      %2419 = vrot.lane.b32.xlu0 %v716, 98
      %v2420 = vpop.permute.xlu0 %2419
      %v2424 = vsel %vm915, %v2409, 0
      %v2427 = vsel %vm915, %v2410, 0
      %2429 = vmatpush.msra.mxu0 0.0
      %2430 = vmatpush.msra.mxu0 0.0
      %2431 = vmatpush.msra.mxu0 0.0
      %2432 = vmatpush.msra.mxu0 0.0
      %2433 = vmatpush.msra.mxu0 0.0
      %2434 = vmatpush.msra.mxu0 0.0
      %2435 = vmatpush.msra.mxu0 0.0
      %2436 = vmatpush.msra.mxu0 0.0
      %2437 = vmatpush.msra.mxu0 0.0
      %2438 = vmatpush.msra.mxu0 0.0
      %2439 = vmatpush.msra.mxu0 0.0
      %2440 = vmatpush.msra.mxu0 0.0
      %2441 = vmatpush.msra.mxu0 0.0
      %2442 = vmatpush.msra.mxu0 0.0
      %2443 = vmatpush.msra.mxu0 %v2420
      %2444 = vmatpush.msra.mxu0 %v2418
      %2445 = vmatmul.f32.gmra.mxu0 %v2424
      %v2446 = vpop.f32.mrf.mxu0
      %v2447 = vadd.f32 0.0, %v2446
      %2448 = vmatmul.f32.gmra.mxu0 %v2427
      %v2449 = vpop.f32.mrf.mxu0
      %v2450 = vadd.f32 0.0, %v2449
      %2451 = vdwg.mxu0
      %2452 = vrot.lane.b32.xlu0 %v719, 98
      %v2453 = vpop.permute.xlu0 %2452
      %2454 = vrot.lane.b32.xlu0 %v722, 98
      %v2455 = vpop.permute.xlu0 %2454
      %v2459 = vsel %vm915, %v2411, 0
      %v2462 = vsel %vm915, %v2412, 0
      %2464 = vmatpush.msra.mxu0 0.0
      %2465 = vmatpush.msra.mxu0 0.0
      %2466 = vmatpush.msra.mxu0 0.0
      %2467 = vmatpush.msra.mxu0 0.0
      %2468 = vmatpush.msra.mxu0 0.0
      %2469 = vmatpush.msra.mxu0 0.0
      %2470 = vmatpush.msra.mxu0 0.0
      %2471 = vmatpush.msra.mxu0 0.0
      %2472 = vmatpush.msra.mxu0 0.0
      %2473 = vmatpush.msra.mxu0 0.0
      %2474 = vmatpush.msra.mxu0 0.0
      %2475 = vmatpush.msra.mxu0 0.0
      %2476 = vmatpush.msra.mxu0 0.0
      %2477 = vmatpush.msra.mxu0 0.0
      %2478 = vmatpush.msra.mxu0 %v2455
      %2479 = vmatpush.msra.mxu0 %v2453
      %2480 = vmatmul.f32.gmra.mxu0 %v2459
      %v2481 = vpop.f32.mrf.mxu0
      %v2482 = vadd.f32 0.0, %v2481
      %2483 = vmatmul.f32.gmra.mxu0 %v2462
      %v2484 = vpop.f32.mrf.mxu0
      %v2485 = vadd.f32 0.0, %v2484
      %2486 = vdwg.mxu0
      %2487 = vrot.lane.b32.xlu0 %v725, 98
      %v2488 = vpop.permute.xlu0 %2487
      %2489 = vrot.lane.b32.xlu0 %v728, 98
      %v2490 = vpop.permute.xlu0 %2489
      %v2494 = vsel %vm915, %v2413, 0
      %v2497 = vsel %vm915, %v2414, 0
      %2499 = vmatpush.msra.mxu0 0.0
      %2500 = vmatpush.msra.mxu0 0.0
      %2501 = vmatpush.msra.mxu0 0.0
      %2502 = vmatpush.msra.mxu0 0.0
      %2503 = vmatpush.msra.mxu0 0.0
      %2504 = vmatpush.msra.mxu0 0.0
      %2505 = vmatpush.msra.mxu0 0.0
      %2506 = vmatpush.msra.mxu0 0.0
      %2507 = vmatpush.msra.mxu0 0.0
      %2508 = vmatpush.msra.mxu0 0.0
      %2509 = vmatpush.msra.mxu0 0.0
      %2510 = vmatpush.msra.mxu0 0.0
      %2511 = vmatpush.msra.mxu0 0.0
      %2512 = vmatpush.msra.mxu0 0.0
      %2513 = vmatpush.msra.mxu0 %v2490
      %2514 = vmatpush.msra.mxu0 %v2488
      %2515 = vmatmul.f32.gmra.mxu0 %v2494
      %v2516 = vpop.f32.mrf.mxu0
      %v2517 = vadd.f32 0.0, %v2516
      %2518 = vmatmul.f32.gmra.mxu0 %v2497
      %v2519 = vpop.f32.mrf.mxu0
      %v2520 = vadd.f32 0.0, %v2519
      %2521 = vdwg.mxu0
      %2522 = vrot.lane.b32.xlu0 %v731, 98
      %v2523 = vpop.permute.xlu0 %2522
      %2524 = vrot.lane.b32.xlu0 %v734, 98
      %v2525 = vpop.permute.xlu0 %2524
      %v2529 = vsel %vm915, %v2415, 0
      %v2532 = vsel %vm915, %v2416, 0
      %2534 = vmatpush.msra.mxu0 0.0
      %2535 = vmatpush.msra.mxu0 0.0
      %2536 = vmatpush.msra.mxu0 0.0
      %2537 = vmatpush.msra.mxu0 0.0
      %2538 = vmatpush.msra.mxu0 0.0
      %2539 = vmatpush.msra.mxu0 0.0
      %2540 = vmatpush.msra.mxu0 0.0
      %2541 = vmatpush.msra.mxu0 0.0
      %2542 = vmatpush.msra.mxu0 0.0
      %2543 = vmatpush.msra.mxu0 0.0
      %2544 = vmatpush.msra.mxu0 0.0
      %2545 = vmatpush.msra.mxu0 0.0
      %2546 = vmatpush.msra.mxu0 0.0
      %2547 = vmatpush.msra.mxu0 0.0
      %2548 = vmatpush.msra.mxu0 %v2525
      %2549 = vmatpush.msra.mxu0 %v2523
      %2550 = vmatmul.f32.gmra.mxu0 %v2529
      %v2551 = vpop.f32.mrf.mxu0
      %v2552 = vadd.f32 0.0, %v2551
      %2553 = vmatmul.f32.gmra.mxu0 %v2532
      %v2554 = vpop.f32.mrf.mxu0
      %v2555 = vadd.f32 0.0, %v2554
      %2556 = vdwg.mxu0
      %v2557 = vrot.slane %v736, 6
      %v2559 = vsel %vm756, %v2447, 0
      %v2562 = vsel %vm756, %v2450, 0
      %v2565 = vsel %vm756, %v2482, 0
      %v2568 = vsel %vm756, %v2485, 0
      %v2571 = vsel %vm756, %v2517, 0
      %v2574 = vsel %vm756, %v2520, 0
      %v2577 = vsel %vm756, %v2552, 0
      %v2580 = vsel %vm756, %v2555, 0
      %v2582 = vsel %vm1570, %v2557, 0
      %2584 = vmatpush.msra.mxu0 0.0
      %2585 = vmatpush.msra.mxu0 0.0
      %2586 = vmatpush.msra.mxu0 0.0
      %2587 = vmatpush.msra.mxu0 0.0
      %2588 = vmatpush.msra.mxu0 0.0
      %2589 = vmatpush.msra.mxu0 0.0
      %2590 = vmatpush.msra.mxu0 0.0
      %2591 = vmatpush.msra.mxu0 0.0
      %2592 = vmatpush.msra.mxu0 0.0
      %2593 = vmatpush.msra.mxu0 0.0
      %2594 = vmatpush.msra.mxu0 0.0
      %2595 = vmatpush.msra.mxu0 0.0
      %2596 = vmatpush.msra.mxu0 0.0
      %2597 = vmatpush.msra.mxu0 0.0
      %2598 = vmatpush.msra.mxu0 0.0
      %2599 = vmatpush.msra.mxu0 %v2582
      %2600 = vmatmul.f32.gmra.mxu0 %v2559
      %v2601 = vpop.f32.mrf.mxu0
      %v2602 = vadd.f32 0.0, %v2601
      %2603 = vmatmul.f32.gmra.mxu0 %v2562
      %v2604 = vpop.f32.mrf.mxu0
      %v2605 = vadd.f32 0.0, %v2604
      %2606 = vmatmul.f32.gmra.mxu0 %v2565
      %v2607 = vpop.f32.mrf.mxu0
      %v2608 = vadd.f32 0.0, %v2607
      %2609 = vmatmul.f32.gmra.mxu0 %v2568
      %v2610 = vpop.f32.mrf.mxu0
      %v2611 = vadd.f32 0.0, %v2610
      %2612 = vmatmul.f32.gmra.mxu0 %v2571
      %v2613 = vpop.f32.mrf.mxu0
      %v2614 = vadd.f32 0.0, %v2613
      %2615 = vmatmul.f32.gmra.mxu0 %v2574
      %v2616 = vpop.f32.mrf.mxu0
      %v2617 = vadd.f32 0.0, %v2616
      %2618 = vmatmul.f32.gmra.mxu0 %v2577
      %v2619 = vpop.f32.mrf.mxu0
      %v2620 = vadd.f32 0.0, %v2619
      %2621 = vmatmul.f32.gmra.mxu0 %v2580
      %v2622 = vpop.f32.mrf.mxu0
      %v2623 = vadd.f32 0.0, %v2622
      %2624 = vdwg.mxu0
      %v2625 = vadd.f32 %v2149, %v2602
      %v2626 = vadd.f32 %v2150, %v2605
      %v2627 = vadd.f32 %v2151, %v2608
      %v2628 = vadd.f32 %v2152, %v2611
      %v2629 = vadd.f32 %v2153, %v2614
      %v2630 = vadd.f32 %v2154, %v2617
      %v2631 = vadd.f32 %v2155, %v2620
      %v2632 = vadd.f32 %v2156, %v2623
      %2633 = vrot.lane.b32.xlu0 %v713, 120
      %v2634 = vpop.permute.xlu0 %2633
      %2635 = vrot.lane.b32.xlu0 %v716, 120
      %v2636 = vpop.permute.xlu0 %2635
      %2637 = vrot.lane.b32.xlu0 %v713, 108
      %v2638 = vpop.permute.xlu0 %2637
      %2639 = vrot.lane.b32.xlu0 %v716, 108
      %v2640 = vpop.permute.xlu0 %2639
      %v2641 = vsel %vm756, %v2634, 0
      %v2643 = vsel %vm756, %v2636, 0
      %v2645 = vsel %vm756, %v2638, 0
      %v2647 = vsel %vm756, %v2640, 0
      %2649 = vmatpush.xpose.msra.mxu0 0.0
      %2650 = vmatpush.xpose.msra.mxu0 0.0
      %2651 = vmatpush.xpose.msra.mxu0 0.0
      %2652 = vmatpush.xpose.msra.mxu0 0.0
      %2653 = vmatpush.xpose.msra.mxu0 0.0
      %2654 = vmatpush.xpose.msra.mxu0 0.0
      %2655 = vmatpush.xpose.msra.mxu0 0.0
      %2656 = vmatpush.xpose.msra.mxu0 0.0
      %2657 = vmatpush.xpose.msra.mxu0 0.0
      %2658 = vmatpush.xpose.msra.mxu0 0.0
      %2659 = vmatpush.xpose.msra.mxu0 0.0
      %2660 = vmatpush.xpose.msra.mxu0 0.0
      %2661 = vmatpush.xpose.msra.mxu0 0.0
      %2662 = vmatpush.xpose.msra.mxu0 0.0
      %2663 = vmatpush.xpose.msra.mxu0 %v2647
      %2664 = vmatpush.xpose.msra.mxu0 %v2645
      %2665 = vmatmul.f32.gmra.mxu0 %v2641
      %v2666 = vpop.f32.mrf.mxu0
      %v2667 = vadd.f32 0.0, %v2666
      %2668 = vmatmul.f32.gmra.mxu0 %v2643
      %v2669 = vpop.f32.mrf.mxu0
      %v2670 = vadd.f32 0.0, %v2669
      %2671 = vdwg.mxu0
      %2672 = vrot.lane.b32.xlu0 %v719, 120
      %v2673 = vpop.permute.xlu0 %2672
      %2674 = vrot.lane.b32.xlu0 %v722, 120
      %v2675 = vpop.permute.xlu0 %2674
      %2676 = vrot.lane.b32.xlu0 %v719, 108
      %v2677 = vpop.permute.xlu0 %2676
      %2678 = vrot.lane.b32.xlu0 %v722, 108
      %v2679 = vpop.permute.xlu0 %2678
      %v2680 = vsel %vm756, %v2673, 0
      %v2682 = vsel %vm756, %v2675, 0
      %v2684 = vsel %vm756, %v2677, 0
      %v2686 = vsel %vm756, %v2679, 0
      %2688 = vmatpush.xpose.msra.mxu0 0.0
      %2689 = vmatpush.xpose.msra.mxu0 0.0
      %2690 = vmatpush.xpose.msra.mxu0 0.0
      %2691 = vmatpush.xpose.msra.mxu0 0.0
      %2692 = vmatpush.xpose.msra.mxu0 0.0
      %2693 = vmatpush.xpose.msra.mxu0 0.0
      %2694 = vmatpush.xpose.msra.mxu0 0.0
      %2695 = vmatpush.xpose.msra.mxu0 0.0
      %2696 = vmatpush.xpose.msra.mxu0 0.0
      %2697 = vmatpush.xpose.msra.mxu0 0.0
      %2698 = vmatpush.xpose.msra.mxu0 0.0
      %2699 = vmatpush.xpose.msra.mxu0 0.0
      %2700 = vmatpush.xpose.msra.mxu0 0.0
      %2701 = vmatpush.xpose.msra.mxu0 0.0
      %2702 = vmatpush.xpose.msra.mxu0 %v2686
      %2703 = vmatpush.xpose.msra.mxu0 %v2684
      %2704 = vmatmul.f32.gmra.mxu0 %v2680
      %v2705 = vpop.f32.mrf.mxu0
      %v2706 = vadd.f32 0.0, %v2705
      %2707 = vmatmul.f32.gmra.mxu0 %v2682
      %v2708 = vpop.f32.mrf.mxu0
      %v2709 = vadd.f32 0.0, %v2708
      %2710 = vdwg.mxu0
      %2711 = vrot.lane.b32.xlu0 %v725, 120
      %v2712 = vpop.permute.xlu0 %2711
      %2713 = vrot.lane.b32.xlu0 %v728, 120
      %v2714 = vpop.permute.xlu0 %2713
      %2715 = vrot.lane.b32.xlu0 %v725, 108
      %v2716 = vpop.permute.xlu0 %2715
      %2717 = vrot.lane.b32.xlu0 %v728, 108
      %v2718 = vpop.permute.xlu0 %2717
      %v2719 = vsel %vm756, %v2712, 0
      %v2721 = vsel %vm756, %v2714, 0
      %v2723 = vsel %vm756, %v2716, 0
      %v2725 = vsel %vm756, %v2718, 0
      %2727 = vmatpush.xpose.msra.mxu0 0.0
      %2728 = vmatpush.xpose.msra.mxu0 0.0
      %2729 = vmatpush.xpose.msra.mxu0 0.0
      %2730 = vmatpush.xpose.msra.mxu0 0.0
      %2731 = vmatpush.xpose.msra.mxu0 0.0
      %2732 = vmatpush.xpose.msra.mxu0 0.0
      %2733 = vmatpush.xpose.msra.mxu0 0.0
      %2734 = vmatpush.xpose.msra.mxu0 0.0
      %2735 = vmatpush.xpose.msra.mxu0 0.0
      %2736 = vmatpush.xpose.msra.mxu0 0.0
      %2737 = vmatpush.xpose.msra.mxu0 0.0
      %2738 = vmatpush.xpose.msra.mxu0 0.0
      %2739 = vmatpush.xpose.msra.mxu0 0.0
      %2740 = vmatpush.xpose.msra.mxu0 0.0
      %2741 = vmatpush.xpose.msra.mxu0 %v2725
      %2742 = vmatpush.xpose.msra.mxu0 %v2723
      %2743 = vmatmul.f32.gmra.mxu0 %v2719
      %v2744 = vpop.f32.mrf.mxu0
      %v2745 = vadd.f32 0.0, %v2744
      %2746 = vmatmul.f32.gmra.mxu0 %v2721
      %v2747 = vpop.f32.mrf.mxu0
      %v2748 = vadd.f32 0.0, %v2747
      %2749 = vdwg.mxu0
      %2750 = vrot.lane.b32.xlu0 %v731, 120
      %v2751 = vpop.permute.xlu0 %2750
      %2752 = vrot.lane.b32.xlu0 %v734, 120
      %v2753 = vpop.permute.xlu0 %2752
      %2754 = vrot.lane.b32.xlu0 %v731, 108
      %v2755 = vpop.permute.xlu0 %2754
      %2756 = vrot.lane.b32.xlu0 %v734, 108
      %v2757 = vpop.permute.xlu0 %2756
      %v2758 = vsel %vm756, %v2751, 0
      %v2760 = vsel %vm756, %v2753, 0
      %v2762 = vsel %vm756, %v2755, 0
      %v2764 = vsel %vm756, %v2757, 0
      %2766 = vmatpush.xpose.msra.mxu0 0.0
      %2767 = vmatpush.xpose.msra.mxu0 0.0
      %2768 = vmatpush.xpose.msra.mxu0 0.0
      %2769 = vmatpush.xpose.msra.mxu0 0.0
      %2770 = vmatpush.xpose.msra.mxu0 0.0
      %2771 = vmatpush.xpose.msra.mxu0 0.0
      %2772 = vmatpush.xpose.msra.mxu0 0.0
      %2773 = vmatpush.xpose.msra.mxu0 0.0
      %2774 = vmatpush.xpose.msra.mxu0 0.0
      %2775 = vmatpush.xpose.msra.mxu0 0.0
      %2776 = vmatpush.xpose.msra.mxu0 0.0
      %2777 = vmatpush.xpose.msra.mxu0 0.0
      %2778 = vmatpush.xpose.msra.mxu0 0.0
      %2779 = vmatpush.xpose.msra.mxu0 0.0
      %2780 = vmatpush.xpose.msra.mxu0 %v2764
      %2781 = vmatpush.xpose.msra.mxu0 %v2762
      %2782 = vmatmul.f32.gmra.mxu0 %v2758
      %v2783 = vpop.f32.mrf.mxu0
      %v2784 = vadd.f32 0.0, %v2783
      %2785 = vmatmul.f32.gmra.mxu0 %v2760
      %v2786 = vpop.f32.mrf.mxu0
      %v2787 = vadd.f32 0.0, %v2786
      %2788 = vdwg.mxu0
      %v2789 = vmul.f32 %v2667, 0.70710677
      %v2790 = vmul.f32 %v2670, 0.70710677
      %v2791 = vmul.f32 %v2706, 0.70710677
      %v2792 = vmul.f32 %v2709, 0.70710677
      %v2793 = vmul.f32 %v2745, 0.70710677
      %v2794 = vmul.f32 %v2748, 0.70710677
      %v2795 = vmul.f32 %v2784, 0.70710677
      %v2796 = vmul.f32 %v2787, 0.70710677
      %v2797 = vadd.f32 %v2789, %v746
      %v2798 = vadd.f32 %v2790, %v747
      %v2799 = vadd.f32 %v2791, %v746
      %v2800 = vadd.f32 %v2792, %v747
      %v2801 = vadd.f32 %v2793, %v746
      %v2802 = vadd.f32 %v2794, %v747
      %v2803 = vadd.f32 %v2795, %v746
      %v2804 = vadd.f32 %v2796, %v747
      %v2805 = vsel %vm915, %v2797, -inf
      %2806 = vmax.xlane.f32.xlu0 %v2805
      %v2807 = vpop.xlane.xlu0 %2806
      %v2808 = vsel %vm915, %v2798, -inf
      %2809 = vmax.xlane.f32.xlu0 %v2808
      %v2810 = vpop.xlane.xlu0 %2809
      %v2811 = vsel %vm915, %v2799, -inf
      %2812 = vmax.xlane.f32.xlu0 %v2811
      %v2813 = vpop.xlane.xlu0 %2812
      %v2814 = vsel %vm915, %v2800, -inf
      %2815 = vmax.xlane.f32.xlu0 %v2814
      %v2816 = vpop.xlane.xlu0 %2815
      %v2817 = vsel %vm915, %v2801, -inf
      %2818 = vmax.xlane.f32.xlu0 %v2817
      %v2819 = vpop.xlane.xlu0 %2818
      %v2820 = vsel %vm915, %v2802, -inf
      %2821 = vmax.xlane.f32.xlu0 %v2820
      %v2822 = vpop.xlane.xlu0 %2821
      %v2823 = vsel %vm915, %v2803, -inf
      %2824 = vmax.xlane.f32.xlu0 %v2823
      %v2825 = vpop.xlane.xlu0 %2824
      %v2826 = vsel %vm915, %v2804, -inf
      %2827 = vmax.xlane.f32.xlu0 %v2826
      %v2828 = vpop.xlane.xlu0 %2827
      %v2829 = vsub.f32 %v2797, %v2807
      %v2830 = vsub.f32 %v2798, %v2810
      %v2831 = vsub.f32 %v2799, %v2813
      %v2832 = vsub.f32 %v2800, %v2816
      %v2833 = vsub.f32 %v2801, %v2819
      %v2834 = vsub.f32 %v2802, %v2822
      %v2835 = vsub.f32 %v2803, %v2825
      %v2836 = vsub.f32 %v2804, %v2828
      %v2837 = vmul.f32 %v2829, 1.442695
      %v2838 = vpow.pop %v2837
      %v2839 = vmul.f32 %v2830, 1.442695
      %v2840 = vpow.pop %v2839
      %v2841 = vmul.f32 %v2831, 1.442695
      %v2842 = vpow.pop %v2841
      %v2843 = vmul.f32 %v2832, 1.442695
      %v2844 = vpow.pop %v2843
      %v2845 = vmul.f32 %v2833, 1.442695
      %v2846 = vpow.pop %v2845
      %v2847 = vmul.f32 %v2834, 1.442695
      %v2848 = vpow.pop %v2847
      %v2849 = vmul.f32 %v2835, 1.442695
      %v2850 = vpow.pop %v2849
      %v2851 = vmul.f32 %v2836, 1.442695
      %v2852 = vpow.pop %v2851
      %v2853 = vsel %vm915, %v2838, 0.0
      %2854 = vadd.xlane.f32.xlu0 %v2853
      %v2855 = vpop.xlane.xlu0 %2854
      %v2856 = vsel %vm915, %v2840, 0.0
      %2857 = vadd.xlane.f32.xlu0 %v2856
      %v2858 = vpop.xlane.xlu0 %2857
      %v2859 = vsel %vm915, %v2842, 0.0
      %2860 = vadd.xlane.f32.xlu0 %v2859
      %v2861 = vpop.xlane.xlu0 %2860
      %v2862 = vsel %vm915, %v2844, 0.0
      %2863 = vadd.xlane.f32.xlu0 %v2862
      %v2864 = vpop.xlane.xlu0 %2863
      %v2865 = vsel %vm915, %v2846, 0.0
      %2866 = vadd.xlane.f32.xlu0 %v2865
      %v2867 = vpop.xlane.xlu0 %2866
      %v2868 = vsel %vm915, %v2848, 0.0
      %2869 = vadd.xlane.f32.xlu0 %v2868
      %v2870 = vpop.xlane.xlu0 %2869
      %v2871 = vsel %vm915, %v2850, 0.0
      %2872 = vadd.xlane.f32.xlu0 %v2871
      %v2873 = vpop.xlane.xlu0 %2872
      %v2874 = vsel %vm915, %v2852, 0.0
      %2875 = vadd.xlane.f32.xlu0 %v2874
      %v2876 = vpop.xlane.xlu0 %2875
      %v2877 = vrcp.pop %v2855
      %v2878 = vrcp.pop %v2858
      %v2879 = vrcp.pop %v2861
      %v2880 = vrcp.pop %v2864
      %v2881 = vrcp.pop %v2867
      %v2882 = vrcp.pop %v2870
      %v2883 = vrcp.pop %v2873
      %v2884 = vrcp.pop %v2876
      %v2885 = vmul.f32 %v2838, %v2877
      %v2886 = vmul.f32 %v2840, %v2878
      %v2887 = vmul.f32 %v2842, %v2879
      %v2888 = vmul.f32 %v2844, %v2880
      %v2889 = vmul.f32 %v2846, %v2881
      %v2890 = vmul.f32 %v2848, %v2882
      %v2891 = vmul.f32 %v2850, %v2883
      %v2892 = vmul.f32 %v2852, %v2884
      %2893 = vrot.lane.b32.xlu0 %v713, 96
      %v2894 = vpop.permute.xlu0 %2893
      %2895 = vrot.lane.b32.xlu0 %v716, 96
      %v2896 = vpop.permute.xlu0 %2895
      %v2900 = vsel %vm915, %v2885, 0
      %v2903 = vsel %vm915, %v2886, 0
      %2905 = vmatpush.msra.mxu0 0.0
      %2906 = vmatpush.msra.mxu0 0.0
      %2907 = vmatpush.msra.mxu0 0.0
      %2908 = vmatpush.msra.mxu0 0.0
      %2909 = vmatpush.msra.mxu0 0.0
      %2910 = vmatpush.msra.mxu0 0.0
      %2911 = vmatpush.msra.mxu0 0.0
      %2912 = vmatpush.msra.mxu0 0.0
      %2913 = vmatpush.msra.mxu0 0.0
      %2914 = vmatpush.msra.mxu0 0.0
      %2915 = vmatpush.msra.mxu0 0.0
      %2916 = vmatpush.msra.mxu0 0.0
      %2917 = vmatpush.msra.mxu0 0.0
      %2918 = vmatpush.msra.mxu0 0.0
      %2919 = vmatpush.msra.mxu0 %v2896
      %2920 = vmatpush.msra.mxu0 %v2894
      %2921 = vmatmul.f32.gmra.mxu0 %v2900
      %v2922 = vpop.f32.mrf.mxu0
      %v2923 = vadd.f32 0.0, %v2922
      %2924 = vmatmul.f32.gmra.mxu0 %v2903
      %v2925 = vpop.f32.mrf.mxu0
      %v2926 = vadd.f32 0.0, %v2925
      %2927 = vdwg.mxu0
      %2928 = vrot.lane.b32.xlu0 %v719, 96
      %v2929 = vpop.permute.xlu0 %2928
      %2930 = vrot.lane.b32.xlu0 %v722, 96
      %v2931 = vpop.permute.xlu0 %2930
      %v2935 = vsel %vm915, %v2887, 0
      %v2938 = vsel %vm915, %v2888, 0
      %2940 = vmatpush.msra.mxu0 0.0
      %2941 = vmatpush.msra.mxu0 0.0
      %2942 = vmatpush.msra.mxu0 0.0
      %2943 = vmatpush.msra.mxu0 0.0
      %2944 = vmatpush.msra.mxu0 0.0
      %2945 = vmatpush.msra.mxu0 0.0
      %2946 = vmatpush.msra.mxu0 0.0
      %2947 = vmatpush.msra.mxu0 0.0
      %2948 = vmatpush.msra.mxu0 0.0
      %2949 = vmatpush.msra.mxu0 0.0
      %2950 = vmatpush.msra.mxu0 0.0
      %2951 = vmatpush.msra.mxu0 0.0
      %2952 = vmatpush.msra.mxu0 0.0
      %2953 = vmatpush.msra.mxu0 0.0
      %2954 = vmatpush.msra.mxu0 %v2931
      %2955 = vmatpush.msra.mxu0 %v2929
      %2956 = vmatmul.f32.gmra.mxu0 %v2935
      %v2957 = vpop.f32.mrf.mxu0
      %v2958 = vadd.f32 0.0, %v2957
      %2959 = vmatmul.f32.gmra.mxu0 %v2938
      %v2960 = vpop.f32.mrf.mxu0
      %v2961 = vadd.f32 0.0, %v2960
      %2962 = vdwg.mxu0
      %2963 = vrot.lane.b32.xlu0 %v725, 96
      %v2964 = vpop.permute.xlu0 %2963
      %2965 = vrot.lane.b32.xlu0 %v728, 96
      %v2966 = vpop.permute.xlu0 %2965
      %v2970 = vsel %vm915, %v2889, 0
      %v2973 = vsel %vm915, %v2890, 0
      %2975 = vmatpush.msra.mxu0 0.0
      %2976 = vmatpush.msra.mxu0 0.0
      %2977 = vmatpush.msra.mxu0 0.0
      %2978 = vmatpush.msra.mxu0 0.0
      %2979 = vmatpush.msra.mxu0 0.0
      %2980 = vmatpush.msra.mxu0 0.0
      %2981 = vmatpush.msra.mxu0 0.0
      %2982 = vmatpush.msra.mxu0 0.0
      %2983 = vmatpush.msra.mxu0 0.0
      %2984 = vmatpush.msra.mxu0 0.0
      %2985 = vmatpush.msra.mxu0 0.0
      %2986 = vmatpush.msra.mxu0 0.0
      %2987 = vmatpush.msra.mxu0 0.0
      %2988 = vmatpush.msra.mxu0 0.0
      %2989 = vmatpush.msra.mxu0 %v2966
      %2990 = vmatpush.msra.mxu0 %v2964
      %2991 = vmatmul.f32.gmra.mxu0 %v2970
      %v2992 = vpop.f32.mrf.mxu0
      %v2993 = vadd.f32 0.0, %v2992
      %2994 = vmatmul.f32.gmra.mxu0 %v2973
      %v2995 = vpop.f32.mrf.mxu0
      %v2996 = vadd.f32 0.0, %v2995
      %2997 = vdwg.mxu0
      %2998 = vrot.lane.b32.xlu0 %v731, 96
      %v2999 = vpop.permute.xlu0 %2998
      %3000 = vrot.lane.b32.xlu0 %v734, 96
      %v3001 = vpop.permute.xlu0 %3000
      %v3005 = vsel %vm915, %v2891, 0
      %v3008 = vsel %vm915, %v2892, 0
      %3010 = vmatpush.msra.mxu0 0.0
      %3011 = vmatpush.msra.mxu0 0.0
      %3012 = vmatpush.msra.mxu0 0.0
      %3013 = vmatpush.msra.mxu0 0.0
      %3014 = vmatpush.msra.mxu0 0.0
      %3015 = vmatpush.msra.mxu0 0.0
      %3016 = vmatpush.msra.mxu0 0.0
      %3017 = vmatpush.msra.mxu0 0.0
      %3018 = vmatpush.msra.mxu0 0.0
      %3019 = vmatpush.msra.mxu0 0.0
      %3020 = vmatpush.msra.mxu0 0.0
      %3021 = vmatpush.msra.mxu0 0.0
      %3022 = vmatpush.msra.mxu0 0.0
      %3023 = vmatpush.msra.mxu0 0.0
      %3024 = vmatpush.msra.mxu0 %v3001
      %3025 = vmatpush.msra.mxu0 %v2999
      %3026 = vmatmul.f32.gmra.mxu0 %v3005
      %v3027 = vpop.f32.mrf.mxu0
      %v3028 = vadd.f32 0.0, %v3027
      %3029 = vmatmul.f32.gmra.mxu0 %v3008
      %v3030 = vpop.f32.mrf.mxu0
      %v3031 = vadd.f32 0.0, %v3030
      %3032 = vdwg.mxu0
      %v3034 = vsel %vm756, %v2923, 0
      %v3037 = vsel %vm756, %v2926, 0
      %v3040 = vsel %vm756, %v2958, 0
      %v3043 = vsel %vm756, %v2961, 0
      %v3046 = vsel %vm756, %v2993, 0
      %v3049 = vsel %vm756, %v2996, 0
      %v3052 = vsel %vm756, %v3028, 0
      %v3055 = vsel %vm756, %v3031, 0
      %v3058 = vsel %vm1570, %v737, 0
      %3060 = vmatpush.msra.mxu0 0.0
      %3061 = vmatpush.msra.mxu0 0.0
      %3062 = vmatpush.msra.mxu0 0.0
      %3063 = vmatpush.msra.mxu0 0.0
      %3064 = vmatpush.msra.mxu0 0.0
      %3065 = vmatpush.msra.mxu0 0.0
      %3066 = vmatpush.msra.mxu0 0.0
      %3067 = vmatpush.msra.mxu0 0.0
      %3068 = vmatpush.msra.mxu0 0.0
      %3069 = vmatpush.msra.mxu0 0.0
      %3070 = vmatpush.msra.mxu0 0.0
      %3071 = vmatpush.msra.mxu0 0.0
      %3072 = vmatpush.msra.mxu0 0.0
      %3073 = vmatpush.msra.mxu0 0.0
      %3074 = vmatpush.msra.mxu0 0.0
      %3075 = vmatpush.msra.mxu0 %v3058
      %3076 = vmatmul.f32.gmra.mxu0 %v3034
      %v3077 = vpop.f32.mrf.mxu0
      %v3078 = vadd.f32 0.0, %v3077
      %3079 = vmatmul.f32.gmra.mxu0 %v3037
      %v3080 = vpop.f32.mrf.mxu0
      %v3081 = vadd.f32 0.0, %v3080
      %3082 = vmatmul.f32.gmra.mxu0 %v3040
      %v3083 = vpop.f32.mrf.mxu0
      %v3084 = vadd.f32 0.0, %v3083
      %3085 = vmatmul.f32.gmra.mxu0 %v3043
      %v3086 = vpop.f32.mrf.mxu0
      %v3087 = vadd.f32 0.0, %v3086
      %3088 = vmatmul.f32.gmra.mxu0 %v3046
      %v3089 = vpop.f32.mrf.mxu0
      %v3090 = vadd.f32 0.0, %v3089
      %3091 = vmatmul.f32.gmra.mxu0 %v3049
      %v3092 = vpop.f32.mrf.mxu0
      %v3093 = vadd.f32 0.0, %v3092
      %3094 = vmatmul.f32.gmra.mxu0 %v3052
      %v3095 = vpop.f32.mrf.mxu0
      %v3096 = vadd.f32 0.0, %v3095
      %3097 = vmatmul.f32.gmra.mxu0 %v3055
      %v3098 = vpop.f32.mrf.mxu0
      %v3099 = vadd.f32 0.0, %v3098
      %3100 = vdwg.mxu0
      %v3101 = vadd.f32 %v2625, %v3078
      %v3102 = vadd.f32 %v2626, %v3081
      %v3103 = vadd.f32 %v2627, %v3084
      %v3104 = vadd.f32 %v2628, %v3087
      %v3105 = vadd.f32 %v2629, %v3090
      %v3106 = vadd.f32 %v2630, %v3093
      %v3107 = vadd.f32 %v2631, %v3096
      %v3108 = vadd.f32 %v2632, %v3099
      %3109 = vrot.lane.b32.xlu0 %v713, 118
      %v3110 = vpop.permute.xlu0 %3109
      %3111 = vrot.lane.b32.xlu0 %v716, 118
      %v3112 = vpop.permute.xlu0 %3111
      %3113 = vrot.lane.b32.xlu0 %v713, 106
      %v3114 = vpop.permute.xlu0 %3113
      %3115 = vrot.lane.b32.xlu0 %v716, 106
      %v3116 = vpop.permute.xlu0 %3115
      %v3117 = vsel %vm756, %v3110, 0
      %v3119 = vsel %vm756, %v3112, 0
      %v3121 = vsel %vm756, %v3114, 0
      %v3123 = vsel %vm756, %v3116, 0
      %3125 = vmatpush.xpose.msra.mxu0 0.0
      %3126 = vmatpush.xpose.msra.mxu0 0.0
      %3127 = vmatpush.xpose.msra.mxu0 0.0
      %3128 = vmatpush.xpose.msra.mxu0 0.0
      %3129 = vmatpush.xpose.msra.mxu0 0.0
      %3130 = vmatpush.xpose.msra.mxu0 0.0
      %3131 = vmatpush.xpose.msra.mxu0 0.0
      %3132 = vmatpush.xpose.msra.mxu0 0.0
      %3133 = vmatpush.xpose.msra.mxu0 0.0
      %3134 = vmatpush.xpose.msra.mxu0 0.0
      %3135 = vmatpush.xpose.msra.mxu0 0.0
      %3136 = vmatpush.xpose.msra.mxu0 0.0
      %3137 = vmatpush.xpose.msra.mxu0 0.0
      %3138 = vmatpush.xpose.msra.mxu0 0.0
      %3139 = vmatpush.xpose.msra.mxu0 %v3123
      %3140 = vmatpush.xpose.msra.mxu0 %v3121
      %3141 = vmatmul.f32.gmra.mxu0 %v3117
      %v3142 = vpop.f32.mrf.mxu0
      %v3143 = vadd.f32 0.0, %v3142
      %3144 = vmatmul.f32.gmra.mxu0 %v3119
      %v3145 = vpop.f32.mrf.mxu0
      %v3146 = vadd.f32 0.0, %v3145
      %3147 = vdwg.mxu0
      %3148 = vrot.lane.b32.xlu0 %v719, 118
      %v3149 = vpop.permute.xlu0 %3148
      %3150 = vrot.lane.b32.xlu0 %v722, 118
      %v3151 = vpop.permute.xlu0 %3150
      %3152 = vrot.lane.b32.xlu0 %v719, 106
      %v3153 = vpop.permute.xlu0 %3152
      %3154 = vrot.lane.b32.xlu0 %v722, 106
      %v3155 = vpop.permute.xlu0 %3154
      %v3156 = vsel %vm756, %v3149, 0
      %v3158 = vsel %vm756, %v3151, 0
      %v3160 = vsel %vm756, %v3153, 0
      %v3162 = vsel %vm756, %v3155, 0
      %3164 = vmatpush.xpose.msra.mxu0 0.0
      %3165 = vmatpush.xpose.msra.mxu0 0.0
      %3166 = vmatpush.xpose.msra.mxu0 0.0
      %3167 = vmatpush.xpose.msra.mxu0 0.0
      %3168 = vmatpush.xpose.msra.mxu0 0.0
      %3169 = vmatpush.xpose.msra.mxu0 0.0
      %3170 = vmatpush.xpose.msra.mxu0 0.0
      %3171 = vmatpush.xpose.msra.mxu0 0.0
      %3172 = vmatpush.xpose.msra.mxu0 0.0
      %3173 = vmatpush.xpose.msra.mxu0 0.0
      %3174 = vmatpush.xpose.msra.mxu0 0.0
      %3175 = vmatpush.xpose.msra.mxu0 0.0
      %3176 = vmatpush.xpose.msra.mxu0 0.0
      %3177 = vmatpush.xpose.msra.mxu0 0.0
      %3178 = vmatpush.xpose.msra.mxu0 %v3162
      %3179 = vmatpush.xpose.msra.mxu0 %v3160
      %3180 = vmatmul.f32.gmra.mxu0 %v3156
      %v3181 = vpop.f32.mrf.mxu0
      %v3182 = vadd.f32 0.0, %v3181
      %3183 = vmatmul.f32.gmra.mxu0 %v3158
      %v3184 = vpop.f32.mrf.mxu0
      %v3185 = vadd.f32 0.0, %v3184
      %3186 = vdwg.mxu0
      %3187 = vrot.lane.b32.xlu0 %v725, 118
      %v3188 = vpop.permute.xlu0 %3187
      %3189 = vrot.lane.b32.xlu0 %v728, 118
      %v3190 = vpop.permute.xlu0 %3189
      %3191 = vrot.lane.b32.xlu0 %v725, 106
      %v3192 = vpop.permute.xlu0 %3191
      %3193 = vrot.lane.b32.xlu0 %v728, 106
      %v3194 = vpop.permute.xlu0 %3193
      %v3195 = vsel %vm756, %v3188, 0
      %v3197 = vsel %vm756, %v3190, 0
      %v3199 = vsel %vm756, %v3192, 0
      %v3201 = vsel %vm756, %v3194, 0
      %3203 = vmatpush.xpose.msra.mxu0 0.0
      %3204 = vmatpush.xpose.msra.mxu0 0.0
      %3205 = vmatpush.xpose.msra.mxu0 0.0
      %3206 = vmatpush.xpose.msra.mxu0 0.0
      %3207 = vmatpush.xpose.msra.mxu0 0.0
      %3208 = vmatpush.xpose.msra.mxu0 0.0
      %3209 = vmatpush.xpose.msra.mxu0 0.0
      %3210 = vmatpush.xpose.msra.mxu0 0.0
      %3211 = vmatpush.xpose.msra.mxu0 0.0
      %3212 = vmatpush.xpose.msra.mxu0 0.0
      %3213 = vmatpush.xpose.msra.mxu0 0.0
      %3214 = vmatpush.xpose.msra.mxu0 0.0
      %3215 = vmatpush.xpose.msra.mxu0 0.0
      %3216 = vmatpush.xpose.msra.mxu0 0.0
      %3217 = vmatpush.xpose.msra.mxu0 %v3201
      %3218 = vmatpush.xpose.msra.mxu0 %v3199
      %3219 = vmatmul.f32.gmra.mxu0 %v3195
      %v3220 = vpop.f32.mrf.mxu0
      %v3221 = vadd.f32 0.0, %v3220
      %3222 = vmatmul.f32.gmra.mxu0 %v3197
      %v3223 = vpop.f32.mrf.mxu0
      %v3224 = vadd.f32 0.0, %v3223
      %3225 = vdwg.mxu0
      %3226 = vrot.lane.b32.xlu0 %v731, 118
      %v3227 = vpop.permute.xlu0 %3226
      %3228 = vrot.lane.b32.xlu0 %v734, 118
      %v3229 = vpop.permute.xlu0 %3228
      %3230 = vrot.lane.b32.xlu0 %v731, 106
      %v3231 = vpop.permute.xlu0 %3230
      %3232 = vrot.lane.b32.xlu0 %v734, 106
      %v3233 = vpop.permute.xlu0 %3232
      %v3234 = vsel %vm756, %v3227, 0
      %v3236 = vsel %vm756, %v3229, 0
      %v3238 = vsel %vm756, %v3231, 0
      %v3240 = vsel %vm756, %v3233, 0
      %3242 = vmatpush.xpose.msra.mxu0 0.0
      %3243 = vmatpush.xpose.msra.mxu0 0.0
      %3244 = vmatpush.xpose.msra.mxu0 0.0
      %3245 = vmatpush.xpose.msra.mxu0 0.0
      %3246 = vmatpush.xpose.msra.mxu0 0.0
      %3247 = vmatpush.xpose.msra.mxu0 0.0
      %3248 = vmatpush.xpose.msra.mxu0 0.0
      %3249 = vmatpush.xpose.msra.mxu0 0.0
      %3250 = vmatpush.xpose.msra.mxu0 0.0
      %3251 = vmatpush.xpose.msra.mxu0 0.0
      %3252 = vmatpush.xpose.msra.mxu0 0.0
      %3253 = vmatpush.xpose.msra.mxu0 0.0
      %3254 = vmatpush.xpose.msra.mxu0 0.0
      %3255 = vmatpush.xpose.msra.mxu0 0.0
      %3256 = vmatpush.xpose.msra.mxu0 %v3240
      %3257 = vmatpush.xpose.msra.mxu0 %v3238
      %3258 = vmatmul.f32.gmra.mxu0 %v3234
      %v3259 = vpop.f32.mrf.mxu0
      %v3260 = vadd.f32 0.0, %v3259
      %3261 = vmatmul.f32.gmra.mxu0 %v3236
      %v3262 = vpop.f32.mrf.mxu0
      %v3263 = vadd.f32 0.0, %v3262
      %3264 = vdwg.mxu0
      %v3265 = vmul.f32 %v3143, 0.70710677
      %v3266 = vmul.f32 %v3146, 0.70710677
      %v3267 = vmul.f32 %v3182, 0.70710677
      %v3268 = vmul.f32 %v3185, 0.70710677
      %v3269 = vmul.f32 %v3221, 0.70710677
      %v3270 = vmul.f32 %v3224, 0.70710677
      %v3271 = vmul.f32 %v3260, 0.70710677
      %v3272 = vmul.f32 %v3263, 0.70710677
      %v3273 = vadd.f32 %v3265, %v748
      %v3274 = vadd.f32 %v3266, %v749
      %v3275 = vadd.f32 %v3267, %v748
      %v3276 = vadd.f32 %v3268, %v749
      %v3277 = vadd.f32 %v3269, %v748
      %v3278 = vadd.f32 %v3270, %v749
      %v3279 = vadd.f32 %v3271, %v748
      %v3280 = vadd.f32 %v3272, %v749
      %v3281 = vsel %vm915, %v3273, -inf
      %3282 = vmax.xlane.f32.xlu0 %v3281
      %v3283 = vpop.xlane.xlu0 %3282
      %v3284 = vsel %vm915, %v3274, -inf
      %3285 = vmax.xlane.f32.xlu0 %v3284
      %v3286 = vpop.xlane.xlu0 %3285
      %v3287 = vsel %vm915, %v3275, -inf
      %3288 = vmax.xlane.f32.xlu0 %v3287
      %v3289 = vpop.xlane.xlu0 %3288
      %v3290 = vsel %vm915, %v3276, -inf
      %3291 = vmax.xlane.f32.xlu0 %v3290
      %v3292 = vpop.xlane.xlu0 %3291
      %v3293 = vsel %vm915, %v3277, -inf
      %3294 = vmax.xlane.f32.xlu0 %v3293
      %v3295 = vpop.xlane.xlu0 %3294
      %v3296 = vsel %vm915, %v3278, -inf
      %3297 = vmax.xlane.f32.xlu0 %v3296
      %v3298 = vpop.xlane.xlu0 %3297
      %v3299 = vsel %vm915, %v3279, -inf
      %3300 = vmax.xlane.f32.xlu0 %v3299
      %v3301 = vpop.xlane.xlu0 %3300
      %v3302 = vsel %vm915, %v3280, -inf
      %3303 = vmax.xlane.f32.xlu0 %v3302
      %v3304 = vpop.xlane.xlu0 %3303
      %v3305 = vsub.f32 %v3273, %v3283
      %v3306 = vsub.f32 %v3274, %v3286
      %v3307 = vsub.f32 %v3275, %v3289
      %v3308 = vsub.f32 %v3276, %v3292
      %v3309 = vsub.f32 %v3277, %v3295
      %v3310 = vsub.f32 %v3278, %v3298
      %v3311 = vsub.f32 %v3279, %v3301
      %v3312 = vsub.f32 %v3280, %v3304
      %v3313 = vmul.f32 %v3305, 1.442695
      %v3314 = vpow.pop %v3313
      %v3315 = vmul.f32 %v3306, 1.442695
      %v3316 = vpow.pop %v3315
      %v3317 = vmul.f32 %v3307, 1.442695
      %v3318 = vpow.pop %v3317
      %v3319 = vmul.f32 %v3308, 1.442695
      %v3320 = vpow.pop %v3319
      %v3321 = vmul.f32 %v3309, 1.442695
      %v3322 = vpow.pop %v3321
      %v3323 = vmul.f32 %v3310, 1.442695
      %v3324 = vpow.pop %v3323
      %v3325 = vmul.f32 %v3311, 1.442695
      %v3326 = vpow.pop %v3325
      %v3327 = vmul.f32 %v3312, 1.442695
      %v3328 = vpow.pop %v3327
      %v3329 = vsel %vm915, %v3314, 0.0
      %3330 = vadd.xlane.f32.xlu0 %v3329
      %v3331 = vpop.xlane.xlu0 %3330
      %v3332 = vsel %vm915, %v3316, 0.0
      %3333 = vadd.xlane.f32.xlu0 %v3332
      %v3334 = vpop.xlane.xlu0 %3333
      %v3335 = vsel %vm915, %v3318, 0.0
      %3336 = vadd.xlane.f32.xlu0 %v3335
      %v3337 = vpop.xlane.xlu0 %3336
      %v3338 = vsel %vm915, %v3320, 0.0
      %3339 = vadd.xlane.f32.xlu0 %v3338
      %v3340 = vpop.xlane.xlu0 %3339
      %v3341 = vsel %vm915, %v3322, 0.0
      %3342 = vadd.xlane.f32.xlu0 %v3341
      %v3343 = vpop.xlane.xlu0 %3342
      %v3344 = vsel %vm915, %v3324, 0.0
      %3345 = vadd.xlane.f32.xlu0 %v3344
      %v3346 = vpop.xlane.xlu0 %3345
      %v3347 = vsel %vm915, %v3326, 0.0
      %3348 = vadd.xlane.f32.xlu0 %v3347
      %v3349 = vpop.xlane.xlu0 %3348
      %v3350 = vsel %vm915, %v3328, 0.0
      %3351 = vadd.xlane.f32.xlu0 %v3350
      %v3352 = vpop.xlane.xlu0 %3351
      %v3353 = vrcp.pop %v3331
      %v3354 = vrcp.pop %v3334
      %v3355 = vrcp.pop %v3337
      %v3356 = vrcp.pop %v3340
      %v3357 = vrcp.pop %v3343
      %v3358 = vrcp.pop %v3346
      %v3359 = vrcp.pop %v3349
      %v3360 = vrcp.pop %v3352
      %v3361 = vmul.f32 %v3314, %v3353
      %v3362 = vmul.f32 %v3316, %v3354
      %v3363 = vmul.f32 %v3318, %v3355
      %v3364 = vmul.f32 %v3320, %v3356
      %v3365 = vmul.f32 %v3322, %v3357
      %v3366 = vmul.f32 %v3324, %v3358
      %v3367 = vmul.f32 %v3326, %v3359
      %v3368 = vmul.f32 %v3328, %v3360
      %3369 = vrot.lane.b32.xlu0 %v713, 94
      %v3370 = vpop.permute.xlu0 %3369
      %3371 = vrot.lane.b32.xlu0 %v716, 94
      %v3372 = vpop.permute.xlu0 %3371
      %v3376 = vsel %vm915, %v3361, 0
      %v3379 = vsel %vm915, %v3362, 0
      %3381 = vmatpush.msra.mxu0 0.0
      %3382 = vmatpush.msra.mxu0 0.0
      %3383 = vmatpush.msra.mxu0 0.0
      %3384 = vmatpush.msra.mxu0 0.0
      %3385 = vmatpush.msra.mxu0 0.0
      %3386 = vmatpush.msra.mxu0 0.0
      %3387 = vmatpush.msra.mxu0 0.0
      %3388 = vmatpush.msra.mxu0 0.0
      %3389 = vmatpush.msra.mxu0 0.0
      %3390 = vmatpush.msra.mxu0 0.0
      %3391 = vmatpush.msra.mxu0 0.0
      %3392 = vmatpush.msra.mxu0 0.0
      %3393 = vmatpush.msra.mxu0 0.0
      %3394 = vmatpush.msra.mxu0 0.0
      %3395 = vmatpush.msra.mxu0 %v3372
      %3396 = vmatpush.msra.mxu0 %v3370
      %3397 = vmatmul.f32.gmra.mxu0 %v3376
      %v3398 = vpop.f32.mrf.mxu0
      %v3399 = vadd.f32 0.0, %v3398
      %3400 = vmatmul.f32.gmra.mxu0 %v3379
      %v3401 = vpop.f32.mrf.mxu0
      %v3402 = vadd.f32 0.0, %v3401
      %3403 = vdwg.mxu0
      %3404 = vrot.lane.b32.xlu0 %v719, 94
      %v3405 = vpop.permute.xlu0 %3404
      %3406 = vrot.lane.b32.xlu0 %v722, 94
      %v3407 = vpop.permute.xlu0 %3406
      %v3411 = vsel %vm915, %v3363, 0
      %v3414 = vsel %vm915, %v3364, 0
      %3416 = vmatpush.msra.mxu0 0.0
      %3417 = vmatpush.msra.mxu0 0.0
      %3418 = vmatpush.msra.mxu0 0.0
      %3419 = vmatpush.msra.mxu0 0.0
      %3420 = vmatpush.msra.mxu0 0.0
      %3421 = vmatpush.msra.mxu0 0.0
      %3422 = vmatpush.msra.mxu0 0.0
      %3423 = vmatpush.msra.mxu0 0.0
      %3424 = vmatpush.msra.mxu0 0.0
      %3425 = vmatpush.msra.mxu0 0.0
      %3426 = vmatpush.msra.mxu0 0.0
      %3427 = vmatpush.msra.mxu0 0.0
      %3428 = vmatpush.msra.mxu0 0.0
      %3429 = vmatpush.msra.mxu0 0.0
      %3430 = vmatpush.msra.mxu0 %v3407
      %3431 = vmatpush.msra.mxu0 %v3405
      %3432 = vmatmul.f32.gmra.mxu0 %v3411
      %v3433 = vpop.f32.mrf.mxu0
      %v3434 = vadd.f32 0.0, %v3433
      %3435 = vmatmul.f32.gmra.mxu0 %v3414
      %v3436 = vpop.f32.mrf.mxu0
      %v3437 = vadd.f32 0.0, %v3436
      %3438 = vdwg.mxu0
      %3439 = vrot.lane.b32.xlu0 %v725, 94
      %v3440 = vpop.permute.xlu0 %3439
      %3441 = vrot.lane.b32.xlu0 %v728, 94
      %v3442 = vpop.permute.xlu0 %3441
      %v3446 = vsel %vm915, %v3365, 0
      %v3449 = vsel %vm915, %v3366, 0
      %3451 = vmatpush.msra.mxu0 0.0
      %3452 = vmatpush.msra.mxu0 0.0
      %3453 = vmatpush.msra.mxu0 0.0
      %3454 = vmatpush.msra.mxu0 0.0
      %3455 = vmatpush.msra.mxu0 0.0
      %3456 = vmatpush.msra.mxu0 0.0
      %3457 = vmatpush.msra.mxu0 0.0
      %3458 = vmatpush.msra.mxu0 0.0
      %3459 = vmatpush.msra.mxu0 0.0
      %3460 = vmatpush.msra.mxu0 0.0
      %3461 = vmatpush.msra.mxu0 0.0
      %3462 = vmatpush.msra.mxu0 0.0
      %3463 = vmatpush.msra.mxu0 0.0
      %3464 = vmatpush.msra.mxu0 0.0
      %3465 = vmatpush.msra.mxu0 %v3442
      %3466 = vmatpush.msra.mxu0 %v3440
      %3467 = vmatmul.f32.gmra.mxu0 %v3446
      %v3468 = vpop.f32.mrf.mxu0
      %v3469 = vadd.f32 0.0, %v3468
      %3470 = vmatmul.f32.gmra.mxu0 %v3449
      %v3471 = vpop.f32.mrf.mxu0
      %v3472 = vadd.f32 0.0, %v3471
      %3473 = vdwg.mxu0
      %3474 = vrot.lane.b32.xlu0 %v731, 94
      %v3475 = vpop.permute.xlu0 %3474
      %3476 = vrot.lane.b32.xlu0 %v734, 94
      %v3477 = vpop.permute.xlu0 %3476
      %v3481 = vsel %vm915, %v3367, 0
      %v3484 = vsel %vm915, %v3368, 0
      %3486 = vmatpush.msra.mxu0 0.0
      %3487 = vmatpush.msra.mxu0 0.0
      %3488 = vmatpush.msra.mxu0 0.0
      %3489 = vmatpush.msra.mxu0 0.0
      %3490 = vmatpush.msra.mxu0 0.0
      %3491 = vmatpush.msra.mxu0 0.0
      %3492 = vmatpush.msra.mxu0 0.0
      %3493 = vmatpush.msra.mxu0 0.0
      %3494 = vmatpush.msra.mxu0 0.0
      %3495 = vmatpush.msra.mxu0 0.0
      %3496 = vmatpush.msra.mxu0 0.0
      %3497 = vmatpush.msra.mxu0 0.0
      %3498 = vmatpush.msra.mxu0 0.0
      %3499 = vmatpush.msra.mxu0 0.0
      %3500 = vmatpush.msra.mxu0 %v3477
      %3501 = vmatpush.msra.mxu0 %v3475
      %3502 = vmatmul.f32.gmra.mxu0 %v3481
      %v3503 = vpop.f32.mrf.mxu0
      %v3504 = vadd.f32 0.0, %v3503
      %3505 = vmatmul.f32.gmra.mxu0 %v3484
      %v3506 = vpop.f32.mrf.mxu0
      %v3507 = vadd.f32 0.0, %v3506
      %3508 = vdwg.mxu0
      %v3509 = vrot.slane %v737, 2
      %v3511 = vsel %vm756, %v3399, 0
      %v3514 = vsel %vm756, %v3402, 0
      %v3517 = vsel %vm756, %v3434, 0
      %v3520 = vsel %vm756, %v3437, 0
      %v3523 = vsel %vm756, %v3469, 0
      %v3526 = vsel %vm756, %v3472, 0
      %v3529 = vsel %vm756, %v3504, 0
      %v3532 = vsel %vm756, %v3507, 0
      %v3534 = vsel %vm1570, %v3509, 0
      %3536 = vmatpush.msra.mxu0 0.0
      %3537 = vmatpush.msra.mxu0 0.0
      %3538 = vmatpush.msra.mxu0 0.0
      %3539 = vmatpush.msra.mxu0 0.0
      %3540 = vmatpush.msra.mxu0 0.0
      %3541 = vmatpush.msra.mxu0 0.0
      %3542 = vmatpush.msra.mxu0 0.0
      %3543 = vmatpush.msra.mxu0 0.0
      %3544 = vmatpush.msra.mxu0 0.0
      %3545 = vmatpush.msra.mxu0 0.0
      %3546 = vmatpush.msra.mxu0 0.0
      %3547 = vmatpush.msra.mxu0 0.0
      %3548 = vmatpush.msra.mxu0 0.0
      %3549 = vmatpush.msra.mxu0 0.0
      %3550 = vmatpush.msra.mxu0 0.0
      %3551 = vmatpush.msra.mxu0 %v3534
      %3552 = vmatmul.f32.gmra.mxu0 %v3511
      %v3553 = vpop.f32.mrf.mxu0
      %v3554 = vadd.f32 0.0, %v3553
      %3555 = vmatmul.f32.gmra.mxu0 %v3514
      %v3556 = vpop.f32.mrf.mxu0
      %v3557 = vadd.f32 0.0, %v3556
      %3558 = vmatmul.f32.gmra.mxu0 %v3517
      %v3559 = vpop.f32.mrf.mxu0
      %v3560 = vadd.f32 0.0, %v3559
      %3561 = vmatmul.f32.gmra.mxu0 %v3520
      %v3562 = vpop.f32.mrf.mxu0
      %v3563 = vadd.f32 0.0, %v3562
      %3564 = vmatmul.f32.gmra.mxu0 %v3523
      %v3565 = vpop.f32.mrf.mxu0
      %v3566 = vadd.f32 0.0, %v3565
      %3567 = vmatmul.f32.gmra.mxu0 %v3526
      %v3568 = vpop.f32.mrf.mxu0
      %v3569 = vadd.f32 0.0, %v3568
      %3570 = vmatmul.f32.gmra.mxu0 %v3529
      %v3571 = vpop.f32.mrf.mxu0
      %v3572 = vadd.f32 0.0, %v3571
      %3573 = vmatmul.f32.gmra.mxu0 %v3532
      %v3574 = vpop.f32.mrf.mxu0
      %v3575 = vadd.f32 0.0, %v3574
      %3576 = vdwg.mxu0
      %v3577 = vadd.f32 %v3101, %v3554
      %v3578 = vadd.f32 %v3102, %v3557
      %v3579 = vadd.f32 %v3103, %v3560
      %v3580 = vadd.f32 %v3104, %v3563
      %v3581 = vadd.f32 %v3105, %v3566
      %v3582 = vadd.f32 %v3106, %v3569
      %v3583 = vadd.f32 %v3107, %v3572
      %v3584 = vadd.f32 %v3108, %v3575
      %v3585 = vld [vmem:[%s6] sm:$0x1]
      %v3587 = vperm.slane %v3585, 0
      %v3589 = vadd.f32 %v3577, %v3587
      %v3590 = vadd.f32 %v3578, %v3587
      %v3591 = vadd.f32 %v3579, %v3587
      %v3592 = vadd.f32 %v3580, %v3587
      %v3593 = vadd.f32 %v3581, %v3587
      %v3594 = vadd.f32 %v3582, %v3587
      %v3595 = vadd.f32 %v3583, %v3587
      %v3596 = vadd.f32 %v3584, %v3587
      %v3597 = vadd.f32 %v3589, %v449
      %v3598 = vadd.f32 %v3590, %v450
      %v3599 = vadd.f32 %v3591, %v451
      %v3600 = vadd.f32 %v3592, %v452
      %v3601 = vadd.f32 %v3593, %v453
      %v3602 = vadd.f32 %v3594, %v454
      %v3603 = vadd.f32 %v3595, %v455
      %v3604 = vadd.f32 %v3596, %v456
      %v3605 = vld [vmem:[%s7] sm:$0x1]
      %v3606 = vld [vmem:[%s8] sm:$0x1]
      %v3607 = vsel %vm459, %v3597, 0.0
      %3608 = vadd.xlane.f32.xlu0 %v3607
      %v3609 = vpop.xlane.xlu0 %3608
      %v3610 = vsel %vm459, %v3598, 0.0
      %3611 = vadd.xlane.f32.xlu0 %v3610
      %v3612 = vpop.xlane.xlu0 %3611
      %v3613 = vsel %vm459, %v3599, 0.0
      %3614 = vadd.xlane.f32.xlu0 %v3613
      %v3615 = vpop.xlane.xlu0 %3614
      %v3616 = vsel %vm459, %v3600, 0.0
      %3617 = vadd.xlane.f32.xlu0 %v3616
      %v3618 = vpop.xlane.xlu0 %3617
      %v3619 = vsel %vm459, %v3601, 0.0
      %3620 = vadd.xlane.f32.xlu0 %v3619
      %v3621 = vpop.xlane.xlu0 %3620
      %v3622 = vsel %vm459, %v3602, 0.0
      %3623 = vadd.xlane.f32.xlu0 %v3622
      %v3624 = vpop.xlane.xlu0 %3623
      %v3625 = vsel %vm459, %v3603, 0.0
      %3626 = vadd.xlane.f32.xlu0 %v3625
      %v3627 = vpop.xlane.xlu0 %3626
      %v3628 = vsel %vm459, %v3604, 0.0
      %3629 = vadd.xlane.f32.xlu0 %v3628
      %v3630 = vpop.xlane.xlu0 %3629
      %v3631 = vmul.f32 %v3609, %v490
      %v3632 = vmul.f32 %v3612, %v490
      %v3633 = vmul.f32 %v3615, %v490
      %v3634 = vmul.f32 %v3618, %v490
      %v3635 = vmul.f32 %v3621, %v490
      %v3636 = vmul.f32 %v3624, %v490
      %v3637 = vmul.f32 %v3627, %v490
      %v3638 = vmul.f32 %v3630, %v490
      %v3639 = vsub.f32 %v3597, %v3631
      %v3640 = vsub.f32 %v3598, %v3632
      %v3641 = vsub.f32 %v3599, %v3633
      %v3642 = vsub.f32 %v3600, %v3634
      %v3643 = vsub.f32 %v3601, %v3635
      %v3644 = vsub.f32 %v3602, %v3636
      %v3645 = vsub.f32 %v3603, %v3637
      %v3646 = vsub.f32 %v3604, %v3638
      %v3647 = vmul.f32 %v3639, %v3639
      %v3648 = vmul.f32 %v3640, %v3640
      %v3649 = vmul.f32 %v3641, %v3641
      %v3650 = vmul.f32 %v3642, %v3642
      %v3651 = vmul.f32 %v3643, %v3643
      %v3652 = vmul.f32 %v3644, %v3644
      %v3653 = vmul.f32 %v3645, %v3645
      %v3654 = vmul.f32 %v3646, %v3646
      %v3655 = vsel %vm459, %v3647, 0.0
      %3656 = vadd.xlane.f32.xlu0 %v3655
      %v3657 = vpop.xlane.xlu0 %3656
      %v3658 = vsel %vm459, %v3648, 0.0
      %3659 = vadd.xlane.f32.xlu0 %v3658
      %v3660 = vpop.xlane.xlu0 %3659
      %v3661 = vsel %vm459, %v3649, 0.0
      %3662 = vadd.xlane.f32.xlu0 %v3661
      %v3663 = vpop.xlane.xlu0 %3662
      %v3664 = vsel %vm459, %v3650, 0.0
      %3665 = vadd.xlane.f32.xlu0 %v3664
      %v3666 = vpop.xlane.xlu0 %3665
      %v3667 = vsel %vm459, %v3651, 0.0
      %3668 = vadd.xlane.f32.xlu0 %v3667
      %v3669 = vpop.xlane.xlu0 %3668
      %v3670 = vsel %vm459, %v3652, 0.0
      %3671 = vadd.xlane.f32.xlu0 %v3670
      %v3672 = vpop.xlane.xlu0 %3671
      %v3673 = vsel %vm459, %v3653, 0.0
      %3674 = vadd.xlane.f32.xlu0 %v3673
      %v3675 = vpop.xlane.xlu0 %3674
      %v3676 = vsel %vm459, %v3654, 0.0
      %3677 = vadd.xlane.f32.xlu0 %v3676
      %v3678 = vpop.xlane.xlu0 %3677
      %v3679 = vmul.f32 %v3657, %v490
      %v3680 = vmul.f32 %v3660, %v490
      %v3681 = vmul.f32 %v3663, %v490
      %v3682 = vmul.f32 %v3666, %v490
      %v3683 = vmul.f32 %v3669, %v490
      %v3684 = vmul.f32 %v3672, %v490
      %v3685 = vmul.f32 %v3675, %v490
      %v3686 = vmul.f32 %v3678, %v490
      %v3687 = vadd.f32 %v3679, 1e-05
      %v3688 = vadd.f32 %v3680, 1e-05
      %v3689 = vadd.f32 %v3681, 1e-05
      %v3690 = vadd.f32 %v3682, 1e-05
      %v3691 = vadd.f32 %v3683, 1e-05
      %v3692 = vadd.f32 %v3684, 1e-05
      %v3693 = vadd.f32 %v3685, 1e-05
      %v3694 = vadd.f32 %v3686, 1e-05
      %v3695 = vrsqrt.pop %v3687
      %v3696 = vmul.f32 %v3695, %v3687
      %v3697 = vmul.f32 %v3696, %v3695
      %v3698 = vmul.f32 0.5, %v3697
      %v3699 = vsub.f32 1.5, %v3698
      %v3700 = vmul.f32 %v3695, %v3699
      %vm3701 = vweird.f32 %v3687
      %vm3702 = vweird.f32 %v3695
      %vm3703 = vmor %vm3701, %vm3702
      %v3704 = vsel %vm3703, %v3695, %v3700
      %v3705 = vrsqrt.pop %v3688
      %v3706 = vmul.f32 %v3705, %v3688
      %v3707 = vmul.f32 %v3706, %v3705
      %v3708 = vmul.f32 0.5, %v3707
      %v3709 = vsub.f32 1.5, %v3708
      %v3710 = vmul.f32 %v3705, %v3709
      %vm3711 = vweird.f32 %v3688
      %vm3712 = vweird.f32 %v3705
      %vm3713 = vmor %vm3711, %vm3712
      %v3714 = vsel %vm3713, %v3705, %v3710
      %v3715 = vrsqrt.pop %v3689
      %v3716 = vmul.f32 %v3715, %v3689
      %v3717 = vmul.f32 %v3716, %v3715
      %v3718 = vmul.f32 0.5, %v3717
      %v3719 = vsub.f32 1.5, %v3718
      %v3720 = vmul.f32 %v3715, %v3719
      %vm3721 = vweird.f32 %v3689
      %vm3722 = vweird.f32 %v3715
      %vm3723 = vmor %vm3721, %vm3722
      %v3724 = vsel %vm3723, %v3715, %v3720
      %v3725 = vrsqrt.pop %v3690
      %v3726 = vmul.f32 %v3725, %v3690
      %v3727 = vmul.f32 %v3726, %v3725
      %v3728 = vmul.f32 0.5, %v3727
      %v3729 = vsub.f32 1.5, %v3728
      %v3730 = vmul.f32 %v3725, %v3729
      %vm3731 = vweird.f32 %v3690
      %vm3732 = vweird.f32 %v3725
      %vm3733 = vmor %vm3731, %vm3732
      %v3734 = vsel %vm3733, %v3725, %v3730
      %v3735 = vrsqrt.pop %v3691
      %v3736 = vmul.f32 %v3735, %v3691
      %v3737 = vmul.f32 %v3736, %v3735
      %v3738 = vmul.f32 0.5, %v3737
      %v3739 = vsub.f32 1.5, %v3738
      %v3740 = vmul.f32 %v3735, %v3739
      %vm3741 = vweird.f32 %v3691
      %vm3742 = vweird.f32 %v3735
      %vm3743 = vmor %vm3741, %vm3742
      %v3744 = vsel %vm3743, %v3735, %v3740
      %v3745 = vrsqrt.pop %v3692
      %v3746 = vmul.f32 %v3745, %v3692
      %v3747 = vmul.f32 %v3746, %v3745
      %v3748 = vmul.f32 0.5, %v3747
      %v3749 = vsub.f32 1.5, %v3748
      %v3750 = vmul.f32 %v3745, %v3749
      %vm3751 = vweird.f32 %v3692
      %vm3752 = vweird.f32 %v3745
      %vm3753 = vmor %vm3751, %vm3752
      %v3754 = vsel %vm3753, %v3745, %v3750
      %v3755 = vrsqrt.pop %v3693
      %v3756 = vmul.f32 %v3755, %v3693
      %v3757 = vmul.f32 %v3756, %v3755
      %v3758 = vmul.f32 0.5, %v3757
      %v3759 = vsub.f32 1.5, %v3758
      %v3760 = vmul.f32 %v3755, %v3759
      %vm3761 = vweird.f32 %v3693
      %vm3762 = vweird.f32 %v3755
      %vm3763 = vmor %vm3761, %vm3762
      %v3764 = vsel %vm3763, %v3755, %v3760
      %v3765 = vrsqrt.pop %v3694
      %v3766 = vmul.f32 %v3765, %v3694
      %v3767 = vmul.f32 %v3766, %v3765
      %v3768 = vmul.f32 0.5, %v3767
      %v3769 = vsub.f32 1.5, %v3768
      %v3770 = vmul.f32 %v3765, %v3769
      %vm3771 = vweird.f32 %v3694
      %vm3772 = vweird.f32 %v3765
      %vm3773 = vmor %vm3771, %vm3772
      %v3774 = vsel %vm3773, %v3765, %v3770
      %v3775 = vmul.f32 %v3639, %v3704
      %v3776 = vmul.f32 %v3640, %v3714
      %v3777 = vmul.f32 %v3641, %v3724
      %v3778 = vmul.f32 %v3642, %v3734
      %v3779 = vmul.f32 %v3643, %v3744
      %v3780 = vmul.f32 %v3644, %v3754
      %v3781 = vmul.f32 %v3645, %v3764
      %v3782 = vmul.f32 %v3646, %v3774
      %v3784 = vperm.slane %v3605, 0
      %v3786 = vmul.f32 %v3775, %v3784
      %v3787 = vmul.f32 %v3776, %v3784
      %v3788 = vmul.f32 %v3777, %v3784
      %v3789 = vmul.f32 %v3778, %v3784
      %v3790 = vmul.f32 %v3779, %v3784
      %v3791 = vmul.f32 %v3780, %v3784
      %v3792 = vmul.f32 %v3781, %v3784
      %v3793 = vmul.f32 %v3782, %v3784
      %v3795 = vperm.slane %v3606, 0
      %v3797 = vadd.f32 %v3786, %v3795
      %v3798 = vadd.f32 %v3787, %v3795
      %v3799 = vadd.f32 %v3788, %v3795
      %v3800 = vadd.f32 %v3789, %v3795
      %v3801 = vadd.f32 %v3790, %v3795
      %v3802 = vadd.f32 %v3791, %v3795
      %v3803 = vadd.f32 %v3792, %v3795
      %v3804 = vadd.f32 %v3793, %v3795
      %v3805 = vld [vmem:[%s9] sm:$0xff]
      %v3806 = vld [vmem:[%s9 + $0x8] sm:$0xf]
      %v3807 = vld [vmem:[%s10] sm:$0x1]
      %v3809 = vperm.slane %v3807, 0
      %v3812 = vsel %vm459, %v3797, 0
      %v3815 = vsel %vm459, %v3798, 0
      %v3818 = vsel %vm459, %v3799, 0
      %v3821 = vsel %vm459, %v3800, 0
      %v3824 = vsel %vm459, %v3801, 0
      %v3827 = vsel %vm459, %v3802, 0
      %v3830 = vsel %vm459, %v3803, 0
      %v3833 = vsel %vm459, %v3804, 0
      %v3836 = vsel %vm691, %v3806, 0
      %3838 = vmatpush.msra.mxu0 0.0
      %3839 = vmatpush.msra.mxu0 0.0
      %3840 = vmatpush.msra.mxu0 0.0
      %3841 = vmatpush.msra.mxu0 0.0
      %3842 = vmatpush.msra.mxu0 0.0
      %3843 = vmatpush.msra.mxu0 0.0
      %3844 = vmatpush.msra.mxu0 0.0
      %3845 = vmatpush.msra.mxu0 0.0
      %3846 = vmatpush.msra.mxu0 0.0
      %3847 = vmatpush.msra.mxu0 0.0
      %3848 = vmatpush.msra.mxu0 0.0
      %3849 = vmatpush.msra.mxu0 0.0
      %3850 = vmatpush.msra.mxu0 0.0
      %3851 = vmatpush.msra.mxu0 0.0
      %3852 = vmatpush.msra.mxu0 %v3836
      %3853 = vmatpush.msra.mxu0 %v3805
      %3854 = vmatmul.f32.gmra.mxu0 %v3812
      %v3855 = vpop.f32.mrf.mxu0
      %v3856 = vadd.f32 %v3809, %v3855
      %3857 = vmatmul.f32.gmra.mxu0 %v3815
      %v3858 = vpop.f32.mrf.mxu0
      %v3859 = vadd.f32 %v3809, %v3858
      %3860 = vmatmul.f32.gmra.mxu0 %v3818
      %v3861 = vpop.f32.mrf.mxu0
      %v3862 = vadd.f32 %v3809, %v3861
      %3863 = vmatmul.f32.gmra.mxu0 %v3821
      %v3864 = vpop.f32.mrf.mxu0
      %v3865 = vadd.f32 %v3809, %v3864
      %3866 = vmatmul.f32.gmra.mxu0 %v3824
      %v3867 = vpop.f32.mrf.mxu0
      %v3868 = vadd.f32 %v3809, %v3867
      %3869 = vmatmul.f32.gmra.mxu0 %v3827
      %v3870 = vpop.f32.mrf.mxu0
      %v3871 = vadd.f32 %v3809, %v3870
      %3872 = vmatmul.f32.gmra.mxu0 %v3830
      %v3873 = vpop.f32.mrf.mxu0
      %v3874 = vadd.f32 %v3809, %v3873
      %3875 = vmatmul.f32.gmra.mxu0 %v3833
      %v3876 = vpop.f32.mrf.mxu0
      %v3877 = vadd.f32 %v3809, %v3876
      %3878 = vdwg.mxu0
      %v3879 = vmul.f32 %v3856, 0.5
      %v3880 = vmul.f32 %v3859, 0.5
      %v3881 = vmul.f32 %v3862, 0.5
      %v3882 = vmul.f32 %v3865, 0.5
      %v3883 = vmul.f32 %v3868, 0.5
      %v3884 = vmul.f32 %v3871, 0.5
      %v3885 = vmul.f32 %v3874, 0.5
      %v3886 = vmul.f32 %v3877, 0.5
      %v3887 = vmul.f32 %v3856, 0.70710677
      %v3888 = vmul.f32 %v3859, 0.70710677
      %v3889 = vmul.f32 %v3862, 0.70710677
      %v3890 = vmul.f32 %v3865, 0.70710677
      %v3891 = vmul.f32 %v3868, 0.70710677
      %v3892 = vmul.f32 %v3871, 0.70710677
      %v3893 = vmul.f32 %v3874, 0.70710677
      %v3894 = vmul.f32 %v3877, 0.70710677
      %v3895 = vmul.f32 %v3887, %v3887
      %v3896 = vmin.f32 16.0, %v3895
      %v3897 = vmul.f32 %v3896, 2.1237322e-06
      %v3898 = vadd.f32 %v3897, 0.00028619796
      %v3899 = vmul.f32 %v3896, %v3898
      %v3900 = vadd.f32 %v3899, 0.0036580483
      %v3901 = vmul.f32 %v3896, %v3900
      %v3902 = vadd.f32 %v3901, 0.05243302
      %v3903 = vmul.f32 %v3896, %v3902
      %v3904 = vadd.f32 %v3903, 0.18741608
      %v3905 = vmul.f32 %v3896, %v3904
      %v3906 = vadd.f32 %v3905, 1.1283791
      %v3907 = vmul.f32 %v3887, %v3906
      %v3908 = vmul.f32 %v3896, 3.8918573e-05
      %v3909 = vadd.f32 %v3908, 0.001143296
      %v3910 = vmul.f32 %v3896, %v3909
      %v3911 = vadd.f32 %v3910, 0.014752088
      %v3912 = vmul.f32 %v3896, %v3911
      %v3913 = vadd.f32 %v3912, 0.112945676
      %v3914 = vmul.f32 %v3896, %v3913
      %v3915 = vadd.f32 %v3914, 0.4994258
      %v3916 = vmul.f32 %v3896, %v3915
      %v3917 = vadd.f32 %v3916, 1.0
      %v3918 = vrcp.pop %v3917
      %v3919 = vmul.f32 %v3917, %v3918
      %v3920 = vsub.f32 1.0, %v3919
      %v3921 = vmul.f32 %v3918, %v3920
      %v3922 = vadd.f32 %v3918, %v3921
      %vm3923 = vweird.f32 %v3917
      %vm3924 = vweird.f32 %v3918
      %vm3925 = vmor %vm3923, %vm3924
      %v3926 = vsel %vm3925, %v3918, %v3922
      %v3927 = vand.u32 2147483647, %v3917
      %vm3928 = vcmp.eq.f32.partialorder %v3927, 8.507059e+37
      %v3929 = vand.u32 %v3917, 2147483648
      %v3930 = vor.u32 1.1754944e-38, %v3929
      %v3931 = vsel %vm3928, %v3930, %v3926
      %v3932 = vmul.f32 %v3907, %v3931
      %v3933 = vmin.f32 %v3932, 1.0
      %v3934 = vmax.f32 %v3933, -1.0
      %v3935 = vmul.f32 %v3888, %v3888
      %v3936 = vmin.f32 16.0, %v3935
      %v3937 = vmul.f32 %v3936, 2.1237322e-06
      %v3938 = vadd.f32 %v3937, 0.00028619796
      %v3939 = vmul.f32 %v3936, %v3938
      %v3940 = vadd.f32 %v3939, 0.0036580483
      %v3941 = vmul.f32 %v3936, %v3940
      %v3942 = vadd.f32 %v3941, 0.05243302
      %v3943 = vmul.f32 %v3936, %v3942
      %v3944 = vadd.f32 %v3943, 0.18741608
      %v3945 = vmul.f32 %v3936, %v3944
      %v3946 = vadd.f32 %v3945, 1.1283791
      %v3947 = vmul.f32 %v3888, %v3946
      %v3948 = vmul.f32 %v3936, 3.8918573e-05
      %v3949 = vadd.f32 %v3948, 0.001143296
      %v3950 = vmul.f32 %v3936, %v3949
      %v3951 = vadd.f32 %v3950, 0.014752088
      %v3952 = vmul.f32 %v3936, %v3951
      %v3953 = vadd.f32 %v3952, 0.112945676
      %v3954 = vmul.f32 %v3936, %v3953
      %v3955 = vadd.f32 %v3954, 0.4994258
      %v3956 = vmul.f32 %v3936, %v3955
      %v3957 = vadd.f32 %v3956, 1.0
      %v3958 = vrcp.pop %v3957
      %v3959 = vmul.f32 %v3957, %v3958
      %v3960 = vsub.f32 1.0, %v3959
      %v3961 = vmul.f32 %v3958, %v3960
      %v3962 = vadd.f32 %v3958, %v3961
      %vm3963 = vweird.f32 %v3957
      %vm3964 = vweird.f32 %v3958
      %vm3965 = vmor %vm3963, %vm3964
      %v3966 = vsel %vm3965, %v3958, %v3962
      %v3967 = vand.u32 2147483647, %v3957
      %vm3968 = vcmp.eq.f32.partialorder %v3967, 8.507059e+37
      %v3969 = vand.u32 %v3957, 2147483648
      %v3970 = vor.u32 1.1754944e-38, %v3969
      %v3971 = vsel %vm3968, %v3970, %v3966
      %v3972 = vmul.f32 %v3947, %v3971
      %v3973 = vmin.f32 %v3972, 1.0
      %v3974 = vmax.f32 %v3973, -1.0
      %v3975 = vmul.f32 %v3889, %v3889
      %v3976 = vmin.f32 16.0, %v3975
      %v3977 = vmul.f32 %v3976, 2.1237322e-06
      %v3978 = vadd.f32 %v3977, 0.00028619796
      %v3979 = vmul.f32 %v3976, %v3978
      %v3980 = vadd.f32 %v3979, 0.0036580483
      %v3981 = vmul.f32 %v3976, %v3980
      %v3982 = vadd.f32 %v3981, 0.05243302
      %v3983 = vmul.f32 %v3976, %v3982
      %v3984 = vadd.f32 %v3983, 0.18741608
      %v3985 = vmul.f32 %v3976, %v3984
      %v3986 = vadd.f32 %v3985, 1.1283791
      %v3987 = vmul.f32 %v3889, %v3986
      %v3988 = vmul.f32 %v3976, 3.8918573e-05
      %v3989 = vadd.f32 %v3988, 0.001143296
      %v3990 = vmul.f32 %v3976, %v3989
      %v3991 = vadd.f32 %v3990, 0.014752088
      %v3992 = vmul.f32 %v3976, %v3991
      %v3993 = vadd.f32 %v3992, 0.112945676
      %v3994 = vmul.f32 %v3976, %v3993
      %v3995 = vadd.f32 %v3994, 0.4994258
      %v3996 = vmul.f32 %v3976, %v3995
      %v3997 = vadd.f32 %v3996, 1.0
      %v3998 = vrcp.pop %v3997
      %v3999 = vmul.f32 %v3997, %v3998
      %v4000 = vsub.f32 1.0, %v3999
      %v4001 = vmul.f32 %v3998, %v4000
      %v4002 = vadd.f32 %v3998, %v4001
      %vm4003 = vweird.f32 %v3997
      %vm4004 = vweird.f32 %v3998
      %vm4005 = vmor %vm4003, %vm4004
      %v4006 = vsel %vm4005, %v3998, %v4002
      %v4007 = vand.u32 2147483647, %v3997
      %vm4008 = vcmp.eq.f32.partialorder %v4007, 8.507059e+37
      %v4009 = vand.u32 %v3997, 2147483648
      %v4010 = vor.u32 1.1754944e-38, %v4009
      %v4011 = vsel %vm4008, %v4010, %v4006
      %v4012 = vmul.f32 %v3987, %v4011
      %v4013 = vmin.f32 %v4012, 1.0
      %v4014 = vmax.f32 %v4013, -1.0
      %v4015 = vmul.f32 %v3890, %v3890
      %v4016 = vmin.f32 16.0, %v4015
      %v4017 = vmul.f32 %v4016, 2.1237322e-06
      %v4018 = vadd.f32 %v4017, 0.00028619796
      %v4019 = vmul.f32 %v4016, %v4018
      %v4020 = vadd.f32 %v4019, 0.0036580483
      %v4021 = vmul.f32 %v4016, %v4020
      %v4022 = vadd.f32 %v4021, 0.05243302
      %v4023 = vmul.f32 %v4016, %v4022
      %v4024 = vadd.f32 %v4023, 0.18741608
      %v4025 = vmul.f32 %v4016, %v4024
      %v4026 = vadd.f32 %v4025, 1.1283791
      %v4027 = vmul.f32 %v3890, %v4026
      %v4028 = vmul.f32 %v4016, 3.8918573e-05
      %v4029 = vadd.f32 %v4028, 0.001143296
      %v4030 = vmul.f32 %v4016, %v4029
      %v4031 = vadd.f32 %v4030, 0.014752088
      %v4032 = vmul.f32 %v4016, %v4031
      %v4033 = vadd.f32 %v4032, 0.112945676
      %v4034 = vmul.f32 %v4016, %v4033
      %v4035 = vadd.f32 %v4034, 0.4994258
      %v4036 = vmul.f32 %v4016, %v4035
      %v4037 = vadd.f32 %v4036, 1.0
      %v4038 = vrcp.pop %v4037
      %v4039 = vmul.f32 %v4037, %v4038
      %v4040 = vsub.f32 1.0, %v4039
      %v4041 = vmul.f32 %v4038, %v4040
      %v4042 = vadd.f32 %v4038, %v4041
      %vm4043 = vweird.f32 %v4037
      %vm4044 = vweird.f32 %v4038
      %vm4045 = vmor %vm4043, %vm4044
      %v4046 = vsel %vm4045, %v4038, %v4042
      %v4047 = vand.u32 2147483647, %v4037
      %vm4048 = vcmp.eq.f32.partialorder %v4047, 8.507059e+37
      %v4049 = vand.u32 %v4037, 2147483648
      %v4050 = vor.u32 1.1754944e-38, %v4049
      %v4051 = vsel %vm4048, %v4050, %v4046
      %v4052 = vmul.f32 %v4027, %v4051
      %v4053 = vmin.f32 %v4052, 1.0
      %v4054 = vmax.f32 %v4053, -1.0
      %v4055 = vmul.f32 %v3891, %v3891
      %v4056 = vmin.f32 16.0, %v4055
      %v4057 = vmul.f32 %v4056, 2.1237322e-06
      %v4058 = vadd.f32 %v4057, 0.00028619796
      %v4059 = vmul.f32 %v4056, %v4058
      %v4060 = vadd.f32 %v4059, 0.0036580483
      %v4061 = vmul.f32 %v4056, %v4060
      %v4062 = vadd.f32 %v4061, 0.05243302
      %v4063 = vmul.f32 %v4056, %v4062
      %v4064 = vadd.f32 %v4063, 0.18741608
      %v4065 = vmul.f32 %v4056, %v4064
      %v4066 = vadd.f32 %v4065, 1.1283791
      %v4067 = vmul.f32 %v3891, %v4066
      %v4068 = vmul.f32 %v4056, 3.8918573e-05
      %v4069 = vadd.f32 %v4068, 0.001143296
      %v4070 = vmul.f32 %v4056, %v4069
      %v4071 = vadd.f32 %v4070, 0.014752088
      %v4072 = vmul.f32 %v4056, %v4071
      %v4073 = vadd.f32 %v4072, 0.112945676
      %v4074 = vmul.f32 %v4056, %v4073
      %v4075 = vadd.f32 %v4074, 0.4994258
      %v4076 = vmul.f32 %v4056, %v4075
      %v4077 = vadd.f32 %v4076, 1.0
      %v4078 = vrcp.pop %v4077
      %v4079 = vmul.f32 %v4077, %v4078
      %v4080 = vsub.f32 1.0, %v4079
      %v4081 = vmul.f32 %v4078, %v4080
      %v4082 = vadd.f32 %v4078, %v4081
      %vm4083 = vweird.f32 %v4077
      %vm4084 = vweird.f32 %v4078
      %vm4085 = vmor %vm4083, %vm4084
      %v4086 = vsel %vm4085, %v4078, %v4082
      %v4087 = vand.u32 2147483647, %v4077
      %vm4088 = vcmp.eq.f32.partialorder %v4087, 8.507059e+37
      %v4089 = vand.u32 %v4077, 2147483648
      %v4090 = vor.u32 1.1754944e-38, %v4089
      %v4091 = vsel %vm4088, %v4090, %v4086
      %v4092 = vmul.f32 %v4067, %v4091
      %v4093 = vmin.f32 %v4092, 1.0
      %v4094 = vmax.f32 %v4093, -1.0
      %v4095 = vmul.f32 %v3892, %v3892
      %v4096 = vmin.f32 16.0, %v4095
      %v4097 = vmul.f32 %v4096, 2.1237322e-06
      %v4098 = vadd.f32 %v4097, 0.00028619796
      %v4099 = vmul.f32 %v4096, %v4098
      %v4100 = vadd.f32 %v4099, 0.0036580483
      %v4101 = vmul.f32 %v4096, %v4100
      %v4102 = vadd.f32 %v4101, 0.05243302
      %v4103 = vmul.f32 %v4096, %v4102
      %v4104 = vadd.f32 %v4103, 0.18741608
      %v4105 = vmul.f32 %v4096, %v4104
      %v4106 = vadd.f32 %v4105, 1.1283791
      %v4107 = vmul.f32 %v3892, %v4106
      %v4108 = vmul.f32 %v4096, 3.8918573e-05
      %v4109 = vadd.f32 %v4108, 0.001143296
      %v4110 = vmul.f32 %v4096, %v4109
      %v4111 = vadd.f32 %v4110, 0.014752088
      %v4112 = vmul.f32 %v4096, %v4111
      %v4113 = vadd.f32 %v4112, 0.112945676
      %v4114 = vmul.f32 %v4096, %v4113
      %v4115 = vadd.f32 %v4114, 0.4994258
      %v4116 = vmul.f32 %v4096, %v4115
      %v4117 = vadd.f32 %v4116, 1.0
      %v4118 = vrcp.pop %v4117
      %v4119 = vmul.f32 %v4117, %v4118
      %v4120 = vsub.f32 1.0, %v4119
      %v4121 = vmul.f32 %v4118, %v4120
      %v4122 = vadd.f32 %v4118, %v4121
      %vm4123 = vweird.f32 %v4117
      %vm4124 = vweird.f32 %v4118
      %vm4125 = vmor %vm4123, %vm4124
      %v4126 = vsel %vm4125, %v4118, %v4122
      %v4127 = vand.u32 2147483647, %v4117
      %vm4128 = vcmp.eq.f32.partialorder %v4127, 8.507059e+37
      %v4129 = vand.u32 %v4117, 2147483648
      %v4130 = vor.u32 1.1754944e-38, %v4129
      %v4131 = vsel %vm4128, %v4130, %v4126
      %v4132 = vmul.f32 %v4107, %v4131
      %v4133 = vmin.f32 %v4132, 1.0
      %v4134 = vmax.f32 %v4133, -1.0
      %v4135 = vmul.f32 %v3893, %v3893
      %v4136 = vmin.f32 16.0, %v4135
      %v4137 = vmul.f32 %v4136, 2.1237322e-06
      %v4138 = vadd.f32 %v4137, 0.00028619796
      %v4139 = vmul.f32 %v4136, %v4138
      %v4140 = vadd.f32 %v4139, 0.0036580483
      %v4141 = vmul.f32 %v4136, %v4140
      %v4142 = vadd.f32 %v4141, 0.05243302
      %v4143 = vmul.f32 %v4136, %v4142
      %v4144 = vadd.f32 %v4143, 0.18741608
      %v4145 = vmul.f32 %v4136, %v4144
      %v4146 = vadd.f32 %v4145, 1.1283791
      %v4147 = vmul.f32 %v3893, %v4146
      %v4148 = vmul.f32 %v4136, 3.8918573e-05
      %v4149 = vadd.f32 %v4148, 0.001143296
      %v4150 = vmul.f32 %v4136, %v4149
      %v4151 = vadd.f32 %v4150, 0.014752088
      %v4152 = vmul.f32 %v4136, %v4151
      %v4153 = vadd.f32 %v4152, 0.112945676
      %v4154 = vmul.f32 %v4136, %v4153
      %v4155 = vadd.f32 %v4154, 0.4994258
      %v4156 = vmul.f32 %v4136, %v4155
      %v4157 = vadd.f32 %v4156, 1.0
      %v4158 = vrcp.pop %v4157
      %v4159 = vmul.f32 %v4157, %v4158
      %v4160 = vsub.f32 1.0, %v4159
      %v4161 = vmul.f32 %v4158, %v4160
      %v4162 = vadd.f32 %v4158, %v4161
      %vm4163 = vweird.f32 %v4157
      %vm4164 = vweird.f32 %v4158
      %vm4165 = vmor %vm4163, %vm4164
      %v4166 = vsel %vm4165, %v4158, %v4162
      %v4167 = vand.u32 2147483647, %v4157
      %vm4168 = vcmp.eq.f32.partialorder %v4167, 8.507059e+37
      %v4169 = vand.u32 %v4157, 2147483648
      %v4170 = vor.u32 1.1754944e-38, %v4169
      %v4171 = vsel %vm4168, %v4170, %v4166
      %v4172 = vmul.f32 %v4147, %v4171
      %v4173 = vmin.f32 %v4172, 1.0
      %v4174 = vmax.f32 %v4173, -1.0
      %v4175 = vmul.f32 %v3894, %v3894
      %v4176 = vmin.f32 16.0, %v4175
      %v4177 = vmul.f32 %v4176, 2.1237322e-06
      %v4178 = vadd.f32 %v4177, 0.00028619796
      %v4179 = vmul.f32 %v4176, %v4178
      %v4180 = vadd.f32 %v4179, 0.0036580483
      %v4181 = vmul.f32 %v4176, %v4180
      %v4182 = vadd.f32 %v4181, 0.05243302
      %v4183 = vmul.f32 %v4176, %v4182
      %v4184 = vadd.f32 %v4183, 0.18741608
      %v4185 = vmul.f32 %v4176, %v4184
      %v4186 = vadd.f32 %v4185, 1.1283791
      %v4187 = vmul.f32 %v3894, %v4186
      %v4188 = vmul.f32 %v4176, 3.8918573e-05
      %v4189 = vadd.f32 %v4188, 0.001143296
      %v4190 = vmul.f32 %v4176, %v4189
      %v4191 = vadd.f32 %v4190, 0.014752088
      %v4192 = vmul.f32 %v4176, %v4191
      %v4193 = vadd.f32 %v4192, 0.112945676
      %v4194 = vmul.f32 %v4176, %v4193
      %v4195 = vadd.f32 %v4194, 0.4994258
      %v4196 = vmul.f32 %v4176, %v4195
      %v4197 = vadd.f32 %v4196, 1.0
      %v4198 = vrcp.pop %v4197
      %v4199 = vmul.f32 %v4197, %v4198
      %v4200 = vsub.f32 1.0, %v4199
      %v4201 = vmul.f32 %v4198, %v4200
      %v4202 = vadd.f32 %v4198, %v4201
      %vm4203 = vweird.f32 %v4197
      %vm4204 = vweird.f32 %v4198
      %vm4205 = vmor %vm4203, %vm4204
      %v4206 = vsel %vm4205, %v4198, %v4202
      %v4207 = vand.u32 2147483647, %v4197
      %vm4208 = vcmp.eq.f32.partialorder %v4207, 8.507059e+37
      %v4209 = vand.u32 %v4197, 2147483648
      %v4210 = vor.u32 1.1754944e-38, %v4209
      %v4211 = vsel %vm4208, %v4210, %v4206
      %v4212 = vmul.f32 %v4187, %v4211
      %v4213 = vmin.f32 %v4212, 1.0
      %v4214 = vmax.f32 %v4213, -1.0
      %v4215 = vadd.f32 %v3934, 1.0
      %v4216 = vadd.f32 %v3974, 1.0
      %v4217 = vadd.f32 %v4014, 1.0
      %v4218 = vadd.f32 %v4054, 1.0
      %v4219 = vadd.f32 %v4094, 1.0
      %v4220 = vadd.f32 %v4134, 1.0
      %v4221 = vadd.f32 %v4174, 1.0
      %v4222 = vadd.f32 %v4214, 1.0
      %v4223 = vmul.f32 %v3879, %v4215
      %v4224 = vmul.f32 %v3880, %v4216
      %v4225 = vmul.f32 %v3881, %v4217
      %v4226 = vmul.f32 %v3882, %v4218
      %v4227 = vmul.f32 %v3883, %v4219
      %v4228 = vmul.f32 %v3884, %v4220
      %v4229 = vmul.f32 %v3885, %v4221
      %v4230 = vmul.f32 %v3886, %v4222
      %v4231 = vld [vmem:[%s11] sm:$0xff]
      %v4232 = vld [vmem:[%s11 + $0x8] sm:$0xff]
      %v4233 = vld [vmem:[%s11 + $0x10] sm:$0xff]
      %v4234 = vld [vmem:[%s12] sm:$0x1]
      %v4236 = vperm.slane %v4234, 0
      %vm4238 = vcmask 195584
      %v4240 = vsel %vm4238, %v4223, 0
      %v4243 = vsel %vm4238, %v4224, 0
      %v4246 = vsel %vm4238, %v4225, 0
      %v4249 = vsel %vm4238, %v4226, 0
      %v4252 = vsel %vm4238, %v4227, 0
      %v4255 = vsel %vm4238, %v4228, 0
      %v4258 = vsel %vm4238, %v4229, 0
      %v4261 = vsel %vm4238, %v4230, 0
      %4263 = vmatpush.msra.mxu0 0.0
      %4264 = vmatpush.msra.mxu0 0.0
      %4265 = vmatpush.msra.mxu0 0.0
      %4266 = vmatpush.msra.mxu0 0.0
      %4267 = vmatpush.msra.mxu0 0.0
      %4268 = vmatpush.msra.mxu0 0.0
      %4269 = vmatpush.msra.mxu0 0.0
      %4270 = vmatpush.msra.mxu0 0.0
      %4271 = vmatpush.msra.mxu0 0.0
      %4272 = vmatpush.msra.mxu0 0.0
      %4273 = vmatpush.msra.mxu0 0.0
      %4274 = vmatpush.msra.mxu0 0.0
      %4275 = vmatpush.msra.mxu0 0.0
      %4276 = vmatpush.msra.mxu0 %v4233
      %4277 = vmatpush.msra.mxu0 %v4232
      %4278 = vmatpush.msra.mxu0 %v4231
      %4279 = vmatmul.f32.gmra.mxu0 %v4240
      %v4280 = vpop.f32.mrf.mxu0
      %v4281 = vadd.f32 %v4236, %v4280
      %4282 = vmatmul.f32.gmra.mxu0 %v4243
      %v4283 = vpop.f32.mrf.mxu0
      %v4284 = vadd.f32 %v4236, %v4283
      %4285 = vmatmul.f32.gmra.mxu0 %v4246
      %v4286 = vpop.f32.mrf.mxu0
      %v4287 = vadd.f32 %v4236, %v4286
      %4288 = vmatmul.f32.gmra.mxu0 %v4249
      %v4289 = vpop.f32.mrf.mxu0
      %v4290 = vadd.f32 %v4236, %v4289
      %4291 = vmatmul.f32.gmra.mxu0 %v4252
      %v4292 = vpop.f32.mrf.mxu0
      %v4293 = vadd.f32 %v4236, %v4292
      %4294 = vmatmul.f32.gmra.mxu0 %v4255
      %v4295 = vpop.f32.mrf.mxu0
      %v4296 = vadd.f32 %v4236, %v4295
      %4297 = vmatmul.f32.gmra.mxu0 %v4258
      %v4298 = vpop.f32.mrf.mxu0
      %v4299 = vadd.f32 %v4236, %v4298
      %4300 = vmatmul.f32.gmra.mxu0 %v4261
      %v4301 = vpop.f32.mrf.mxu0
      %v4302 = vadd.f32 %v4236, %v4301
      %4303 = vdwg.mxu0
      %v4304 = vadd.f32 %v4281, %v3597
      %v4305 = vadd.f32 %v4284, %v3598
      %v4306 = vadd.f32 %v4287, %v3599
      %v4307 = vadd.f32 %v4290, %v3600
      %v4308 = vadd.f32 %v4293, %v3601
      %v4309 = vadd.f32 %v4296, %v3602
      %v4310 = vadd.f32 %v4299, %v3603
      %v4311 = vadd.f32 %v4302, %v3604
      %4312 = vst.msk [vmem:[%s447] sm:$0xff] %vm459, %v4304
      %4313 = vst.msk [vmem:[%s447 + $0x8] sm:$0xff] %vm459, %v4305
      %4314 = vst.msk [vmem:[%s447 + $0x10] sm:$0xff] %vm459, %v4306
      %4315 = vst.msk [vmem:[%s447 + $0x18] sm:$0xff] %vm459, %v4307
      %4316 = vst.msk [vmem:[%s447 + $0x20] sm:$0xff] %vm459, %v4308
      %4317 = vst.msk [vmem:[%s447 + $0x28] sm:$0xff] %vm459, %v4309
      %4318 = vst.msk [vmem:[%s447 + $0x30] sm:$0xff] %vm459, %v4310
      %4319 = vst.msk [vmem:[%s447 + $0x38] sm:$0xff] %vm459, %v4311
      %s4320 = smul.u32 4, %s24
      %p4321 = scmp.lt.s32.totalorder %s4320, 7
      %s4322 = scalar_select %p4321, %s4320, 7
      %s4323 = smul.addr %s4322, 2
      %s4324 = smul.addr %s4323, 8
      %s4325 = scalar_lea.vmem %s13, %s4324
      // Predicated region
      $region73: #{_lambda_.5} parent=71 // pred_check
        %p4326 = pneg %p320
      $region74: #{_lambda_.5} parent=71 // pred_check_branch
        %4328 = sbr.rel (%p4326) target = $region76
      $region75: #{_lambda_.5} parent=71 // pred_region
        %s4329 = smul.u32 4, %s24
      $region76: #{_lambda_.5} parent=71 // pred_fallthru
        _
    $region72: #{_lambda_.5} parent=5 // pred_fallthru
      _
    %p4330 = scmp.le.s32.totalorder 2, %s19
    // Predicated region
    $region77: #{_lambda_.5} parent=5 // pred_check
      %p4331 = pneg %p4330
    $region78: #{_lambda_.5} parent=5 // pred_check_branch
      %4333 = sbr.rel (%p4331) target = $region80
    $region79: #{_lambda_.5} parent=5 // pred_region
      %s4334 = ssub.s32 %s19, 2
      // Predicated region
      $region81: #{_lambda_.5} parent=79 // pred_check
        %p4335 = pneg %p326
      $region82: #{_lambda_.5} parent=79 // pred_check_branch
        %4337 = sbr.rel (%p4335) target = $region84
      $region83: #{_lambda_.5} parent=79 // pred_region
        %s4338 = smul.u32 4, %s25
        %p4339 = scmp.lt.s32.totalorder %s4338, 7
        %s4340 = scalar_select %p4339, %s4338, 7
        %s4341 = smul.addr %s4340, 2
        %s4342 = smul.addr %s4341, 8
        %s4343 = scalar_lea.vmem %s13, %s4342
      $region84: #{_lambda_.5} parent=79 // pred_fallthru
        _
    $region80: #{_lambda_.5} parent=5 // pred_fallthru
      _
  $region6: #{_lambda_.5} parent=0 // loop_footer
    %s23 = sadd.s32 1, %s19
  $region7: #{_lambda_.5} parent=0 // loop_footer_branch
    %18 = sbr.rel target = $region3
  $region8: #{_lambda_.5} parent=0 // loop_exit
    _

// kernel: _lambda_.7
$region0: #{_lambda_.7}
  #allocation0 [shape = 'u32[]', space=smem, size = 0x4, offset = 0x4, fixed_abs, tag = 'smem constant byte address 0x4 - core index']
  #allocation1 [shape = 'u32[72,128]{1,0:T(1,128)}', space=vmem, size = 0x9000, scoped, tag = 'internal scratch']
  %s0 = inlined_call_operand.vmem [shape: f32[2,10,10,12], index: 0, kind: input, shape index: {}]
  %s1 = inlined_call_operand.vmem [shape: f32[9,12,12], index: 1, kind: input, shape index: {}]
  %s2 = inlined_call_operand.vmem [shape: f32[1,12], index: 2, kind: input, shape index: {}]
  %s3 = inlined_call_operand.hbm [shape: f32[2,8,8,12], index: 3, kind: output, shape index: {}]
  %s4 = sld [smem:[#allocation0]]
  $region45: #{_lambda_.7} parent=0
    _
  %s6 = ssub.s32 1, %s4
  %s7 = scalar_select 0, %s6, %s4
  $region1: #{_lambda_.7} parent=0
    #allocation2 [shape = 'u8[65536]{0}', space=vmem, size = 0x10000, scoped, tag = 'output window, operand 0']
    #allocation3 [shape = 's32[2]{0}', space=sflag, size = 0x8, scoped, tag = 'scoped memory for _lambda_.7']
    %8 = vsyncpa [#allocation3], 0
    %s9 = scalar_lea.sflag [#allocation3], 1
    %10 = vsyncpa %s9, 0
    loop: start=0, step=1, limit=4
    $region2: #{_lambda_.7} parent=1 // loop_pre_header
      _
    $region3: #{_lambda_.7} parent=1 // loop_header
      %s12 = sphi 0, %s16
      %p13 = scmp.ge.s32.totalorder %s12, 4
      %s22 = sphi 0, %s24
      %s25 = sphi 0, %s22
      %s26 = sphi 0, %s25
      %s42 = sphi 0, %s26
      %s46 = sphi 0, %s46
      %s48 = sphi 0, %s46
      %s49 = sphi 0, %s48
      %s63 = sphi 0, %s49
      %s67 = sphi 0, %s67
      %s69 = sphi 0, %s67
      %s70 = sphi 0, %s69
      %s84 = sphi 0, %s70
      %s90 = sphi 0, %s92
      %s93 = sphi 0, %s90
      %s94 = sphi 0, %s93
      %s110 = sphi 0, %s94
    $region4: #{_lambda_.7} parent=1 // loop_header_branch
      %15 = sbr.rel (%p13) target = $region8
    $region5: #{_lambda_.7} parent=1 // loop_body
      %s17 = ssub.s32 %s12, 1
      %s18 = ssub.s32 %s12, 2
      %s19 = sadd.s32 %s12, 1
      %s20 = ssub.s32 %s12, %s19
      %p21 = scmp.eq.s32.totalorder %s20, 0
      %s23 = sadd.s32 %s22, 1
      %s24 = scalar_select %p21, %s22, %s23
      %p27 = pneg %p21
      %p28 = scmp.eq.s32.totalorder %s12, 1
      %p29 = por %p27, %p28
      %p30 = scmp.ne.s32.totalorder %s22, %s25
      %p31 = scmp.eq.s32.totalorder %s12, 0
      %p32 = por %p30, %p31
      %p33 = scmp.ne.s32.totalorder %s22, %s25
      %p34 = scmp.eq.s32.totalorder %s17, 1
      %p35 = por %p33, %p34
      %p36 = scmp.ne.s32.totalorder %s25, %s26
      %p37 = scmp.eq.s32.totalorder %s17, 0
      %p38 = por %p36, %p37
      %p39 = scmp.ne.s32.totalorder %s25, %s26
      %p40 = scmp.eq.s32.totalorder %s18, 1
      %p41 = por %p39, %p40
      %p43 = scmp.ne.s32.totalorder %s26, %s42
      %p44 = scmp.eq.s32.totalorder %s18, 0
      %p45 = por %p43, %p44
      %s47 = sadd.s32 %s46, 1
      %p50 = scmp.eq.s32.totalorder %s12, 1
      %p51 = scmp.ne.s32.totalorder %s46, %s48
      %p52 = scmp.eq.s32.totalorder %s12, 0
      %p53 = por %p51, %p52
      %p54 = scmp.ne.s32.totalorder %s46, %s48
      %p55 = scmp.eq.s32.totalorder %s17, 1
      %p56 = por %p54, %p55
      %p57 = scmp.ne.s32.totalorder %s48, %s49
      %p58 = scmp.eq.s32.totalorder %s17, 0
      %p59 = por %p57, %p58
      %p60 = scmp.ne.s32.totalorder %s48, %s49
      %p61 = scmp.eq.s32.totalorder %s18, 1
      %p62 = por %p60, %p61
      %p64 = scmp.ne.s32.totalorder %s49, %s63
      %p65 = scmp.eq.s32.totalorder %s18, 0
      %p66 = por %p64, %p65
      %s68 = sadd.s32 %s67, 1
      %p71 = scmp.eq.s32.totalorder %s12, 1
      %p72 = scmp.ne.s32.totalorder %s67, %s69
      %p73 = scmp.eq.s32.totalorder %s12, 0
      %p74 = por %p72, %p73
      %p75 = scmp.ne.s32.totalorder %s67, %s69
      %p76 = scmp.eq.s32.totalorder %s17, 1
      %p77 = por %p75, %p76
      %p78 = scmp.ne.s32.totalorder %s69, %s70
      %p79 = scmp.eq.s32.totalorder %s17, 0
      %p80 = por %p78, %p79
      %p81 = scmp.ne.s32.totalorder %s69, %s70
      %p82 = scmp.eq.s32.totalorder %s18, 1
      %p83 = por %p81, %p82
      %p85 = scmp.ne.s32.totalorder %s70, %s84
      %p86 = scmp.eq.s32.totalorder %s18, 0
      %p87 = por %p85, %p86
      %s88 = ssub.s32 %s12, %s19
      %p89 = scmp.eq.s32.totalorder %s88, 0
      %s91 = sadd.s32 %s90, 1
      %s92 = scalar_select %p89, %s90, %s91
      %p95 = pneg %p89
      %p96 = scmp.eq.s32.totalorder %s12, 1
      %p97 = por %p95, %p96
      %p98 = scmp.ne.s32.totalorder %s90, %s93
      %p99 = scmp.eq.s32.totalorder %s12, 0
      %p100 = por %p98, %p99
      %p101 = scmp.ne.s32.totalorder %s90, %s93
      %p102 = scmp.eq.s32.totalorder %s17, 1
      %p103 = por %p101, %p102
      %p104 = scmp.ne.s32.totalorder %s93, %s94
      %p105 = scmp.eq.s32.totalorder %s17, 0
      %p106 = por %p104, %p105
      %p107 = scmp.ne.s32.totalorder %s93, %s94
      %p108 = scmp.eq.s32.totalorder %s18, 1
      %p109 = por %p107, %p108
      %p111 = scmp.ne.s32.totalorder %s94, %s110
      %p112 = scmp.eq.s32.totalorder %s18, 0
      %p113 = por %p111, %p112
      %p114 = scmp.le.s32.totalorder 1, %s12
      %p115 = scmp.lt.s32.totalorder %s12, 3
      %p116 = pnand %p114, %p115
      %p117 = pneg %p116
      // Predicated region
      $region9: #{_lambda_.7} parent=5 // pred_check
        _
      $region10: #{_lambda_.7} parent=5 // pred_check_branch
        %119 = sbr.rel (%p116) target = $region12
      $region11: #{_lambda_.7} parent=5 // pred_region
        %s120 = ssub.s32 %s12, 1
        // Predicated region
        $region13: #{_lambda_.7} parent=11 // pred_check
          %p121 = pneg %p59
        $region14: #{_lambda_.7} parent=11 // pred_check_branch
          %123 = sbr.rel (%p121) target = $region16
        $region15: #{_lambda_.7} parent=11 // pred_region
          _
        $region16: #{_lambda_.7} parent=11 // pred_fallthru
          _
        // Predicated region
        $region17: #{_lambda_.7} parent=11 // pred_check
          %p124 = pneg %p80
        $region18: #{_lambda_.7} parent=11 // pred_check_branch
          %126 = sbr.rel (%p124) target = $region20
        $region19: #{_lambda_.7} parent=11 // pred_region
          _
        $region20: #{_lambda_.7} parent=11 // pred_fallthru
          _
      $region12: #{_lambda_.7} parent=5 // pred_fallthru
        _
      %p127 = scmp.lt.s32.totalorder %s12, 2
      // Predicated region
      $region21: #{_lambda_.7} parent=5 // pred_check
        %p128 = pneg %p127
      $region22: #{_lambda_.7} parent=5 // pred_check_branch
        %130 = sbr.rel (%p128) target = $region24
      $region23: #{_lambda_.7} parent=5 // pred_region
        // Predicated region
        $region25: #{_lambda_.7} parent=23 // pred_check
          %p131 = pneg %p32
        $region26: #{_lambda_.7} parent=23 // pred_check_branch
          %133 = sbr.rel (%p131) target = $region28
        $region27: #{_lambda_.7} parent=23 // pred_region
          %p134 = scmp.lt.s32.totalorder %s12, 1
          %s135 = scalar_select %p134, %s12, 1
          %s136 = smul.addr %s135, 20
          %s137 = smul.addr %s136, 8
          %s138 = scalar_lea.vmem %s0, %s137
        $region28: #{_lambda_.7} parent=23 // pred_fallthru
          _
      $region24: #{_lambda_.7} parent=5 // pred_fallthru
        _
      %p139 = scmp.le.s32.totalorder 1, %s12
      %p140 = scmp.lt.s32.totalorder %s12, 3
      %p141 = pnand %p139, %p140
      %p142 = pneg %p141
      // Predicated region
      $region29: #{_lambda_.7} parent=5 // pred_check
        _
      $region30: #{_lambda_.7} parent=5 // pred_check_branch
        %144 = sbr.rel (%p141) target = $region32
      $region31: #{_lambda_.7} parent=5 // pred_region
        %s145 = ssub.s32 %s12, 1
        %p146 = scmp.lt.s32.totalorder %s17, 1
        %s147 = scalar_select %p146, %s17, 1
        %s148 = smul.addr %s147, 20
        %s149 = smul.addr %s148, 8
        %s150 = scalar_lea.vmem %s0, %s149
        %p151 = pneg %p38
        %p152 = pneg %p35
        %p153 = pneg %p59
        %p154 = pneg %p56
        %p155 = pneg %p80
        %p156 = pneg %p77
        %p157 = pneg %p106
        %p158 = pneg %p103
        %s159 = sand.u32 %s93, 1
        %s160 = scalar_lea.sflag [#allocation3], %s159
        %s161 = sand.u32 %s93, 1
        %s162 = smul.addr %s161, 64
        %s163 = scalar_lea.vmem [#allocation2], %s162
        %p164 = scmp.lt.s32.totalorder %s17, 1
        %s165 = scalar_select %p164, %s17, 1
        %s166 = smul.addr %s165, 20
        %s167 = smul.addr %s166, 8
        %s168 = scalar_lea.vmem %s0, %s167
        %v169 = vld [vmem:[%s168] sm:$0xff]
        %v170 = vld [vmem:[%s168 + $0x10] sm:$0xff]
        %v171 = vld [vmem:[%s168 + $0x20] sm:$0xff]
        %v172 = vld [vmem:[%s168 + $0x30] sm:$0xff]
        %v173 = vld [vmem:[%s168 + $0x40] sm:$0xff]
        %v174 = vld [vmem:[%s168 + $0x50] sm:$0xff]
        %v175 = vld [vmem:[%s168 + $0x60] sm:$0xff]
        %v176 = vld [vmem:[%s168 + $0x70] sm:$0xff]
        %v177 = vld [vmem:[%s1] sm:$0xff]
        %v178 = vld [vmem:[%s1 + $0x8] sm:$0xf]
        %v179 = vld [vmem:[%s168 + $0x1] sm:$0xff]
        %v180 = vld [vmem:[%s168 + $0x11] sm:$0xff]
        %v181 = vld [vmem:[%s168 + $0x21] sm:$0xff]
        %v182 = vld [vmem:[%s168 + $0x31] sm:$0xff]
        %v183 = vld [vmem:[%s168 + $0x41] sm:$0xff]
        %v184 = vld [vmem:[%s168 + $0x51] sm:$0xff]
        %v185 = vld [vmem:[%s168 + $0x61] sm:$0xff]
        %v186 = vld [vmem:[%s168 + $0x71] sm:$0xff]
        %s187 = scalar_lea.vmem %s1, 16
        %v188 = vld [vmem:[%s187] sm:$0xff]
        %v189 = vld [vmem:[%s187 + $0x8] sm:$0xf]
        %vm190 = vcmask 97280
        %v192 = vsel %vm190, %v179, 0
        %v195 = vsel %vm190, %v180, 0
        %v198 = vsel %vm190, %v181, 0
        %v201 = vsel %vm190, %v182, 0
        %v204 = vsel %vm190, %v183, 0
        %v207 = vsel %vm190, %v184, 0
        %v210 = vsel %vm190, %v185, 0
        %v213 = vsel %vm190, %v186, 0
        %vm215 = vcmask 1043456
        %v217 = vsel %vm215, %v189, 0
        %219 = vmatpush.msra.mxu0 0.0
        %220 = vmatpush.msra.mxu0 0.0
        %221 = vmatpush.msra.mxu0 0.0
        %222 = vmatpush.msra.mxu0 0.0
        %223 = vmatpush.msra.mxu0 0.0
        %224 = vmatpush.msra.mxu0 0.0
        %225 = vmatpush.msra.mxu0 0.0
        %226 = vmatpush.msra.mxu0 0.0
        %227 = vmatpush.msra.mxu0 0.0
        %228 = vmatpush.msra.mxu0 0.0
        %229 = vmatpush.msra.mxu0 0.0
        %230 = vmatpush.msra.mxu0 0.0
        %231 = vmatpush.msra.mxu0 0.0
        %232 = vmatpush.msra.mxu0 0.0
        %233 = vmatpush.msra.mxu0 %v217
        %234 = vmatpush.msra.mxu0 %v188
        %235 = vmatmul.f32.gmra.mxu0 %v192
        %v236 = vpop.f32.mrf.mxu0
        %v237 = vadd.f32 0.0, %v236
        %238 = vmatmul.f32.gmra.mxu0 %v195
        %v239 = vpop.f32.mrf.mxu0
        %v240 = vadd.f32 0.0, %v239
        %241 = vmatmul.f32.gmra.mxu0 %v198
        %v242 = vpop.f32.mrf.mxu0
        %v243 = vadd.f32 0.0, %v242
        %244 = vmatmul.f32.gmra.mxu0 %v201
        %v245 = vpop.f32.mrf.mxu0
        %v246 = vadd.f32 0.0, %v245
        %247 = vmatmul.f32.gmra.mxu0 %v204
        %v248 = vpop.f32.mrf.mxu0
        %v249 = vadd.f32 0.0, %v248
        %250 = vmatmul.f32.gmra.mxu0 %v207
        %v251 = vpop.f32.mrf.mxu0
        %v252 = vadd.f32 0.0, %v251
        %253 = vmatmul.f32.gmra.mxu0 %v210
        %v254 = vpop.f32.mrf.mxu0
        %v255 = vadd.f32 0.0, %v254
        %256 = vmatmul.f32.gmra.mxu0 %v213
        %v257 = vpop.f32.mrf.mxu0
        %v258 = vadd.f32 0.0, %v257
        %259 = vdwg.mxu0
        %v261 = vsel %vm190, %v169, 0
        %v264 = vsel %vm190, %v170, 0
        %v267 = vsel %vm190, %v171, 0
        %v270 = vsel %vm190, %v172, 0
        %v273 = vsel %vm190, %v173, 0
        %v276 = vsel %vm190, %v174, 0
        %v279 = vsel %vm190, %v175, 0
        %v282 = vsel %vm190, %v176, 0
        %v285 = vsel %vm215, %v178, 0
        %287 = vmatpush.msra.mxu0 0.0
        %288 = vmatpush.msra.mxu0 0.0
        %289 = vmatpush.msra.mxu0 0.0
        %290 = vmatpush.msra.mxu0 0.0
        %291 = vmatpush.msra.mxu0 0.0
        %292 = vmatpush.msra.mxu0 0.0
        %293 = vmatpush.msra.mxu0 0.0
        %294 = vmatpush.msra.mxu0 0.0
        %295 = vmatpush.msra.mxu0 0.0
        %296 = vmatpush.msra.mxu0 0.0
        %297 = vmatpush.msra.mxu0 0.0
        %298 = vmatpush.msra.mxu0 0.0
        %299 = vmatpush.msra.mxu0 0.0
        %300 = vmatpush.msra.mxu0 0.0
        %301 = vmatpush.msra.mxu0 %v285
        %302 = vmatpush.msra.mxu0 %v177
        %303 = vmatmul.f32.gmra.mxu0 %v261
        %v304 = vpop.f32.mrf.mxu0
        %v305 = vadd.f32 %v237, %v304
        %306 = vmatmul.f32.gmra.mxu0 %v264
        %v307 = vpop.f32.mrf.mxu0
        %v308 = vadd.f32 %v240, %v307
        %309 = vmatmul.f32.gmra.mxu0 %v267
        %v310 = vpop.f32.mrf.mxu0
        %v311 = vadd.f32 %v243, %v310
        %312 = vmatmul.f32.gmra.mxu0 %v270
        %v313 = vpop.f32.mrf.mxu0
        %v314 = vadd.f32 %v246, %v313
        %315 = vmatmul.f32.gmra.mxu0 %v273
        %v316 = vpop.f32.mrf.mxu0
        %v317 = vadd.f32 %v249, %v316
        %318 = vmatmul.f32.gmra.mxu0 %v276
        %v319 = vpop.f32.mrf.mxu0
        %v320 = vadd.f32 %v252, %v319
        %321 = vmatmul.f32.gmra.mxu0 %v279
        %v322 = vpop.f32.mrf.mxu0
        %v323 = vadd.f32 %v255, %v322
        %324 = vmatmul.f32.gmra.mxu0 %v282
        %v325 = vpop.f32.mrf.mxu0
        %v326 = vadd.f32 %v258, %v325
        %327 = vdwg.mxu0
        %v328 = vld [vmem:[%s168 + $0x2] sm:$0xff]
        %v329 = vld [vmem:[%s168 + $0x12] sm:$0xff]
        %v330 = vld [vmem:[%s168 + $0x22] sm:$0xff]
        %v331 = vld [vmem:[%s168 + $0x32] sm:$0xff]
        %v332 = vld [vmem:[%s168 + $0x42] sm:$0xff]
        %v333 = vld [vmem:[%s168 + $0x52] sm:$0xff]
        %v334 = vld [vmem:[%s168 + $0x62] sm:$0xff]
        %v335 = vld [vmem:[%s168 + $0x72] sm:$0xff]
        %s336 = scalar_lea.vmem %s1, 32
        %v337 = vld [vmem:[%s336] sm:$0xff]
        %v338 = vld [vmem:[%s336 + $0x8] sm:$0xf]
        %v340 = vsel %vm190, %v328, 0
        %v343 = vsel %vm190, %v329, 0
        %v346 = vsel %vm190, %v330, 0
        %v349 = vsel %vm190, %v331, 0
        %v352 = vsel %vm190, %v332, 0
        %v355 = vsel %vm190, %v333, 0
        %v358 = vsel %vm190, %v334, 0
        %v361 = vsel %vm190, %v335, 0
        %v364 = vsel %vm215, %v338, 0
        %366 = vmatpush.msra.mxu0 0.0
        %367 = vmatpush.msra.mxu0 0.0
        %368 = vmatpush.msra.mxu0 0.0
        %369 = vmatpush.msra.mxu0 0.0
        %370 = vmatpush.msra.mxu0 0.0
        %371 = vmatpush.msra.mxu0 0.0
        %372 = vmatpush.msra.mxu0 0.0
        %373 = vmatpush.msra.mxu0 0.0
        %374 = vmatpush.msra.mxu0 0.0
        %375 = vmatpush.msra.mxu0 0.0
        %376 = vmatpush.msra.mxu0 0.0
        %377 = vmatpush.msra.mxu0 0.0
        %378 = vmatpush.msra.mxu0 0.0
        %379 = vmatpush.msra.mxu0 0.0
        %380 = vmatpush.msra.mxu0 %v364
        %381 = vmatpush.msra.mxu0 %v337
        %382 = vmatmul.f32.gmra.mxu0 %v340
        %v383 = vpop.f32.mrf.mxu0
        %v384 = vadd.f32 0.0, %v383
        %385 = vmatmul.f32.gmra.mxu0 %v343
        %v386 = vpop.f32.mrf.mxu0
        %v387 = vadd.f32 0.0, %v386
        %388 = vmatmul.f32.gmra.mxu0 %v346
        %v389 = vpop.f32.mrf.mxu0
        %v390 = vadd.f32 0.0, %v389
        %391 = vmatmul.f32.gmra.mxu0 %v349
        %v392 = vpop.f32.mrf.mxu0
        %v393 = vadd.f32 0.0, %v392
        %394 = vmatmul.f32.gmra.mxu0 %v352
        %v395 = vpop.f32.mrf.mxu0
        %v396 = vadd.f32 0.0, %v395
        %397 = vmatmul.f32.gmra.mxu0 %v355
        %v398 = vpop.f32.mrf.mxu0
        %v399 = vadd.f32 0.0, %v398
        %400 = vmatmul.f32.gmra.mxu0 %v358
        %v401 = vpop.f32.mrf.mxu0
        %v402 = vadd.f32 0.0, %v401
        %403 = vmatmul.f32.gmra.mxu0 %v361
        %v404 = vpop.f32.mrf.mxu0
        %v405 = vadd.f32 0.0, %v404
        %406 = vdwg.mxu0
        %v407 = vadd.f32 %v305, %v384
        %v408 = vadd.f32 %v308, %v387
        %v409 = vadd.f32 %v311, %v390
        %v410 = vadd.f32 %v314, %v393
        %v411 = vadd.f32 %v317, %v396
        %v412 = vadd.f32 %v320, %v399
        %v413 = vadd.f32 %v323, %v402
        %v414 = vadd.f32 %v326, %v405
        %s415 = scalar_lea.vmem %s168, 16
        %v416 = vld [vmem:[%s415] sm:$0xff]
        %v417 = vld [vmem:[%s415 + $0x10] sm:$0xff]
        %v418 = vld [vmem:[%s415 + $0x20] sm:$0xff]
        %v419 = vld [vmem:[%s415 + $0x30] sm:$0xff]
        %v420 = vld [vmem:[%s415 + $0x40] sm:$0xff]
        %v421 = vld [vmem:[%s415 + $0x50] sm:$0xff]
        %v422 = vld [vmem:[%s415 + $0x60] sm:$0xff]
        %v423 = vld [vmem:[%s415 + $0x70] sm:$0xff]
        %s424 = scalar_lea.vmem %s1, 48
        %v425 = vld [vmem:[%s424] sm:$0xff]
        %v426 = vld [vmem:[%s424 + $0x8] sm:$0xf]
        %v428 = vsel %vm190, %v416, 0
        %v431 = vsel %vm190, %v417, 0
        %v434 = vsel %vm190, %v418, 0
        %v437 = vsel %vm190, %v419, 0
        %v440 = vsel %vm190, %v420, 0
        %v443 = vsel %vm190, %v421, 0
        %v446 = vsel %vm190, %v422, 0
        %v449 = vsel %vm190, %v423, 0
        %v452 = vsel %vm215, %v426, 0
        %454 = vmatpush.msra.mxu0 0.0
        %455 = vmatpush.msra.mxu0 0.0
        %456 = vmatpush.msra.mxu0 0.0
        %457 = vmatpush.msra.mxu0 0.0
        %458 = vmatpush.msra.mxu0 0.0
        %459 = vmatpush.msra.mxu0 0.0
        %460 = vmatpush.msra.mxu0 0.0
        %461 = vmatpush.msra.mxu0 0.0
        %462 = vmatpush.msra.mxu0 0.0
        %463 = vmatpush.msra.mxu0 0.0
        %464 = vmatpush.msra.mxu0 0.0
        %465 = vmatpush.msra.mxu0 0.0
        %466 = vmatpush.msra.mxu0 0.0
        %467 = vmatpush.msra.mxu0 0.0
        %468 = vmatpush.msra.mxu0 %v452
        %469 = vmatpush.msra.mxu0 %v425
        %470 = vmatmul.f32.gmra.mxu0 %v428
        %v471 = vpop.f32.mrf.mxu0
        %v472 = vadd.f32 0.0, %v471
        %473 = vmatmul.f32.gmra.mxu0 %v431
        %v474 = vpop.f32.mrf.mxu0
        %v475 = vadd.f32 0.0, %v474
        %476 = vmatmul.f32.gmra.mxu0 %v434
        %v477 = vpop.f32.mrf.mxu0
        %v478 = vadd.f32 0.0, %v477
        %479 = vmatmul.f32.gmra.mxu0 %v437
        %v480 = vpop.f32.mrf.mxu0
        %v481 = vadd.f32 0.0, %v480
        %482 = vmatmul.f32.gmra.mxu0 %v440
        %v483 = vpop.f32.mrf.mxu0
        %v484 = vadd.f32 0.0, %v483
        %485 = vmatmul.f32.gmra.mxu0 %v443
        %v486 = vpop.f32.mrf.mxu0
        %v487 = vadd.f32 0.0, %v486
        %488 = vmatmul.f32.gmra.mxu0 %v446
        %v489 = vpop.f32.mrf.mxu0
        %v490 = vadd.f32 0.0, %v489
        %491 = vmatmul.f32.gmra.mxu0 %v449
        %v492 = vpop.f32.mrf.mxu0
        %v493 = vadd.f32 0.0, %v492
        %494 = vdwg.mxu0
        %v495 = vadd.f32 %v407, %v472
        %v496 = vadd.f32 %v408, %v475
        %v497 = vadd.f32 %v409, %v478
        %v498 = vadd.f32 %v410, %v481
        %v499 = vadd.f32 %v411, %v484
        %v500 = vadd.f32 %v412, %v487
        %v501 = vadd.f32 %v413, %v490
        %v502 = vadd.f32 %v414, %v493
        %v503 = vld [vmem:[%s415 + $0x1] sm:$0xff]
        %v504 = vld [vmem:[%s415 + $0x11] sm:$0xff]
        %v505 = vld [vmem:[%s415 + $0x21] sm:$0xff]
        %v506 = vld [vmem:[%s415 + $0x31] sm:$0xff]
        %v507 = vld [vmem:[%s415 + $0x41] sm:$0xff]
        %v508 = vld [vmem:[%s415 + $0x51] sm:$0xff]
        %v509 = vld [vmem:[%s415 + $0x61] sm:$0xff]
        %v510 = vld [vmem:[%s415 + $0x71] sm:$0xff]
        %s511 = scalar_lea.vmem %s1, 64
        %v512 = vld [vmem:[%s511] sm:$0xff]
        %v513 = vld [vmem:[%s511 + $0x8] sm:$0xf]
        %v515 = vsel %vm190, %v503, 0
        %v518 = vsel %vm190, %v504, 0
        %v521 = vsel %vm190, %v505, 0
        %v524 = vsel %vm190, %v506, 0
        %v527 = vsel %vm190, %v507, 0
        %v530 = vsel %vm190, %v508, 0
        %v533 = vsel %vm190, %v509, 0
        %v536 = vsel %vm190, %v510, 0
        %v539 = vsel %vm215, %v513, 0
        %541 = vmatpush.msra.mxu0 0.0
        %542 = vmatpush.msra.mxu0 0.0
        %543 = vmatpush.msra.mxu0 0.0
        %544 = vmatpush.msra.mxu0 0.0
        %545 = vmatpush.msra.mxu0 0.0
        %546 = vmatpush.msra.mxu0 0.0
        %547 = vmatpush.msra.mxu0 0.0
        %548 = vmatpush.msra.mxu0 0.0
        %549 = vmatpush.msra.mxu0 0.0
        %550 = vmatpush.msra.mxu0 0.0
        %551 = vmatpush.msra.mxu0 0.0
        %552 = vmatpush.msra.mxu0 0.0
        %553 = vmatpush.msra.mxu0 0.0
        %554 = vmatpush.msra.mxu0 0.0
        %555 = vmatpush.msra.mxu0 %v539
        %556 = vmatpush.msra.mxu0 %v512
        %557 = vmatmul.f32.gmra.mxu0 %v515
        %v558 = vpop.f32.mrf.mxu0
        %v559 = vadd.f32 0.0, %v558
        %560 = vmatmul.f32.gmra.mxu0 %v518
        %v561 = vpop.f32.mrf.mxu0
        %v562 = vadd.f32 0.0, %v561
        %563 = vmatmul.f32.gmra.mxu0 %v521
        %v564 = vpop.f32.mrf.mxu0
        %v565 = vadd.f32 0.0, %v564
        %566 = vmatmul.f32.gmra.mxu0 %v524
        %v567 = vpop.f32.mrf.mxu0
        %v568 = vadd.f32 0.0, %v567
        %569 = vmatmul.f32.gmra.mxu0 %v527
        %v570 = vpop.f32.mrf.mxu0
        %v571 = vadd.f32 0.0, %v570
        %572 = vmatmul.f32.gmra.mxu0 %v530
        %v573 = vpop.f32.mrf.mxu0
        %v574 = vadd.f32 0.0, %v573
        %575 = vmatmul.f32.gmra.mxu0 %v533
        %v576 = vpop.f32.mrf.mxu0
        %v577 = vadd.f32 0.0, %v576
        %578 = vmatmul.f32.gmra.mxu0 %v536
        %v579 = vpop.f32.mrf.mxu0
        %v580 = vadd.f32 0.0, %v579
        %581 = vdwg.mxu0
        %v582 = vadd.f32 %v495, %v559
        %v583 = vadd.f32 %v496, %v562
        %v584 = vadd.f32 %v497, %v565
        %v585 = vadd.f32 %v498, %v568
        %v586 = vadd.f32 %v499, %v571
        %v587 = vadd.f32 %v500, %v574
        %v588 = vadd.f32 %v501, %v577
        %v589 = vadd.f32 %v502, %v580
        %v590 = vld [vmem:[%s415 + $0x2] sm:$0xff]
        %v591 = vld [vmem:[%s415 + $0x12] sm:$0xff]
        %v592 = vld [vmem:[%s415 + $0x22] sm:$0xff]
        %v593 = vld [vmem:[%s415 + $0x32] sm:$0xff]
        %v594 = vld [vmem:[%s415 + $0x42] sm:$0xff]
        %v595 = vld [vmem:[%s415 + $0x52] sm:$0xff]
        %v596 = vld [vmem:[%s415 + $0x62] sm:$0xff]
        %v597 = vld [vmem:[%s415 + $0x72] sm:$0xff]
        %s598 = scalar_lea.vmem %s1, 80
        %v599 = vld [vmem:[%s598] sm:$0xff]
        %v600 = vld [vmem:[%s598 + $0x8] sm:$0xf]
        %v602 = vsel %vm190, %v590, 0
        %v605 = vsel %vm190, %v591, 0
        %v608 = vsel %vm190, %v592, 0
        %v611 = vsel %vm190, %v593, 0
        %v614 = vsel %vm190, %v594, 0
        %v617 = vsel %vm190, %v595, 0
        %v620 = vsel %vm190, %v596, 0
        %v623 = vsel %vm190, %v597, 0
        %v626 = vsel %vm215, %v600, 0
        %628 = vmatpush.msra.mxu0 0.0
        %629 = vmatpush.msra.mxu0 0.0
        %630 = vmatpush.msra.mxu0 0.0
        %631 = vmatpush.msra.mxu0 0.0
        %632 = vmatpush.msra.mxu0 0.0
        %633 = vmatpush.msra.mxu0 0.0
        %634 = vmatpush.msra.mxu0 0.0
        %635 = vmatpush.msra.mxu0 0.0
        %636 = vmatpush.msra.mxu0 0.0
        %637 = vmatpush.msra.mxu0 0.0
        %638 = vmatpush.msra.mxu0 0.0
        %639 = vmatpush.msra.mxu0 0.0
        %640 = vmatpush.msra.mxu0 0.0
        %641 = vmatpush.msra.mxu0 0.0
        %642 = vmatpush.msra.mxu0 %v626
        %643 = vmatpush.msra.mxu0 %v599
        %644 = vmatmul.f32.gmra.mxu0 %v602
        %v645 = vpop.f32.mrf.mxu0
        %v646 = vadd.f32 0.0, %v645
        %647 = vmatmul.f32.gmra.mxu0 %v605
        %v648 = vpop.f32.mrf.mxu0
        %v649 = vadd.f32 0.0, %v648
        %650 = vmatmul.f32.gmra.mxu0 %v608
        %v651 = vpop.f32.mrf.mxu0
        %v652 = vadd.f32 0.0, %v651
        %653 = vmatmul.f32.gmra.mxu0 %v611
        %v654 = vpop.f32.mrf.mxu0
        %v655 = vadd.f32 0.0, %v654
        %656 = vmatmul.f32.gmra.mxu0 %v614
        %v657 = vpop.f32.mrf.mxu0
        %v658 = vadd.f32 0.0, %v657
        %659 = vmatmul.f32.gmra.mxu0 %v617
        %v660 = vpop.f32.mrf.mxu0
        %v661 = vadd.f32 0.0, %v660
        %662 = vmatmul.f32.gmra.mxu0 %v620
        %v663 = vpop.f32.mrf.mxu0
        %v664 = vadd.f32 0.0, %v663
        %665 = vmatmul.f32.gmra.mxu0 %v623
        %v666 = vpop.f32.mrf.mxu0
        %v667 = vadd.f32 0.0, %v666
        %668 = vdwg.mxu0
        %v669 = vadd.f32 %v582, %v646
        %v670 = vadd.f32 %v583, %v649
        %v671 = vadd.f32 %v584, %v652
        %v672 = vadd.f32 %v585, %v655
        %v673 = vadd.f32 %v586, %v658
        %v674 = vadd.f32 %v587, %v661
        %v675 = vadd.f32 %v588, %v664
        %v676 = vadd.f32 %v589, %v667
        %s677 = scalar_lea.vmem %s168, 32
        %v678 = vld [vmem:[%s677] sm:$0xff]
        %v679 = vld [vmem:[%s677 + $0x10] sm:$0xff]
        %v680 = vld [vmem:[%s677 + $0x20] sm:$0xff]
        %v681 = vld [vmem:[%s677 + $0x30] sm:$0xff]
        %v682 = vld [vmem:[%s677 + $0x40] sm:$0xff]
        %v683 = vld [vmem:[%s677 + $0x50] sm:$0xff]
        %v684 = vld [vmem:[%s677 + $0x60] sm:$0xff]
        %v685 = vld [vmem:[%s677 + $0x70] sm:$0xff]
        %s686 = scalar_lea.vmem %s1, 96
        %v687 = vld [vmem:[%s686] sm:$0xff]
        %v688 = vld [vmem:[%s686 + $0x8] sm:$0xf]
        %v690 = vsel %vm190, %v678, 0
        %v693 = vsel %vm190, %v679, 0
        %v696 = vsel %vm190, %v680, 0
        %v699 = vsel %vm190, %v681, 0
        %v702 = vsel %vm190, %v682, 0
        %v705 = vsel %vm190, %v683, 0
        %v708 = vsel %vm190, %v684, 0
        %v711 = vsel %vm190, %v685, 0
        %v714 = vsel %vm215, %v688, 0
        %716 = vmatpush.msra.mxu0 0.0
        %717 = vmatpush.msra.mxu0 0.0
        %718 = vmatpush.msra.mxu0 0.0
        %719 = vmatpush.msra.mxu0 0.0
        %720 = vmatpush.msra.mxu0 0.0
        %721 = vmatpush.msra.mxu0 0.0
        %722 = vmatpush.msra.mxu0 0.0
        %723 = vmatpush.msra.mxu0 0.0
        %724 = vmatpush.msra.mxu0 0.0
        %725 = vmatpush.msra.mxu0 0.0
        %726 = vmatpush.msra.mxu0 0.0
        %727 = vmatpush.msra.mxu0 0.0
        %728 = vmatpush.msra.mxu0 0.0
        %729 = vmatpush.msra.mxu0 0.0
        %730 = vmatpush.msra.mxu0 %v714
        %731 = vmatpush.msra.mxu0 %v687
        %732 = vmatmul.f32.gmra.mxu0 %v690
        %v733 = vpop.f32.mrf.mxu0
        %v734 = vadd.f32 0.0, %v733
        %735 = vmatmul.f32.gmra.mxu0 %v693
        %v736 = vpop.f32.mrf.mxu0
        %v737 = vadd.f32 0.0, %v736
        %738 = vmatmul.f32.gmra.mxu0 %v696
        %v739 = vpop.f32.mrf.mxu0
        %v740 = vadd.f32 0.0, %v739
        %741 = vmatmul.f32.gmra.mxu0 %v699
        %v742 = vpop.f32.mrf.mxu0
        %v743 = vadd.f32 0.0, %v742
        %744 = vmatmul.f32.gmra.mxu0 %v702
        %v745 = vpop.f32.mrf.mxu0
        %v746 = vadd.f32 0.0, %v745
        %747 = vmatmul.f32.gmra.mxu0 %v705
        %v748 = vpop.f32.mrf.mxu0
        %v749 = vadd.f32 0.0, %v748
        %750 = vmatmul.f32.gmra.mxu0 %v708
        %v751 = vpop.f32.mrf.mxu0
        %v752 = vadd.f32 0.0, %v751
        %753 = vmatmul.f32.gmra.mxu0 %v711
        %v754 = vpop.f32.mrf.mxu0
        %v755 = vadd.f32 0.0, %v754
        %756 = vdwg.mxu0
        %v757 = vadd.f32 %v669, %v734
        %v758 = vadd.f32 %v670, %v737
        %v759 = vadd.f32 %v671, %v740
        %v760 = vadd.f32 %v672, %v743
        %v761 = vadd.f32 %v673, %v746
        %v762 = vadd.f32 %v674, %v749
        %v763 = vadd.f32 %v675, %v752
        %v764 = vadd.f32 %v676, %v755
        %v765 = vld [vmem:[%s677 + $0x1] sm:$0xff]
        %v766 = vld [vmem:[%s677 + $0x11] sm:$0xff]
        %v767 = vld [vmem:[%s677 + $0x21] sm:$0xff]
        %v768 = vld [vmem:[%s677 + $0x31] sm:$0xff]
        %v769 = vld [vmem:[%s677 + $0x41] sm:$0xff]
        %v770 = vld [vmem:[%s677 + $0x51] sm:$0xff]
        %v771 = vld [vmem:[%s677 + $0x61] sm:$0xff]
        %v772 = vld [vmem:[%s677 + $0x71] sm:$0xff]
        %s773 = scalar_lea.vmem %s1, 112
        %v774 = vld [vmem:[%s773] sm:$0xff]
        %v775 = vld [vmem:[%s773 + $0x8] sm:$0xf]
        %v777 = vsel %vm190, %v765, 0
        %v780 = vsel %vm190, %v766, 0
        %v783 = vsel %vm190, %v767, 0
        %v786 = vsel %vm190, %v768, 0
        %v789 = vsel %vm190, %v769, 0
        %v792 = vsel %vm190, %v770, 0
        %v795 = vsel %vm190, %v771, 0
        %v798 = vsel %vm190, %v772, 0
        %v801 = vsel %vm215, %v775, 0
        %803 = vmatpush.msra.mxu0 0.0
        %804 = vmatpush.msra.mxu0 0.0
        %805 = vmatpush.msra.mxu0 0.0
        %806 = vmatpush.msra.mxu0 0.0
        %807 = vmatpush.msra.mxu0 0.0
        %808 = vmatpush.msra.mxu0 0.0
        %809 = vmatpush.msra.mxu0 0.0
        %810 = vmatpush.msra.mxu0 0.0
        %811 = vmatpush.msra.mxu0 0.0
        %812 = vmatpush.msra.mxu0 0.0
        %813 = vmatpush.msra.mxu0 0.0
        %814 = vmatpush.msra.mxu0 0.0
        %815 = vmatpush.msra.mxu0 0.0
        %816 = vmatpush.msra.mxu0 0.0
        %817 = vmatpush.msra.mxu0 %v801
        %818 = vmatpush.msra.mxu0 %v774
        %819 = vmatmul.f32.gmra.mxu0 %v777
        %v820 = vpop.f32.mrf.mxu0
        %v821 = vadd.f32 0.0, %v820
        %822 = vmatmul.f32.gmra.mxu0 %v780
        %v823 = vpop.f32.mrf.mxu0
        %v824 = vadd.f32 0.0, %v823
        %825 = vmatmul.f32.gmra.mxu0 %v783
        %v826 = vpop.f32.mrf.mxu0
        %v827 = vadd.f32 0.0, %v826
        %828 = vmatmul.f32.gmra.mxu0 %v786
        %v829 = vpop.f32.mrf.mxu0
        %v830 = vadd.f32 0.0, %v829
        %831 = vmatmul.f32.gmra.mxu0 %v789
        %v832 = vpop.f32.mrf.mxu0
        %v833 = vadd.f32 0.0, %v832
        %834 = vmatmul.f32.gmra.mxu0 %v792
        %v835 = vpop.f32.mrf.mxu0
        %v836 = vadd.f32 0.0, %v835
        %837 = vmatmul.f32.gmra.mxu0 %v795
        %v838 = vpop.f32.mrf.mxu0
        %v839 = vadd.f32 0.0, %v838
        %840 = vmatmul.f32.gmra.mxu0 %v798
        %v841 = vpop.f32.mrf.mxu0
        %v842 = vadd.f32 0.0, %v841
        %843 = vdwg.mxu0
        %v844 = vadd.f32 %v757, %v821
        %v845 = vadd.f32 %v758, %v824
        %v846 = vadd.f32 %v759, %v827
        %v847 = vadd.f32 %v760, %v830
        %v848 = vadd.f32 %v761, %v833
        %v849 = vadd.f32 %v762, %v836
        %v850 = vadd.f32 %v763, %v839
        %v851 = vadd.f32 %v764, %v842
        %v852 = vld [vmem:[%s677 + $0x2] sm:$0xff]
        %v853 = vld [vmem:[%s677 + $0x12] sm:$0xff]
        %v854 = vld [vmem:[%s677 + $0x22] sm:$0xff]
        %v855 = vld [vmem:[%s677 + $0x32] sm:$0xff]
        %v856 = vld [vmem:[%s677 + $0x42] sm:$0xff]
        %v857 = vld [vmem:[%s677 + $0x52] sm:$0xff]
        %v858 = vld [vmem:[%s677 + $0x62] sm:$0xff]
        %v859 = vld [vmem:[%s677 + $0x72] sm:$0xff]
        %s860 = scalar_lea.vmem %s1, 128
        %v861 = vld [vmem:[%s860] sm:$0xff]
        %v862 = vld [vmem:[%s860 + $0x8] sm:$0xf]
        %v864 = vsel %vm190, %v852, 0
        %v867 = vsel %vm190, %v853, 0
        %v870 = vsel %vm190, %v854, 0
        %v873 = vsel %vm190, %v855, 0
        %v876 = vsel %vm190, %v856, 0
        %v879 = vsel %vm190, %v857, 0
        %v882 = vsel %vm190, %v858, 0
        %v885 = vsel %vm190, %v859, 0
        %v888 = vsel %vm215, %v862, 0
        %890 = vmatpush.msra.mxu0 0.0
        %891 = vmatpush.msra.mxu0 0.0
        %892 = vmatpush.msra.mxu0 0.0
        %893 = vmatpush.msra.mxu0 0.0
        %894 = vmatpush.msra.mxu0 0.0
        %895 = vmatpush.msra.mxu0 0.0
        %896 = vmatpush.msra.mxu0 0.0
        %897 = vmatpush.msra.mxu0 0.0
        %898 = vmatpush.msra.mxu0 0.0
        %899 = vmatpush.msra.mxu0 0.0
        %900 = vmatpush.msra.mxu0 0.0
        %901 = vmatpush.msra.mxu0 0.0
        %902 = vmatpush.msra.mxu0 0.0
        %903 = vmatpush.msra.mxu0 0.0
        %904 = vmatpush.msra.mxu0 %v888
        %905 = vmatpush.msra.mxu0 %v861
        %906 = vmatmul.f32.gmra.mxu0 %v864
        %v907 = vpop.f32.mrf.mxu0
        %v908 = vadd.f32 0.0, %v907
        %909 = vmatmul.f32.gmra.mxu0 %v867
        %v910 = vpop.f32.mrf.mxu0
        %v911 = vadd.f32 0.0, %v910
        %912 = vmatmul.f32.gmra.mxu0 %v870
        %v913 = vpop.f32.mrf.mxu0
        %v914 = vadd.f32 0.0, %v913
        %915 = vmatmul.f32.gmra.mxu0 %v873
        %v916 = vpop.f32.mrf.mxu0
        %v917 = vadd.f32 0.0, %v916
        %918 = vmatmul.f32.gmra.mxu0 %v876
        %v919 = vpop.f32.mrf.mxu0
        %v920 = vadd.f32 0.0, %v919
        %921 = vmatmul.f32.gmra.mxu0 %v879
        %v922 = vpop.f32.mrf.mxu0
        %v923 = vadd.f32 0.0, %v922
        %924 = vmatmul.f32.gmra.mxu0 %v882
        %v925 = vpop.f32.mrf.mxu0
        %v926 = vadd.f32 0.0, %v925
        %927 = vmatmul.f32.gmra.mxu0 %v885
        %v928 = vpop.f32.mrf.mxu0
        %v929 = vadd.f32 0.0, %v928
        %930 = vdwg.mxu0
        %v931 = vadd.f32 %v844, %v908
        %v932 = vadd.f32 %v845, %v911
        %v933 = vadd.f32 %v846, %v914
        %v934 = vadd.f32 %v847, %v917
        %v935 = vadd.f32 %v848, %v920
        %v936 = vadd.f32 %v849, %v923
        %v937 = vadd.f32 %v850, %v926
        %v938 = vadd.f32 %v851, %v929
        %v939 = vld [vmem:[%s2] sm:$0x1]
        %v941 = vperm.slane %v939, 0
        %v943 = vadd.f32 %v931, %v941
        %v944 = vadd.f32 %v932, %v941
        %v945 = vadd.f32 %v933, %v941
        %v946 = vadd.f32 %v934, %v941
        %v947 = vadd.f32 %v935, %v941
        %v948 = vadd.f32 %v936, %v941
        %v949 = vadd.f32 %v937, %v941
        %v950 = vadd.f32 %v938, %v941
        %951 = vst.msk [vmem:[%s163] sm:$0xff] %vm190, %v943
        %952 = vst.msk [vmem:[%s163 + $0x8] sm:$0xff] %vm190, %v944
        %953 = vst.msk [vmem:[%s163 + $0x10] sm:$0xff] %vm190, %v945
        %954 = vst.msk [vmem:[%s163 + $0x18] sm:$0xff] %vm190, %v946
        %955 = vst.msk [vmem:[%s163 + $0x20] sm:$0xff] %vm190, %v947
        %956 = vst.msk [vmem:[%s163 + $0x28] sm:$0xff] %vm190, %v948
        %957 = vst.msk [vmem:[%s163 + $0x30] sm:$0xff] %vm190, %v949
        %958 = vst.msk [vmem:[%s163 + $0x38] sm:$0xff] %vm190, %v950
        %s959 = sand.u32 %s93, 1
        %s960 = scalar_lea.sflag [#allocation3], %s959
        %s961 = sand.u32 %s93, 1
        %s962 = smul.addr %s961, 64
        %s963 = scalar_lea.vmem [#allocation2], %s962
        // Predicated region
        $region33: #{_lambda_.7} parent=31 // pred_check
          %p964 = pneg %p103
        $region34: #{_lambda_.7} parent=31 // pred_check_branch
          %966 = sbr.rel (%p964) target = $region36
        $region35: #{_lambda_.7} parent=31 // pred_region
          %968 = vsyncadd %s960, 0
          %s969 = smul.addr %s17, 8
          %s970 = smul.addr %s969, 8
          %s971 = scalar_lea.hbm %s3, %s970
          %s972 = sshll.u32 %s963, 4
          %s973 = int_to_ptr.vmem [resolvable:$true] %s972
          %s974 = sshll.u32 %s971, 4
          %s975 = int_to_ptr.hbm [resolvable:$true] %s974
          %980 = dma.vmem_to_hbm [thread:$0]  %s973, 1024, %s975, %s960, 128, 128, 8
        $region36: #{_lambda_.7} parent=31 // pred_fallthru
          _
      $region32: #{_lambda_.7} parent=5 // pred_fallthru
        _
      %p981 = scmp.le.s32.totalorder 2, %s12
      // Predicated region
      $region37: #{_lambda_.7} parent=5 // pred_check
        %p982 = pneg %p981
      $region38: #{_lambda_.7} parent=5 // pred_check_branch
        %984 = sbr.rel (%p982) target = $region40
      $region39: #{_lambda_.7} parent=5 // pred_region
        %s985 = ssub.s32 %s12, 2
        // Predicated region
        $region41: #{_lambda_.7} parent=39 // pred_check
          %p986 = pneg %p109
        $region42: #{_lambda_.7} parent=39 // pred_check_branch
          %988 = sbr.rel (%p986) target = $region44
        $region43: #{_lambda_.7} parent=39 // pred_region
          %s989 = sand.u32 %s94, 1
          %s990 = scalar_lea.sflag [#allocation3], %s989
          %s991 = sand.u32 %s94, 1
          %s992 = smul.addr %s991, 64
          %s993 = scalar_lea.vmem [#allocation2], %s992
          %995 = dma.done %s990, 1024
        $region44: #{_lambda_.7} parent=39 // pred_fallthru
          _
      $region40: #{_lambda_.7} parent=5 // pred_fallthru
        _
    $region6: #{_lambda_.7} parent=1 // loop_footer
      %s16 = sadd.s32 1, %s12
    $region7: #{_lambda_.7} parent=1 // loop_footer_branch
      %11 = sbr.rel target = $region3
    $region8: #{_lambda_.7} parent=1 // loop_exit
      _
    %996 = vsyncpa [#allocation3], 1
    %s997 = scalar_lea.sflag [#allocation3], 1
    %998 = vsyncpa %s997, 1

// kernel: _lambda_.6
$region0: #{_lambda_.6}
  #allocation0 [shape = 'u32[]', space=smem, size = 0x4, offset = 0x4, fixed_abs, tag = 'smem constant byte address 0x4 - core index']
  #allocation1 [shape = 'u32[72,128]{1,0:T(1,128)}', space=vmem, size = 0x9000, scoped, tag = 'internal scratch']
  %s0 = inlined_call_operand.vmem [shape: f32[8,16,12], index: 0, kind: input, shape index: {}]
  %s1 = inlined_call_operand.vmem [shape: f32[6,4,16,16], index: 1, kind: input, shape index: {}]
  %s2 = inlined_call_operand.vmem [shape: f32[1,12], index: 2, kind: input, shape index: {}]
  %s3 = inlined_call_operand.vmem [shape: f32[1,12], index: 3, kind: input, shape index: {}]
  %s4 = inlined_call_operand.vmem [shape: f32[12,36], index: 4, kind: input, shape index: {}]
  %s5 = inlined_call_operand.vmem [shape: f32[12,12], index: 5, kind: input, shape index: {}]
  %s6 = inlined_call_operand.vmem [shape: f32[1,12], index: 6, kind: input, shape index: {}]
  %s7 = inlined_call_operand.vmem [shape: f32[1,12], index: 7, kind: input, shape index: {}]
  %s8 = inlined_call_operand.vmem [shape: f32[1,12], index: 8, kind: input, shape index: {}]
  %s9 = inlined_call_operand.vmem [shape: f32[12,24], index: 9, kind: input, shape index: {}]
  %s10 = inlined_call_operand.vmem [shape: f32[1,24], index: 10, kind: input, shape index: {}]
  %s11 = inlined_call_operand.vmem [shape: f32[24,12], index: 11, kind: input, shape index: {}]
  %s12 = inlined_call_operand.vmem [shape: f32[1,12], index: 12, kind: input, shape index: {}]
  %s13 = inlined_call_operand.vmem [shape: f32[8,16,12], index: 13, kind: output, shape index: {}]
  %s14 = sld [smem:[#allocation0]]
  $region85: #{_lambda_.6} parent=0
    _
  %s16 = ssub.s32 1, %s14
  %s17 = scalar_select 0, %s16, %s14
  loop: start=0, step=1, limit=4
  $region2: #{_lambda_.6} parent=0 // loop_pre_header
    _
  $region3: #{_lambda_.6} parent=0 // loop_header
    %s19 = sphi 0, %s23
    %p20 = scmp.ge.s32.totalorder %s19, 4
    %s29 = sphi 0, %s31
    %s32 = sphi 0, %s29
    %s33 = sphi 0, %s32
    %s49 = sphi 0, %s33
    %s53 = sphi 0, %s53
    %s55 = sphi 0, %s53
    %s56 = sphi 0, %s55
    %s70 = sphi 0, %s56
    %s74 = sphi 0, %s74
    %s76 = sphi 0, %s74
    %s77 = sphi 0, %s76
    %s91 = sphi 0, %s77
    %s95 = sphi 0, %s95
    %s97 = sphi 0, %s95
    %s98 = sphi 0, %s97
    %s112 = sphi 0, %s98
    %s116 = sphi 0, %s116
    %s118 = sphi 0, %s116
    %s119 = sphi 0, %s118
    %s133 = sphi 0, %s119
    %s137 = sphi 0, %s137
    %s139 = sphi 0, %s137
    %s140 = sphi 0, %s139
    %s154 = sphi 0, %s140
    %s158 = sphi 0, %s158
    %s160 = sphi 0, %s158
    %s161 = sphi 0, %s160
    %s175 = sphi 0, %s161
    %s179 = sphi 0, %s179
    %s181 = sphi 0, %s179
    %s182 = sphi 0, %s181
    %s196 = sphi 0, %s182
    %s200 = sphi 0, %s200
    %s202 = sphi 0, %s200
    %s203 = sphi 0, %s202
    %s217 = sphi 0, %s203
    %s221 = sphi 0, %s221
    %s223 = sphi 0, %s221
    %s224 = sphi 0, %s223
    %s238 = sphi 0, %s224
    %s242 = sphi 0, %s242
    %s244 = sphi 0, %s242
    %s245 = sphi 0, %s244
    %s259 = sphi 0, %s245
    %s263 = sphi 0, %s263
    %s265 = sphi 0, %s263
    %s266 = sphi 0, %s265
    %s280 = sphi 0, %s266
    %s284 = sphi 0, %s284
    %s286 = sphi 0, %s284
    %s287 = sphi 0, %s286
    %s301 = sphi 0, %s287
    %s307 = sphi 0, %s309
    %s310 = sphi 0, %s307
    %s311 = sphi 0, %s310
    %s327 = sphi 0, %s311
  $region4: #{_lambda_.6} parent=0 // loop_header_branch
    %22 = sbr.rel (%p20) target = $region8
  $region5: #{_lambda_.6} parent=0 // loop_body
    %s24 = ssub.s32 %s19, 1
    %s25 = ssub.s32 %s19, 2
    %s26 = sadd.s32 %s19, 1
    %s27 = ssub.s32 %s19, %s26
    %p28 = scmp.eq.s32.totalorder %s27, 0
    %s30 = sadd.s32 %s29, 1
    %s31 = scalar_select %p28, %s29, %s30
    %p34 = pneg %p28
    %p35 = scmp.eq.s32.totalorder %s19, 1
    %p36 = por %p34, %p35
    %p37 = scmp.ne.s32.totalorder %s29, %s32
    %p38 = scmp.eq.s32.totalorder %s19, 0
    %p39 = por %p37, %p38
    %p40 = scmp.ne.s32.totalorder %s29, %s32
    %p41 = scmp.eq.s32.totalorder %s24, 1
    %p42 = por %p40, %p41
    %p43 = scmp.ne.s32.totalorder %s32, %s33
    %p44 = scmp.eq.s32.totalorder %s24, 0
    %p45 = por %p43, %p44
    %p46 = scmp.ne.s32.totalorder %s32, %s33
    %p47 = scmp.eq.s32.totalorder %s25, 1
    %p48 = por %p46, %p47
    %p50 = scmp.ne.s32.totalorder %s33, %s49
    %p51 = scmp.eq.s32.totalorder %s25, 0
    %p52 = por %p50, %p51
    %s54 = sadd.s32 %s53, 1
    %p57 = scmp.eq.s32.totalorder %s19, 1
    %p58 = scmp.ne.s32.totalorder %s53, %s55
    %p59 = scmp.eq.s32.totalorder %s19, 0
    %p60 = por %p58, %p59
    %p61 = scmp.ne.s32.totalorder %s53, %s55
    %p62 = scmp.eq.s32.totalorder %s24, 1
    %p63 = por %p61, %p62
    %p64 = scmp.ne.s32.totalorder %s55, %s56
    %p65 = scmp.eq.s32.totalorder %s24, 0
    %p66 = por %p64, %p65
    %p67 = scmp.ne.s32.totalorder %s55, %s56
    %p68 = scmp.eq.s32.totalorder %s25, 1
    %p69 = por %p67, %p68
    %p71 = scmp.ne.s32.totalorder %s56, %s70
    %p72 = scmp.eq.s32.totalorder %s25, 0
    %p73 = por %p71, %p72
    %s75 = sadd.s32 %s74, 1
    %p78 = scmp.eq.s32.totalorder %s19, 1
    %p79 = scmp.ne.s32.totalorder %s74, %s76
    %p80 = scmp.eq.s32.totalorder %s19, 0
    %p81 = por %p79, %p80
    %p82 = scmp.ne.s32.totalorder %s74, %s76
    %p83 = scmp.eq.s32.totalorder %s24, 1
    %p84 = por %p82, %p83
    %p85 = scmp.ne.s32.totalorder %s76, %s77
    %p86 = scmp.eq.s32.totalorder %s24, 0
    %p87 = por %p85, %p86
    %p88 = scmp.ne.s32.totalorder %s76, %s77
    %p89 = scmp.eq.s32.totalorder %s25, 1
    %p90 = por %p88, %p89
    %p92 = scmp.ne.s32.totalorder %s77, %s91
    %p93 = scmp.eq.s32.totalorder %s25, 0
    %p94 = por %p92, %p93
    %s96 = sadd.s32 %s95, 1
    %p99 = scmp.eq.s32.totalorder %s19, 1
    %p100 = scmp.ne.s32.totalorder %s95, %s97
    %p101 = scmp.eq.s32.totalorder %s19, 0
    %p102 = por %p100, %p101
    %p103 = scmp.ne.s32.totalorder %s95, %s97
    %p104 = scmp.eq.s32.totalorder %s24, 1
    %p105 = por %p103, %p104
    %p106 = scmp.ne.s32.totalorder %s97, %s98
    %p107 = scmp.eq.s32.totalorder %s24, 0
    %p108 = por %p106, %p107
    %p109 = scmp.ne.s32.totalorder %s97, %s98
    %p110 = scmp.eq.s32.totalorder %s25, 1
    %p111 = por %p109, %p110
    %p113 = scmp.ne.s32.totalorder %s98, %s112
    %p114 = scmp.eq.s32.totalorder %s25, 0
    %p115 = por %p113, %p114
    %s117 = sadd.s32 %s116, 1
    %p120 = scmp.eq.s32.totalorder %s19, 1
    %p121 = scmp.ne.s32.totalorder %s116, %s118
    %p122 = scmp.eq.s32.totalorder %s19, 0
    %p123 = por %p121, %p122
    %p124 = scmp.ne.s32.totalorder %s116, %s118
    %p125 = scmp.eq.s32.totalorder %s24, 1
    %p126 = por %p124, %p125
    %p127 = scmp.ne.s32.totalorder %s118, %s119
    %p128 = scmp.eq.s32.totalorder %s24, 0
    %p129 = por %p127, %p128
    %p130 = scmp.ne.s32.totalorder %s118, %s119
    %p131 = scmp.eq.s32.totalorder %s25, 1
    %p132 = por %p130, %p131
    %p134 = scmp.ne.s32.totalorder %s119, %s133
    %p135 = scmp.eq.s32.totalorder %s25, 0
    %p136 = por %p134, %p135
    %s138 = sadd.s32 %s137, 1
    %p141 = scmp.eq.s32.totalorder %s19, 1
    %p142 = scmp.ne.s32.totalorder %s137, %s139
    %p143 = scmp.eq.s32.totalorder %s19, 0
    %p144 = por %p142, %p143
    %p145 = scmp.ne.s32.totalorder %s137, %s139
    %p146 = scmp.eq.s32.totalorder %s24, 1
    %p147 = por %p145, %p146
    %p148 = scmp.ne.s32.totalorder %s139, %s140
    %p149 = scmp.eq.s32.totalorder %s24, 0
    %p150 = por %p148, %p149
    %p151 = scmp.ne.s32.totalorder %s139, %s140
    %p152 = scmp.eq.s32.totalorder %s25, 1
    %p153 = por %p151, %p152
    %p155 = scmp.ne.s32.totalorder %s140, %s154
    %p156 = scmp.eq.s32.totalorder %s25, 0
    %p157 = por %p155, %p156
    %s159 = sadd.s32 %s158, 1
    %p162 = scmp.eq.s32.totalorder %s19, 1
    %p163 = scmp.ne.s32.totalorder %s158, %s160
    %p164 = scmp.eq.s32.totalorder %s19, 0
    %p165 = por %p163, %p164
    %p166 = scmp.ne.s32.totalorder %s158, %s160
    %p167 = scmp.eq.s32.totalorder %s24, 1
    %p168 = por %p166, %p167
    %p169 = scmp.ne.s32.totalorder %s160, %s161
    %p170 = scmp.eq.s32.totalorder %s24, 0
    %p171 = por %p169, %p170
    %p172 = scmp.ne.s32.totalorder %s160, %s161
    %p173 = scmp.eq.s32.totalorder %s25, 1
    %p174 = por %p172, %p173
    %p176 = scmp.ne.s32.totalorder %s161, %s175
    %p177 = scmp.eq.s32.totalorder %s25, 0
    %p178 = por %p176, %p177
    %s180 = sadd.s32 %s179, 1
    %p183 = scmp.eq.s32.totalorder %s19, 1
    %p184 = scmp.ne.s32.totalorder %s179, %s181
    %p185 = scmp.eq.s32.totalorder %s19, 0
    %p186 = por %p184, %p185
    %p187 = scmp.ne.s32.totalorder %s179, %s181
    %p188 = scmp.eq.s32.totalorder %s24, 1
    %p189 = por %p187, %p188
    %p190 = scmp.ne.s32.totalorder %s181, %s182
    %p191 = scmp.eq.s32.totalorder %s24, 0
    %p192 = por %p190, %p191
    %p193 = scmp.ne.s32.totalorder %s181, %s182
    %p194 = scmp.eq.s32.totalorder %s25, 1
    %p195 = por %p193, %p194
    %p197 = scmp.ne.s32.totalorder %s182, %s196
    %p198 = scmp.eq.s32.totalorder %s25, 0
    %p199 = por %p197, %p198
    %s201 = sadd.s32 %s200, 1
    %p204 = scmp.eq.s32.totalorder %s19, 1
    %p205 = scmp.ne.s32.totalorder %s200, %s202
    %p206 = scmp.eq.s32.totalorder %s19, 0
    %p207 = por %p205, %p206
    %p208 = scmp.ne.s32.totalorder %s200, %s202
    %p209 = scmp.eq.s32.totalorder %s24, 1
    %p210 = por %p208, %p209
    %p211 = scmp.ne.s32.totalorder %s202, %s203
    %p212 = scmp.eq.s32.totalorder %s24, 0
    %p213 = por %p211, %p212
    %p214 = scmp.ne.s32.totalorder %s202, %s203
    %p215 = scmp.eq.s32.totalorder %s25, 1
    %p216 = por %p214, %p215
    %p218 = scmp.ne.s32.totalorder %s203, %s217
    %p219 = scmp.eq.s32.totalorder %s25, 0
    %p220 = por %p218, %p219
    %s222 = sadd.s32 %s221, 1
    %p225 = scmp.eq.s32.totalorder %s19, 1
    %p226 = scmp.ne.s32.totalorder %s221, %s223
    %p227 = scmp.eq.s32.totalorder %s19, 0
    %p228 = por %p226, %p227
    %p229 = scmp.ne.s32.totalorder %s221, %s223
    %p230 = scmp.eq.s32.totalorder %s24, 1
    %p231 = por %p229, %p230
    %p232 = scmp.ne.s32.totalorder %s223, %s224
    %p233 = scmp.eq.s32.totalorder %s24, 0
    %p234 = por %p232, %p233
    %p235 = scmp.ne.s32.totalorder %s223, %s224
    %p236 = scmp.eq.s32.totalorder %s25, 1
    %p237 = por %p235, %p236
    %p239 = scmp.ne.s32.totalorder %s224, %s238
    %p240 = scmp.eq.s32.totalorder %s25, 0
    %p241 = por %p239, %p240
    %s243 = sadd.s32 %s242, 1
    %p246 = scmp.eq.s32.totalorder %s19, 1
    %p247 = scmp.ne.s32.totalorder %s242, %s244
    %p248 = scmp.eq.s32.totalorder %s19, 0
    %p249 = por %p247, %p248
    %p250 = scmp.ne.s32.totalorder %s242, %s244
    %p251 = scmp.eq.s32.totalorder %s24, 1
    %p252 = por %p250, %p251
    %p253 = scmp.ne.s32.totalorder %s244, %s245
    %p254 = scmp.eq.s32.totalorder %s24, 0
    %p255 = por %p253, %p254
    %p256 = scmp.ne.s32.totalorder %s244, %s245
    %p257 = scmp.eq.s32.totalorder %s25, 1
    %p258 = por %p256, %p257
    %p260 = scmp.ne.s32.totalorder %s245, %s259
    %p261 = scmp.eq.s32.totalorder %s25, 0
    %p262 = por %p260, %p261
    %s264 = sadd.s32 %s263, 1
    %p267 = scmp.eq.s32.totalorder %s19, 1
    %p268 = scmp.ne.s32.totalorder %s263, %s265
    %p269 = scmp.eq.s32.totalorder %s19, 0
    %p270 = por %p268, %p269
    %p271 = scmp.ne.s32.totalorder %s263, %s265
    %p272 = scmp.eq.s32.totalorder %s24, 1
    %p273 = por %p271, %p272
    %p274 = scmp.ne.s32.totalorder %s265, %s266
    %p275 = scmp.eq.s32.totalorder %s24, 0
    %p276 = por %p274, %p275
    %p277 = scmp.ne.s32.totalorder %s265, %s266
    %p278 = scmp.eq.s32.totalorder %s25, 1
    %p279 = por %p277, %p278
    %p281 = scmp.ne.s32.totalorder %s266, %s280
    %p282 = scmp.eq.s32.totalorder %s25, 0
    %p283 = por %p281, %p282
    %s285 = sadd.s32 %s284, 1
    %p288 = scmp.eq.s32.totalorder %s19, 1
    %p289 = scmp.ne.s32.totalorder %s284, %s286
    %p290 = scmp.eq.s32.totalorder %s19, 0
    %p291 = por %p289, %p290
    %p292 = scmp.ne.s32.totalorder %s284, %s286
    %p293 = scmp.eq.s32.totalorder %s24, 1
    %p294 = por %p292, %p293
    %p295 = scmp.ne.s32.totalorder %s286, %s287
    %p296 = scmp.eq.s32.totalorder %s24, 0
    %p297 = por %p295, %p296
    %p298 = scmp.ne.s32.totalorder %s286, %s287
    %p299 = scmp.eq.s32.totalorder %s25, 1
    %p300 = por %p298, %p299
    %p302 = scmp.ne.s32.totalorder %s287, %s301
    %p303 = scmp.eq.s32.totalorder %s25, 0
    %p304 = por %p302, %p303
    %s305 = ssub.s32 %s19, %s26
    %p306 = scmp.eq.s32.totalorder %s305, 0
    %s308 = sadd.s32 %s307, 1
    %s309 = scalar_select %p306, %s307, %s308
    %p312 = pneg %p306
    %p313 = scmp.eq.s32.totalorder %s19, 1
    %p314 = por %p312, %p313
    %p315 = scmp.ne.s32.totalorder %s307, %s310
    %p316 = scmp.eq.s32.totalorder %s19, 0
    %p317 = por %p315, %p316
    %p318 = scmp.ne.s32.totalorder %s307, %s310
    %p319 = scmp.eq.s32.totalorder %s24, 1
    %p320 = por %p318, %p319
    %p321 = scmp.ne.s32.totalorder %s310, %s311
    %p322 = scmp.eq.s32.totalorder %s24, 0
    %p323 = por %p321, %p322
    %p324 = scmp.ne.s32.totalorder %s310, %s311
    %p325 = scmp.eq.s32.totalorder %s25, 1
    %p326 = por %p324, %p325
    %p328 = scmp.ne.s32.totalorder %s311, %s327
    %p329 = scmp.eq.s32.totalorder %s25, 0
    %p330 = por %p328, %p329
    %p331 = scmp.le.s32.totalorder 1, %s19
    %p332 = scmp.lt.s32.totalorder %s19, 3
    %p333 = pnand %p331, %p332
    %p334 = pneg %p333
    // Predicated region
    $region9: #{_lambda_.6} parent=5 // pred_check
      _
    $region10: #{_lambda_.6} parent=5 // pred_check_branch
      %336 = sbr.rel (%p333) target = $region12
    $region11: #{_lambda_.6} parent=5 // pred_region
      %s337 = ssub.s32 %s19, 1
      // Predicated region
      $region13: #{_lambda_.6} parent=11 // pred_check
        %p338 = pneg %p66
      $region14: #{_lambda_.6} parent=11 // pred_check_branch
        %340 = sbr.rel (%p338) target = $region16
      $region15: #{_lambda_.6} parent=11 // pred_region
        _
      $region16: #{_lambda_.6} parent=11 // pred_fallthru
        _
      // Predicated region
      $region17: #{_lambda_.6} parent=11 // pred_check
        %p341 = pneg %p87
      $region18: #{_lambda_.6} parent=11 // pred_check_branch
        %343 = sbr.rel (%p341) target = $region20
      $region19: #{_lambda_.6} parent=11 // pred_region
        _
      $region20: #{_lambda_.6} parent=11 // pred_fallthru
        _
      // Predicated region
      $region21: #{_lambda_.6} parent=11 // pred_check
        %p344 = pneg %p108
      $region22: #{_lambda_.6} parent=11 // pred_check_branch
        %346 = sbr.rel (%p344) target = $region24
      $region23: #{_lambda_.6} parent=11 // pred_region
        _
      $region24: #{_lambda_.6} parent=11 // pred_fallthru
        _
      // Predicated region
      $region25: #{_lambda_.6} parent=11 // pred_check
        %p347 = pneg %p129
      $region26: #{_lambda_.6} parent=11 // pred_check_branch
        %349 = sbr.rel (%p347) target = $region28
      $region27: #{_lambda_.6} parent=11 // pred_region
        _
      $region28: #{_lambda_.6} parent=11 // pred_fallthru
        _
      // Predicated region
      $region29: #{_lambda_.6} parent=11 // pred_check
        %p350 = pneg %p150
      $region30: #{_lambda_.6} parent=11 // pred_check_branch
        %352 = sbr.rel (%p350) target = $region32
      $region31: #{_lambda_.6} parent=11 // pred_region
        _
      $region32: #{_lambda_.6} parent=11 // pred_fallthru
        _
      // Predicated region
      $region33: #{_lambda_.6} parent=11 // pred_check
        %p353 = pneg %p171
      $region34: #{_lambda_.6} parent=11 // pred_check_branch
        %355 = sbr.rel (%p353) target = $region36
      $region35: #{_lambda_.6} parent=11 // pred_region
        _
      $region36: #{_lambda_.6} parent=11 // pred_fallthru
        _
      // Predicated region
      $region37: #{_lambda_.6} parent=11 // pred_check
        %p356 = pneg %p192
      $region38: #{_lambda_.6} parent=11 // pred_check_branch
        %358 = sbr.rel (%p356) target = $region40
      $region39: #{_lambda_.6} parent=11 // pred_region
        _
      $region40: #{_lambda_.6} parent=11 // pred_fallthru
        _
      // Predicated region
      $region41: #{_lambda_.6} parent=11 // pred_check
        %p359 = pneg %p213
      $region42: #{_lambda_.6} parent=11 // pred_check_branch
        %361 = sbr.rel (%p359) target = $region44
      $region43: #{_lambda_.6} parent=11 // pred_region
        _
      $region44: #{_lambda_.6} parent=11 // pred_fallthru
        _
      // Predicated region
      $region45: #{_lambda_.6} parent=11 // pred_check
        %p362 = pneg %p234
      $region46: #{_lambda_.6} parent=11 // pred_check_branch
        %364 = sbr.rel (%p362) target = $region48
      $region47: #{_lambda_.6} parent=11 // pred_region
        _
      $region48: #{_lambda_.6} parent=11 // pred_fallthru
        _
      // Predicated region
      $region49: #{_lambda_.6} parent=11 // pred_check
        %p365 = pneg %p255
      $region50: #{_lambda_.6} parent=11 // pred_check_branch
        %367 = sbr.rel (%p365) target = $region52
      $region51: #{_lambda_.6} parent=11 // pred_region
        _
      $region52: #{_lambda_.6} parent=11 // pred_fallthru
        _
      // Predicated region
      $region53: #{_lambda_.6} parent=11 // pred_check
        %p368 = pneg %p276
      $region54: #{_lambda_.6} parent=11 // pred_check_branch
        %370 = sbr.rel (%p368) target = $region56
      $region55: #{_lambda_.6} parent=11 // pred_region
        _
      $region56: #{_lambda_.6} parent=11 // pred_fallthru
        _
      // Predicated region
      $region57: #{_lambda_.6} parent=11 // pred_check
        %p371 = pneg %p297
      $region58: #{_lambda_.6} parent=11 // pred_check_branch
        %373 = sbr.rel (%p371) target = $region60
      $region59: #{_lambda_.6} parent=11 // pred_region
        _
      $region60: #{_lambda_.6} parent=11 // pred_fallthru
        _
    $region12: #{_lambda_.6} parent=5 // pred_fallthru
      _
    %p374 = scmp.lt.s32.totalorder %s19, 2
    // Predicated region
    $region61: #{_lambda_.6} parent=5 // pred_check
      %p375 = pneg %p374
    $region62: #{_lambda_.6} parent=5 // pred_check_branch
      %377 = sbr.rel (%p375) target = $region64
    $region63: #{_lambda_.6} parent=5 // pred_region
      // Predicated region
      $region65: #{_lambda_.6} parent=63 // pred_check
        %p378 = pneg %p39
      $region66: #{_lambda_.6} parent=63 // pred_check_branch
        %380 = sbr.rel (%p378) target = $region68
      $region67: #{_lambda_.6} parent=63 // pred_region
        %s381 = smul.u32 4, %s19
        %p382 = scmp.lt.s32.totalorder %s381, 7
        %s383 = scalar_select %p382, %s381, 7
        %s384 = smul.addr %s383, 2
        %s385 = smul.addr %s384, 8
        %s386 = scalar_lea.vmem %s0, %s385
        %s387 = smul.u32 4, %s19
      $region68: #{_lambda_.6} parent=63 // pred_fallthru
        _
    $region64: #{_lambda_.6} parent=5 // pred_fallthru
      _
    %p388 = scmp.le.s32.totalorder 1, %s19
    %p389 = scmp.lt.s32.totalorder %s19, 3
    %p390 = pnand %p388, %p389
    %p391 = pneg %p390
    // Predicated region
    $region69: #{_lambda_.6} parent=5 // pred_check
      _
    $region70: #{_lambda_.6} parent=5 // pred_check_branch
      %393 = sbr.rel (%p390) target = $region72
    $region71: #{_lambda_.6} parent=5 // pred_region
      %s394 = ssub.s32 %s19, 1
      %s395 = smul.u32 4, %s24
      %p396 = scmp.lt.s32.totalorder %s395, 7
      %s397 = scalar_select %p396, %s395, 7
      %s398 = smul.addr %s397, 2
      %s399 = smul.addr %s398, 8
      %s400 = scalar_lea.vmem %s0, %s399
      %p401 = pneg %p45
      %p402 = pneg %p42
      %p403 = pneg %p66
      %p404 = pneg %p63
      %p405 = pneg %p87
      %p406 = pneg %p84
      %p407 = pneg %p108
      %p408 = pneg %p105
      %p409 = pneg %p129
      %p410 = pneg %p126
      %p411 = pneg %p150
      %p412 = pneg %p147
      %p413 = pneg %p171
      %p414 = pneg %p168
      %p415 = pneg %p192
      %p416 = pneg %p189
      %p417 = pneg %p213
      %p418 = pneg %p210
      %p419 = pneg %p234
      %p420 = pneg %p231
      %p421 = pneg %p255
      %p422 = pneg %p252
      %p423 = pneg %p276
      %p424 = pneg %p273
      %p425 = pneg %p297
      %p426 = pneg %p294
      %p427 = pneg %p323
      %p428 = pneg %p320
      %s429 = smul.u32 4, %s24
      %p430 = scmp.lt.s32.totalorder %s429, 7
      %s431 = scalar_select %p430, %s429, 7
      %s432 = smul.addr %s431, 2
      %s433 = smul.addr %s432, 8
      %s434 = scalar_lea.vmem %s13, %s433
      %s435 = smul.u32 4, %s24
      %p436 = scmp.lt.s32.totalorder %s435, 7
      %s437 = scalar_select %p436, %s435, 7
      %s438 = smul.addr %s437, 2
      %s439 = smul.addr %s438, 8
      %s440 = scalar_lea.vmem %s0, %s439
      %s441 = smul.u32 4, %s24
      %s442 = smul.u32 4, %s24
      %p443 = scmp.lt.s32.totalorder %s442, 7
      %s444 = scalar_select %p443, %s442, 7
      %s445 = smul.addr %s444, 2
      %s446 = smul.addr %s445, 8
      %s447 = scalar_lea.vmem %s13, %s446
      %s448 = smul.u32 4, %s24
      %v449 = vld [vmem:[%s440] sm:$0xff]
      %v450 = vld [vmem:[%s440 + $0x8] sm:$0xff]
      %v451 = vld [vmem:[%s440 + $0x10] sm:$0xff]
      %v452 = vld [vmem:[%s440 + $0x18] sm:$0xff]
      %v453 = vld [vmem:[%s440 + $0x20] sm:$0xff]
      %v454 = vld [vmem:[%s440 + $0x28] sm:$0xff]
      %v455 = vld [vmem:[%s440 + $0x30] sm:$0xff]
      %v456 = vld [vmem:[%s440 + $0x38] sm:$0xff]
      %v457 = vld [vmem:[%s2] sm:$0x1]
      %v458 = vld [vmem:[%s3] sm:$0x1]
      %vm459 = vcmask 97280
      %v460 = vsel %vm459, %v449, 0.0
      %461 = vadd.xlane.f32.xlu0 %v460
      %v462 = vpop.xlane.xlu0 %461
      %v463 = vsel %vm459, %v450, 0.0
      %464 = vadd.xlane.f32.xlu0 %v463
      %v465 = vpop.xlane.xlu0 %464
      %v466 = vsel %vm459, %v451, 0.0
      %467 = vadd.xlane.f32.xlu0 %v466
      %v468 = vpop.xlane.xlu0 %467
      %v469 = vsel %vm459, %v452, 0.0
      %470 = vadd.xlane.f32.xlu0 %v469
      %v471 = vpop.xlane.xlu0 %470
      %v472 = vsel %vm459, %v453, 0.0
      %473 = vadd.xlane.f32.xlu0 %v472
      %v474 = vpop.xlane.xlu0 %473
      %v475 = vsel %vm459, %v454, 0.0
      %476 = vadd.xlane.f32.xlu0 %v475
      %v477 = vpop.xlane.xlu0 %476
      %v478 = vsel %vm459, %v455, 0.0
      %479 = vadd.xlane.f32.xlu0 %v478
      %v480 = vpop.xlane.xlu0 %479
      %v481 = vsel %vm459, %v456, 0.0
      %482 = vadd.xlane.f32.xlu0 %v481
      %v483 = vpop.xlane.xlu0 %482
      %v484 = vrcp.pop 12.0
      %v485 = vmul.f32 12.0, %v484
      %v486 = vsub.f32 1.0, %v485
      %v487 = vmul.f32 %v484, %v486
      %v488 = vadd.f32 %v484, %v487
      %vm489 = vweird.f32 %v484
      %v490 = vsel %vm489, %v484, %v488
      %v491 = vmul.f32 %v462, %v490
      %v492 = vmul.f32 %v465, %v490
      %v493 = vmul.f32 %v468, %v490
      %v494 = vmul.f32 %v471, %v490
      %v495 = vmul.f32 %v474, %v490
      %v496 = vmul.f32 %v477, %v490
      %v497 = vmul.f32 %v480, %v490
      %v498 = vmul.f32 %v483, %v490
      %v499 = vsub.f32 %v449, %v491
      %v500 = vsub.f32 %v450, %v492
      %v501 = vsub.f32 %v451, %v493
      %v502 = vsub.f32 %v452, %v494
      %v503 = vsub.f32 %v453, %v495
      %v504 = vsub.f32 %v454, %v496
      %v505 = vsub.f32 %v455, %v497
      %v506 = vsub.f32 %v456, %v498
      %v507 = vmul.f32 %v499, %v499
      %v508 = vmul.f32 %v500, %v500
      %v509 = vmul.f32 %v501, %v501
      %v510 = vmul.f32 %v502, %v502
      %v511 = vmul.f32 %v503, %v503
      %v512 = vmul.f32 %v504, %v504
      %v513 = vmul.f32 %v505, %v505
      %v514 = vmul.f32 %v506, %v506
      %v515 = vsel %vm459, %v507, 0.0
      %516 = vadd.xlane.f32.xlu0 %v515
      %v517 = vpop.xlane.xlu0 %516
      %v518 = vsel %vm459, %v508, 0.0
      %519 = vadd.xlane.f32.xlu0 %v518
      %v520 = vpop.xlane.xlu0 %519
      %v521 = vsel %vm459, %v509, 0.0
      %522 = vadd.xlane.f32.xlu0 %v521
      %v523 = vpop.xlane.xlu0 %522
      %v524 = vsel %vm459, %v510, 0.0
      %525 = vadd.xlane.f32.xlu0 %v524
      %v526 = vpop.xlane.xlu0 %525
      %v527 = vsel %vm459, %v511, 0.0
      %528 = vadd.xlane.f32.xlu0 %v527
      %v529 = vpop.xlane.xlu0 %528
      %v530 = vsel %vm459, %v512, 0.0
      %531 = vadd.xlane.f32.xlu0 %v530
      %v532 = vpop.xlane.xlu0 %531
      %v533 = vsel %vm459, %v513, 0.0
      %534 = vadd.xlane.f32.xlu0 %v533
      %v535 = vpop.xlane.xlu0 %534
      %v536 = vsel %vm459, %v514, 0.0
      %537 = vadd.xlane.f32.xlu0 %v536
      %v538 = vpop.xlane.xlu0 %537
      %v539 = vmul.f32 %v517, %v490
      %v540 = vmul.f32 %v520, %v490
      %v541 = vmul.f32 %v523, %v490
      %v542 = vmul.f32 %v526, %v490
      %v543 = vmul.f32 %v529, %v490
      %v544 = vmul.f32 %v532, %v490
      %v545 = vmul.f32 %v535, %v490
      %v546 = vmul.f32 %v538, %v490
      %v547 = vadd.f32 %v539, 1e-05
      %v548 = vadd.f32 %v540, 1e-05
      %v549 = vadd.f32 %v541, 1e-05
      %v550 = vadd.f32 %v542, 1e-05
      %v551 = vadd.f32 %v543, 1e-05
      %v552 = vadd.f32 %v544, 1e-05
      %v553 = vadd.f32 %v545, 1e-05
      %v554 = vadd.f32 %v546, 1e-05
      %v555 = vrsqrt.pop %v547
      %v556 = vmul.f32 %v555, %v547
      %v557 = vmul.f32 %v556, %v555
      %v558 = vmul.f32 0.5, %v557
      %v559 = vsub.f32 1.5, %v558
      %v560 = vmul.f32 %v555, %v559
      %vm561 = vweird.f32 %v547
      %vm562 = vweird.f32 %v555
      %vm563 = vmor %vm561, %vm562
      %v564 = vsel %vm563, %v555, %v560
      %v565 = vrsqrt.pop %v548
      %v566 = vmul.f32 %v565, %v548
      %v567 = vmul.f32 %v566, %v565
      %v568 = vmul.f32 0.5, %v567
      %v569 = vsub.f32 1.5, %v568
      %v570 = vmul.f32 %v565, %v569
      %vm571 = vweird.f32 %v548
      %vm572 = vweird.f32 %v565
      %vm573 = vmor %vm571, %vm572
      %v574 = vsel %vm573, %v565, %v570
      %v575 = vrsqrt.pop %v549
      %v576 = vmul.f32 %v575, %v549
      %v577 = vmul.f32 %v576, %v575
      %v578 = vmul.f32 0.5, %v577
      %v579 = vsub.f32 1.5, %v578
      %v580 = vmul.f32 %v575, %v579
      %vm581 = vweird.f32 %v549
      %vm582 = vweird.f32 %v575
      %vm583 = vmor %vm581, %vm582
      %v584 = vsel %vm583, %v575, %v580
      %v585 = vrsqrt.pop %v550
      %v586 = vmul.f32 %v585, %v550
      %v587 = vmul.f32 %v586, %v585
      %v588 = vmul.f32 0.5, %v587
      %v589 = vsub.f32 1.5, %v588
      %v590 = vmul.f32 %v585, %v589
      %vm591 = vweird.f32 %v550
      %vm592 = vweird.f32 %v585
      %vm593 = vmor %vm591, %vm592
      %v594 = vsel %vm593, %v585, %v590
      %v595 = vrsqrt.pop %v551
      %v596 = vmul.f32 %v595, %v551
      %v597 = vmul.f32 %v596, %v595
      %v598 = vmul.f32 0.5, %v597
      %v599 = vsub.f32 1.5, %v598
      %v600 = vmul.f32 %v595, %v599
      %vm601 = vweird.f32 %v551
      %vm602 = vweird.f32 %v595
      %vm603 = vmor %vm601, %vm602
      %v604 = vsel %vm603, %v595, %v600
      %v605 = vrsqrt.pop %v552
      %v606 = vmul.f32 %v605, %v552
      %v607 = vmul.f32 %v606, %v605
      %v608 = vmul.f32 0.5, %v607
      %v609 = vsub.f32 1.5, %v608
      %v610 = vmul.f32 %v605, %v609
      %vm611 = vweird.f32 %v552
      %vm612 = vweird.f32 %v605
      %vm613 = vmor %vm611, %vm612
      %v614 = vsel %vm613, %v605, %v610
      %v615 = vrsqrt.pop %v553
      %v616 = vmul.f32 %v615, %v553
      %v617 = vmul.f32 %v616, %v615
      %v618 = vmul.f32 0.5, %v617
      %v619 = vsub.f32 1.5, %v618
      %v620 = vmul.f32 %v615, %v619
      %vm621 = vweird.f32 %v553
      %vm622 = vweird.f32 %v615
      %vm623 = vmor %vm621, %vm622
      %v624 = vsel %vm623, %v615, %v620
      %v625 = vrsqrt.pop %v554
      %v626 = vmul.f32 %v625, %v554
      %v627 = vmul.f32 %v626, %v625
      %v628 = vmul.f32 0.5, %v627
      %v629 = vsub.f32 1.5, %v628
      %v630 = vmul.f32 %v625, %v629
      %vm631 = vweird.f32 %v554
      %vm632 = vweird.f32 %v625
      %vm633 = vmor %vm631, %vm632
      %v634 = vsel %vm633, %v625, %v630
      %v635 = vmul.f32 %v499, %v564
      %v636 = vmul.f32 %v500, %v574
      %v637 = vmul.f32 %v501, %v584
      %v638 = vmul.f32 %v502, %v594
      %v639 = vmul.f32 %v503, %v604
      %v640 = vmul.f32 %v504, %v614
      %v641 = vmul.f32 %v505, %v624
      %v642 = vmul.f32 %v506, %v634
      %v644 = vperm.slane %v457, 0
      %v646 = vmul.f32 %v635, %v644
      %v647 = vmul.f32 %v636, %v644
      %v648 = vmul.f32 %v637, %v644
      %v649 = vmul.f32 %v638, %v644
      %v650 = vmul.f32 %v639, %v644
      %v651 = vmul.f32 %v640, %v644
      %v652 = vmul.f32 %v641, %v644
      %v653 = vmul.f32 %v642, %v644
      %v655 = vperm.slane %v458, 0
      %v657 = vadd.f32 %v646, %v655
      %v658 = vadd.f32 %v647, %v655
      %v659 = vadd.f32 %v648, %v655
      %v660 = vadd.f32 %v649, %v655
      %v661 = vadd.f32 %v650, %v655
      %v662 = vadd.f32 %v651, %v655
      %v663 = vadd.f32 %v652, %v655
      %v664 = vadd.f32 %v653, %v655
      %v665 = vld [vmem:[%s4] sm:$0xff]
      %v666 = vld [vmem:[%s4 + $0x8] sm:$0xf]
      %v668 = vsel %vm459, %v657, 0
      %v671 = vsel %vm459, %v658, 0
      %v674 = vsel %vm459, %v659, 0
      %v677 = vsel %vm459, %v660, 0
      %v680 = vsel %vm459, %v661, 0
      %v683 = vsel %vm459, %v662, 0
      %v686 = vsel %vm459, %v663, 0
      %v689 = vsel %vm459, %v664, 0
      %vm691 = vcmask 1043456
      %v693 = vsel %vm691, %v666, 0
      %695 = vmatpush.msra.mxu0 0.0
      %696 = vmatpush.msra.mxu0 0.0
      %697 = vmatpush.msra.mxu0 0.0
      %698 = vmatpush.msra.mxu0 0.0
      %699 = vmatpush.msra.mxu0 0.0
      %700 = vmatpush.msra.mxu0 0.0
      %701 = vmatpush.msra.mxu0 0.0
      %702 = vmatpush.msra.mxu0 0.0
      %703 = vmatpush.msra.mxu0 0.0
      %704 = vmatpush.msra.mxu0 0.0
      %705 = vmatpush.msra.mxu0 0.0
      %706 = vmatpush.msra.mxu0 0.0
      %707 = vmatpush.msra.mxu0 0.0
      %708 = vmatpush.msra.mxu0 0.0
      %709 = vmatpush.msra.mxu0 %v693
      %710 = vmatpush.msra.mxu0 %v665
      %711 = vmatmul.f32.gmra.mxu0 %v668
      %v712 = vpop.f32.mrf.mxu0
      %v713 = vadd.f32 0.0, %v712
      %714 = vmatmul.f32.gmra.mxu0 %v671
      %v715 = vpop.f32.mrf.mxu0
      %v716 = vadd.f32 0.0, %v715
      %717 = vmatmul.f32.gmra.mxu0 %v674
      %v718 = vpop.f32.mrf.mxu0
      %v719 = vadd.f32 0.0, %v718
      %720 = vmatmul.f32.gmra.mxu0 %v677
      %v721 = vpop.f32.mrf.mxu0
      %v722 = vadd.f32 0.0, %v721
      %723 = vmatmul.f32.gmra.mxu0 %v680
      %v724 = vpop.f32.mrf.mxu0
      %v725 = vadd.f32 0.0, %v724
      %726 = vmatmul.f32.gmra.mxu0 %v683
      %v727 = vpop.f32.mrf.mxu0
      %v728 = vadd.f32 0.0, %v727
      %729 = vmatmul.f32.gmra.mxu0 %v686
      %v730 = vpop.f32.mrf.mxu0
      %v731 = vadd.f32 0.0, %v730
      %732 = vmatmul.f32.gmra.mxu0 %v689
      %v733 = vpop.f32.mrf.mxu0
      %v734 = vadd.f32 0.0, %v733
      %735 = vdwg.mxu0
      %v736 = vld [vmem:[%s5] sm:$0xff]
      %v737 = vld [vmem:[%s5 + $0x8] sm:$0xf]
      %v738 = vld [vmem:[%s1] sm:$0xff]
      %v739 = vld [vmem:[%s1 + $0x8] sm:$0xff]
      %v740 = vld [vmem:[%s1 + $0x10] sm:$0xff]
      %v741 = vld [vmem:[%s1 + $0x18] sm:$0xff]
      %v742 = vld [vmem:[%s1 + $0x20] sm:$0xff]
      %v743 = vld [vmem:[%s1 + $0x28] sm:$0xff]
      %v744 = vld [vmem:[%s1 + $0x30] sm:$0xff]
      %v745 = vld [vmem:[%s1 + $0x38] sm:$0xff]
      %v746 = vld [vmem:[%s1 + $0x40] sm:$0xff]
      %v747 = vld [vmem:[%s1 + $0x48] sm:$0xff]
      %v748 = vld [vmem:[%s1 + $0x50] sm:$0xff]
      %v749 = vld [vmem:[%s1 + $0x58] sm:$0xff]
      %v750 = vld [vmem:[%s1 + $0x60] sm:$0xff]
      %v751 = vld [vmem:[%s1 + $0x68] sm:$0xff]
      %v752 = vld [vmem:[%s1 + $0x70] sm:$0xff]
      %v753 = vld [vmem:[%s1 + $0x78] sm:$0xff]
      %v754 = vld [vmem:[%s1 + $0x80] sm:$0xff]
      %v755 = vld [vmem:[%s1 + $0x88] sm:$0xff]
      %v756 = vld [vmem:[%s1 + $0x90] sm:$0xff]
      %v757 = vld [vmem:[%s1 + $0x98] sm:$0xff]
      %v758 = vld [vmem:[%s1 + $0xa0] sm:$0xff]
      %v759 = vld [vmem:[%s1 + $0xa8] sm:$0xff]
      %v760 = vld [vmem:[%s1 + $0xb0] sm:$0xff]
      %v761 = vld [vmem:[%s1 + $0xb8] sm:$0xff]
      %v762 = vld [vmem:[%s1 + $0xc0] sm:$0xff]
      %v763 = vld [vmem:[%s1 + $0xc8] sm:$0xff]
      %v764 = vld [vmem:[%s1 + $0xd0] sm:$0xff]
      %v765 = vld [vmem:[%s1 + $0xd8] sm:$0xff]
      %v766 = vld [vmem:[%s1 + $0xe0] sm:$0xff]
      %v767 = vld [vmem:[%s1 + $0xe8] sm:$0xff]
      %v768 = vld [vmem:[%s1 + $0xf0] sm:$0xff]
      %v769 = vld [vmem:[%s1 + $0xf8] sm:$0xff]
      %v770 = vld [vmem:[%s1 + $0x100] sm:$0xff]
      %v771 = vld [vmem:[%s1 + $0x108] sm:$0xff]
      %v772 = vld [vmem:[%s1 + $0x110] sm:$0xff]
      %v773 = vld [vmem:[%s1 + $0x118] sm:$0xff]
      %v774 = vld [vmem:[%s1 + $0x120] sm:$0xff]
      %v775 = vld [vmem:[%s1 + $0x128] sm:$0xff]
      %v776 = vld [vmem:[%s1 + $0x130] sm:$0xff]
      %v777 = vld [vmem:[%s1 + $0x138] sm:$0xff]
      %v778 = vld [vmem:[%s1 + $0x140] sm:$0xff]
      %v779 = vld [vmem:[%s1 + $0x148] sm:$0xff]
      %v780 = vld [vmem:[%s1 + $0x150] sm:$0xff]
      %v781 = vld [vmem:[%s1 + $0x158] sm:$0xff]
      %v782 = vld [vmem:[%s1 + $0x160] sm:$0xff]
      %v783 = vld [vmem:[%s1 + $0x168] sm:$0xff]
      %v784 = vld [vmem:[%s1 + $0x170] sm:$0xff]
      %v785 = vld [vmem:[%s1 + $0x178] sm:$0xff]
      %788 = vrot.lane.b32.xlu0 %v713, 116
      %v789 = vpop.permute.xlu0 %788
      %790 = vrot.lane.b32.xlu0 %v716, 116
      %v791 = vpop.permute.xlu0 %790
      %vm792 = vcmask 15360
      %v793 = vsel %vm792, %v713, 0
      %v795 = vsel %vm792, %v716, 0
      %v797 = vsel %vm792, %v789, 0
      %v799 = vsel %vm792, %v791, 0
      %801 = vmatpush.xpose.msra.mxu0 0.0
      %802 = vmatpush.xpose.msra.mxu0 0.0
      %803 = vmatpush.xpose.msra.mxu0 0.0
      %804 = vmatpush.xpose.msra.mxu0 0.0
      %805 = vmatpush.xpose.msra.mxu0 0.0
      %806 = vmatpush.xpose.msra.mxu0 0.0
      %807 = vmatpush.xpose.msra.mxu0 0.0
      %808 = vmatpush.xpose.msra.mxu0 0.0
      %809 = vmatpush.xpose.msra.mxu0 0.0
      %810 = vmatpush.xpose.msra.mxu0 0.0
      %811 = vmatpush.xpose.msra.mxu0 0.0
      %812 = vmatpush.xpose.msra.mxu0 0.0
      %813 = vmatpush.xpose.msra.mxu0 0.0
      %814 = vmatpush.xpose.msra.mxu0 0.0
      %815 = vmatpush.xpose.msra.mxu0 %v799
      %816 = vmatpush.xpose.msra.mxu0 %v797
      %817 = vmatmul.f32.gmra.mxu0 %v793
      %v818 = vpop.f32.mrf.mxu0
      %v819 = vadd.f32 0.0, %v818
      %820 = vmatmul.f32.gmra.mxu0 %v795
      %v821 = vpop.f32.mrf.mxu0
      %v822 = vadd.f32 0.0, %v821
      %823 = vdwg.mxu0
      %826 = vrot.lane.b32.xlu0 %v719, 116
      %v827 = vpop.permute.xlu0 %826
      %828 = vrot.lane.b32.xlu0 %v722, 116
      %v829 = vpop.permute.xlu0 %828
      %v830 = vsel %vm792, %v719, 0
      %v832 = vsel %vm792, %v722, 0
      %v834 = vsel %vm792, %v827, 0
      %v836 = vsel %vm792, %v829, 0
      %838 = vmatpush.xpose.msra.mxu0 0.0
      %839 = vmatpush.xpose.msra.mxu0 0.0
      %840 = vmatpush.xpose.msra.mxu0 0.0
      %841 = vmatpush.xpose.msra.mxu0 0.0
      %842 = vmatpush.xpose.msra.mxu0 0.0
      %843 = vmatpush.xpose.msra.mxu0 0.0
      %844 = vmatpush.xpose.msra.mxu0 0.0
      %845 = vmatpush.xpose.msra.mxu0 0.0
      %846 = vmatpush.xpose.msra.mxu0 0.0
      %847 = vmatpush.xpose.msra.mxu0 0.0
      %848 = vmatpush.xpose.msra.mxu0 0.0
      %849 = vmatpush.xpose.msra.mxu0 0.0
      %850 = vmatpush.xpose.msra.mxu0 0.0
      %851 = vmatpush.xpose.msra.mxu0 0.0
      %852 = vmatpush.xpose.msra.mxu0 %v836
      %853 = vmatpush.xpose.msra.mxu0 %v834
      %854 = vmatmul.f32.gmra.mxu0 %v830
      %v855 = vpop.f32.mrf.mxu0
      %v856 = vadd.f32 0.0, %v855
      %857 = vmatmul.f32.gmra.mxu0 %v832
      %v858 = vpop.f32.mrf.mxu0
      %v859 = vadd.f32 0.0, %v858
      %860 = vdwg.mxu0
      %863 = vrot.lane.b32.xlu0 %v725, 116
      %v864 = vpop.permute.xlu0 %863
      %865 = vrot.lane.b32.xlu0 %v728, 116
      %v866 = vpop.permute.xlu0 %865
      %v867 = vsel %vm792, %v725, 0
      %v869 = vsel %vm792, %v728, 0
      %v871 = vsel %vm792, %v864, 0
      %v873 = vsel %vm792, %v866, 0
      %875 = vmatpush.xpose.msra.mxu0 0.0
      %876 = vmatpush.xpose.msra.mxu0 0.0
      %877 = vmatpush.xpose.msra.mxu0 0.0
      %878 = vmatpush.xpose.msra.mxu0 0.0
      %879 = vmatpush.xpose.msra.mxu0 0.0
      %880 = vmatpush.xpose.msra.mxu0 0.0
      %881 = vmatpush.xpose.msra.mxu0 0.0
      %882 = vmatpush.xpose.msra.mxu0 0.0
      %883 = vmatpush.xpose.msra.mxu0 0.0
      %884 = vmatpush.xpose.msra.mxu0 0.0
      %885 = vmatpush.xpose.msra.mxu0 0.0
      %886 = vmatpush.xpose.msra.mxu0 0.0
      %887 = vmatpush.xpose.msra.mxu0 0.0
      %888 = vmatpush.xpose.msra.mxu0 0.0
      %889 = vmatpush.xpose.msra.mxu0 %v873
      %890 = vmatpush.xpose.msra.mxu0 %v871
      %891 = vmatmul.f32.gmra.mxu0 %v867
      %v892 = vpop.f32.mrf.mxu0
      %v893 = vadd.f32 0.0, %v892
      %894 = vmatmul.f32.gmra.mxu0 %v869
      %v895 = vpop.f32.mrf.mxu0
      %v896 = vadd.f32 0.0, %v895
      %897 = vdwg.mxu0
      %900 = vrot.lane.b32.xlu0 %v731, 116
      %v901 = vpop.permute.xlu0 %900
      %902 = vrot.lane.b32.xlu0 %v734, 116
      %v903 = vpop.permute.xlu0 %902
      %v904 = vsel %vm792, %v731, 0
      %v906 = vsel %vm792, %v734, 0
      %v908 = vsel %vm792, %v901, 0
      %v910 = vsel %vm792, %v903, 0
      %912 = vmatpush.xpose.msra.mxu0 0.0
      %913 = vmatpush.xpose.msra.mxu0 0.0
      %914 = vmatpush.xpose.msra.mxu0 0.0
      %915 = vmatpush.xpose.msra.mxu0 0.0
      %916 = vmatpush.xpose.msra.mxu0 0.0
      %917 = vmatpush.xpose.msra.mxu0 0.0
      %918 = vmatpush.xpose.msra.mxu0 0.0
      %919 = vmatpush.xpose.msra.mxu0 0.0
      %920 = vmatpush.xpose.msra.mxu0 0.0
      %921 = vmatpush.xpose.msra.mxu0 0.0
      %922 = vmatpush.xpose.msra.mxu0 0.0
      %923 = vmatpush.xpose.msra.mxu0 0.0
      %924 = vmatpush.xpose.msra.mxu0 0.0
      %925 = vmatpush.xpose.msra.mxu0 0.0
      %926 = vmatpush.xpose.msra.mxu0 %v910
      %927 = vmatpush.xpose.msra.mxu0 %v908
      %928 = vmatmul.f32.gmra.mxu0 %v904
      %v929 = vpop.f32.mrf.mxu0
      %v930 = vadd.f32 0.0, %v929
      %931 = vmatmul.f32.gmra.mxu0 %v906
      %v932 = vpop.f32.mrf.mxu0
      %v933 = vadd.f32 0.0, %v932
      %934 = vdwg.mxu0
      %v935 = vmul.f32 %v819, 0.70710677
      %v936 = vmul.f32 %v822, 0.70710677
      %v937 = vmul.f32 %v856, 0.70710677
      %v938 = vmul.f32 %v859, 0.70710677
      %v939 = vmul.f32 %v893, 0.70710677
      %v940 = vmul.f32 %v896, 0.70710677
      %v941 = vmul.f32 %v930, 0.70710677
      %v942 = vmul.f32 %v933, 0.70710677
      %v943 = vadd.f32 %v935, %v738
      %v944 = vadd.f32 %v936, %v739
      %v945 = vadd.f32 %v937, %v740
      %v946 = vadd.f32 %v938, %v741
      %v947 = vadd.f32 %v939, %v742
      %v948 = vadd.f32 %v940, %v743
      %v949 = vadd.f32 %v941, %v744
      %v950 = vadd.f32 %v942, %v745
      %vm951 = vcmask 130048
      %v952 = vsel %vm951, %v943, -inf
      %953 = vmax.xlane.f32.xlu0 %v952
      %v954 = vpop.xlane.xlu0 %953
      %v955 = vsel %vm951, %v944, -inf
      %956 = vmax.xlane.f32.xlu0 %v955
      %v957 = vpop.xlane.xlu0 %956
      %v958 = vsel %vm951, %v945, -inf
      %959 = vmax.xlane.f32.xlu0 %v958
      %v960 = vpop.xlane.xlu0 %959
      %v961 = vsel %vm951, %v946, -inf
      %962 = vmax.xlane.f32.xlu0 %v961
      %v963 = vpop.xlane.xlu0 %962
      %v964 = vsel %vm951, %v947, -inf
      %965 = vmax.xlane.f32.xlu0 %v964
      %v966 = vpop.xlane.xlu0 %965
      %v967 = vsel %vm951, %v948, -inf
      %968 = vmax.xlane.f32.xlu0 %v967
      %v969 = vpop.xlane.xlu0 %968
      %v970 = vsel %vm951, %v949, -inf
      %971 = vmax.xlane.f32.xlu0 %v970
      %v972 = vpop.xlane.xlu0 %971
      %v973 = vsel %vm951, %v950, -inf
      %974 = vmax.xlane.f32.xlu0 %v973
      %v975 = vpop.xlane.xlu0 %974
      %v976 = vsub.f32 %v943, %v954
      %v977 = vsub.f32 %v944, %v957
      %v978 = vsub.f32 %v945, %v960
      %v979 = vsub.f32 %v946, %v963
      %v980 = vsub.f32 %v947, %v966
      %v981 = vsub.f32 %v948, %v969
      %v982 = vsub.f32 %v949, %v972
      %v983 = vsub.f32 %v950, %v975
      %v984 = vmul.f32 %v976, 1.442695
      %v985 = vpow.pop %v984
      %v986 = vmul.f32 %v977, 1.442695
      %v987 = vpow.pop %v986
      %v988 = vmul.f32 %v978, 1.442695
      %v989 = vpow.pop %v988
      %v990 = vmul.f32 %v979, 1.442695
      %v991 = vpow.pop %v990
      %v992 = vmul.f32 %v980, 1.442695
      %v993 = vpow.pop %v992
      %v994 = vmul.f32 %v981, 1.442695
      %v995 = vpow.pop %v994
      %v996 = vmul.f32 %v982, 1.442695
      %v997 = vpow.pop %v996
      %v998 = vmul.f32 %v983, 1.442695
      %v999 = vpow.pop %v998
      %v1000 = vsel %vm951, %v985, 0.0
      %1001 = vadd.xlane.f32.xlu0 %v1000
      %v1002 = vpop.xlane.xlu0 %1001
      %v1003 = vsel %vm951, %v987, 0.0
      %1004 = vadd.xlane.f32.xlu0 %v1003
      %v1005 = vpop.xlane.xlu0 %1004
      %v1006 = vsel %vm951, %v989, 0.0
      %1007 = vadd.xlane.f32.xlu0 %v1006
      %v1008 = vpop.xlane.xlu0 %1007
      %v1009 = vsel %vm951, %v991, 0.0
      %1010 = vadd.xlane.f32.xlu0 %v1009
      %v1011 = vpop.xlane.xlu0 %1010
      %v1012 = vsel %vm951, %v993, 0.0
      %1013 = vadd.xlane.f32.xlu0 %v1012
      %v1014 = vpop.xlane.xlu0 %1013
      %v1015 = vsel %vm951, %v995, 0.0
      %1016 = vadd.xlane.f32.xlu0 %v1015
      %v1017 = vpop.xlane.xlu0 %1016
      %v1018 = vsel %vm951, %v997, 0.0
      %1019 = vadd.xlane.f32.xlu0 %v1018
      %v1020 = vpop.xlane.xlu0 %1019
      %v1021 = vsel %vm951, %v999, 0.0
      %1022 = vadd.xlane.f32.xlu0 %v1021
      %v1023 = vpop.xlane.xlu0 %1022
      %v1024 = vrcp.pop %v1002
      %v1025 = vrcp.pop %v1005
      %v1026 = vrcp.pop %v1008
      %v1027 = vrcp.pop %v1011
      %v1028 = vrcp.pop %v1014
      %v1029 = vrcp.pop %v1017
      %v1030 = vrcp.pop %v1020
      %v1031 = vrcp.pop %v1023
      %v1032 = vmul.f32 %v985, %v1024
      %v1033 = vmul.f32 %v987, %v1025
      %v1034 = vmul.f32 %v989, %v1026
      %v1035 = vmul.f32 %v991, %v1027
      %v1036 = vmul.f32 %v993, %v1028
      %v1037 = vmul.f32 %v995, %v1029
      %v1038 = vmul.f32 %v997, %v1030
      %v1039 = vmul.f32 %v999, %v1031
      %1040 = vrot.lane.b32.xlu0 %v713, 104
      %v1041 = vpop.permute.xlu0 %1040
      %1042 = vrot.lane.b32.xlu0 %v716, 104
      %v1043 = vpop.permute.xlu0 %1042
      %v1047 = vsel %vm951, %v1032, 0
      %v1050 = vsel %vm951, %v1033, 0
      %1052 = vmatpush.msra.mxu0 0.0
      %1053 = vmatpush.msra.mxu0 0.0
      %1054 = vmatpush.msra.mxu0 0.0
      %1055 = vmatpush.msra.mxu0 0.0
      %1056 = vmatpush.msra.mxu0 0.0
      %1057 = vmatpush.msra.mxu0 0.0
      %1058 = vmatpush.msra.mxu0 0.0
      %1059 = vmatpush.msra.mxu0 0.0
      %1060 = vmatpush.msra.mxu0 0.0
      %1061 = vmatpush.msra.mxu0 0.0
      %1062 = vmatpush.msra.mxu0 0.0
      %1063 = vmatpush.msra.mxu0 0.0
      %1064 = vmatpush.msra.mxu0 0.0
      %1065 = vmatpush.msra.mxu0 0.0
      %1066 = vmatpush.msra.mxu0 %v1043
      %1067 = vmatpush.msra.mxu0 %v1041
      %1068 = vmatmul.f32.gmra.mxu0 %v1047
      %v1069 = vpop.f32.mrf.mxu0
      %v1070 = vadd.f32 0.0, %v1069
      %1071 = vmatmul.f32.gmra.mxu0 %v1050
      %v1072 = vpop.f32.mrf.mxu0
      %v1073 = vadd.f32 0.0, %v1072
      %1074 = vdwg.mxu0
      %1075 = vrot.lane.b32.xlu0 %v719, 104
      %v1076 = vpop.permute.xlu0 %1075
      %1077 = vrot.lane.b32.xlu0 %v722, 104
      %v1078 = vpop.permute.xlu0 %1077
      %v1082 = vsel %vm951, %v1034, 0
      %v1085 = vsel %vm951, %v1035, 0
      %1087 = vmatpush.msra.mxu0 0.0
      %1088 = vmatpush.msra.mxu0 0.0
      %1089 = vmatpush.msra.mxu0 0.0
      %1090 = vmatpush.msra.mxu0 0.0
      %1091 = vmatpush.msra.mxu0 0.0
      %1092 = vmatpush.msra.mxu0 0.0
      %1093 = vmatpush.msra.mxu0 0.0
      %1094 = vmatpush.msra.mxu0 0.0
      %1095 = vmatpush.msra.mxu0 0.0
      %1096 = vmatpush.msra.mxu0 0.0
      %1097 = vmatpush.msra.mxu0 0.0
      %1098 = vmatpush.msra.mxu0 0.0
      %1099 = vmatpush.msra.mxu0 0.0
      %1100 = vmatpush.msra.mxu0 0.0
      %1101 = vmatpush.msra.mxu0 %v1078
      %1102 = vmatpush.msra.mxu0 %v1076
      %1103 = vmatmul.f32.gmra.mxu0 %v1082
      %v1104 = vpop.f32.mrf.mxu0
      %v1105 = vadd.f32 0.0, %v1104
      %1106 = vmatmul.f32.gmra.mxu0 %v1085
      %v1107 = vpop.f32.mrf.mxu0
      %v1108 = vadd.f32 0.0, %v1107
      %1109 = vdwg.mxu0
      %1110 = vrot.lane.b32.xlu0 %v725, 104
      %v1111 = vpop.permute.xlu0 %1110
      %1112 = vrot.lane.b32.xlu0 %v728, 104
      %v1113 = vpop.permute.xlu0 %1112
      %v1117 = vsel %vm951, %v1036, 0
      %v1120 = vsel %vm951, %v1037, 0
      %1122 = vmatpush.msra.mxu0 0.0
      %1123 = vmatpush.msra.mxu0 0.0
      %1124 = vmatpush.msra.mxu0 0.0
      %1125 = vmatpush.msra.mxu0 0.0
      %1126 = vmatpush.msra.mxu0 0.0
      %1127 = vmatpush.msra.mxu0 0.0
      %1128 = vmatpush.msra.mxu0 0.0
      %1129 = vmatpush.msra.mxu0 0.0
      %1130 = vmatpush.msra.mxu0 0.0
      %1131 = vmatpush.msra.mxu0 0.0
      %1132 = vmatpush.msra.mxu0 0.0
      %1133 = vmatpush.msra.mxu0 0.0
      %1134 = vmatpush.msra.mxu0 0.0
      %1135 = vmatpush.msra.mxu0 0.0
      %1136 = vmatpush.msra.mxu0 %v1113
      %1137 = vmatpush.msra.mxu0 %v1111
      %1138 = vmatmul.f32.gmra.mxu0 %v1117
      %v1139 = vpop.f32.mrf.mxu0
      %v1140 = vadd.f32 0.0, %v1139
      %1141 = vmatmul.f32.gmra.mxu0 %v1120
      %v1142 = vpop.f32.mrf.mxu0
      %v1143 = vadd.f32 0.0, %v1142
      %1144 = vdwg.mxu0
      %1145 = vrot.lane.b32.xlu0 %v731, 104
      %v1146 = vpop.permute.xlu0 %1145
      %1147 = vrot.lane.b32.xlu0 %v734, 104
      %v1148 = vpop.permute.xlu0 %1147
      %v1152 = vsel %vm951, %v1038, 0
      %v1155 = vsel %vm951, %v1039, 0
      %1157 = vmatpush.msra.mxu0 0.0
      %1158 = vmatpush.msra.mxu0 0.0
      %1159 = vmatpush.msra.mxu0 0.0
      %1160 = vmatpush.msra.mxu0 0.0
      %1161 = vmatpush.msra.mxu0 0.0
      %1162 = vmatpush.msra.mxu0 0.0
      %1163 = vmatpush.msra.mxu0 0.0
      %1164 = vmatpush.msra.mxu0 0.0
      %1165 = vmatpush.msra.mxu0 0.0
      %1166 = vmatpush.msra.mxu0 0.0
      %1167 = vmatpush.msra.mxu0 0.0
      %1168 = vmatpush.msra.mxu0 0.0
      %1169 = vmatpush.msra.mxu0 0.0
      %1170 = vmatpush.msra.mxu0 0.0
      %1171 = vmatpush.msra.mxu0 %v1148
      %1172 = vmatpush.msra.mxu0 %v1146
      %1173 = vmatmul.f32.gmra.mxu0 %v1152
      %v1174 = vpop.f32.mrf.mxu0
      %v1175 = vadd.f32 0.0, %v1174
      %1176 = vmatmul.f32.gmra.mxu0 %v1155
      %v1177 = vpop.f32.mrf.mxu0
      %v1178 = vadd.f32 0.0, %v1177
      %1179 = vdwg.mxu0
      %1180 = vrot.lane.b32.xlu0 %v713, 126
      %v1181 = vpop.permute.xlu0 %1180
      %1182 = vrot.lane.b32.xlu0 %v716, 126
      %v1183 = vpop.permute.xlu0 %1182
      %1184 = vrot.lane.b32.xlu0 %v713, 114
      %v1185 = vpop.permute.xlu0 %1184
      %1186 = vrot.lane.b32.xlu0 %v716, 114
      %v1187 = vpop.permute.xlu0 %1186
      %v1188 = vsel %vm792, %v1181, 0
      %v1190 = vsel %vm792, %v1183, 0
      %v1192 = vsel %vm792, %v1185, 0
      %v1194 = vsel %vm792, %v1187, 0
      %1196 = vmatpush.xpose.msra.mxu0 0.0
      %1197 = vmatpush.xpose.msra.mxu0 0.0
      %1198 = vmatpush.xpose.msra.mxu0 0.0
      %1199 = vmatpush.xpose.msra.mxu0 0.0
      %1200 = vmatpush.xpose.msra.mxu0 0.0
      %1201 = vmatpush.xpose.msra.mxu0 0.0
      %1202 = vmatpush.xpose.msra.mxu0 0.0
      %1203 = vmatpush.xpose.msra.mxu0 0.0
      %1204 = vmatpush.xpose.msra.mxu0 0.0
      %1205 = vmatpush.xpose.msra.mxu0 0.0
      %1206 = vmatpush.xpose.msra.mxu0 0.0
      %1207 = vmatpush.xpose.msra.mxu0 0.0
      %1208 = vmatpush.xpose.msra.mxu0 0.0
      %1209 = vmatpush.xpose.msra.mxu0 0.0
      %1210 = vmatpush.xpose.msra.mxu0 %v1194
      %1211 = vmatpush.xpose.msra.mxu0 %v1192
      %1212 = vmatmul.f32.gmra.mxu0 %v1188
      %v1213 = vpop.f32.mrf.mxu0
      %v1214 = vadd.f32 0.0, %v1213
      %1215 = vmatmul.f32.gmra.mxu0 %v1190
      %v1216 = vpop.f32.mrf.mxu0
      %v1217 = vadd.f32 0.0, %v1216
      %1218 = vdwg.mxu0
      %1219 = vrot.lane.b32.xlu0 %v719, 126
      %v1220 = vpop.permute.xlu0 %1219
      %1221 = vrot.lane.b32.xlu0 %v722, 126
      %v1222 = vpop.permute.xlu0 %1221
      %1223 = vrot.lane.b32.xlu0 %v719, 114
      %v1224 = vpop.permute.xlu0 %1223
      %1225 = vrot.lane.b32.xlu0 %v722, 114
      %v1226 = vpop.permute.xlu0 %1225
      %v1227 = vsel %vm792, %v1220, 0
      %v1229 = vsel %vm792, %v1222, 0
      %v1231 = vsel %vm792, %v1224, 0
      %v1233 = vsel %vm792, %v1226, 0
      %1235 = vmatpush.xpose.msra.mxu0 0.0
      %1236 = vmatpush.xpose.msra.mxu0 0.0
      %1237 = vmatpush.xpose.msra.mxu0 0.0
      %1238 = vmatpush.xpose.msra.mxu0 0.0
      %1239 = vmatpush.xpose.msra.mxu0 0.0
      %1240 = vmatpush.xpose.msra.mxu0 0.0
      %1241 = vmatpush.xpose.msra.mxu0 0.0
      %1242 = vmatpush.xpose.msra.mxu0 0.0
      %1243 = vmatpush.xpose.msra.mxu0 0.0
      %1244 = vmatpush.xpose.msra.mxu0 0.0
      %1245 = vmatpush.xpose.msra.mxu0 0.0
      %1246 = vmatpush.xpose.msra.mxu0 0.0
      %1247 = vmatpush.xpose.msra.mxu0 0.0
      %1248 = vmatpush.xpose.msra.mxu0 0.0
      %1249 = vmatpush.xpose.msra.mxu0 %v1233
      %1250 = vmatpush.xpose.msra.mxu0 %v1231
      %1251 = vmatmul.f32.gmra.mxu0 %v1227
      %v1252 = vpop.f32.mrf.mxu0
      %v1253 = vadd.f32 0.0, %v1252
      %1254 = vmatmul.f32.gmra.mxu0 %v1229
      %v1255 = vpop.f32.mrf.mxu0
      %v1256 = vadd.f32 0.0, %v1255
      %1257 = vdwg.mxu0
      %1258 = vrot.lane.b32.xlu0 %v725, 126
      %v1259 = vpop.permute.xlu0 %1258
      %1260 = vrot.lane.b32.xlu0 %v728, 126
      %v1261 = vpop.permute.xlu0 %1260
      %1262 = vrot.lane.b32.xlu0 %v725, 114
      %v1263 = vpop.permute.xlu0 %1262
      %1264 = vrot.lane.b32.xlu0 %v728, 114
      %v1265 = vpop.permute.xlu0 %1264
      %v1266 = vsel %vm792, %v1259, 0
      %v1268 = vsel %vm792, %v1261, 0
      %v1270 = vsel %vm792, %v1263, 0
      %v1272 = vsel %vm792, %v1265, 0
      %1274 = vmatpush.xpose.msra.mxu0 0.0
      %1275 = vmatpush.xpose.msra.mxu0 0.0
      %1276 = vmatpush.xpose.msra.mxu0 0.0
      %1277 = vmatpush.xpose.msra.mxu0 0.0
      %1278 = vmatpush.xpose.msra.mxu0 0.0
      %1279 = vmatpush.xpose.msra.mxu0 0.0
      %1280 = vmatpush.xpose.msra.mxu0 0.0
      %1281 = vmatpush.xpose.msra.mxu0 0.0
      %1282 = vmatpush.xpose.msra.mxu0 0.0
      %1283 = vmatpush.xpose.msra.mxu0 0.0
      %1284 = vmatpush.xpose.msra.mxu0 0.0
      %1285 = vmatpush.xpose.msra.mxu0 0.0
      %1286 = vmatpush.xpose.msra.mxu0 0.0
      %1287 = vmatpush.xpose.msra.mxu0 0.0
      %1288 = vmatpush.xpose.msra.mxu0 %v1272
      %1289 = vmatpush.xpose.msra.mxu0 %v1270
      %1290 = vmatmul.f32.gmra.mxu0 %v1266
      %v1291 = vpop.f32.mrf.mxu0
      %v1292 = vadd.f32 0.0, %v1291
      %1293 = vmatmul.f32.gmra.mxu0 %v1268
      %v1294 = vpop.f32.mrf.mxu0
      %v1295 = vadd.f32 0.0, %v1294
      %1296 = vdwg.mxu0
      %1297 = vrot.lane.b32.xlu0 %v731, 126
      %v1298 = vpop.permute.xlu0 %1297
      %1299 = vrot.lane.b32.xlu0 %v734, 126
      %v1300 = vpop.permute.xlu0 %1299
      %1301 = vrot.lane.b32.xlu0 %v731, 114
      %v1302 = vpop.permute.xlu0 %1301
      %1303 = vrot.lane.b32.xlu0 %v734, 114
      %v1304 = vpop.permute.xlu0 %1303
      %v1305 = vsel %vm792, %v1298, 0
      %v1307 = vsel %vm792, %v1300, 0
      %v1309 = vsel %vm792, %v1302, 0
      %v1311 = vsel %vm792, %v1304, 0
      %1313 = vmatpush.xpose.msra.mxu0 0.0
      %1314 = vmatpush.xpose.msra.mxu0 0.0
      %1315 = vmatpush.xpose.msra.mxu0 0.0
      %1316 = vmatpush.xpose.msra.mxu0 0.0
      %1317 = vmatpush.xpose.msra.mxu0 0.0
      %1318 = vmatpush.xpose.msra.mxu0 0.0
      %1319 = vmatpush.xpose.msra.mxu0 0.0
      %1320 = vmatpush.xpose.msra.mxu0 0.0
      %1321 = vmatpush.xpose.msra.mxu0 0.0
      %1322 = vmatpush.xpose.msra.mxu0 0.0
      %1323 = vmatpush.xpose.msra.mxu0 0.0
      %1324 = vmatpush.xpose.msra.mxu0 0.0
      %1325 = vmatpush.xpose.msra.mxu0 0.0
      %1326 = vmatpush.xpose.msra.mxu0 0.0
      %1327 = vmatpush.xpose.msra.mxu0 %v1311
      %1328 = vmatpush.xpose.msra.mxu0 %v1309
      %1329 = vmatmul.f32.gmra.mxu0 %v1305
      %v1330 = vpop.f32.mrf.mxu0
      %v1331 = vadd.f32 0.0, %v1330
      %1332 = vmatmul.f32.gmra.mxu0 %v1307
      %v1333 = vpop.f32.mrf.mxu0
      %v1334 = vadd.f32 0.0, %v1333
      %1335 = vdwg.mxu0
      %v1336 = vmul.f32 %v1214, 0.70710677
      %v1337 = vmul.f32 %v1217, 0.70710677
      %v1338 = vmul.f32 %v1253, 0.70710677
      %v1339 = vmul.f32 %v1256, 0.70710677
      %v1340 = vmul.f32 %v1292, 0.70710677
      %v1341 = vmul.f32 %v1295, 0.70710677
      %v1342 = vmul.f32 %v1331, 0.70710677
      %v1343 = vmul.f32 %v1334, 0.70710677
      %v1344 = vadd.f32 %v1336, %v746
      %v1345 = vadd.f32 %v1337, %v747
      %v1346 = vadd.f32 %v1338, %v748
      %v1347 = vadd.f32 %v1339, %v749
      %v1348 = vadd.f32 %v1340, %v750
      %v1349 = vadd.f32 %v1341, %v751
      %v1350 = vadd.f32 %v1342, %v752
      %v1351 = vadd.f32 %v1343, %v753
      %v1352 = vsel %vm951, %v1344, -inf
      %1353 = vmax.xlane.f32.xlu0 %v1352
      %v1354 = vpop.xlane.xlu0 %1353
      %v1355 = vsel %vm951, %v1345, -inf
      %1356 = vmax.xlane.f32.xlu0 %v1355
      %v1357 = vpop.xlane.xlu0 %1356
      %v1358 = vsel %vm951, %v1346, -inf
      %1359 = vmax.xlane.f32.xlu0 %v1358
      %v1360 = vpop.xlane.xlu0 %1359
      %v1361 = vsel %vm951, %v1347, -inf
      %1362 = vmax.xlane.f32.xlu0 %v1361
      %v1363 = vpop.xlane.xlu0 %1362
      %v1364 = vsel %vm951, %v1348, -inf
      %1365 = vmax.xlane.f32.xlu0 %v1364
      %v1366 = vpop.xlane.xlu0 %1365
      %v1367 = vsel %vm951, %v1349, -inf
      %1368 = vmax.xlane.f32.xlu0 %v1367
      %v1369 = vpop.xlane.xlu0 %1368
      %v1370 = vsel %vm951, %v1350, -inf
      %1371 = vmax.xlane.f32.xlu0 %v1370
      %v1372 = vpop.xlane.xlu0 %1371
      %v1373 = vsel %vm951, %v1351, -inf
      %1374 = vmax.xlane.f32.xlu0 %v1373
      %v1375 = vpop.xlane.xlu0 %1374
      %v1376 = vsub.f32 %v1344, %v1354
      %v1377 = vsub.f32 %v1345, %v1357
      %v1378 = vsub.f32 %v1346, %v1360
      %v1379 = vsub.f32 %v1347, %v1363
      %v1380 = vsub.f32 %v1348, %v1366
      %v1381 = vsub.f32 %v1349, %v1369
      %v1382 = vsub.f32 %v1350, %v1372
      %v1383 = vsub.f32 %v1351, %v1375
      %v1384 = vmul.f32 %v1376, 1.442695
      %v1385 = vpow.pop %v1384
      %v1386 = vmul.f32 %v1377, 1.442695
      %v1387 = vpow.pop %v1386
      %v1388 = vmul.f32 %v1378, 1.442695
      %v1389 = vpow.pop %v1388
      %v1390 = vmul.f32 %v1379, 1.442695
      %v1391 = vpow.pop %v1390
      %v1392 = vmul.f32 %v1380, 1.442695
      %v1393 = vpow.pop %v1392
      %v1394 = vmul.f32 %v1381, 1.442695
      %v1395 = vpow.pop %v1394
      %v1396 = vmul.f32 %v1382, 1.442695
      %v1397 = vpow.pop %v1396
      %v1398 = vmul.f32 %v1383, 1.442695
      %v1399 = vpow.pop %v1398
      %v1400 = vsel %vm951, %v1385, 0.0
      %1401 = vadd.xlane.f32.xlu0 %v1400
      %v1402 = vpop.xlane.xlu0 %1401
      %v1403 = vsel %vm951, %v1387, 0.0
      %1404 = vadd.xlane.f32.xlu0 %v1403
      %v1405 = vpop.xlane.xlu0 %1404
      %v1406 = vsel %vm951, %v1389, 0.0
      %1407 = vadd.xlane.f32.xlu0 %v1406
      %v1408 = vpop.xlane.xlu0 %1407
      %v1409 = vsel %vm951, %v1391, 0.0
      %1410 = vadd.xlane.f32.xlu0 %v1409
      %v1411 = vpop.xlane.xlu0 %1410
      %v1412 = vsel %vm951, %v1393, 0.0
      %1413 = vadd.xlane.f32.xlu0 %v1412
      %v1414 = vpop.xlane.xlu0 %1413
      %v1415 = vsel %vm951, %v1395, 0.0
      %1416 = vadd.xlane.f32.xlu0 %v1415
      %v1417 = vpop.xlane.xlu0 %1416
      %v1418 = vsel %vm951, %v1397, 0.0
      %1419 = vadd.xlane.f32.xlu0 %v1418
      %v1420 = vpop.xlane.xlu0 %1419
      %v1421 = vsel %vm951, %v1399, 0.0
      %1422 = vadd.xlane.f32.xlu0 %v1421
      %v1423 = vpop.xlane.xlu0 %1422
      %v1424 = vrcp.pop %v1402
      %v1425 = vrcp.pop %v1405
      %v1426 = vrcp.pop %v1408
      %v1427 = vrcp.pop %v1411
      %v1428 = vrcp.pop %v1414
      %v1429 = vrcp.pop %v1417
      %v1430 = vrcp.pop %v1420
      %v1431 = vrcp.pop %v1423
      %v1432 = vmul.f32 %v1385, %v1424
      %v1433 = vmul.f32 %v1387, %v1425
      %v1434 = vmul.f32 %v1389, %v1426
      %v1435 = vmul.f32 %v1391, %v1427
      %v1436 = vmul.f32 %v1393, %v1428
      %v1437 = vmul.f32 %v1395, %v1429
      %v1438 = vmul.f32 %v1397, %v1430
      %v1439 = vmul.f32 %v1399, %v1431
      %1440 = vrot.lane.b32.xlu0 %v713, 102
      %v1441 = vpop.permute.xlu0 %1440
      %1442 = vrot.lane.b32.xlu0 %v716, 102
      %v1443 = vpop.permute.xlu0 %1442
      %v1447 = vsel %vm951, %v1432, 0
      %v1450 = vsel %vm951, %v1433, 0
      %1452 = vmatpush.msra.mxu0 0.0
      %1453 = vmatpush.msra.mxu0 0.0
      %1454 = vmatpush.msra.mxu0 0.0
      %1455 = vmatpush.msra.mxu0 0.0
      %1456 = vmatpush.msra.mxu0 0.0
      %1457 = vmatpush.msra.mxu0 0.0
      %1458 = vmatpush.msra.mxu0 0.0
      %1459 = vmatpush.msra.mxu0 0.0
      %1460 = vmatpush.msra.mxu0 0.0
      %1461 = vmatpush.msra.mxu0 0.0
      %1462 = vmatpush.msra.mxu0 0.0
      %1463 = vmatpush.msra.mxu0 0.0
      %1464 = vmatpush.msra.mxu0 0.0
      %1465 = vmatpush.msra.mxu0 0.0
      %1466 = vmatpush.msra.mxu0 %v1443
      %1467 = vmatpush.msra.mxu0 %v1441
      %1468 = vmatmul.f32.gmra.mxu0 %v1447
      %v1469 = vpop.f32.mrf.mxu0
      %v1470 = vadd.f32 0.0, %v1469
      %1471 = vmatmul.f32.gmra.mxu0 %v1450
      %v1472 = vpop.f32.mrf.mxu0
      %v1473 = vadd.f32 0.0, %v1472
      %1474 = vdwg.mxu0
      %1475 = vrot.lane.b32.xlu0 %v719, 102
      %v1476 = vpop.permute.xlu0 %1475
      %1477 = vrot.lane.b32.xlu0 %v722, 102
      %v1478 = vpop.permute.xlu0 %1477
      %v1482 = vsel %vm951, %v1434, 0
      %v1485 = vsel %vm951, %v1435, 0
      %1487 = vmatpush.msra.mxu0 0.0
      %1488 = vmatpush.msra.mxu0 0.0
      %1489 = vmatpush.msra.mxu0 0.0
      %1490 = vmatpush.msra.mxu0 0.0
      %1491 = vmatpush.msra.mxu0 0.0
      %1492 = vmatpush.msra.mxu0 0.0
      %1493 = vmatpush.msra.mxu0 0.0
      %1494 = vmatpush.msra.mxu0 0.0
      %1495 = vmatpush.msra.mxu0 0.0
      %1496 = vmatpush.msra.mxu0 0.0
      %1497 = vmatpush.msra.mxu0 0.0
      %1498 = vmatpush.msra.mxu0 0.0
      %1499 = vmatpush.msra.mxu0 0.0
      %1500 = vmatpush.msra.mxu0 0.0
      %1501 = vmatpush.msra.mxu0 %v1478
      %1502 = vmatpush.msra.mxu0 %v1476
      %1503 = vmatmul.f32.gmra.mxu0 %v1482
      %v1504 = vpop.f32.mrf.mxu0
      %v1505 = vadd.f32 0.0, %v1504
      %1506 = vmatmul.f32.gmra.mxu0 %v1485
      %v1507 = vpop.f32.mrf.mxu0
      %v1508 = vadd.f32 0.0, %v1507
      %1509 = vdwg.mxu0
      %1510 = vrot.lane.b32.xlu0 %v725, 102
      %v1511 = vpop.permute.xlu0 %1510
      %1512 = vrot.lane.b32.xlu0 %v728, 102
      %v1513 = vpop.permute.xlu0 %1512
      %v1517 = vsel %vm951, %v1436, 0
      %v1520 = vsel %vm951, %v1437, 0
      %1522 = vmatpush.msra.mxu0 0.0
      %1523 = vmatpush.msra.mxu0 0.0
      %1524 = vmatpush.msra.mxu0 0.0
      %1525 = vmatpush.msra.mxu0 0.0
      %1526 = vmatpush.msra.mxu0 0.0
      %1527 = vmatpush.msra.mxu0 0.0
      %1528 = vmatpush.msra.mxu0 0.0
      %1529 = vmatpush.msra.mxu0 0.0
      %1530 = vmatpush.msra.mxu0 0.0
      %1531 = vmatpush.msra.mxu0 0.0
      %1532 = vmatpush.msra.mxu0 0.0
      %1533 = vmatpush.msra.mxu0 0.0
      %1534 = vmatpush.msra.mxu0 0.0
      %1535 = vmatpush.msra.mxu0 0.0
      %1536 = vmatpush.msra.mxu0 %v1513
      %1537 = vmatpush.msra.mxu0 %v1511
      %1538 = vmatmul.f32.gmra.mxu0 %v1517
      %v1539 = vpop.f32.mrf.mxu0
      %v1540 = vadd.f32 0.0, %v1539
      %1541 = vmatmul.f32.gmra.mxu0 %v1520
      %v1542 = vpop.f32.mrf.mxu0
      %v1543 = vadd.f32 0.0, %v1542
      %1544 = vdwg.mxu0
      %1545 = vrot.lane.b32.xlu0 %v731, 102
      %v1546 = vpop.permute.xlu0 %1545
      %1547 = vrot.lane.b32.xlu0 %v734, 102
      %v1548 = vpop.permute.xlu0 %1547
      %v1552 = vsel %vm951, %v1438, 0
      %v1555 = vsel %vm951, %v1439, 0
      %1557 = vmatpush.msra.mxu0 0.0
      %1558 = vmatpush.msra.mxu0 0.0
      %1559 = vmatpush.msra.mxu0 0.0
      %1560 = vmatpush.msra.mxu0 0.0
      %1561 = vmatpush.msra.mxu0 0.0
      %1562 = vmatpush.msra.mxu0 0.0
      %1563 = vmatpush.msra.mxu0 0.0
      %1564 = vmatpush.msra.mxu0 0.0
      %1565 = vmatpush.msra.mxu0 0.0
      %1566 = vmatpush.msra.mxu0 0.0
      %1567 = vmatpush.msra.mxu0 0.0
      %1568 = vmatpush.msra.mxu0 0.0
      %1569 = vmatpush.msra.mxu0 0.0
      %1570 = vmatpush.msra.mxu0 0.0
      %1571 = vmatpush.msra.mxu0 %v1548
      %1572 = vmatpush.msra.mxu0 %v1546
      %1573 = vmatmul.f32.gmra.mxu0 %v1552
      %v1574 = vpop.f32.mrf.mxu0
      %v1575 = vadd.f32 0.0, %v1574
      %1576 = vmatmul.f32.gmra.mxu0 %v1555
      %v1577 = vpop.f32.mrf.mxu0
      %v1578 = vadd.f32 0.0, %v1577
      %1579 = vdwg.mxu0
      %v1581 = vrot.slane %v736, 2
      %v1583 = vsel %vm792, %v1470, 0
      %v1586 = vsel %vm792, %v1473, 0
      %v1589 = vsel %vm792, %v1505, 0
      %v1592 = vsel %vm792, %v1508, 0
      %v1595 = vsel %vm792, %v1540, 0
      %v1598 = vsel %vm792, %v1543, 0
      %v1601 = vsel %vm792, %v1575, 0
      %v1604 = vsel %vm792, %v1578, 0
      %vm1606 = vcmask 1041408
      %v1607 = vsel %vm1606, %v1581, 0
      %1609 = vmatpush.msra.mxu0 0.0
      %1610 = vmatpush.msra.mxu0 0.0
      %1611 = vmatpush.msra.mxu0 0.0
      %1612 = vmatpush.msra.mxu0 0.0
      %1613 = vmatpush.msra.mxu0 0.0
      %1614 = vmatpush.msra.mxu0 0.0
      %1615 = vmatpush.msra.mxu0 0.0
      %1616 = vmatpush.msra.mxu0 0.0
      %1617 = vmatpush.msra.mxu0 0.0
      %1618 = vmatpush.msra.mxu0 0.0
      %1619 = vmatpush.msra.mxu0 0.0
      %1620 = vmatpush.msra.mxu0 0.0
      %1621 = vmatpush.msra.mxu0 0.0
      %1622 = vmatpush.msra.mxu0 0.0
      %1623 = vmatpush.msra.mxu0 0.0
      %1624 = vmatpush.msra.mxu0 %v1607
      %1625 = vmatmul.f32.gmra.mxu0 %v1583
      %v1626 = vpop.f32.mrf.mxu0
      %v1627 = vadd.f32 0.0, %v1626
      %1628 = vmatmul.f32.gmra.mxu0 %v1586
      %v1629 = vpop.f32.mrf.mxu0
      %v1630 = vadd.f32 0.0, %v1629
      %1631 = vmatmul.f32.gmra.mxu0 %v1589
      %v1632 = vpop.f32.mrf.mxu0
      %v1633 = vadd.f32 0.0, %v1632
      %1634 = vmatmul.f32.gmra.mxu0 %v1592
      %v1635 = vpop.f32.mrf.mxu0
      %v1636 = vadd.f32 0.0, %v1635
      %1637 = vmatmul.f32.gmra.mxu0 %v1595
      %v1638 = vpop.f32.mrf.mxu0
      %v1639 = vadd.f32 0.0, %v1638
      %1640 = vmatmul.f32.gmra.mxu0 %v1598
      %v1641 = vpop.f32.mrf.mxu0
      %v1642 = vadd.f32 0.0, %v1641
      %1643 = vmatmul.f32.gmra.mxu0 %v1601
      %v1644 = vpop.f32.mrf.mxu0
      %v1645 = vadd.f32 0.0, %v1644
      %1646 = vmatmul.f32.gmra.mxu0 %v1604
      %v1647 = vpop.f32.mrf.mxu0
      %v1648 = vadd.f32 0.0, %v1647
      %1649 = vdwg.mxu0
      %v1651 = vsel %vm792, %v1070, 0
      %v1654 = vsel %vm792, %v1073, 0
      %v1657 = vsel %vm792, %v1105, 0
      %v1660 = vsel %vm792, %v1108, 0
      %v1663 = vsel %vm792, %v1140, 0
      %v1666 = vsel %vm792, %v1143, 0
      %v1669 = vsel %vm792, %v1175, 0
      %v1672 = vsel %vm792, %v1178, 0
      %v1674 = vsel %vm1606, %v736, 0
      %1676 = vmatpush.msra.mxu0 0.0
      %1677 = vmatpush.msra.mxu0 0.0
      %1678 = vmatpush.msra.mxu0 0.0
      %1679 = vmatpush.msra.mxu0 0.0
      %1680 = vmatpush.msra.mxu0 0.0
      %1681 = vmatpush.msra.mxu0 0.0
      %1682 = vmatpush.msra.mxu0 0.0
      %1683 = vmatpush.msra.mxu0 0.0
      %1684 = vmatpush.msra.mxu0 0.0
      %1685 = vmatpush.msra.mxu0 0.0
      %1686 = vmatpush.msra.mxu0 0.0
      %1687 = vmatpush.msra.mxu0 0.0
      %1688 = vmatpush.msra.mxu0 0.0
      %1689 = vmatpush.msra.mxu0 0.0
      %1690 = vmatpush.msra.mxu0 0.0
      %1691 = vmatpush.msra.mxu0 %v1674
      %1692 = vmatmul.f32.gmra.mxu0 %v1651
      %v1693 = vpop.f32.mrf.mxu0
      %v1694 = vadd.f32 %v1627, %v1693
      %1695 = vmatmul.f32.gmra.mxu0 %v1654
      %v1696 = vpop.f32.mrf.mxu0
      %v1697 = vadd.f32 %v1630, %v1696
      %1698 = vmatmul.f32.gmra.mxu0 %v1657
      %v1699 = vpop.f32.mrf.mxu0
      %v1700 = vadd.f32 %v1633, %v1699
      %1701 = vmatmul.f32.gmra.mxu0 %v1660
      %v1702 = vpop.f32.mrf.mxu0
      %v1703 = vadd.f32 %v1636, %v1702
      %1704 = vmatmul.f32.gmra.mxu0 %v1663
      %v1705 = vpop.f32.mrf.mxu0
      %v1706 = vadd.f32 %v1639, %v1705
      %1707 = vmatmul.f32.gmra.mxu0 %v1666
      %v1708 = vpop.f32.mrf.mxu0
      %v1709 = vadd.f32 %v1642, %v1708
      %1710 = vmatmul.f32.gmra.mxu0 %v1669
      %v1711 = vpop.f32.mrf.mxu0
      %v1712 = vadd.f32 %v1645, %v1711
      %1713 = vmatmul.f32.gmra.mxu0 %v1672
      %v1714 = vpop.f32.mrf.mxu0
      %v1715 = vadd.f32 %v1648, %v1714
      %1716 = vdwg.mxu0
      %1717 = vrot.lane.b32.xlu0 %v713, 124
      %v1718 = vpop.permute.xlu0 %1717
      %1719 = vrot.lane.b32.xlu0 %v716, 124
      %v1720 = vpop.permute.xlu0 %1719
      %1721 = vrot.lane.b32.xlu0 %v713, 112
      %v1722 = vpop.permute.xlu0 %1721
      %1723 = vrot.lane.b32.xlu0 %v716, 112
      %v1724 = vpop.permute.xlu0 %1723
      %v1725 = vsel %vm792, %v1718, 0
      %v1727 = vsel %vm792, %v1720, 0
      %v1729 = vsel %vm792, %v1722, 0
      %v1731 = vsel %vm792, %v1724, 0
      %1733 = vmatpush.xpose.msra.mxu0 0.0
      %1734 = vmatpush.xpose.msra.mxu0 0.0
      %1735 = vmatpush.xpose.msra.mxu0 0.0
      %1736 = vmatpush.xpose.msra.mxu0 0.0
      %1737 = vmatpush.xpose.msra.mxu0 0.0
      %1738 = vmatpush.xpose.msra.mxu0 0.0
      %1739 = vmatpush.xpose.msra.mxu0 0.0
      %1740 = vmatpush.xpose.msra.mxu0 0.0
      %1741 = vmatpush.xpose.msra.mxu0 0.0
      %1742 = vmatpush.xpose.msra.mxu0 0.0
      %1743 = vmatpush.xpose.msra.mxu0 0.0
      %1744 = vmatpush.xpose.msra.mxu0 0.0
      %1745 = vmatpush.xpose.msra.mxu0 0.0
      %1746 = vmatpush.xpose.msra.mxu0 0.0
      %1747 = vmatpush.xpose.msra.mxu0 %v1731
      %1748 = vmatpush.xpose.msra.mxu0 %v1729
      %1749 = vmatmul.f32.gmra.mxu0 %v1725
      %v1750 = vpop.f32.mrf.mxu0
      %v1751 = vadd.f32 0.0, %v1750
      %1752 = vmatmul.f32.gmra.mxu0 %v1727
      %v1753 = vpop.f32.mrf.mxu0
      %v1754 = vadd.f32 0.0, %v1753
      %1755 = vdwg.mxu0
      %1756 = vrot.lane.b32.xlu0 %v719, 124
      %v1757 = vpop.permute.xlu0 %1756
      %1758 = vrot.lane.b32.xlu0 %v722, 124
      %v1759 = vpop.permute.xlu0 %1758
      %1760 = vrot.lane.b32.xlu0 %v719, 112
      %v1761 = vpop.permute.xlu0 %1760
      %1762 = vrot.lane.b32.xlu0 %v722, 112
      %v1763 = vpop.permute.xlu0 %1762
      %v1764 = vsel %vm792, %v1757, 0
      %v1766 = vsel %vm792, %v1759, 0
      %v1768 = vsel %vm792, %v1761, 0
      %v1770 = vsel %vm792, %v1763, 0
      %1772 = vmatpush.xpose.msra.mxu0 0.0
      %1773 = vmatpush.xpose.msra.mxu0 0.0
      %1774 = vmatpush.xpose.msra.mxu0 0.0
      %1775 = vmatpush.xpose.msra.mxu0 0.0
      %1776 = vmatpush.xpose.msra.mxu0 0.0
      %1777 = vmatpush.xpose.msra.mxu0 0.0
      %1778 = vmatpush.xpose.msra.mxu0 0.0
      %1779 = vmatpush.xpose.msra.mxu0 0.0
      %1780 = vmatpush.xpose.msra.mxu0 0.0
      %1781 = vmatpush.xpose.msra.mxu0 0.0
      %1782 = vmatpush.xpose.msra.mxu0 0.0
      %1783 = vmatpush.xpose.msra.mxu0 0.0
      %1784 = vmatpush.xpose.msra.mxu0 0.0
      %1785 = vmatpush.xpose.msra.mxu0 0.0
      %1786 = vmatpush.xpose.msra.mxu0 %v1770
      %1787 = vmatpush.xpose.msra.mxu0 %v1768
      %1788 = vmatmul.f32.gmra.mxu0 %v1764
      %v1789 = vpop.f32.mrf.mxu0
      %v1790 = vadd.f32 0.0, %v1789
      %1791 = vmatmul.f32.gmra.mxu0 %v1766
      %v1792 = vpop.f32.mrf.mxu0
      %v1793 = vadd.f32 0.0, %v1792
      %1794 = vdwg.mxu0
      %1795 = vrot.lane.b32.xlu0 %v725, 124
      %v1796 = vpop.permute.xlu0 %1795
      %1797 = vrot.lane.b32.xlu0 %v728, 124
      %v1798 = vpop.permute.xlu0 %1797
      %1799 = vrot.lane.b32.xlu0 %v725, 112
      %v1800 = vpop.permute.xlu0 %1799
      %1801 = vrot.lane.b32.xlu0 %v728, 112
      %v1802 = vpop.permute.xlu0 %1801
      %v1803 = vsel %vm792, %v1796, 0
      %v1805 = vsel %vm792, %v1798, 0
      %v1807 = vsel %vm792, %v1800, 0
      %v1809 = vsel %vm792, %v1802, 0
      %1811 = vmatpush.xpose.msra.mxu0 0.0
      %1812 = vmatpush.xpose.msra.mxu0 0.0
      %1813 = vmatpush.xpose.msra.mxu0 0.0
      %1814 = vmatpush.xpose.msra.mxu0 0.0
      %1815 = vmatpush.xpose.msra.mxu0 0.0
      %1816 = vmatpush.xpose.msra.mxu0 0.0
      %1817 = vmatpush.xpose.msra.mxu0 0.0
      %1818 = vmatpush.xpose.msra.mxu0 0.0
      %1819 = vmatpush.xpose.msra.mxu0 0.0
      %1820 = vmatpush.xpose.msra.mxu0 0.0
      %1821 = vmatpush.xpose.msra.mxu0 0.0
      %1822 = vmatpush.xpose.msra.mxu0 0.0
      %1823 = vmatpush.xpose.msra.mxu0 0.0
      %1824 = vmatpush.xpose.msra.mxu0 0.0
      %1825 = vmatpush.xpose.msra.mxu0 %v1809
      %1826 = vmatpush.xpose.msra.mxu0 %v1807
      %1827 = vmatmul.f32.gmra.mxu0 %v1803
      %v1828 = vpop.f32.mrf.mxu0
      %v1829 = vadd.f32 0.0, %v1828
      %1830 = vmatmul.f32.gmra.mxu0 %v1805
      %v1831 = vpop.f32.mrf.mxu0
      %v1832 = vadd.f32 0.0, %v1831
      %1833 = vdwg.mxu0
      %1834 = vrot.lane.b32.xlu0 %v731, 124
      %v1835 = vpop.permute.xlu0 %1834
      %1836 = vrot.lane.b32.xlu0 %v734, 124
      %v1837 = vpop.permute.xlu0 %1836
      %1838 = vrot.lane.b32.xlu0 %v731, 112
      %v1839 = vpop.permute.xlu0 %1838
      %1840 = vrot.lane.b32.xlu0 %v734, 112
      %v1841 = vpop.permute.xlu0 %1840
      %v1842 = vsel %vm792, %v1835, 0
      %v1844 = vsel %vm792, %v1837, 0
      %v1846 = vsel %vm792, %v1839, 0
      %v1848 = vsel %vm792, %v1841, 0
      %1850 = vmatpush.xpose.msra.mxu0 0.0
      %1851 = vmatpush.xpose.msra.mxu0 0.0
      %1852 = vmatpush.xpose.msra.mxu0 0.0
      %1853 = vmatpush.xpose.msra.mxu0 0.0
      %1854 = vmatpush.xpose.msra.mxu0 0.0
      %1855 = vmatpush.xpose.msra.mxu0 0.0
      %1856 = vmatpush.xpose.msra.mxu0 0.0
      %1857 = vmatpush.xpose.msra.mxu0 0.0
      %1858 = vmatpush.xpose.msra.mxu0 0.0
      %1859 = vmatpush.xpose.msra.mxu0 0.0
      %1860 = vmatpush.xpose.msra.mxu0 0.0
      %1861 = vmatpush.xpose.msra.mxu0 0.0
      %1862 = vmatpush.xpose.msra.mxu0 0.0
      %1863 = vmatpush.xpose.msra.mxu0 0.0
      %1864 = vmatpush.xpose.msra.mxu0 %v1848
      %1865 = vmatpush.xpose.msra.mxu0 %v1846
      %1866 = vmatmul.f32.gmra.mxu0 %v1842
      %v1867 = vpop.f32.mrf.mxu0
      %v1868 = vadd.f32 0.0, %v1867
      %1869 = vmatmul.f32.gmra.mxu0 %v1844
      %v1870 = vpop.f32.mrf.mxu0
      %v1871 = vadd.f32 0.0, %v1870
      %1872 = vdwg.mxu0
      %v1873 = vmul.f32 %v1751, 0.70710677
      %v1874 = vmul.f32 %v1754, 0.70710677
      %v1875 = vmul.f32 %v1790, 0.70710677
      %v1876 = vmul.f32 %v1793, 0.70710677
      %v1877 = vmul.f32 %v1829, 0.70710677
      %v1878 = vmul.f32 %v1832, 0.70710677
      %v1879 = vmul.f32 %v1868, 0.70710677
      %v1880 = vmul.f32 %v1871, 0.70710677
      %v1881 = vadd.f32 %v1873, %v754
      %v1882 = vadd.f32 %v1874, %v755
      %v1883 = vadd.f32 %v1875, %v756
      %v1884 = vadd.f32 %v1876, %v757
      %v1885 = vadd.f32 %v1877, %v758
      %v1886 = vadd.f32 %v1878, %v759
      %v1887 = vadd.f32 %v1879, %v760
      %v1888 = vadd.f32 %v1880, %v761
      %v1889 = vsel %vm951, %v1881, -inf
      %1890 = vmax.xlane.f32.xlu0 %v1889
      %v1891 = vpop.xlane.xlu0 %1890
      %v1892 = vsel %vm951, %v1882, -inf
      %1893 = vmax.xlane.f32.xlu0 %v1892
      %v1894 = vpop.xlane.xlu0 %1893
      %v1895 = vsel %vm951, %v1883, -inf
      %1896 = vmax.xlane.f32.xlu0 %v1895
      %v1897 = vpop.xlane.xlu0 %1896
      %v1898 = vsel %vm951, %v1884, -inf
      %1899 = vmax.xlane.f32.xlu0 %v1898
      %v1900 = vpop.xlane.xlu0 %1899
      %v1901 = vsel %vm951, %v1885, -inf
      %1902 = vmax.xlane.f32.xlu0 %v1901
      %v1903 = vpop.xlane.xlu0 %1902
      %v1904 = vsel %vm951, %v1886, -inf
      %1905 = vmax.xlane.f32.xlu0 %v1904
      %v1906 = vpop.xlane.xlu0 %1905
      %v1907 = vsel %vm951, %v1887, -inf
      %1908 = vmax.xlane.f32.xlu0 %v1907
      %v1909 = vpop.xlane.xlu0 %1908
      %v1910 = vsel %vm951, %v1888, -inf
      %1911 = vmax.xlane.f32.xlu0 %v1910
      %v1912 = vpop.xlane.xlu0 %1911
      %v1913 = vsub.f32 %v1881, %v1891
      %v1914 = vsub.f32 %v1882, %v1894
      %v1915 = vsub.f32 %v1883, %v1897
      %v1916 = vsub.f32 %v1884, %v1900
      %v1917 = vsub.f32 %v1885, %v1903
      %v1918 = vsub.f32 %v1886, %v1906
      %v1919 = vsub.f32 %v1887, %v1909
      %v1920 = vsub.f32 %v1888, %v1912
      %v1921 = vmul.f32 %v1913, 1.442695
      %v1922 = vpow.pop %v1921
      %v1923 = vmul.f32 %v1914, 1.442695
      %v1924 = vpow.pop %v1923
      %v1925 = vmul.f32 %v1915, 1.442695
      %v1926 = vpow.pop %v1925
      %v1927 = vmul.f32 %v1916, 1.442695
      %v1928 = vpow.pop %v1927
      %v1929 = vmul.f32 %v1917, 1.442695
      %v1930 = vpow.pop %v1929
      %v1931 = vmul.f32 %v1918, 1.442695
      %v1932 = vpow.pop %v1931
      %v1933 = vmul.f32 %v1919, 1.442695
      %v1934 = vpow.pop %v1933
      %v1935 = vmul.f32 %v1920, 1.442695
      %v1936 = vpow.pop %v1935
      %v1937 = vsel %vm951, %v1922, 0.0
      %1938 = vadd.xlane.f32.xlu0 %v1937
      %v1939 = vpop.xlane.xlu0 %1938
      %v1940 = vsel %vm951, %v1924, 0.0
      %1941 = vadd.xlane.f32.xlu0 %v1940
      %v1942 = vpop.xlane.xlu0 %1941
      %v1943 = vsel %vm951, %v1926, 0.0
      %1944 = vadd.xlane.f32.xlu0 %v1943
      %v1945 = vpop.xlane.xlu0 %1944
      %v1946 = vsel %vm951, %v1928, 0.0
      %1947 = vadd.xlane.f32.xlu0 %v1946
      %v1948 = vpop.xlane.xlu0 %1947
      %v1949 = vsel %vm951, %v1930, 0.0
      %1950 = vadd.xlane.f32.xlu0 %v1949
      %v1951 = vpop.xlane.xlu0 %1950
      %v1952 = vsel %vm951, %v1932, 0.0
      %1953 = vadd.xlane.f32.xlu0 %v1952
      %v1954 = vpop.xlane.xlu0 %1953
      %v1955 = vsel %vm951, %v1934, 0.0
      %1956 = vadd.xlane.f32.xlu0 %v1955
      %v1957 = vpop.xlane.xlu0 %1956
      %v1958 = vsel %vm951, %v1936, 0.0
      %1959 = vadd.xlane.f32.xlu0 %v1958
      %v1960 = vpop.xlane.xlu0 %1959
      %v1961 = vrcp.pop %v1939
      %v1962 = vrcp.pop %v1942
      %v1963 = vrcp.pop %v1945
      %v1964 = vrcp.pop %v1948
      %v1965 = vrcp.pop %v1951
      %v1966 = vrcp.pop %v1954
      %v1967 = vrcp.pop %v1957
      %v1968 = vrcp.pop %v1960
      %v1969 = vmul.f32 %v1922, %v1961
      %v1970 = vmul.f32 %v1924, %v1962
      %v1971 = vmul.f32 %v1926, %v1963
      %v1972 = vmul.f32 %v1928, %v1964
      %v1973 = vmul.f32 %v1930, %v1965
      %v1974 = vmul.f32 %v1932, %v1966
      %v1975 = vmul.f32 %v1934, %v1967
      %v1976 = vmul.f32 %v1936, %v1968
      %1977 = vrot.lane.b32.xlu0 %v713, 100
      %v1978 = vpop.permute.xlu0 %1977
      %1979 = vrot.lane.b32.xlu0 %v716, 100
      %v1980 = vpop.permute.xlu0 %1979
      %v1984 = vsel %vm951, %v1969, 0
      %v1987 = vsel %vm951, %v1970, 0
      %1989 = vmatpush.msra.mxu0 0.0
      %1990 = vmatpush.msra.mxu0 0.0
      %1991 = vmatpush.msra.mxu0 0.0
      %1992 = vmatpush.msra.mxu0 0.0
      %1993 = vmatpush.msra.mxu0 0.0
      %1994 = vmatpush.msra.mxu0 0.0
      %1995 = vmatpush.msra.mxu0 0.0
      %1996 = vmatpush.msra.mxu0 0.0
      %1997 = vmatpush.msra.mxu0 0.0
      %1998 = vmatpush.msra.mxu0 0.0
      %1999 = vmatpush.msra.mxu0 0.0
      %2000 = vmatpush.msra.mxu0 0.0
      %2001 = vmatpush.msra.mxu0 0.0
      %2002 = vmatpush.msra.mxu0 0.0
      %2003 = vmatpush.msra.mxu0 %v1980
      %2004 = vmatpush.msra.mxu0 %v1978
      %2005 = vmatmul.f32.gmra.mxu0 %v1984
      %v2006 = vpop.f32.mrf.mxu0
      %v2007 = vadd.f32 0.0, %v2006
      %2008 = vmatmul.f32.gmra.mxu0 %v1987
      %v2009 = vpop.f32.mrf.mxu0
      %v2010 = vadd.f32 0.0, %v2009
      %2011 = vdwg.mxu0
      %2012 = vrot.lane.b32.xlu0 %v719, 100
      %v2013 = vpop.permute.xlu0 %2012
      %2014 = vrot.lane.b32.xlu0 %v722, 100
      %v2015 = vpop.permute.xlu0 %2014
      %v2019 = vsel %vm951, %v1971, 0
      %v2022 = vsel %vm951, %v1972, 0
      %2024 = vmatpush.msra.mxu0 0.0
      %2025 = vmatpush.msra.mxu0 0.0
      %2026 = vmatpush.msra.mxu0 0.0
      %2027 = vmatpush.msra.mxu0 0.0
      %2028 = vmatpush.msra.mxu0 0.0
      %2029 = vmatpush.msra.mxu0 0.0
      %2030 = vmatpush.msra.mxu0 0.0
      %2031 = vmatpush.msra.mxu0 0.0
      %2032 = vmatpush.msra.mxu0 0.0
      %2033 = vmatpush.msra.mxu0 0.0
      %2034 = vmatpush.msra.mxu0 0.0
      %2035 = vmatpush.msra.mxu0 0.0
      %2036 = vmatpush.msra.mxu0 0.0
      %2037 = vmatpush.msra.mxu0 0.0
      %2038 = vmatpush.msra.mxu0 %v2015
      %2039 = vmatpush.msra.mxu0 %v2013
      %2040 = vmatmul.f32.gmra.mxu0 %v2019
      %v2041 = vpop.f32.mrf.mxu0
      %v2042 = vadd.f32 0.0, %v2041
      %2043 = vmatmul.f32.gmra.mxu0 %v2022
      %v2044 = vpop.f32.mrf.mxu0
      %v2045 = vadd.f32 0.0, %v2044
      %2046 = vdwg.mxu0
      %2047 = vrot.lane.b32.xlu0 %v725, 100
      %v2048 = vpop.permute.xlu0 %2047
      %2049 = vrot.lane.b32.xlu0 %v728, 100
      %v2050 = vpop.permute.xlu0 %2049
      %v2054 = vsel %vm951, %v1973, 0
      %v2057 = vsel %vm951, %v1974, 0
      %2059 = vmatpush.msra.mxu0 0.0
      %2060 = vmatpush.msra.mxu0 0.0
      %2061 = vmatpush.msra.mxu0 0.0
      %2062 = vmatpush.msra.mxu0 0.0
      %2063 = vmatpush.msra.mxu0 0.0
      %2064 = vmatpush.msra.mxu0 0.0
      %2065 = vmatpush.msra.mxu0 0.0
      %2066 = vmatpush.msra.mxu0 0.0
      %2067 = vmatpush.msra.mxu0 0.0
      %2068 = vmatpush.msra.mxu0 0.0
      %2069 = vmatpush.msra.mxu0 0.0
      %2070 = vmatpush.msra.mxu0 0.0
      %2071 = vmatpush.msra.mxu0 0.0
      %2072 = vmatpush.msra.mxu0 0.0
      %2073 = vmatpush.msra.mxu0 %v2050
      %2074 = vmatpush.msra.mxu0 %v2048
      %2075 = vmatmul.f32.gmra.mxu0 %v2054
      %v2076 = vpop.f32.mrf.mxu0
      %v2077 = vadd.f32 0.0, %v2076
      %2078 = vmatmul.f32.gmra.mxu0 %v2057
      %v2079 = vpop.f32.mrf.mxu0
      %v2080 = vadd.f32 0.0, %v2079
      %2081 = vdwg.mxu0
      %2082 = vrot.lane.b32.xlu0 %v731, 100
      %v2083 = vpop.permute.xlu0 %2082
      %2084 = vrot.lane.b32.xlu0 %v734, 100
      %v2085 = vpop.permute.xlu0 %2084
      %v2089 = vsel %vm951, %v1975, 0
      %v2092 = vsel %vm951, %v1976, 0
      %2094 = vmatpush.msra.mxu0 0.0
      %2095 = vmatpush.msra.mxu0 0.0
      %2096 = vmatpush.msra.mxu0 0.0
      %2097 = vmatpush.msra.mxu0 0.0
      %2098 = vmatpush.msra.mxu0 0.0
      %2099 = vmatpush.msra.mxu0 0.0
      %2100 = vmatpush.msra.mxu0 0.0
      %2101 = vmatpush.msra.mxu0 0.0
      %2102 = vmatpush.msra.mxu0 0.0
      %2103 = vmatpush.msra.mxu0 0.0
      %2104 = vmatpush.msra.mxu0 0.0
      %2105 = vmatpush.msra.mxu0 0.0
      %2106 = vmatpush.msra.mxu0 0.0
      %2107 = vmatpush.msra.mxu0 0.0
      %2108 = vmatpush.msra.mxu0 %v2085
      %2109 = vmatpush.msra.mxu0 %v2083
      %2110 = vmatmul.f32.gmra.mxu0 %v2089
      %v2111 = vpop.f32.mrf.mxu0
      %v2112 = vadd.f32 0.0, %v2111
      %2113 = vmatmul.f32.gmra.mxu0 %v2092
      %v2114 = vpop.f32.mrf.mxu0
      %v2115 = vadd.f32 0.0, %v2114
      %2116 = vdwg.mxu0
      %v2117 = vrot.slane %v736, 4
      %v2119 = vsel %vm792, %v2007, 0
      %v2122 = vsel %vm792, %v2010, 0
      %v2125 = vsel %vm792, %v2042, 0
      %v2128 = vsel %vm792, %v2045, 0
      %v2131 = vsel %vm792, %v2077, 0
      %v2134 = vsel %vm792, %v2080, 0
      %v2137 = vsel %vm792, %v2112, 0
      %v2140 = vsel %vm792, %v2115, 0
      %v2142 = vsel %vm1606, %v2117, 0
      %2144 = vmatpush.msra.mxu0 0.0
      %2145 = vmatpush.msra.mxu0 0.0
      %2146 = vmatpush.msra.mxu0 0.0
      %2147 = vmatpush.msra.mxu0 0.0
      %2148 = vmatpush.msra.mxu0 0.0
      %2149 = vmatpush.msra.mxu0 0.0
      %2150 = vmatpush.msra.mxu0 0.0
      %2151 = vmatpush.msra.mxu0 0.0
      %2152 = vmatpush.msra.mxu0 0.0
      %2153 = vmatpush.msra.mxu0 0.0
      %2154 = vmatpush.msra.mxu0 0.0
      %2155 = vmatpush.msra.mxu0 0.0
      %2156 = vmatpush.msra.mxu0 0.0
      %2157 = vmatpush.msra.mxu0 0.0
      %2158 = vmatpush.msra.mxu0 0.0
      %2159 = vmatpush.msra.mxu0 %v2142
      %2160 = vmatmul.f32.gmra.mxu0 %v2119
      %v2161 = vpop.f32.mrf.mxu0
      %v2162 = vadd.f32 0.0, %v2161
      %2163 = vmatmul.f32.gmra.mxu0 %v2122
      %v2164 = vpop.f32.mrf.mxu0
      %v2165 = vadd.f32 0.0, %v2164
      %2166 = vmatmul.f32.gmra.mxu0 %v2125
      %v2167 = vpop.f32.mrf.mxu0
      %v2168 = vadd.f32 0.0, %v2167
      %2169 = vmatmul.f32.gmra.mxu0 %v2128
      %v2170 = vpop.f32.mrf.mxu0
      %v2171 = vadd.f32 0.0, %v2170
      %2172 = vmatmul.f32.gmra.mxu0 %v2131
      %v2173 = vpop.f32.mrf.mxu0
      %v2174 = vadd.f32 0.0, %v2173
      %2175 = vmatmul.f32.gmra.mxu0 %v2134
      %v2176 = vpop.f32.mrf.mxu0
      %v2177 = vadd.f32 0.0, %v2176
      %2178 = vmatmul.f32.gmra.mxu0 %v2137
      %v2179 = vpop.f32.mrf.mxu0
      %v2180 = vadd.f32 0.0, %v2179
      %2181 = vmatmul.f32.gmra.mxu0 %v2140
      %v2182 = vpop.f32.mrf.mxu0
      %v2183 = vadd.f32 0.0, %v2182
      %2184 = vdwg.mxu0
      %v2185 = vadd.f32 %v1694, %v2162
      %v2186 = vadd.f32 %v1697, %v2165
      %v2187 = vadd.f32 %v1700, %v2168
      %v2188 = vadd.f32 %v1703, %v2171
      %v2189 = vadd.f32 %v1706, %v2174
      %v2190 = vadd.f32 %v1709, %v2177
      %v2191 = vadd.f32 %v1712, %v2180
      %v2192 = vadd.f32 %v1715, %v2183
      %2193 = vrot.lane.b32.xlu0 %v713, 122
      %v2194 = vpop.permute.xlu0 %2193
      %2195 = vrot.lane.b32.xlu0 %v716, 122
      %v2196 = vpop.permute.xlu0 %2195
      %2197 = vrot.lane.b32.xlu0 %v713, 110
      %v2198 = vpop.permute.xlu0 %2197
      %2199 = vrot.lane.b32.xlu0 %v716, 110
      %v2200 = vpop.permute.xlu0 %2199
      %v2201 = vsel %vm792, %v2194, 0
      %v2203 = vsel %vm792, %v2196, 0
      %v2205 = vsel %vm792, %v2198, 0
      %v2207 = vsel %vm792, %v2200, 0
      %2209 = vmatpush.xpose.msra.mxu0 0.0
      %2210 = vmatpush.xpose.msra.mxu0 0.0
      %2211 = vmatpush.xpose.msra.mxu0 0.0
      %2212 = vmatpush.xpose.msra.mxu0 0.0
      %2213 = vmatpush.xpose.msra.mxu0 0.0
      %2214 = vmatpush.xpose.msra.mxu0 0.0
      %2215 = vmatpush.xpose.msra.mxu0 0.0
      %2216 = vmatpush.xpose.msra.mxu0 0.0
      %2217 = vmatpush.xpose.msra.mxu0 0.0
      %2218 = vmatpush.xpose.msra.mxu0 0.0
      %2219 = vmatpush.xpose.msra.mxu0 0.0
      %2220 = vmatpush.xpose.msra.mxu0 0.0
      %2221 = vmatpush.xpose.msra.mxu0 0.0
      %2222 = vmatpush.xpose.msra.mxu0 0.0
      %2223 = vmatpush.xpose.msra.mxu0 %v2207
      %2224 = vmatpush.xpose.msra.mxu0 %v2205
      %2225 = vmatmul.f32.gmra.mxu0 %v2201
      %v2226 = vpop.f32.mrf.mxu0
      %v2227 = vadd.f32 0.0, %v2226
      %2228 = vmatmul.f32.gmra.mxu0 %v2203
      %v2229 = vpop.f32.mrf.mxu0
      %v2230 = vadd.f32 0.0, %v2229
      %2231 = vdwg.mxu0
      %2232 = vrot.lane.b32.xlu0 %v719, 122
      %v2233 = vpop.permute.xlu0 %2232
      %2234 = vrot.lane.b32.xlu0 %v722, 122
      %v2235 = vpop.permute.xlu0 %2234
      %2236 = vrot.lane.b32.xlu0 %v719, 110
      %v2237 = vpop.permute.xlu0 %2236
      %2238 = vrot.lane.b32.xlu0 %v722, 110
      %v2239 = vpop.permute.xlu0 %2238
      %v2240 = vsel %vm792, %v2233, 0
      %v2242 = vsel %vm792, %v2235, 0
      %v2244 = vsel %vm792, %v2237, 0
      %v2246 = vsel %vm792, %v2239, 0
      %2248 = vmatpush.xpose.msra.mxu0 0.0
      %2249 = vmatpush.xpose.msra.mxu0 0.0
      %2250 = vmatpush.xpose.msra.mxu0 0.0
      %2251 = vmatpush.xpose.msra.mxu0 0.0
      %2252 = vmatpush.xpose.msra.mxu0 0.0
      %2253 = vmatpush.xpose.msra.mxu0 0.0
      %2254 = vmatpush.xpose.msra.mxu0 0.0
      %2255 = vmatpush.xpose.msra.mxu0 0.0
      %2256 = vmatpush.xpose.msra.mxu0 0.0
      %2257 = vmatpush.xpose.msra.mxu0 0.0
      %2258 = vmatpush.xpose.msra.mxu0 0.0
      %2259 = vmatpush.xpose.msra.mxu0 0.0
      %2260 = vmatpush.xpose.msra.mxu0 0.0
      %2261 = vmatpush.xpose.msra.mxu0 0.0
      %2262 = vmatpush.xpose.msra.mxu0 %v2246
      %2263 = vmatpush.xpose.msra.mxu0 %v2244
      %2264 = vmatmul.f32.gmra.mxu0 %v2240
      %v2265 = vpop.f32.mrf.mxu0
      %v2266 = vadd.f32 0.0, %v2265
      %2267 = vmatmul.f32.gmra.mxu0 %v2242
      %v2268 = vpop.f32.mrf.mxu0
      %v2269 = vadd.f32 0.0, %v2268
      %2270 = vdwg.mxu0
      %2271 = vrot.lane.b32.xlu0 %v725, 122
      %v2272 = vpop.permute.xlu0 %2271
      %2273 = vrot.lane.b32.xlu0 %v728, 122
      %v2274 = vpop.permute.xlu0 %2273
      %2275 = vrot.lane.b32.xlu0 %v725, 110
      %v2276 = vpop.permute.xlu0 %2275
      %2277 = vrot.lane.b32.xlu0 %v728, 110
      %v2278 = vpop.permute.xlu0 %2277
      %v2279 = vsel %vm792, %v2272, 0
      %v2281 = vsel %vm792, %v2274, 0
      %v2283 = vsel %vm792, %v2276, 0
      %v2285 = vsel %vm792, %v2278, 0
      %2287 = vmatpush.xpose.msra.mxu0 0.0
      %2288 = vmatpush.xpose.msra.mxu0 0.0
      %2289 = vmatpush.xpose.msra.mxu0 0.0
      %2290 = vmatpush.xpose.msra.mxu0 0.0
      %2291 = vmatpush.xpose.msra.mxu0 0.0
      %2292 = vmatpush.xpose.msra.mxu0 0.0
      %2293 = vmatpush.xpose.msra.mxu0 0.0
      %2294 = vmatpush.xpose.msra.mxu0 0.0
      %2295 = vmatpush.xpose.msra.mxu0 0.0
      %2296 = vmatpush.xpose.msra.mxu0 0.0
      %2297 = vmatpush.xpose.msra.mxu0 0.0
      %2298 = vmatpush.xpose.msra.mxu0 0.0
      %2299 = vmatpush.xpose.msra.mxu0 0.0
      %2300 = vmatpush.xpose.msra.mxu0 0.0
      %2301 = vmatpush.xpose.msra.mxu0 %v2285
      %2302 = vmatpush.xpose.msra.mxu0 %v2283
      %2303 = vmatmul.f32.gmra.mxu0 %v2279
      %v2304 = vpop.f32.mrf.mxu0
      %v2305 = vadd.f32 0.0, %v2304
      %2306 = vmatmul.f32.gmra.mxu0 %v2281
      %v2307 = vpop.f32.mrf.mxu0
      %v2308 = vadd.f32 0.0, %v2307
      %2309 = vdwg.mxu0
      %2310 = vrot.lane.b32.xlu0 %v731, 122
      %v2311 = vpop.permute.xlu0 %2310
      %2312 = vrot.lane.b32.xlu0 %v734, 122
      %v2313 = vpop.permute.xlu0 %2312
      %2314 = vrot.lane.b32.xlu0 %v731, 110
      %v2315 = vpop.permute.xlu0 %2314
      %2316 = vrot.lane.b32.xlu0 %v734, 110
      %v2317 = vpop.permute.xlu0 %2316
      %v2318 = vsel %vm792, %v2311, 0
      %v2320 = vsel %vm792, %v2313, 0
      %v2322 = vsel %vm792, %v2315, 0
      %v2324 = vsel %vm792, %v2317, 0
      %2326 = vmatpush.xpose.msra.mxu0 0.0
      %2327 = vmatpush.xpose.msra.mxu0 0.0
      %2328 = vmatpush.xpose.msra.mxu0 0.0
      %2329 = vmatpush.xpose.msra.mxu0 0.0
      %2330 = vmatpush.xpose.msra.mxu0 0.0
      %2331 = vmatpush.xpose.msra.mxu0 0.0
      %2332 = vmatpush.xpose.msra.mxu0 0.0
      %2333 = vmatpush.xpose.msra.mxu0 0.0
      %2334 = vmatpush.xpose.msra.mxu0 0.0
      %2335 = vmatpush.xpose.msra.mxu0 0.0
      %2336 = vmatpush.xpose.msra.mxu0 0.0
      %2337 = vmatpush.xpose.msra.mxu0 0.0
      %2338 = vmatpush.xpose.msra.mxu0 0.0
      %2339 = vmatpush.xpose.msra.mxu0 0.0
      %2340 = vmatpush.xpose.msra.mxu0 %v2324
      %2341 = vmatpush.xpose.msra.mxu0 %v2322
      %2342 = vmatmul.f32.gmra.mxu0 %v2318
      %v2343 = vpop.f32.mrf.mxu0
      %v2344 = vadd.f32 0.0, %v2343
      %2345 = vmatmul.f32.gmra.mxu0 %v2320
      %v2346 = vpop.f32.mrf.mxu0
      %v2347 = vadd.f32 0.0, %v2346
      %2348 = vdwg.mxu0
      %v2349 = vmul.f32 %v2227, 0.70710677
      %v2350 = vmul.f32 %v2230, 0.70710677
      %v2351 = vmul.f32 %v2266, 0.70710677
      %v2352 = vmul.f32 %v2269, 0.70710677
      %v2353 = vmul.f32 %v2305, 0.70710677
      %v2354 = vmul.f32 %v2308, 0.70710677
      %v2355 = vmul.f32 %v2344, 0.70710677
      %v2356 = vmul.f32 %v2347, 0.70710677
      %v2357 = vadd.f32 %v2349, %v762
      %v2358 = vadd.f32 %v2350, %v763
      %v2359 = vadd.f32 %v2351, %v764
      %v2360 = vadd.f32 %v2352, %v765
      %v2361 = vadd.f32 %v2353, %v766
      %v2362 = vadd.f32 %v2354, %v767
      %v2363 = vadd.f32 %v2355, %v768
      %v2364 = vadd.f32 %v2356, %v769
      %v2365 = vsel %vm951, %v2357, -inf
      %2366 = vmax.xlane.f32.xlu0 %v2365
      %v2367 = vpop.xlane.xlu0 %2366
      %v2368 = vsel %vm951, %v2358, -inf
      %2369 = vmax.xlane.f32.xlu0 %v2368
      %v2370 = vpop.xlane.xlu0 %2369
      %v2371 = vsel %vm951, %v2359, -inf
      %2372 = vmax.xlane.f32.xlu0 %v2371
      %v2373 = vpop.xlane.xlu0 %2372
      %v2374 = vsel %vm951, %v2360, -inf
      %2375 = vmax.xlane.f32.xlu0 %v2374
      %v2376 = vpop.xlane.xlu0 %2375
      %v2377 = vsel %vm951, %v2361, -inf
      %2378 = vmax.xlane.f32.xlu0 %v2377
      %v2379 = vpop.xlane.xlu0 %2378
      %v2380 = vsel %vm951, %v2362, -inf
      %2381 = vmax.xlane.f32.xlu0 %v2380
      %v2382 = vpop.xlane.xlu0 %2381
      %v2383 = vsel %vm951, %v2363, -inf
      %2384 = vmax.xlane.f32.xlu0 %v2383
      %v2385 = vpop.xlane.xlu0 %2384
      %v2386 = vsel %vm951, %v2364, -inf
      %2387 = vmax.xlane.f32.xlu0 %v2386
      %v2388 = vpop.xlane.xlu0 %2387
      %v2389 = vsub.f32 %v2357, %v2367
      %v2390 = vsub.f32 %v2358, %v2370
      %v2391 = vsub.f32 %v2359, %v2373
      %v2392 = vsub.f32 %v2360, %v2376
      %v2393 = vsub.f32 %v2361, %v2379
      %v2394 = vsub.f32 %v2362, %v2382
      %v2395 = vsub.f32 %v2363, %v2385
      %v2396 = vsub.f32 %v2364, %v2388
      %v2397 = vmul.f32 %v2389, 1.442695
      %v2398 = vpow.pop %v2397
      %v2399 = vmul.f32 %v2390, 1.442695
      %v2400 = vpow.pop %v2399
      %v2401 = vmul.f32 %v2391, 1.442695
      %v2402 = vpow.pop %v2401
      %v2403 = vmul.f32 %v2392, 1.442695
      %v2404 = vpow.pop %v2403
      %v2405 = vmul.f32 %v2393, 1.442695
      %v2406 = vpow.pop %v2405
      %v2407 = vmul.f32 %v2394, 1.442695
      %v2408 = vpow.pop %v2407
      %v2409 = vmul.f32 %v2395, 1.442695
      %v2410 = vpow.pop %v2409
      %v2411 = vmul.f32 %v2396, 1.442695
      %v2412 = vpow.pop %v2411
      %v2413 = vsel %vm951, %v2398, 0.0
      %2414 = vadd.xlane.f32.xlu0 %v2413
      %v2415 = vpop.xlane.xlu0 %2414
      %v2416 = vsel %vm951, %v2400, 0.0
      %2417 = vadd.xlane.f32.xlu0 %v2416
      %v2418 = vpop.xlane.xlu0 %2417
      %v2419 = vsel %vm951, %v2402, 0.0
      %2420 = vadd.xlane.f32.xlu0 %v2419
      %v2421 = vpop.xlane.xlu0 %2420
      %v2422 = vsel %vm951, %v2404, 0.0
      %2423 = vadd.xlane.f32.xlu0 %v2422
      %v2424 = vpop.xlane.xlu0 %2423
      %v2425 = vsel %vm951, %v2406, 0.0
      %2426 = vadd.xlane.f32.xlu0 %v2425
      %v2427 = vpop.xlane.xlu0 %2426
      %v2428 = vsel %vm951, %v2408, 0.0
      %2429 = vadd.xlane.f32.xlu0 %v2428
      %v2430 = vpop.xlane.xlu0 %2429
      %v2431 = vsel %vm951, %v2410, 0.0
      %2432 = vadd.xlane.f32.xlu0 %v2431
      %v2433 = vpop.xlane.xlu0 %2432
      %v2434 = vsel %vm951, %v2412, 0.0
      %2435 = vadd.xlane.f32.xlu0 %v2434
      %v2436 = vpop.xlane.xlu0 %2435
      %v2437 = vrcp.pop %v2415
      %v2438 = vrcp.pop %v2418
      %v2439 = vrcp.pop %v2421
      %v2440 = vrcp.pop %v2424
      %v2441 = vrcp.pop %v2427
      %v2442 = vrcp.pop %v2430
      %v2443 = vrcp.pop %v2433
      %v2444 = vrcp.pop %v2436
      %v2445 = vmul.f32 %v2398, %v2437
      %v2446 = vmul.f32 %v2400, %v2438
      %v2447 = vmul.f32 %v2402, %v2439
      %v2448 = vmul.f32 %v2404, %v2440
      %v2449 = vmul.f32 %v2406, %v2441
      %v2450 = vmul.f32 %v2408, %v2442
      %v2451 = vmul.f32 %v2410, %v2443
      %v2452 = vmul.f32 %v2412, %v2444
      %2453 = vrot.lane.b32.xlu0 %v713, 98
      %v2454 = vpop.permute.xlu0 %2453
      %2455 = vrot.lane.b32.xlu0 %v716, 98
      %v2456 = vpop.permute.xlu0 %2455
      %v2460 = vsel %vm951, %v2445, 0
      %v2463 = vsel %vm951, %v2446, 0
      %2465 = vmatpush.msra.mxu0 0.0
      %2466 = vmatpush.msra.mxu0 0.0
      %2467 = vmatpush.msra.mxu0 0.0
      %2468 = vmatpush.msra.mxu0 0.0
      %2469 = vmatpush.msra.mxu0 0.0
      %2470 = vmatpush.msra.mxu0 0.0
      %2471 = vmatpush.msra.mxu0 0.0
      %2472 = vmatpush.msra.mxu0 0.0
      %2473 = vmatpush.msra.mxu0 0.0
      %2474 = vmatpush.msra.mxu0 0.0
      %2475 = vmatpush.msra.mxu0 0.0
      %2476 = vmatpush.msra.mxu0 0.0
      %2477 = vmatpush.msra.mxu0 0.0
      %2478 = vmatpush.msra.mxu0 0.0
      %2479 = vmatpush.msra.mxu0 %v2456
      %2480 = vmatpush.msra.mxu0 %v2454
      %2481 = vmatmul.f32.gmra.mxu0 %v2460
      %v2482 = vpop.f32.mrf.mxu0
      %v2483 = vadd.f32 0.0, %v2482
      %2484 = vmatmul.f32.gmra.mxu0 %v2463
      %v2485 = vpop.f32.mrf.mxu0
      %v2486 = vadd.f32 0.0, %v2485
      %2487 = vdwg.mxu0
      %2488 = vrot.lane.b32.xlu0 %v719, 98
      %v2489 = vpop.permute.xlu0 %2488
      %2490 = vrot.lane.b32.xlu0 %v722, 98
      %v2491 = vpop.permute.xlu0 %2490
      %v2495 = vsel %vm951, %v2447, 0
      %v2498 = vsel %vm951, %v2448, 0
      %2500 = vmatpush.msra.mxu0 0.0
      %2501 = vmatpush.msra.mxu0 0.0
      %2502 = vmatpush.msra.mxu0 0.0
      %2503 = vmatpush.msra.mxu0 0.0
      %2504 = vmatpush.msra.mxu0 0.0
      %2505 = vmatpush.msra.mxu0 0.0
      %2506 = vmatpush.msra.mxu0 0.0
      %2507 = vmatpush.msra.mxu0 0.0
      %2508 = vmatpush.msra.mxu0 0.0
      %2509 = vmatpush.msra.mxu0 0.0
      %2510 = vmatpush.msra.mxu0 0.0
      %2511 = vmatpush.msra.mxu0 0.0
      %2512 = vmatpush.msra.mxu0 0.0
      %2513 = vmatpush.msra.mxu0 0.0
      %2514 = vmatpush.msra.mxu0 %v2491
      %2515 = vmatpush.msra.mxu0 %v2489
      %2516 = vmatmul.f32.gmra.mxu0 %v2495
      %v2517 = vpop.f32.mrf.mxu0
      %v2518 = vadd.f32 0.0, %v2517
      %2519 = vmatmul.f32.gmra.mxu0 %v2498
      %v2520 = vpop.f32.mrf.mxu0
      %v2521 = vadd.f32 0.0, %v2520
      %2522 = vdwg.mxu0
      %2523 = vrot.lane.b32.xlu0 %v725, 98
      %v2524 = vpop.permute.xlu0 %2523
      %2525 = vrot.lane.b32.xlu0 %v728, 98
      %v2526 = vpop.permute.xlu0 %2525
      %v2530 = vsel %vm951, %v2449, 0
      %v2533 = vsel %vm951, %v2450, 0
      %2535 = vmatpush.msra.mxu0 0.0
      %2536 = vmatpush.msra.mxu0 0.0
      %2537 = vmatpush.msra.mxu0 0.0
      %2538 = vmatpush.msra.mxu0 0.0
      %2539 = vmatpush.msra.mxu0 0.0
      %2540 = vmatpush.msra.mxu0 0.0
      %2541 = vmatpush.msra.mxu0 0.0
      %2542 = vmatpush.msra.mxu0 0.0
      %2543 = vmatpush.msra.mxu0 0.0
      %2544 = vmatpush.msra.mxu0 0.0
      %2545 = vmatpush.msra.mxu0 0.0
      %2546 = vmatpush.msra.mxu0 0.0
      %2547 = vmatpush.msra.mxu0 0.0
      %2548 = vmatpush.msra.mxu0 0.0
      %2549 = vmatpush.msra.mxu0 %v2526
      %2550 = vmatpush.msra.mxu0 %v2524
      %2551 = vmatmul.f32.gmra.mxu0 %v2530
      %v2552 = vpop.f32.mrf.mxu0
      %v2553 = vadd.f32 0.0, %v2552
      %2554 = vmatmul.f32.gmra.mxu0 %v2533
      %v2555 = vpop.f32.mrf.mxu0
      %v2556 = vadd.f32 0.0, %v2555
      %2557 = vdwg.mxu0
      %2558 = vrot.lane.b32.xlu0 %v731, 98
      %v2559 = vpop.permute.xlu0 %2558
      %2560 = vrot.lane.b32.xlu0 %v734, 98
      %v2561 = vpop.permute.xlu0 %2560
      %v2565 = vsel %vm951, %v2451, 0
      %v2568 = vsel %vm951, %v2452, 0
      %2570 = vmatpush.msra.mxu0 0.0
      %2571 = vmatpush.msra.mxu0 0.0
      %2572 = vmatpush.msra.mxu0 0.0
      %2573 = vmatpush.msra.mxu0 0.0
      %2574 = vmatpush.msra.mxu0 0.0
      %2575 = vmatpush.msra.mxu0 0.0
      %2576 = vmatpush.msra.mxu0 0.0
      %2577 = vmatpush.msra.mxu0 0.0
      %2578 = vmatpush.msra.mxu0 0.0
      %2579 = vmatpush.msra.mxu0 0.0
      %2580 = vmatpush.msra.mxu0 0.0
      %2581 = vmatpush.msra.mxu0 0.0
      %2582 = vmatpush.msra.mxu0 0.0
      %2583 = vmatpush.msra.mxu0 0.0
      %2584 = vmatpush.msra.mxu0 %v2561
      %2585 = vmatpush.msra.mxu0 %v2559
      %2586 = vmatmul.f32.gmra.mxu0 %v2565
      %v2587 = vpop.f32.mrf.mxu0
      %v2588 = vadd.f32 0.0, %v2587
      %2589 = vmatmul.f32.gmra.mxu0 %v2568
      %v2590 = vpop.f32.mrf.mxu0
      %v2591 = vadd.f32 0.0, %v2590
      %2592 = vdwg.mxu0
      %v2593 = vrot.slane %v736, 6
      %v2595 = vsel %vm792, %v2483, 0
      %v2598 = vsel %vm792, %v2486, 0
      %v2601 = vsel %vm792, %v2518, 0
      %v2604 = vsel %vm792, %v2521, 0
      %v2607 = vsel %vm792, %v2553, 0
      %v2610 = vsel %vm792, %v2556, 0
      %v2613 = vsel %vm792, %v2588, 0
      %v2616 = vsel %vm792, %v2591, 0
      %v2618 = vsel %vm1606, %v2593, 0
      %2620 = vmatpush.msra.mxu0 0.0
      %2621 = vmatpush.msra.mxu0 0.0
      %2622 = vmatpush.msra.mxu0 0.0
      %2623 = vmatpush.msra.mxu0 0.0
      %2624 = vmatpush.msra.mxu0 0.0
      %2625 = vmatpush.msra.mxu0 0.0
      %2626 = vmatpush.msra.mxu0 0.0
      %2627 = vmatpush.msra.mxu0 0.0
      %2628 = vmatpush.msra.mxu0 0.0
      %2629 = vmatpush.msra.mxu0 0.0
      %2630 = vmatpush.msra.mxu0 0.0
      %2631 = vmatpush.msra.mxu0 0.0
      %2632 = vmatpush.msra.mxu0 0.0
      %2633 = vmatpush.msra.mxu0 0.0
      %2634 = vmatpush.msra.mxu0 0.0
      %2635 = vmatpush.msra.mxu0 %v2618
      %2636 = vmatmul.f32.gmra.mxu0 %v2595
      %v2637 = vpop.f32.mrf.mxu0
      %v2638 = vadd.f32 0.0, %v2637
      %2639 = vmatmul.f32.gmra.mxu0 %v2598
      %v2640 = vpop.f32.mrf.mxu0
      %v2641 = vadd.f32 0.0, %v2640
      %2642 = vmatmul.f32.gmra.mxu0 %v2601
      %v2643 = vpop.f32.mrf.mxu0
      %v2644 = vadd.f32 0.0, %v2643
      %2645 = vmatmul.f32.gmra.mxu0 %v2604
      %v2646 = vpop.f32.mrf.mxu0
      %v2647 = vadd.f32 0.0, %v2646
      %2648 = vmatmul.f32.gmra.mxu0 %v2607
      %v2649 = vpop.f32.mrf.mxu0
      %v2650 = vadd.f32 0.0, %v2649
      %2651 = vmatmul.f32.gmra.mxu0 %v2610
      %v2652 = vpop.f32.mrf.mxu0
      %v2653 = vadd.f32 0.0, %v2652
      %2654 = vmatmul.f32.gmra.mxu0 %v2613
      %v2655 = vpop.f32.mrf.mxu0
      %v2656 = vadd.f32 0.0, %v2655
      %2657 = vmatmul.f32.gmra.mxu0 %v2616
      %v2658 = vpop.f32.mrf.mxu0
      %v2659 = vadd.f32 0.0, %v2658
      %2660 = vdwg.mxu0
      %v2661 = vadd.f32 %v2185, %v2638
      %v2662 = vadd.f32 %v2186, %v2641
      %v2663 = vadd.f32 %v2187, %v2644
      %v2664 = vadd.f32 %v2188, %v2647
      %v2665 = vadd.f32 %v2189, %v2650
      %v2666 = vadd.f32 %v2190, %v2653
      %v2667 = vadd.f32 %v2191, %v2656
      %v2668 = vadd.f32 %v2192, %v2659
      %2669 = vrot.lane.b32.xlu0 %v713, 120
      %v2670 = vpop.permute.xlu0 %2669
      %2671 = vrot.lane.b32.xlu0 %v716, 120
      %v2672 = vpop.permute.xlu0 %2671
      %2673 = vrot.lane.b32.xlu0 %v713, 108
      %v2674 = vpop.permute.xlu0 %2673
      %2675 = vrot.lane.b32.xlu0 %v716, 108
      %v2676 = vpop.permute.xlu0 %2675
      %v2677 = vsel %vm792, %v2670, 0
      %v2679 = vsel %vm792, %v2672, 0
      %v2681 = vsel %vm792, %v2674, 0
      %v2683 = vsel %vm792, %v2676, 0
      %2685 = vmatpush.xpose.msra.mxu0 0.0
      %2686 = vmatpush.xpose.msra.mxu0 0.0
      %2687 = vmatpush.xpose.msra.mxu0 0.0
      %2688 = vmatpush.xpose.msra.mxu0 0.0
      %2689 = vmatpush.xpose.msra.mxu0 0.0
      %2690 = vmatpush.xpose.msra.mxu0 0.0
      %2691 = vmatpush.xpose.msra.mxu0 0.0
      %2692 = vmatpush.xpose.msra.mxu0 0.0
      %2693 = vmatpush.xpose.msra.mxu0 0.0
      %2694 = vmatpush.xpose.msra.mxu0 0.0
      %2695 = vmatpush.xpose.msra.mxu0 0.0
      %2696 = vmatpush.xpose.msra.mxu0 0.0
      %2697 = vmatpush.xpose.msra.mxu0 0.0
      %2698 = vmatpush.xpose.msra.mxu0 0.0
      %2699 = vmatpush.xpose.msra.mxu0 %v2683
      %2700 = vmatpush.xpose.msra.mxu0 %v2681
      %2701 = vmatmul.f32.gmra.mxu0 %v2677
      %v2702 = vpop.f32.mrf.mxu0
      %v2703 = vadd.f32 0.0, %v2702
      %2704 = vmatmul.f32.gmra.mxu0 %v2679
      %v2705 = vpop.f32.mrf.mxu0
      %v2706 = vadd.f32 0.0, %v2705
      %2707 = vdwg.mxu0
      %2708 = vrot.lane.b32.xlu0 %v719, 120
      %v2709 = vpop.permute.xlu0 %2708
      %2710 = vrot.lane.b32.xlu0 %v722, 120
      %v2711 = vpop.permute.xlu0 %2710
      %2712 = vrot.lane.b32.xlu0 %v719, 108
      %v2713 = vpop.permute.xlu0 %2712
      %2714 = vrot.lane.b32.xlu0 %v722, 108
      %v2715 = vpop.permute.xlu0 %2714
      %v2716 = vsel %vm792, %v2709, 0
      %v2718 = vsel %vm792, %v2711, 0
      %v2720 = vsel %vm792, %v2713, 0
      %v2722 = vsel %vm792, %v2715, 0
      %2724 = vmatpush.xpose.msra.mxu0 0.0
      %2725 = vmatpush.xpose.msra.mxu0 0.0
      %2726 = vmatpush.xpose.msra.mxu0 0.0
      %2727 = vmatpush.xpose.msra.mxu0 0.0
      %2728 = vmatpush.xpose.msra.mxu0 0.0
      %2729 = vmatpush.xpose.msra.mxu0 0.0
      %2730 = vmatpush.xpose.msra.mxu0 0.0
      %2731 = vmatpush.xpose.msra.mxu0 0.0
      %2732 = vmatpush.xpose.msra.mxu0 0.0
      %2733 = vmatpush.xpose.msra.mxu0 0.0
      %2734 = vmatpush.xpose.msra.mxu0 0.0
      %2735 = vmatpush.xpose.msra.mxu0 0.0
      %2736 = vmatpush.xpose.msra.mxu0 0.0
      %2737 = vmatpush.xpose.msra.mxu0 0.0
      %2738 = vmatpush.xpose.msra.mxu0 %v2722
      %2739 = vmatpush.xpose.msra.mxu0 %v2720
      %2740 = vmatmul.f32.gmra.mxu0 %v2716
      %v2741 = vpop.f32.mrf.mxu0
      %v2742 = vadd.f32 0.0, %v2741
      %2743 = vmatmul.f32.gmra.mxu0 %v2718
      %v2744 = vpop.f32.mrf.mxu0
      %v2745 = vadd.f32 0.0, %v2744
      %2746 = vdwg.mxu0
      %2747 = vrot.lane.b32.xlu0 %v725, 120
      %v2748 = vpop.permute.xlu0 %2747
      %2749 = vrot.lane.b32.xlu0 %v728, 120
      %v2750 = vpop.permute.xlu0 %2749
      %2751 = vrot.lane.b32.xlu0 %v725, 108
      %v2752 = vpop.permute.xlu0 %2751
      %2753 = vrot.lane.b32.xlu0 %v728, 108
      %v2754 = vpop.permute.xlu0 %2753
      %v2755 = vsel %vm792, %v2748, 0
      %v2757 = vsel %vm792, %v2750, 0
      %v2759 = vsel %vm792, %v2752, 0
      %v2761 = vsel %vm792, %v2754, 0
      %2763 = vmatpush.xpose.msra.mxu0 0.0
      %2764 = vmatpush.xpose.msra.mxu0 0.0
      %2765 = vmatpush.xpose.msra.mxu0 0.0
      %2766 = vmatpush.xpose.msra.mxu0 0.0
      %2767 = vmatpush.xpose.msra.mxu0 0.0
      %2768 = vmatpush.xpose.msra.mxu0 0.0
      %2769 = vmatpush.xpose.msra.mxu0 0.0
      %2770 = vmatpush.xpose.msra.mxu0 0.0
      %2771 = vmatpush.xpose.msra.mxu0 0.0
      %2772 = vmatpush.xpose.msra.mxu0 0.0
      %2773 = vmatpush.xpose.msra.mxu0 0.0
      %2774 = vmatpush.xpose.msra.mxu0 0.0
      %2775 = vmatpush.xpose.msra.mxu0 0.0
      %2776 = vmatpush.xpose.msra.mxu0 0.0
      %2777 = vmatpush.xpose.msra.mxu0 %v2761
      %2778 = vmatpush.xpose.msra.mxu0 %v2759
      %2779 = vmatmul.f32.gmra.mxu0 %v2755
      %v2780 = vpop.f32.mrf.mxu0
      %v2781 = vadd.f32 0.0, %v2780
      %2782 = vmatmul.f32.gmra.mxu0 %v2757
      %v2783 = vpop.f32.mrf.mxu0
      %v2784 = vadd.f32 0.0, %v2783
      %2785 = vdwg.mxu0
      %2786 = vrot.lane.b32.xlu0 %v731, 120
      %v2787 = vpop.permute.xlu0 %2786
      %2788 = vrot.lane.b32.xlu0 %v734, 120
      %v2789 = vpop.permute.xlu0 %2788
      %2790 = vrot.lane.b32.xlu0 %v731, 108
      %v2791 = vpop.permute.xlu0 %2790
      %2792 = vrot.lane.b32.xlu0 %v734, 108
      %v2793 = vpop.permute.xlu0 %2792
      %v2794 = vsel %vm792, %v2787, 0
      %v2796 = vsel %vm792, %v2789, 0
      %v2798 = vsel %vm792, %v2791, 0
      %v2800 = vsel %vm792, %v2793, 0
      %2802 = vmatpush.xpose.msra.mxu0 0.0
      %2803 = vmatpush.xpose.msra.mxu0 0.0
      %2804 = vmatpush.xpose.msra.mxu0 0.0
      %2805 = vmatpush.xpose.msra.mxu0 0.0
      %2806 = vmatpush.xpose.msra.mxu0 0.0
      %2807 = vmatpush.xpose.msra.mxu0 0.0
      %2808 = vmatpush.xpose.msra.mxu0 0.0
      %2809 = vmatpush.xpose.msra.mxu0 0.0
      %2810 = vmatpush.xpose.msra.mxu0 0.0
      %2811 = vmatpush.xpose.msra.mxu0 0.0
      %2812 = vmatpush.xpose.msra.mxu0 0.0
      %2813 = vmatpush.xpose.msra.mxu0 0.0
      %2814 = vmatpush.xpose.msra.mxu0 0.0
      %2815 = vmatpush.xpose.msra.mxu0 0.0
      %2816 = vmatpush.xpose.msra.mxu0 %v2800
      %2817 = vmatpush.xpose.msra.mxu0 %v2798
      %2818 = vmatmul.f32.gmra.mxu0 %v2794
      %v2819 = vpop.f32.mrf.mxu0
      %v2820 = vadd.f32 0.0, %v2819
      %2821 = vmatmul.f32.gmra.mxu0 %v2796
      %v2822 = vpop.f32.mrf.mxu0
      %v2823 = vadd.f32 0.0, %v2822
      %2824 = vdwg.mxu0
      %v2825 = vmul.f32 %v2703, 0.70710677
      %v2826 = vmul.f32 %v2706, 0.70710677
      %v2827 = vmul.f32 %v2742, 0.70710677
      %v2828 = vmul.f32 %v2745, 0.70710677
      %v2829 = vmul.f32 %v2781, 0.70710677
      %v2830 = vmul.f32 %v2784, 0.70710677
      %v2831 = vmul.f32 %v2820, 0.70710677
      %v2832 = vmul.f32 %v2823, 0.70710677
      %v2833 = vadd.f32 %v2825, %v770
      %v2834 = vadd.f32 %v2826, %v771
      %v2835 = vadd.f32 %v2827, %v772
      %v2836 = vadd.f32 %v2828, %v773
      %v2837 = vadd.f32 %v2829, %v774
      %v2838 = vadd.f32 %v2830, %v775
      %v2839 = vadd.f32 %v2831, %v776
      %v2840 = vadd.f32 %v2832, %v777
      %v2841 = vsel %vm951, %v2833, -inf
      %2842 = vmax.xlane.f32.xlu0 %v2841
      %v2843 = vpop.xlane.xlu0 %2842
      %v2844 = vsel %vm951, %v2834, -inf
      %2845 = vmax.xlane.f32.xlu0 %v2844
      %v2846 = vpop.xlane.xlu0 %2845
      %v2847 = vsel %vm951, %v2835, -inf
      %2848 = vmax.xlane.f32.xlu0 %v2847
      %v2849 = vpop.xlane.xlu0 %2848
      %v2850 = vsel %vm951, %v2836, -inf
      %2851 = vmax.xlane.f32.xlu0 %v2850
      %v2852 = vpop.xlane.xlu0 %2851
      %v2853 = vsel %vm951, %v2837, -inf
      %2854 = vmax.xlane.f32.xlu0 %v2853
      %v2855 = vpop.xlane.xlu0 %2854
      %v2856 = vsel %vm951, %v2838, -inf
      %2857 = vmax.xlane.f32.xlu0 %v2856
      %v2858 = vpop.xlane.xlu0 %2857
      %v2859 = vsel %vm951, %v2839, -inf
      %2860 = vmax.xlane.f32.xlu0 %v2859
      %v2861 = vpop.xlane.xlu0 %2860
      %v2862 = vsel %vm951, %v2840, -inf
      %2863 = vmax.xlane.f32.xlu0 %v2862
      %v2864 = vpop.xlane.xlu0 %2863
      %v2865 = vsub.f32 %v2833, %v2843
      %v2866 = vsub.f32 %v2834, %v2846
      %v2867 = vsub.f32 %v2835, %v2849
      %v2868 = vsub.f32 %v2836, %v2852
      %v2869 = vsub.f32 %v2837, %v2855
      %v2870 = vsub.f32 %v2838, %v2858
      %v2871 = vsub.f32 %v2839, %v2861
      %v2872 = vsub.f32 %v2840, %v2864
      %v2873 = vmul.f32 %v2865, 1.442695
      %v2874 = vpow.pop %v2873
      %v2875 = vmul.f32 %v2866, 1.442695
      %v2876 = vpow.pop %v2875
      %v2877 = vmul.f32 %v2867, 1.442695
      %v2878 = vpow.pop %v2877
      %v2879 = vmul.f32 %v2868, 1.442695
      %v2880 = vpow.pop %v2879
      %v2881 = vmul.f32 %v2869, 1.442695
      %v2882 = vpow.pop %v2881
      %v2883 = vmul.f32 %v2870, 1.442695
      %v2884 = vpow.pop %v2883
      %v2885 = vmul.f32 %v2871, 1.442695
      %v2886 = vpow.pop %v2885
      %v2887 = vmul.f32 %v2872, 1.442695
      %v2888 = vpow.pop %v2887
      %v2889 = vsel %vm951, %v2874, 0.0
      %2890 = vadd.xlane.f32.xlu0 %v2889
      %v2891 = vpop.xlane.xlu0 %2890
      %v2892 = vsel %vm951, %v2876, 0.0
      %2893 = vadd.xlane.f32.xlu0 %v2892
      %v2894 = vpop.xlane.xlu0 %2893
      %v2895 = vsel %vm951, %v2878, 0.0
      %2896 = vadd.xlane.f32.xlu0 %v2895
      %v2897 = vpop.xlane.xlu0 %2896
      %v2898 = vsel %vm951, %v2880, 0.0
      %2899 = vadd.xlane.f32.xlu0 %v2898
      %v2900 = vpop.xlane.xlu0 %2899
      %v2901 = vsel %vm951, %v2882, 0.0
      %2902 = vadd.xlane.f32.xlu0 %v2901
      %v2903 = vpop.xlane.xlu0 %2902
      %v2904 = vsel %vm951, %v2884, 0.0
      %2905 = vadd.xlane.f32.xlu0 %v2904
      %v2906 = vpop.xlane.xlu0 %2905
      %v2907 = vsel %vm951, %v2886, 0.0
      %2908 = vadd.xlane.f32.xlu0 %v2907
      %v2909 = vpop.xlane.xlu0 %2908
      %v2910 = vsel %vm951, %v2888, 0.0
      %2911 = vadd.xlane.f32.xlu0 %v2910
      %v2912 = vpop.xlane.xlu0 %2911
      %v2913 = vrcp.pop %v2891
      %v2914 = vrcp.pop %v2894
      %v2915 = vrcp.pop %v2897
      %v2916 = vrcp.pop %v2900
      %v2917 = vrcp.pop %v2903
      %v2918 = vrcp.pop %v2906
      %v2919 = vrcp.pop %v2909
      %v2920 = vrcp.pop %v2912
      %v2921 = vmul.f32 %v2874, %v2913
      %v2922 = vmul.f32 %v2876, %v2914
      %v2923 = vmul.f32 %v2878, %v2915
      %v2924 = vmul.f32 %v2880, %v2916
      %v2925 = vmul.f32 %v2882, %v2917
      %v2926 = vmul.f32 %v2884, %v2918
      %v2927 = vmul.f32 %v2886, %v2919
      %v2928 = vmul.f32 %v2888, %v2920
      %2929 = vrot.lane.b32.xlu0 %v713, 96
      %v2930 = vpop.permute.xlu0 %2929
      %2931 = vrot.lane.b32.xlu0 %v716, 96
      %v2932 = vpop.permute.xlu0 %2931
      %v2936 = vsel %vm951, %v2921, 0
      %v2939 = vsel %vm951, %v2922, 0
      %2941 = vmatpush.msra.mxu0 0.0
      %2942 = vmatpush.msra.mxu0 0.0
      %2943 = vmatpush.msra.mxu0 0.0
      %2944 = vmatpush.msra.mxu0 0.0
      %2945 = vmatpush.msra.mxu0 0.0
      %2946 = vmatpush.msra.mxu0 0.0
      %2947 = vmatpush.msra.mxu0 0.0
      %2948 = vmatpush.msra.mxu0 0.0
      %2949 = vmatpush.msra.mxu0 0.0
      %2950 = vmatpush.msra.mxu0 0.0
      %2951 = vmatpush.msra.mxu0 0.0
      %2952 = vmatpush.msra.mxu0 0.0
      %2953 = vmatpush.msra.mxu0 0.0
      %2954 = vmatpush.msra.mxu0 0.0
      %2955 = vmatpush.msra.mxu0 %v2932
      %2956 = vmatpush.msra.mxu0 %v2930
      %2957 = vmatmul.f32.gmra.mxu0 %v2936
      %v2958 = vpop.f32.mrf.mxu0
      %v2959 = vadd.f32 0.0, %v2958
      %2960 = vmatmul.f32.gmra.mxu0 %v2939
      %v2961 = vpop.f32.mrf.mxu0
      %v2962 = vadd.f32 0.0, %v2961
      %2963 = vdwg.mxu0
      %2964 = vrot.lane.b32.xlu0 %v719, 96
      %v2965 = vpop.permute.xlu0 %2964
      %2966 = vrot.lane.b32.xlu0 %v722, 96
      %v2967 = vpop.permute.xlu0 %2966
      %v2971 = vsel %vm951, %v2923, 0
      %v2974 = vsel %vm951, %v2924, 0
      %2976 = vmatpush.msra.mxu0 0.0
      %2977 = vmatpush.msra.mxu0 0.0
      %2978 = vmatpush.msra.mxu0 0.0
      %2979 = vmatpush.msra.mxu0 0.0
      %2980 = vmatpush.msra.mxu0 0.0
      %2981 = vmatpush.msra.mxu0 0.0
      %2982 = vmatpush.msra.mxu0 0.0
      %2983 = vmatpush.msra.mxu0 0.0
      %2984 = vmatpush.msra.mxu0 0.0
      %2985 = vmatpush.msra.mxu0 0.0
      %2986 = vmatpush.msra.mxu0 0.0
      %2987 = vmatpush.msra.mxu0 0.0
      %2988 = vmatpush.msra.mxu0 0.0
      %2989 = vmatpush.msra.mxu0 0.0
      %2990 = vmatpush.msra.mxu0 %v2967
      %2991 = vmatpush.msra.mxu0 %v2965
      %2992 = vmatmul.f32.gmra.mxu0 %v2971
      %v2993 = vpop.f32.mrf.mxu0
      %v2994 = vadd.f32 0.0, %v2993
      %2995 = vmatmul.f32.gmra.mxu0 %v2974
      %v2996 = vpop.f32.mrf.mxu0
      %v2997 = vadd.f32 0.0, %v2996
      %2998 = vdwg.mxu0
      %2999 = vrot.lane.b32.xlu0 %v725, 96
      %v3000 = vpop.permute.xlu0 %2999
      %3001 = vrot.lane.b32.xlu0 %v728, 96
      %v3002 = vpop.permute.xlu0 %3001
      %v3006 = vsel %vm951, %v2925, 0
      %v3009 = vsel %vm951, %v2926, 0
      %3011 = vmatpush.msra.mxu0 0.0
      %3012 = vmatpush.msra.mxu0 0.0
      %3013 = vmatpush.msra.mxu0 0.0
      %3014 = vmatpush.msra.mxu0 0.0
      %3015 = vmatpush.msra.mxu0 0.0
      %3016 = vmatpush.msra.mxu0 0.0
      %3017 = vmatpush.msra.mxu0 0.0
      %3018 = vmatpush.msra.mxu0 0.0
      %3019 = vmatpush.msra.mxu0 0.0
      %3020 = vmatpush.msra.mxu0 0.0
      %3021 = vmatpush.msra.mxu0 0.0
      %3022 = vmatpush.msra.mxu0 0.0
      %3023 = vmatpush.msra.mxu0 0.0
      %3024 = vmatpush.msra.mxu0 0.0
      %3025 = vmatpush.msra.mxu0 %v3002
      %3026 = vmatpush.msra.mxu0 %v3000
      %3027 = vmatmul.f32.gmra.mxu0 %v3006
      %v3028 = vpop.f32.mrf.mxu0
      %v3029 = vadd.f32 0.0, %v3028
      %3030 = vmatmul.f32.gmra.mxu0 %v3009
      %v3031 = vpop.f32.mrf.mxu0
      %v3032 = vadd.f32 0.0, %v3031
      %3033 = vdwg.mxu0
      %3034 = vrot.lane.b32.xlu0 %v731, 96
      %v3035 = vpop.permute.xlu0 %3034
      %3036 = vrot.lane.b32.xlu0 %v734, 96
      %v3037 = vpop.permute.xlu0 %3036
      %v3041 = vsel %vm951, %v2927, 0
      %v3044 = vsel %vm951, %v2928, 0
      %3046 = vmatpush.msra.mxu0 0.0
      %3047 = vmatpush.msra.mxu0 0.0
      %3048 = vmatpush.msra.mxu0 0.0
      %3049 = vmatpush.msra.mxu0 0.0
      %3050 = vmatpush.msra.mxu0 0.0
      %3051 = vmatpush.msra.mxu0 0.0
      %3052 = vmatpush.msra.mxu0 0.0
      %3053 = vmatpush.msra.mxu0 0.0
      %3054 = vmatpush.msra.mxu0 0.0
      %3055 = vmatpush.msra.mxu0 0.0
      %3056 = vmatpush.msra.mxu0 0.0
      %3057 = vmatpush.msra.mxu0 0.0
      %3058 = vmatpush.msra.mxu0 0.0
      %3059 = vmatpush.msra.mxu0 0.0
      %3060 = vmatpush.msra.mxu0 %v3037
      %3061 = vmatpush.msra.mxu0 %v3035
      %3062 = vmatmul.f32.gmra.mxu0 %v3041
      %v3063 = vpop.f32.mrf.mxu0
      %v3064 = vadd.f32 0.0, %v3063
      %3065 = vmatmul.f32.gmra.mxu0 %v3044
      %v3066 = vpop.f32.mrf.mxu0
      %v3067 = vadd.f32 0.0, %v3066
      %3068 = vdwg.mxu0
      %v3070 = vsel %vm792, %v2959, 0
      %v3073 = vsel %vm792, %v2962, 0
      %v3076 = vsel %vm792, %v2994, 0
      %v3079 = vsel %vm792, %v2997, 0
      %v3082 = vsel %vm792, %v3029, 0
      %v3085 = vsel %vm792, %v3032, 0
      %v3088 = vsel %vm792, %v3064, 0
      %v3091 = vsel %vm792, %v3067, 0
      %v3094 = vsel %vm1606, %v737, 0
      %3096 = vmatpush.msra.mxu0 0.0
      %3097 = vmatpush.msra.mxu0 0.0
      %3098 = vmatpush.msra.mxu0 0.0
      %3099 = vmatpush.msra.mxu0 0.0
      %3100 = vmatpush.msra.mxu0 0.0
      %3101 = vmatpush.msra.mxu0 0.0
      %3102 = vmatpush.msra.mxu0 0.0
      %3103 = vmatpush.msra.mxu0 0.0
      %3104 = vmatpush.msra.mxu0 0.0
      %3105 = vmatpush.msra.mxu0 0.0
      %3106 = vmatpush.msra.mxu0 0.0
      %3107 = vmatpush.msra.mxu0 0.0
      %3108 = vmatpush.msra.mxu0 0.0
      %3109 = vmatpush.msra.mxu0 0.0
      %3110 = vmatpush.msra.mxu0 0.0
      %3111 = vmatpush.msra.mxu0 %v3094
      %3112 = vmatmul.f32.gmra.mxu0 %v3070
      %v3113 = vpop.f32.mrf.mxu0
      %v3114 = vadd.f32 0.0, %v3113
      %3115 = vmatmul.f32.gmra.mxu0 %v3073
      %v3116 = vpop.f32.mrf.mxu0
      %v3117 = vadd.f32 0.0, %v3116
      %3118 = vmatmul.f32.gmra.mxu0 %v3076
      %v3119 = vpop.f32.mrf.mxu0
      %v3120 = vadd.f32 0.0, %v3119
      %3121 = vmatmul.f32.gmra.mxu0 %v3079
      %v3122 = vpop.f32.mrf.mxu0
      %v3123 = vadd.f32 0.0, %v3122
      %3124 = vmatmul.f32.gmra.mxu0 %v3082
      %v3125 = vpop.f32.mrf.mxu0
      %v3126 = vadd.f32 0.0, %v3125
      %3127 = vmatmul.f32.gmra.mxu0 %v3085
      %v3128 = vpop.f32.mrf.mxu0
      %v3129 = vadd.f32 0.0, %v3128
      %3130 = vmatmul.f32.gmra.mxu0 %v3088
      %v3131 = vpop.f32.mrf.mxu0
      %v3132 = vadd.f32 0.0, %v3131
      %3133 = vmatmul.f32.gmra.mxu0 %v3091
      %v3134 = vpop.f32.mrf.mxu0
      %v3135 = vadd.f32 0.0, %v3134
      %3136 = vdwg.mxu0
      %v3137 = vadd.f32 %v2661, %v3114
      %v3138 = vadd.f32 %v2662, %v3117
      %v3139 = vadd.f32 %v2663, %v3120
      %v3140 = vadd.f32 %v2664, %v3123
      %v3141 = vadd.f32 %v2665, %v3126
      %v3142 = vadd.f32 %v2666, %v3129
      %v3143 = vadd.f32 %v2667, %v3132
      %v3144 = vadd.f32 %v2668, %v3135
      %3145 = vrot.lane.b32.xlu0 %v713, 118
      %v3146 = vpop.permute.xlu0 %3145
      %3147 = vrot.lane.b32.xlu0 %v716, 118
      %v3148 = vpop.permute.xlu0 %3147
      %3149 = vrot.lane.b32.xlu0 %v713, 106
      %v3150 = vpop.permute.xlu0 %3149
      %3151 = vrot.lane.b32.xlu0 %v716, 106
      %v3152 = vpop.permute.xlu0 %3151
      %v3153 = vsel %vm792, %v3146, 0
      %v3155 = vsel %vm792, %v3148, 0
      %v3157 = vsel %vm792, %v3150, 0
      %v3159 = vsel %vm792, %v3152, 0
      %3161 = vmatpush.xpose.msra.mxu0 0.0
      %3162 = vmatpush.xpose.msra.mxu0 0.0
      %3163 = vmatpush.xpose.msra.mxu0 0.0
      %3164 = vmatpush.xpose.msra.mxu0 0.0
      %3165 = vmatpush.xpose.msra.mxu0 0.0
      %3166 = vmatpush.xpose.msra.mxu0 0.0
      %3167 = vmatpush.xpose.msra.mxu0 0.0
      %3168 = vmatpush.xpose.msra.mxu0 0.0
      %3169 = vmatpush.xpose.msra.mxu0 0.0
      %3170 = vmatpush.xpose.msra.mxu0 0.0
      %3171 = vmatpush.xpose.msra.mxu0 0.0
      %3172 = vmatpush.xpose.msra.mxu0 0.0
      %3173 = vmatpush.xpose.msra.mxu0 0.0
      %3174 = vmatpush.xpose.msra.mxu0 0.0
      %3175 = vmatpush.xpose.msra.mxu0 %v3159
      %3176 = vmatpush.xpose.msra.mxu0 %v3157
      %3177 = vmatmul.f32.gmra.mxu0 %v3153
      %v3178 = vpop.f32.mrf.mxu0
      %v3179 = vadd.f32 0.0, %v3178
      %3180 = vmatmul.f32.gmra.mxu0 %v3155
      %v3181 = vpop.f32.mrf.mxu0
      %v3182 = vadd.f32 0.0, %v3181
      %3183 = vdwg.mxu0
      %3184 = vrot.lane.b32.xlu0 %v719, 118
      %v3185 = vpop.permute.xlu0 %3184
      %3186 = vrot.lane.b32.xlu0 %v722, 118
      %v3187 = vpop.permute.xlu0 %3186
      %3188 = vrot.lane.b32.xlu0 %v719, 106
      %v3189 = vpop.permute.xlu0 %3188
      %3190 = vrot.lane.b32.xlu0 %v722, 106
      %v3191 = vpop.permute.xlu0 %3190
      %v3192 = vsel %vm792, %v3185, 0
      %v3194 = vsel %vm792, %v3187, 0
      %v3196 = vsel %vm792, %v3189, 0
      %v3198 = vsel %vm792, %v3191, 0
      %3200 = vmatpush.xpose.msra.mxu0 0.0
      %3201 = vmatpush.xpose.msra.mxu0 0.0
      %3202 = vmatpush.xpose.msra.mxu0 0.0
      %3203 = vmatpush.xpose.msra.mxu0 0.0
      %3204 = vmatpush.xpose.msra.mxu0 0.0
      %3205 = vmatpush.xpose.msra.mxu0 0.0
      %3206 = vmatpush.xpose.msra.mxu0 0.0
      %3207 = vmatpush.xpose.msra.mxu0 0.0
      %3208 = vmatpush.xpose.msra.mxu0 0.0
      %3209 = vmatpush.xpose.msra.mxu0 0.0
      %3210 = vmatpush.xpose.msra.mxu0 0.0
      %3211 = vmatpush.xpose.msra.mxu0 0.0
      %3212 = vmatpush.xpose.msra.mxu0 0.0
      %3213 = vmatpush.xpose.msra.mxu0 0.0
      %3214 = vmatpush.xpose.msra.mxu0 %v3198
      %3215 = vmatpush.xpose.msra.mxu0 %v3196
      %3216 = vmatmul.f32.gmra.mxu0 %v3192
      %v3217 = vpop.f32.mrf.mxu0
      %v3218 = vadd.f32 0.0, %v3217
      %3219 = vmatmul.f32.gmra.mxu0 %v3194
      %v3220 = vpop.f32.mrf.mxu0
      %v3221 = vadd.f32 0.0, %v3220
      %3222 = vdwg.mxu0
      %3223 = vrot.lane.b32.xlu0 %v725, 118
      %v3224 = vpop.permute.xlu0 %3223
      %3225 = vrot.lane.b32.xlu0 %v728, 118
      %v3226 = vpop.permute.xlu0 %3225
      %3227 = vrot.lane.b32.xlu0 %v725, 106
      %v3228 = vpop.permute.xlu0 %3227
      %3229 = vrot.lane.b32.xlu0 %v728, 106
      %v3230 = vpop.permute.xlu0 %3229
      %v3231 = vsel %vm792, %v3224, 0
      %v3233 = vsel %vm792, %v3226, 0
      %v3235 = vsel %vm792, %v3228, 0
      %v3237 = vsel %vm792, %v3230, 0
      %3239 = vmatpush.xpose.msra.mxu0 0.0
      %3240 = vmatpush.xpose.msra.mxu0 0.0
      %3241 = vmatpush.xpose.msra.mxu0 0.0
      %3242 = vmatpush.xpose.msra.mxu0 0.0
      %3243 = vmatpush.xpose.msra.mxu0 0.0
      %3244 = vmatpush.xpose.msra.mxu0 0.0
      %3245 = vmatpush.xpose.msra.mxu0 0.0
      %3246 = vmatpush.xpose.msra.mxu0 0.0
      %3247 = vmatpush.xpose.msra.mxu0 0.0
      %3248 = vmatpush.xpose.msra.mxu0 0.0
      %3249 = vmatpush.xpose.msra.mxu0 0.0
      %3250 = vmatpush.xpose.msra.mxu0 0.0
      %3251 = vmatpush.xpose.msra.mxu0 0.0
      %3252 = vmatpush.xpose.msra.mxu0 0.0
      %3253 = vmatpush.xpose.msra.mxu0 %v3237
      %3254 = vmatpush.xpose.msra.mxu0 %v3235
      %3255 = vmatmul.f32.gmra.mxu0 %v3231
      %v3256 = vpop.f32.mrf.mxu0
      %v3257 = vadd.f32 0.0, %v3256
      %3258 = vmatmul.f32.gmra.mxu0 %v3233
      %v3259 = vpop.f32.mrf.mxu0
      %v3260 = vadd.f32 0.0, %v3259
      %3261 = vdwg.mxu0
      %3262 = vrot.lane.b32.xlu0 %v731, 118
      %v3263 = vpop.permute.xlu0 %3262
      %3264 = vrot.lane.b32.xlu0 %v734, 118
      %v3265 = vpop.permute.xlu0 %3264
      %3266 = vrot.lane.b32.xlu0 %v731, 106
      %v3267 = vpop.permute.xlu0 %3266
      %3268 = vrot.lane.b32.xlu0 %v734, 106
      %v3269 = vpop.permute.xlu0 %3268
      %v3270 = vsel %vm792, %v3263, 0
      %v3272 = vsel %vm792, %v3265, 0
      %v3274 = vsel %vm792, %v3267, 0
      %v3276 = vsel %vm792, %v3269, 0
      %3278 = vmatpush.xpose.msra.mxu0 0.0
      %3279 = vmatpush.xpose.msra.mxu0 0.0
      %3280 = vmatpush.xpose.msra.mxu0 0.0
      %3281 = vmatpush.xpose.msra.mxu0 0.0
      %3282 = vmatpush.xpose.msra.mxu0 0.0
      %3283 = vmatpush.xpose.msra.mxu0 0.0
      %3284 = vmatpush.xpose.msra.mxu0 0.0
      %3285 = vmatpush.xpose.msra.mxu0 0.0
      %3286 = vmatpush.xpose.msra.mxu0 0.0
      %3287 = vmatpush.xpose.msra.mxu0 0.0
      %3288 = vmatpush.xpose.msra.mxu0 0.0
      %3289 = vmatpush.xpose.msra.mxu0 0.0
      %3290 = vmatpush.xpose.msra.mxu0 0.0
      %3291 = vmatpush.xpose.msra.mxu0 0.0
      %3292 = vmatpush.xpose.msra.mxu0 %v3276
      %3293 = vmatpush.xpose.msra.mxu0 %v3274
      %3294 = vmatmul.f32.gmra.mxu0 %v3270
      %v3295 = vpop.f32.mrf.mxu0
      %v3296 = vadd.f32 0.0, %v3295
      %3297 = vmatmul.f32.gmra.mxu0 %v3272
      %v3298 = vpop.f32.mrf.mxu0
      %v3299 = vadd.f32 0.0, %v3298
      %3300 = vdwg.mxu0
      %v3301 = vmul.f32 %v3179, 0.70710677
      %v3302 = vmul.f32 %v3182, 0.70710677
      %v3303 = vmul.f32 %v3218, 0.70710677
      %v3304 = vmul.f32 %v3221, 0.70710677
      %v3305 = vmul.f32 %v3257, 0.70710677
      %v3306 = vmul.f32 %v3260, 0.70710677
      %v3307 = vmul.f32 %v3296, 0.70710677
      %v3308 = vmul.f32 %v3299, 0.70710677
      %v3309 = vadd.f32 %v3301, %v778
      %v3310 = vadd.f32 %v3302, %v779
      %v3311 = vadd.f32 %v3303, %v780
      %v3312 = vadd.f32 %v3304, %v781
      %v3313 = vadd.f32 %v3305, %v782
      %v3314 = vadd.f32 %v3306, %v783
      %v3315 = vadd.f32 %v3307, %v784
      %v3316 = vadd.f32 %v3308, %v785
      %v3317 = vsel %vm951, %v3309, -inf
      %3318 = vmax.xlane.f32.xlu0 %v3317
      %v3319 = vpop.xlane.xlu0 %3318
      %v3320 = vsel %vm951, %v3310, -inf
      %3321 = vmax.xlane.f32.xlu0 %v3320
      %v3322 = vpop.xlane.xlu0 %3321
      %v3323 = vsel %vm951, %v3311, -inf
      %3324 = vmax.xlane.f32.xlu0 %v3323
      %v3325 = vpop.xlane.xlu0 %3324
      %v3326 = vsel %vm951, %v3312, -inf
      %3327 = vmax.xlane.f32.xlu0 %v3326
      %v3328 = vpop.xlane.xlu0 %3327
      %v3329 = vsel %vm951, %v3313, -inf
      %3330 = vmax.xlane.f32.xlu0 %v3329
      %v3331 = vpop.xlane.xlu0 %3330
      %v3332 = vsel %vm951, %v3314, -inf
      %3333 = vmax.xlane.f32.xlu0 %v3332
      %v3334 = vpop.xlane.xlu0 %3333
      %v3335 = vsel %vm951, %v3315, -inf
      %3336 = vmax.xlane.f32.xlu0 %v3335
      %v3337 = vpop.xlane.xlu0 %3336
      %v3338 = vsel %vm951, %v3316, -inf
      %3339 = vmax.xlane.f32.xlu0 %v3338
      %v3340 = vpop.xlane.xlu0 %3339
      %v3341 = vsub.f32 %v3309, %v3319
      %v3342 = vsub.f32 %v3310, %v3322
      %v3343 = vsub.f32 %v3311, %v3325
      %v3344 = vsub.f32 %v3312, %v3328
      %v3345 = vsub.f32 %v3313, %v3331
      %v3346 = vsub.f32 %v3314, %v3334
      %v3347 = vsub.f32 %v3315, %v3337
      %v3348 = vsub.f32 %v3316, %v3340
      %v3349 = vmul.f32 %v3341, 1.442695
      %v3350 = vpow.pop %v3349
      %v3351 = vmul.f32 %v3342, 1.442695
      %v3352 = vpow.pop %v3351
      %v3353 = vmul.f32 %v3343, 1.442695
      %v3354 = vpow.pop %v3353
      %v3355 = vmul.f32 %v3344, 1.442695
      %v3356 = vpow.pop %v3355
      %v3357 = vmul.f32 %v3345, 1.442695
      %v3358 = vpow.pop %v3357
      %v3359 = vmul.f32 %v3346, 1.442695
      %v3360 = vpow.pop %v3359
      %v3361 = vmul.f32 %v3347, 1.442695
      %v3362 = vpow.pop %v3361
      %v3363 = vmul.f32 %v3348, 1.442695
      %v3364 = vpow.pop %v3363
      %v3365 = vsel %vm951, %v3350, 0.0
      %3366 = vadd.xlane.f32.xlu0 %v3365
      %v3367 = vpop.xlane.xlu0 %3366
      %v3368 = vsel %vm951, %v3352, 0.0
      %3369 = vadd.xlane.f32.xlu0 %v3368
      %v3370 = vpop.xlane.xlu0 %3369
      %v3371 = vsel %vm951, %v3354, 0.0
      %3372 = vadd.xlane.f32.xlu0 %v3371
      %v3373 = vpop.xlane.xlu0 %3372
      %v3374 = vsel %vm951, %v3356, 0.0
      %3375 = vadd.xlane.f32.xlu0 %v3374
      %v3376 = vpop.xlane.xlu0 %3375
      %v3377 = vsel %vm951, %v3358, 0.0
      %3378 = vadd.xlane.f32.xlu0 %v3377
      %v3379 = vpop.xlane.xlu0 %3378
      %v3380 = vsel %vm951, %v3360, 0.0
      %3381 = vadd.xlane.f32.xlu0 %v3380
      %v3382 = vpop.xlane.xlu0 %3381
      %v3383 = vsel %vm951, %v3362, 0.0
      %3384 = vadd.xlane.f32.xlu0 %v3383
      %v3385 = vpop.xlane.xlu0 %3384
      %v3386 = vsel %vm951, %v3364, 0.0
      %3387 = vadd.xlane.f32.xlu0 %v3386
      %v3388 = vpop.xlane.xlu0 %3387
      %v3389 = vrcp.pop %v3367
      %v3390 = vrcp.pop %v3370
      %v3391 = vrcp.pop %v3373
      %v3392 = vrcp.pop %v3376
      %v3393 = vrcp.pop %v3379
      %v3394 = vrcp.pop %v3382
      %v3395 = vrcp.pop %v3385
      %v3396 = vrcp.pop %v3388
      %v3397 = vmul.f32 %v3350, %v3389
      %v3398 = vmul.f32 %v3352, %v3390
      %v3399 = vmul.f32 %v3354, %v3391
      %v3400 = vmul.f32 %v3356, %v3392
      %v3401 = vmul.f32 %v3358, %v3393
      %v3402 = vmul.f32 %v3360, %v3394
      %v3403 = vmul.f32 %v3362, %v3395
      %v3404 = vmul.f32 %v3364, %v3396
      %3405 = vrot.lane.b32.xlu0 %v713, 94
      %v3406 = vpop.permute.xlu0 %3405
      %3407 = vrot.lane.b32.xlu0 %v716, 94
      %v3408 = vpop.permute.xlu0 %3407
      %v3412 = vsel %vm951, %v3397, 0
      %v3415 = vsel %vm951, %v3398, 0
      %3417 = vmatpush.msra.mxu0 0.0
      %3418 = vmatpush.msra.mxu0 0.0
      %3419 = vmatpush.msra.mxu0 0.0
      %3420 = vmatpush.msra.mxu0 0.0
      %3421 = vmatpush.msra.mxu0 0.0
      %3422 = vmatpush.msra.mxu0 0.0
      %3423 = vmatpush.msra.mxu0 0.0
      %3424 = vmatpush.msra.mxu0 0.0
      %3425 = vmatpush.msra.mxu0 0.0
      %3426 = vmatpush.msra.mxu0 0.0
      %3427 = vmatpush.msra.mxu0 0.0
      %3428 = vmatpush.msra.mxu0 0.0
      %3429 = vmatpush.msra.mxu0 0.0
      %3430 = vmatpush.msra.mxu0 0.0
      %3431 = vmatpush.msra.mxu0 %v3408
      %3432 = vmatpush.msra.mxu0 %v3406
      %3433 = vmatmul.f32.gmra.mxu0 %v3412
      %v3434 = vpop.f32.mrf.mxu0
      %v3435 = vadd.f32 0.0, %v3434
      %3436 = vmatmul.f32.gmra.mxu0 %v3415
      %v3437 = vpop.f32.mrf.mxu0
      %v3438 = vadd.f32 0.0, %v3437
      %3439 = vdwg.mxu0
      %3440 = vrot.lane.b32.xlu0 %v719, 94
      %v3441 = vpop.permute.xlu0 %3440
      %3442 = vrot.lane.b32.xlu0 %v722, 94
      %v3443 = vpop.permute.xlu0 %3442
      %v3447 = vsel %vm951, %v3399, 0
      %v3450 = vsel %vm951, %v3400, 0
      %3452 = vmatpush.msra.mxu0 0.0
      %3453 = vmatpush.msra.mxu0 0.0
      %3454 = vmatpush.msra.mxu0 0.0
      %3455 = vmatpush.msra.mxu0 0.0
      %3456 = vmatpush.msra.mxu0 0.0
      %3457 = vmatpush.msra.mxu0 0.0
      %3458 = vmatpush.msra.mxu0 0.0
      %3459 = vmatpush.msra.mxu0 0.0
      %3460 = vmatpush.msra.mxu0 0.0
      %3461 = vmatpush.msra.mxu0 0.0
      %3462 = vmatpush.msra.mxu0 0.0
      %3463 = vmatpush.msra.mxu0 0.0
      %3464 = vmatpush.msra.mxu0 0.0
      %3465 = vmatpush.msra.mxu0 0.0
      %3466 = vmatpush.msra.mxu0 %v3443
      %3467 = vmatpush.msra.mxu0 %v3441
      %3468 = vmatmul.f32.gmra.mxu0 %v3447
      %v3469 = vpop.f32.mrf.mxu0
      %v3470 = vadd.f32 0.0, %v3469
      %3471 = vmatmul.f32.gmra.mxu0 %v3450
      %v3472 = vpop.f32.mrf.mxu0
      %v3473 = vadd.f32 0.0, %v3472
      %3474 = vdwg.mxu0
      %3475 = vrot.lane.b32.xlu0 %v725, 94
      %v3476 = vpop.permute.xlu0 %3475
      %3477 = vrot.lane.b32.xlu0 %v728, 94
      %v3478 = vpop.permute.xlu0 %3477
      %v3482 = vsel %vm951, %v3401, 0
      %v3485 = vsel %vm951, %v3402, 0
      %3487 = vmatpush.msra.mxu0 0.0
      %3488 = vmatpush.msra.mxu0 0.0
      %3489 = vmatpush.msra.mxu0 0.0
      %3490 = vmatpush.msra.mxu0 0.0
      %3491 = vmatpush.msra.mxu0 0.0
      %3492 = vmatpush.msra.mxu0 0.0
      %3493 = vmatpush.msra.mxu0 0.0
      %3494 = vmatpush.msra.mxu0 0.0
      %3495 = vmatpush.msra.mxu0 0.0
      %3496 = vmatpush.msra.mxu0 0.0
      %3497 = vmatpush.msra.mxu0 0.0
      %3498 = vmatpush.msra.mxu0 0.0
      %3499 = vmatpush.msra.mxu0 0.0
      %3500 = vmatpush.msra.mxu0 0.0
      %3501 = vmatpush.msra.mxu0 %v3478
      %3502 = vmatpush.msra.mxu0 %v3476
      %3503 = vmatmul.f32.gmra.mxu0 %v3482
      %v3504 = vpop.f32.mrf.mxu0
      %v3505 = vadd.f32 0.0, %v3504
      %3506 = vmatmul.f32.gmra.mxu0 %v3485
      %v3507 = vpop.f32.mrf.mxu0
      %v3508 = vadd.f32 0.0, %v3507
      %3509 = vdwg.mxu0
      %3510 = vrot.lane.b32.xlu0 %v731, 94
      %v3511 = vpop.permute.xlu0 %3510
      %3512 = vrot.lane.b32.xlu0 %v734, 94
      %v3513 = vpop.permute.xlu0 %3512
      %v3517 = vsel %vm951, %v3403, 0
      %v3520 = vsel %vm951, %v3404, 0
      %3522 = vmatpush.msra.mxu0 0.0
      %3523 = vmatpush.msra.mxu0 0.0
      %3524 = vmatpush.msra.mxu0 0.0
      %3525 = vmatpush.msra.mxu0 0.0
      %3526 = vmatpush.msra.mxu0 0.0
      %3527 = vmatpush.msra.mxu0 0.0
      %3528 = vmatpush.msra.mxu0 0.0
      %3529 = vmatpush.msra.mxu0 0.0
      %3530 = vmatpush.msra.mxu0 0.0
      %3531 = vmatpush.msra.mxu0 0.0
      %3532 = vmatpush.msra.mxu0 0.0
      %3533 = vmatpush.msra.mxu0 0.0
      %3534 = vmatpush.msra.mxu0 0.0
      %3535 = vmatpush.msra.mxu0 0.0
      %3536 = vmatpush.msra.mxu0 %v3513
      %3537 = vmatpush.msra.mxu0 %v3511
      %3538 = vmatmul.f32.gmra.mxu0 %v3517
      %v3539 = vpop.f32.mrf.mxu0
      %v3540 = vadd.f32 0.0, %v3539
      %3541 = vmatmul.f32.gmra.mxu0 %v3520
      %v3542 = vpop.f32.mrf.mxu0
      %v3543 = vadd.f32 0.0, %v3542
      %3544 = vdwg.mxu0
      %v3545 = vrot.slane %v737, 2
      %v3547 = vsel %vm792, %v3435, 0
      %v3550 = vsel %vm792, %v3438, 0
      %v3553 = vsel %vm792, %v3470, 0
      %v3556 = vsel %vm792, %v3473, 0
      %v3559 = vsel %vm792, %v3505, 0
      %v3562 = vsel %vm792, %v3508, 0
      %v3565 = vsel %vm792, %v3540, 0
      %v3568 = vsel %vm792, %v3543, 0
      %v3570 = vsel %vm1606, %v3545, 0
      %3572 = vmatpush.msra.mxu0 0.0
      %3573 = vmatpush.msra.mxu0 0.0
      %3574 = vmatpush.msra.mxu0 0.0
      %3575 = vmatpush.msra.mxu0 0.0
      %3576 = vmatpush.msra.mxu0 0.0
      %3577 = vmatpush.msra.mxu0 0.0
      %3578 = vmatpush.msra.mxu0 0.0
      %3579 = vmatpush.msra.mxu0 0.0
      %3580 = vmatpush.msra.mxu0 0.0
      %3581 = vmatpush.msra.mxu0 0.0
      %3582 = vmatpush.msra.mxu0 0.0
      %3583 = vmatpush.msra.mxu0 0.0
      %3584 = vmatpush.msra.mxu0 0.0
      %3585 = vmatpush.msra.mxu0 0.0
      %3586 = vmatpush.msra.mxu0 0.0
      %3587 = vmatpush.msra.mxu0 %v3570
      %3588 = vmatmul.f32.gmra.mxu0 %v3547
      %v3589 = vpop.f32.mrf.mxu0
      %v3590 = vadd.f32 0.0, %v3589
      %3591 = vmatmul.f32.gmra.mxu0 %v3550
      %v3592 = vpop.f32.mrf.mxu0
      %v3593 = vadd.f32 0.0, %v3592
      %3594 = vmatmul.f32.gmra.mxu0 %v3553
      %v3595 = vpop.f32.mrf.mxu0
      %v3596 = vadd.f32 0.0, %v3595
      %3597 = vmatmul.f32.gmra.mxu0 %v3556
      %v3598 = vpop.f32.mrf.mxu0
      %v3599 = vadd.f32 0.0, %v3598
      %3600 = vmatmul.f32.gmra.mxu0 %v3559
      %v3601 = vpop.f32.mrf.mxu0
      %v3602 = vadd.f32 0.0, %v3601
      %3603 = vmatmul.f32.gmra.mxu0 %v3562
      %v3604 = vpop.f32.mrf.mxu0
      %v3605 = vadd.f32 0.0, %v3604
      %3606 = vmatmul.f32.gmra.mxu0 %v3565
      %v3607 = vpop.f32.mrf.mxu0
      %v3608 = vadd.f32 0.0, %v3607
      %3609 = vmatmul.f32.gmra.mxu0 %v3568
      %v3610 = vpop.f32.mrf.mxu0
      %v3611 = vadd.f32 0.0, %v3610
      %3612 = vdwg.mxu0
      %v3613 = vadd.f32 %v3137, %v3590
      %v3614 = vadd.f32 %v3138, %v3593
      %v3615 = vadd.f32 %v3139, %v3596
      %v3616 = vadd.f32 %v3140, %v3599
      %v3617 = vadd.f32 %v3141, %v3602
      %v3618 = vadd.f32 %v3142, %v3605
      %v3619 = vadd.f32 %v3143, %v3608
      %v3620 = vadd.f32 %v3144, %v3611
      %v3621 = vld [vmem:[%s6] sm:$0x1]
      %v3623 = vperm.slane %v3621, 0
      %v3625 = vadd.f32 %v3613, %v3623
      %v3626 = vadd.f32 %v3614, %v3623
      %v3627 = vadd.f32 %v3615, %v3623
      %v3628 = vadd.f32 %v3616, %v3623
      %v3629 = vadd.f32 %v3617, %v3623
      %v3630 = vadd.f32 %v3618, %v3623
      %v3631 = vadd.f32 %v3619, %v3623
      %v3632 = vadd.f32 %v3620, %v3623
      %v3633 = vadd.f32 %v3625, %v449
      %v3634 = vadd.f32 %v3626, %v450
      %v3635 = vadd.f32 %v3627, %v451
      %v3636 = vadd.f32 %v3628, %v452
      %v3637 = vadd.f32 %v3629, %v453
      %v3638 = vadd.f32 %v3630, %v454
      %v3639 = vadd.f32 %v3631, %v455
      %v3640 = vadd.f32 %v3632, %v456
      %v3641 = vld [vmem:[%s7] sm:$0x1]
      %v3642 = vld [vmem:[%s8] sm:$0x1]
      %v3643 = vsel %vm459, %v3633, 0.0
      %3644 = vadd.xlane.f32.xlu0 %v3643
      %v3645 = vpop.xlane.xlu0 %3644
      %v3646 = vsel %vm459, %v3634, 0.0
      %3647 = vadd.xlane.f32.xlu0 %v3646
      %v3648 = vpop.xlane.xlu0 %3647
      %v3649 = vsel %vm459, %v3635, 0.0
      %3650 = vadd.xlane.f32.xlu0 %v3649
      %v3651 = vpop.xlane.xlu0 %3650
      %v3652 = vsel %vm459, %v3636, 0.0
      %3653 = vadd.xlane.f32.xlu0 %v3652
      %v3654 = vpop.xlane.xlu0 %3653
      %v3655 = vsel %vm459, %v3637, 0.0
      %3656 = vadd.xlane.f32.xlu0 %v3655
      %v3657 = vpop.xlane.xlu0 %3656
      %v3658 = vsel %vm459, %v3638, 0.0
      %3659 = vadd.xlane.f32.xlu0 %v3658
      %v3660 = vpop.xlane.xlu0 %3659
      %v3661 = vsel %vm459, %v3639, 0.0
      %3662 = vadd.xlane.f32.xlu0 %v3661
      %v3663 = vpop.xlane.xlu0 %3662
      %v3664 = vsel %vm459, %v3640, 0.0
      %3665 = vadd.xlane.f32.xlu0 %v3664
      %v3666 = vpop.xlane.xlu0 %3665
      %v3667 = vmul.f32 %v3645, %v490
      %v3668 = vmul.f32 %v3648, %v490
      %v3669 = vmul.f32 %v3651, %v490
      %v3670 = vmul.f32 %v3654, %v490
      %v3671 = vmul.f32 %v3657, %v490
      %v3672 = vmul.f32 %v3660, %v490
      %v3673 = vmul.f32 %v3663, %v490
      %v3674 = vmul.f32 %v3666, %v490
      %v3675 = vsub.f32 %v3633, %v3667
      %v3676 = vsub.f32 %v3634, %v3668
      %v3677 = vsub.f32 %v3635, %v3669
      %v3678 = vsub.f32 %v3636, %v3670
      %v3679 = vsub.f32 %v3637, %v3671
      %v3680 = vsub.f32 %v3638, %v3672
      %v3681 = vsub.f32 %v3639, %v3673
      %v3682 = vsub.f32 %v3640, %v3674
      %v3683 = vmul.f32 %v3675, %v3675
      %v3684 = vmul.f32 %v3676, %v3676
      %v3685 = vmul.f32 %v3677, %v3677
      %v3686 = vmul.f32 %v3678, %v3678
      %v3687 = vmul.f32 %v3679, %v3679
      %v3688 = vmul.f32 %v3680, %v3680
      %v3689 = vmul.f32 %v3681, %v3681
      %v3690 = vmul.f32 %v3682, %v3682
      %v3691 = vsel %vm459, %v3683, 0.0
      %3692 = vadd.xlane.f32.xlu0 %v3691
      %v3693 = vpop.xlane.xlu0 %3692
      %v3694 = vsel %vm459, %v3684, 0.0
      %3695 = vadd.xlane.f32.xlu0 %v3694
      %v3696 = vpop.xlane.xlu0 %3695
      %v3697 = vsel %vm459, %v3685, 0.0
      %3698 = vadd.xlane.f32.xlu0 %v3697
      %v3699 = vpop.xlane.xlu0 %3698
      %v3700 = vsel %vm459, %v3686, 0.0
      %3701 = vadd.xlane.f32.xlu0 %v3700
      %v3702 = vpop.xlane.xlu0 %3701
      %v3703 = vsel %vm459, %v3687, 0.0
      %3704 = vadd.xlane.f32.xlu0 %v3703
      %v3705 = vpop.xlane.xlu0 %3704
      %v3706 = vsel %vm459, %v3688, 0.0
      %3707 = vadd.xlane.f32.xlu0 %v3706
      %v3708 = vpop.xlane.xlu0 %3707
      %v3709 = vsel %vm459, %v3689, 0.0
      %3710 = vadd.xlane.f32.xlu0 %v3709
      %v3711 = vpop.xlane.xlu0 %3710
      %v3712 = vsel %vm459, %v3690, 0.0
      %3713 = vadd.xlane.f32.xlu0 %v3712
      %v3714 = vpop.xlane.xlu0 %3713
      %v3715 = vmul.f32 %v3693, %v490
      %v3716 = vmul.f32 %v3696, %v490
      %v3717 = vmul.f32 %v3699, %v490
      %v3718 = vmul.f32 %v3702, %v490
      %v3719 = vmul.f32 %v3705, %v490
      %v3720 = vmul.f32 %v3708, %v490
      %v3721 = vmul.f32 %v3711, %v490
      %v3722 = vmul.f32 %v3714, %v490
      %v3723 = vadd.f32 %v3715, 1e-05
      %v3724 = vadd.f32 %v3716, 1e-05
      %v3725 = vadd.f32 %v3717, 1e-05
      %v3726 = vadd.f32 %v3718, 1e-05
      %v3727 = vadd.f32 %v3719, 1e-05
      %v3728 = vadd.f32 %v3720, 1e-05
      %v3729 = vadd.f32 %v3721, 1e-05
      %v3730 = vadd.f32 %v3722, 1e-05
      %v3731 = vrsqrt.pop %v3723
      %v3732 = vmul.f32 %v3731, %v3723
      %v3733 = vmul.f32 %v3732, %v3731
      %v3734 = vmul.f32 0.5, %v3733
      %v3735 = vsub.f32 1.5, %v3734
      %v3736 = vmul.f32 %v3731, %v3735
      %vm3737 = vweird.f32 %v3723
      %vm3738 = vweird.f32 %v3731
      %vm3739 = vmor %vm3737, %vm3738
      %v3740 = vsel %vm3739, %v3731, %v3736
      %v3741 = vrsqrt.pop %v3724
      %v3742 = vmul.f32 %v3741, %v3724
      %v3743 = vmul.f32 %v3742, %v3741
      %v3744 = vmul.f32 0.5, %v3743
      %v3745 = vsub.f32 1.5, %v3744
      %v3746 = vmul.f32 %v3741, %v3745
      %vm3747 = vweird.f32 %v3724
      %vm3748 = vweird.f32 %v3741
      %vm3749 = vmor %vm3747, %vm3748
      %v3750 = vsel %vm3749, %v3741, %v3746
      %v3751 = vrsqrt.pop %v3725
      %v3752 = vmul.f32 %v3751, %v3725
      %v3753 = vmul.f32 %v3752, %v3751
      %v3754 = vmul.f32 0.5, %v3753
      %v3755 = vsub.f32 1.5, %v3754
      %v3756 = vmul.f32 %v3751, %v3755
      %vm3757 = vweird.f32 %v3725
      %vm3758 = vweird.f32 %v3751
      %vm3759 = vmor %vm3757, %vm3758
      %v3760 = vsel %vm3759, %v3751, %v3756
      %v3761 = vrsqrt.pop %v3726
      %v3762 = vmul.f32 %v3761, %v3726
      %v3763 = vmul.f32 %v3762, %v3761
      %v3764 = vmul.f32 0.5, %v3763
      %v3765 = vsub.f32 1.5, %v3764
      %v3766 = vmul.f32 %v3761, %v3765
      %vm3767 = vweird.f32 %v3726
      %vm3768 = vweird.f32 %v3761
      %vm3769 = vmor %vm3767, %vm3768
      %v3770 = vsel %vm3769, %v3761, %v3766
      %v3771 = vrsqrt.pop %v3727
      %v3772 = vmul.f32 %v3771, %v3727
      %v3773 = vmul.f32 %v3772, %v3771
      %v3774 = vmul.f32 0.5, %v3773
      %v3775 = vsub.f32 1.5, %v3774
      %v3776 = vmul.f32 %v3771, %v3775
      %vm3777 = vweird.f32 %v3727
      %vm3778 = vweird.f32 %v3771
      %vm3779 = vmor %vm3777, %vm3778
      %v3780 = vsel %vm3779, %v3771, %v3776
      %v3781 = vrsqrt.pop %v3728
      %v3782 = vmul.f32 %v3781, %v3728
      %v3783 = vmul.f32 %v3782, %v3781
      %v3784 = vmul.f32 0.5, %v3783
      %v3785 = vsub.f32 1.5, %v3784
      %v3786 = vmul.f32 %v3781, %v3785
      %vm3787 = vweird.f32 %v3728
      %vm3788 = vweird.f32 %v3781
      %vm3789 = vmor %vm3787, %vm3788
      %v3790 = vsel %vm3789, %v3781, %v3786
      %v3791 = vrsqrt.pop %v3729
      %v3792 = vmul.f32 %v3791, %v3729
      %v3793 = vmul.f32 %v3792, %v3791
      %v3794 = vmul.f32 0.5, %v3793
      %v3795 = vsub.f32 1.5, %v3794
      %v3796 = vmul.f32 %v3791, %v3795
      %vm3797 = vweird.f32 %v3729
      %vm3798 = vweird.f32 %v3791
      %vm3799 = vmor %vm3797, %vm3798
      %v3800 = vsel %vm3799, %v3791, %v3796
      %v3801 = vrsqrt.pop %v3730
      %v3802 = vmul.f32 %v3801, %v3730
      %v3803 = vmul.f32 %v3802, %v3801
      %v3804 = vmul.f32 0.5, %v3803
      %v3805 = vsub.f32 1.5, %v3804
      %v3806 = vmul.f32 %v3801, %v3805
      %vm3807 = vweird.f32 %v3730
      %vm3808 = vweird.f32 %v3801
      %vm3809 = vmor %vm3807, %vm3808
      %v3810 = vsel %vm3809, %v3801, %v3806
      %v3811 = vmul.f32 %v3675, %v3740
      %v3812 = vmul.f32 %v3676, %v3750
      %v3813 = vmul.f32 %v3677, %v3760
      %v3814 = vmul.f32 %v3678, %v3770
      %v3815 = vmul.f32 %v3679, %v3780
      %v3816 = vmul.f32 %v3680, %v3790
      %v3817 = vmul.f32 %v3681, %v3800
      %v3818 = vmul.f32 %v3682, %v3810
      %v3820 = vperm.slane %v3641, 0
      %v3822 = vmul.f32 %v3811, %v3820
      %v3823 = vmul.f32 %v3812, %v3820
      %v3824 = vmul.f32 %v3813, %v3820
      %v3825 = vmul.f32 %v3814, %v3820
      %v3826 = vmul.f32 %v3815, %v3820
      %v3827 = vmul.f32 %v3816, %v3820
      %v3828 = vmul.f32 %v3817, %v3820
      %v3829 = vmul.f32 %v3818, %v3820
      %v3831 = vperm.slane %v3642, 0
      %v3833 = vadd.f32 %v3822, %v3831
      %v3834 = vadd.f32 %v3823, %v3831
      %v3835 = vadd.f32 %v3824, %v3831
      %v3836 = vadd.f32 %v3825, %v3831
      %v3837 = vadd.f32 %v3826, %v3831
      %v3838 = vadd.f32 %v3827, %v3831
      %v3839 = vadd.f32 %v3828, %v3831
      %v3840 = vadd.f32 %v3829, %v3831
      %v3841 = vld [vmem:[%s9] sm:$0xff]
      %v3842 = vld [vmem:[%s9 + $0x8] sm:$0xf]
      %v3843 = vld [vmem:[%s10] sm:$0x1]
      %v3845 = vperm.slane %v3843, 0
      %v3848 = vsel %vm459, %v3833, 0
      %v3851 = vsel %vm459, %v3834, 0
      %v3854 = vsel %vm459, %v3835, 0
      %v3857 = vsel %vm459, %v3836, 0
      %v3860 = vsel %vm459, %v3837, 0
      %v3863 = vsel %vm459, %v3838, 0
      %v3866 = vsel %vm459, %v3839, 0
      %v3869 = vsel %vm459, %v3840, 0
      %v3872 = vsel %vm691, %v3842, 0
      %3874 = vmatpush.msra.mxu0 0.0
      %3875 = vmatpush.msra.mxu0 0.0
      %3876 = vmatpush.msra.mxu0 0.0
      %3877 = vmatpush.msra.mxu0 0.0
      %3878 = vmatpush.msra.mxu0 0.0
      %3879 = vmatpush.msra.mxu0 0.0
      %3880 = vmatpush.msra.mxu0 0.0
      %3881 = vmatpush.msra.mxu0 0.0
      %3882 = vmatpush.msra.mxu0 0.0
      %3883 = vmatpush.msra.mxu0 0.0
      %3884 = vmatpush.msra.mxu0 0.0
      %3885 = vmatpush.msra.mxu0 0.0
      %3886 = vmatpush.msra.mxu0 0.0
      %3887 = vmatpush.msra.mxu0 0.0
      %3888 = vmatpush.msra.mxu0 %v3872
      %3889 = vmatpush.msra.mxu0 %v3841
      %3890 = vmatmul.f32.gmra.mxu0 %v3848
      %v3891 = vpop.f32.mrf.mxu0
      %v3892 = vadd.f32 %v3845, %v3891
      %3893 = vmatmul.f32.gmra.mxu0 %v3851
      %v3894 = vpop.f32.mrf.mxu0
      %v3895 = vadd.f32 %v3845, %v3894
      %3896 = vmatmul.f32.gmra.mxu0 %v3854
      %v3897 = vpop.f32.mrf.mxu0
      %v3898 = vadd.f32 %v3845, %v3897
      %3899 = vmatmul.f32.gmra.mxu0 %v3857
      %v3900 = vpop.f32.mrf.mxu0
      %v3901 = vadd.f32 %v3845, %v3900
      %3902 = vmatmul.f32.gmra.mxu0 %v3860
      %v3903 = vpop.f32.mrf.mxu0
      %v3904 = vadd.f32 %v3845, %v3903
      %3905 = vmatmul.f32.gmra.mxu0 %v3863
      %v3906 = vpop.f32.mrf.mxu0
      %v3907 = vadd.f32 %v3845, %v3906
      %3908 = vmatmul.f32.gmra.mxu0 %v3866
      %v3909 = vpop.f32.mrf.mxu0
      %v3910 = vadd.f32 %v3845, %v3909
      %3911 = vmatmul.f32.gmra.mxu0 %v3869
      %v3912 = vpop.f32.mrf.mxu0
      %v3913 = vadd.f32 %v3845, %v3912
      %3914 = vdwg.mxu0
      %v3915 = vmul.f32 %v3892, 0.5
      %v3916 = vmul.f32 %v3895, 0.5
      %v3917 = vmul.f32 %v3898, 0.5
      %v3918 = vmul.f32 %v3901, 0.5
      %v3919 = vmul.f32 %v3904, 0.5
      %v3920 = vmul.f32 %v3907, 0.5
      %v3921 = vmul.f32 %v3910, 0.5
      %v3922 = vmul.f32 %v3913, 0.5
      %v3923 = vmul.f32 %v3892, 0.70710677
      %v3924 = vmul.f32 %v3895, 0.70710677
      %v3925 = vmul.f32 %v3898, 0.70710677
      %v3926 = vmul.f32 %v3901, 0.70710677
      %v3927 = vmul.f32 %v3904, 0.70710677
      %v3928 = vmul.f32 %v3907, 0.70710677
      %v3929 = vmul.f32 %v3910, 0.70710677
      %v3930 = vmul.f32 %v3913, 0.70710677
      %v3931 = vmul.f32 %v3923, %v3923
      %v3932 = vmin.f32 16.0, %v3931
      %v3933 = vmul.f32 %v3932, 2.1237322e-06
      %v3934 = vadd.f32 %v3933, 0.00028619796
      %v3935 = vmul.f32 %v3932, %v3934
      %v3936 = vadd.f32 %v3935, 0.0036580483
      %v3937 = vmul.f32 %v3932, %v3936
      %v3938 = vadd.f32 %v3937, 0.05243302
      %v3939 = vmul.f32 %v3932, %v3938
      %v3940 = vadd.f32 %v3939, 0.18741608
      %v3941 = vmul.f32 %v3932, %v3940
      %v3942 = vadd.f32 %v3941, 1.1283791
      %v3943 = vmul.f32 %v3923, %v3942
      %v3944 = vmul.f32 %v3932, 3.8918573e-05
      %v3945 = vadd.f32 %v3944, 0.001143296
      %v3946 = vmul.f32 %v3932, %v3945
      %v3947 = vadd.f32 %v3946, 0.014752088
      %v3948 = vmul.f32 %v3932, %v3947
      %v3949 = vadd.f32 %v3948, 0.112945676
      %v3950 = vmul.f32 %v3932, %v3949
      %v3951 = vadd.f32 %v3950, 0.4994258
      %v3952 = vmul.f32 %v3932, %v3951
      %v3953 = vadd.f32 %v3952, 1.0
      %v3954 = vrcp.pop %v3953
      %v3955 = vmul.f32 %v3953, %v3954
      %v3956 = vsub.f32 1.0, %v3955
      %v3957 = vmul.f32 %v3954, %v3956
      %v3958 = vadd.f32 %v3954, %v3957
      %vm3959 = vweird.f32 %v3953
      %vm3960 = vweird.f32 %v3954
      %vm3961 = vmor %vm3959, %vm3960
      %v3962 = vsel %vm3961, %v3954, %v3958
      %v3963 = vand.u32 2147483647, %v3953
      %vm3964 = vcmp.eq.f32.partialorder %v3963, 8.507059e+37
      %v3965 = vand.u32 %v3953, 2147483648
      %v3966 = vor.u32 1.1754944e-38, %v3965
      %v3967 = vsel %vm3964, %v3966, %v3962
      %v3968 = vmul.f32 %v3943, %v3967
      %v3969 = vmin.f32 %v3968, 1.0
      %v3970 = vmax.f32 %v3969, -1.0
      %v3971 = vmul.f32 %v3924, %v3924
      %v3972 = vmin.f32 16.0, %v3971
      %v3973 = vmul.f32 %v3972, 2.1237322e-06
      %v3974 = vadd.f32 %v3973, 0.00028619796
      %v3975 = vmul.f32 %v3972, %v3974
      %v3976 = vadd.f32 %v3975, 0.0036580483
      %v3977 = vmul.f32 %v3972, %v3976
      %v3978 = vadd.f32 %v3977, 0.05243302
      %v3979 = vmul.f32 %v3972, %v3978
      %v3980 = vadd.f32 %v3979, 0.18741608
      %v3981 = vmul.f32 %v3972, %v3980
      %v3982 = vadd.f32 %v3981, 1.1283791
      %v3983 = vmul.f32 %v3924, %v3982
      %v3984 = vmul.f32 %v3972, 3.8918573e-05
      %v3985 = vadd.f32 %v3984, 0.001143296
      %v3986 = vmul.f32 %v3972, %v3985
      %v3987 = vadd.f32 %v3986, 0.014752088
      %v3988 = vmul.f32 %v3972, %v3987
      %v3989 = vadd.f32 %v3988, 0.112945676
      %v3990 = vmul.f32 %v3972, %v3989
      %v3991 = vadd.f32 %v3990, 0.4994258
      %v3992 = vmul.f32 %v3972, %v3991
      %v3993 = vadd.f32 %v3992, 1.0
      %v3994 = vrcp.pop %v3993
      %v3995 = vmul.f32 %v3993, %v3994
      %v3996 = vsub.f32 1.0, %v3995
      %v3997 = vmul.f32 %v3994, %v3996
      %v3998 = vadd.f32 %v3994, %v3997
      %vm3999 = vweird.f32 %v3993
      %vm4000 = vweird.f32 %v3994
      %vm4001 = vmor %vm3999, %vm4000
      %v4002 = vsel %vm4001, %v3994, %v3998
      %v4003 = vand.u32 2147483647, %v3993
      %vm4004 = vcmp.eq.f32.partialorder %v4003, 8.507059e+37
      %v4005 = vand.u32 %v3993, 2147483648
      %v4006 = vor.u32 1.1754944e-38, %v4005
      %v4007 = vsel %vm4004, %v4006, %v4002
      %v4008 = vmul.f32 %v3983, %v4007
      %v4009 = vmin.f32 %v4008, 1.0
      %v4010 = vmax.f32 %v4009, -1.0
      %v4011 = vmul.f32 %v3925, %v3925
      %v4012 = vmin.f32 16.0, %v4011
      %v4013 = vmul.f32 %v4012, 2.1237322e-06
      %v4014 = vadd.f32 %v4013, 0.00028619796
      %v4015 = vmul.f32 %v4012, %v4014
      %v4016 = vadd.f32 %v4015, 0.0036580483
      %v4017 = vmul.f32 %v4012, %v4016
      %v4018 = vadd.f32 %v4017, 0.05243302
      %v4019 = vmul.f32 %v4012, %v4018
      %v4020 = vadd.f32 %v4019, 0.18741608
      %v4021 = vmul.f32 %v4012, %v4020
      %v4022 = vadd.f32 %v4021, 1.1283791
      %v4023 = vmul.f32 %v3925, %v4022
      %v4024 = vmul.f32 %v4012, 3.8918573e-05
      %v4025 = vadd.f32 %v4024, 0.001143296
      %v4026 = vmul.f32 %v4012, %v4025
      %v4027 = vadd.f32 %v4026, 0.014752088
      %v4028 = vmul.f32 %v4012, %v4027
      %v4029 = vadd.f32 %v4028, 0.112945676
      %v4030 = vmul.f32 %v4012, %v4029
      %v4031 = vadd.f32 %v4030, 0.4994258
      %v4032 = vmul.f32 %v4012, %v4031
      %v4033 = vadd.f32 %v4032, 1.0
      %v4034 = vrcp.pop %v4033
      %v4035 = vmul.f32 %v4033, %v4034
      %v4036 = vsub.f32 1.0, %v4035
      %v4037 = vmul.f32 %v4034, %v4036
      %v4038 = vadd.f32 %v4034, %v4037
      %vm4039 = vweird.f32 %v4033
      %vm4040 = vweird.f32 %v4034
      %vm4041 = vmor %vm4039, %vm4040
      %v4042 = vsel %vm4041, %v4034, %v4038
      %v4043 = vand.u32 2147483647, %v4033
      %vm4044 = vcmp.eq.f32.partialorder %v4043, 8.507059e+37
      %v4045 = vand.u32 %v4033, 2147483648
      %v4046 = vor.u32 1.1754944e-38, %v4045
      %v4047 = vsel %vm4044, %v4046, %v4042
      %v4048 = vmul.f32 %v4023, %v4047
      %v4049 = vmin.f32 %v4048, 1.0
      %v4050 = vmax.f32 %v4049, -1.0
      %v4051 = vmul.f32 %v3926, %v3926
      %v4052 = vmin.f32 16.0, %v4051
      %v4053 = vmul.f32 %v4052, 2.1237322e-06
      %v4054 = vadd.f32 %v4053, 0.00028619796
      %v4055 = vmul.f32 %v4052, %v4054
      %v4056 = vadd.f32 %v4055, 0.0036580483
      %v4057 = vmul.f32 %v4052, %v4056
      %v4058 = vadd.f32 %v4057, 0.05243302
      %v4059 = vmul.f32 %v4052, %v4058
      %v4060 = vadd.f32 %v4059, 0.18741608
      %v4061 = vmul.f32 %v4052, %v4060
      %v4062 = vadd.f32 %v4061, 1.1283791
      %v4063 = vmul.f32 %v3926, %v4062
      %v4064 = vmul.f32 %v4052, 3.8918573e-05
      %v4065 = vadd.f32 %v4064, 0.001143296
      %v4066 = vmul.f32 %v4052, %v4065
      %v4067 = vadd.f32 %v4066, 0.014752088
      %v4068 = vmul.f32 %v4052, %v4067
      %v4069 = vadd.f32 %v4068, 0.112945676
      %v4070 = vmul.f32 %v4052, %v4069
      %v4071 = vadd.f32 %v4070, 0.4994258
      %v4072 = vmul.f32 %v4052, %v4071
      %v4073 = vadd.f32 %v4072, 1.0
      %v4074 = vrcp.pop %v4073
      %v4075 = vmul.f32 %v4073, %v4074
      %v4076 = vsub.f32 1.0, %v4075
      %v4077 = vmul.f32 %v4074, %v4076
      %v4078 = vadd.f32 %v4074, %v4077
      %vm4079 = vweird.f32 %v4073
      %vm4080 = vweird.f32 %v4074
      %vm4081 = vmor %vm4079, %vm4080
      %v4082 = vsel %vm4081, %v4074, %v4078
      %v4083 = vand.u32 2147483647, %v4073
      %vm4084 = vcmp.eq.f32.partialorder %v4083, 8.507059e+37
      %v4085 = vand.u32 %v4073, 2147483648
      %v4086 = vor.u32 1.1754944e-38, %v4085
      %v4087 = vsel %vm4084, %v4086, %v4082
      %v4088 = vmul.f32 %v4063, %v4087
      %v4089 = vmin.f32 %v4088, 1.0
      %v4090 = vmax.f32 %v4089, -1.0
      %v4091 = vmul.f32 %v3927, %v3927
      %v4092 = vmin.f32 16.0, %v4091
      %v4093 = vmul.f32 %v4092, 2.1237322e-06
      %v4094 = vadd.f32 %v4093, 0.00028619796
      %v4095 = vmul.f32 %v4092, %v4094
      %v4096 = vadd.f32 %v4095, 0.0036580483
      %v4097 = vmul.f32 %v4092, %v4096
      %v4098 = vadd.f32 %v4097, 0.05243302
      %v4099 = vmul.f32 %v4092, %v4098
      %v4100 = vadd.f32 %v4099, 0.18741608
      %v4101 = vmul.f32 %v4092, %v4100
      %v4102 = vadd.f32 %v4101, 1.1283791
      %v4103 = vmul.f32 %v3927, %v4102
      %v4104 = vmul.f32 %v4092, 3.8918573e-05
      %v4105 = vadd.f32 %v4104, 0.001143296
      %v4106 = vmul.f32 %v4092, %v4105
      %v4107 = vadd.f32 %v4106, 0.014752088
      %v4108 = vmul.f32 %v4092, %v4107
      %v4109 = vadd.f32 %v4108, 0.112945676
      %v4110 = vmul.f32 %v4092, %v4109
      %v4111 = vadd.f32 %v4110, 0.4994258
      %v4112 = vmul.f32 %v4092, %v4111
      %v4113 = vadd.f32 %v4112, 1.0
      %v4114 = vrcp.pop %v4113
      %v4115 = vmul.f32 %v4113, %v4114
      %v4116 = vsub.f32 1.0, %v4115
      %v4117 = vmul.f32 %v4114, %v4116
      %v4118 = vadd.f32 %v4114, %v4117
      %vm4119 = vweird.f32 %v4113
      %vm4120 = vweird.f32 %v4114
      %vm4121 = vmor %vm4119, %vm4120
      %v4122 = vsel %vm4121, %v4114, %v4118
      %v4123 = vand.u32 2147483647, %v4113
      %vm4124 = vcmp.eq.f32.partialorder %v4123, 8.507059e+37
      %v4125 = vand.u32 %v4113, 2147483648
      %v4126 = vor.u32 1.1754944e-38, %v4125
      %v4127 = vsel %vm4124, %v4126, %v4122
      %v4128 = vmul.f32 %v4103, %v4127
      %v4129 = vmin.f32 %v4128, 1.0
      %v4130 = vmax.f32 %v4129, -1.0
      %v4131 = vmul.f32 %v3928, %v3928
      %v4132 = vmin.f32 16.0, %v4131
      %v4133 = vmul.f32 %v4132, 2.1237322e-06
      %v4134 = vadd.f32 %v4133, 0.00028619796
      %v4135 = vmul.f32 %v4132, %v4134
      %v4136 = vadd.f32 %v4135, 0.0036580483
      %v4137 = vmul.f32 %v4132, %v4136
      %v4138 = vadd.f32 %v4137, 0.05243302
      %v4139 = vmul.f32 %v4132, %v4138
      %v4140 = vadd.f32 %v4139, 0.18741608
      %v4141 = vmul.f32 %v4132, %v4140
      %v4142 = vadd.f32 %v4141, 1.1283791
      %v4143 = vmul.f32 %v3928, %v4142
      %v4144 = vmul.f32 %v4132, 3.8918573e-05
      %v4145 = vadd.f32 %v4144, 0.001143296
      %v4146 = vmul.f32 %v4132, %v4145
      %v4147 = vadd.f32 %v4146, 0.014752088
      %v4148 = vmul.f32 %v4132, %v4147
      %v4149 = vadd.f32 %v4148, 0.112945676
      %v4150 = vmul.f32 %v4132, %v4149
      %v4151 = vadd.f32 %v4150, 0.4994258
      %v4152 = vmul.f32 %v4132, %v4151
      %v4153 = vadd.f32 %v4152, 1.0
      %v4154 = vrcp.pop %v4153
      %v4155 = vmul.f32 %v4153, %v4154
      %v4156 = vsub.f32 1.0, %v4155
      %v4157 = vmul.f32 %v4154, %v4156
      %v4158 = vadd.f32 %v4154, %v4157
      %vm4159 = vweird.f32 %v4153
      %vm4160 = vweird.f32 %v4154
      %vm4161 = vmor %vm4159, %vm4160
      %v4162 = vsel %vm4161, %v4154, %v4158
      %v4163 = vand.u32 2147483647, %v4153
      %vm4164 = vcmp.eq.f32.partialorder %v4163, 8.507059e+37
      %v4165 = vand.u32 %v4153, 2147483648
      %v4166 = vor.u32 1.1754944e-38, %v4165
      %v4167 = vsel %vm4164, %v4166, %v4162
      %v4168 = vmul.f32 %v4143, %v4167
      %v4169 = vmin.f32 %v4168, 1.0
      %v4170 = vmax.f32 %v4169, -1.0
      %v4171 = vmul.f32 %v3929, %v3929
      %v4172 = vmin.f32 16.0, %v4171
      %v4173 = vmul.f32 %v4172, 2.1237322e-06
      %v4174 = vadd.f32 %v4173, 0.00028619796
      %v4175 = vmul.f32 %v4172, %v4174
      %v4176 = vadd.f32 %v4175, 0.0036580483
      %v4177 = vmul.f32 %v4172, %v4176
      %v4178 = vadd.f32 %v4177, 0.05243302
      %v4179 = vmul.f32 %v4172, %v4178
      %v4180 = vadd.f32 %v4179, 0.18741608
      %v4181 = vmul.f32 %v4172, %v4180
      %v4182 = vadd.f32 %v4181, 1.1283791
      %v4183 = vmul.f32 %v3929, %v4182
      %v4184 = vmul.f32 %v4172, 3.8918573e-05
      %v4185 = vadd.f32 %v4184, 0.001143296
      %v4186 = vmul.f32 %v4172, %v4185
      %v4187 = vadd.f32 %v4186, 0.014752088
      %v4188 = vmul.f32 %v4172, %v4187
      %v4189 = vadd.f32 %v4188, 0.112945676
      %v4190 = vmul.f32 %v4172, %v4189
      %v4191 = vadd.f32 %v4190, 0.4994258
      %v4192 = vmul.f32 %v4172, %v4191
      %v4193 = vadd.f32 %v4192, 1.0
      %v4194 = vrcp.pop %v4193
      %v4195 = vmul.f32 %v4193, %v4194
      %v4196 = vsub.f32 1.0, %v4195
      %v4197 = vmul.f32 %v4194, %v4196
      %v4198 = vadd.f32 %v4194, %v4197
      %vm4199 = vweird.f32 %v4193
      %vm4200 = vweird.f32 %v4194
      %vm4201 = vmor %vm4199, %vm4200
      %v4202 = vsel %vm4201, %v4194, %v4198
      %v4203 = vand.u32 2147483647, %v4193
      %vm4204 = vcmp.eq.f32.partialorder %v4203, 8.507059e+37
      %v4205 = vand.u32 %v4193, 2147483648
      %v4206 = vor.u32 1.1754944e-38, %v4205
      %v4207 = vsel %vm4204, %v4206, %v4202
      %v4208 = vmul.f32 %v4183, %v4207
      %v4209 = vmin.f32 %v4208, 1.0
      %v4210 = vmax.f32 %v4209, -1.0
      %v4211 = vmul.f32 %v3930, %v3930
      %v4212 = vmin.f32 16.0, %v4211
      %v4213 = vmul.f32 %v4212, 2.1237322e-06
      %v4214 = vadd.f32 %v4213, 0.00028619796
      %v4215 = vmul.f32 %v4212, %v4214
      %v4216 = vadd.f32 %v4215, 0.0036580483
      %v4217 = vmul.f32 %v4212, %v4216
      %v4218 = vadd.f32 %v4217, 0.05243302
      %v4219 = vmul.f32 %v4212, %v4218
      %v4220 = vadd.f32 %v4219, 0.18741608
      %v4221 = vmul.f32 %v4212, %v4220
      %v4222 = vadd.f32 %v4221, 1.1283791
      %v4223 = vmul.f32 %v3930, %v4222
      %v4224 = vmul.f32 %v4212, 3.8918573e-05
      %v4225 = vadd.f32 %v4224, 0.001143296
      %v4226 = vmul.f32 %v4212, %v4225
      %v4227 = vadd.f32 %v4226, 0.014752088
      %v4228 = vmul.f32 %v4212, %v4227
      %v4229 = vadd.f32 %v4228, 0.112945676
      %v4230 = vmul.f32 %v4212, %v4229
      %v4231 = vadd.f32 %v4230, 0.4994258
      %v4232 = vmul.f32 %v4212, %v4231
      %v4233 = vadd.f32 %v4232, 1.0
      %v4234 = vrcp.pop %v4233
      %v4235 = vmul.f32 %v4233, %v4234
      %v4236 = vsub.f32 1.0, %v4235
      %v4237 = vmul.f32 %v4234, %v4236
      %v4238 = vadd.f32 %v4234, %v4237
      %vm4239 = vweird.f32 %v4233
      %vm4240 = vweird.f32 %v4234
      %vm4241 = vmor %vm4239, %vm4240
      %v4242 = vsel %vm4241, %v4234, %v4238
      %v4243 = vand.u32 2147483647, %v4233
      %vm4244 = vcmp.eq.f32.partialorder %v4243, 8.507059e+37
      %v4245 = vand.u32 %v4233, 2147483648
      %v4246 = vor.u32 1.1754944e-38, %v4245
      %v4247 = vsel %vm4244, %v4246, %v4242
      %v4248 = vmul.f32 %v4223, %v4247
      %v4249 = vmin.f32 %v4248, 1.0
      %v4250 = vmax.f32 %v4249, -1.0
      %v4251 = vadd.f32 %v3970, 1.0
      %v4252 = vadd.f32 %v4010, 1.0
      %v4253 = vadd.f32 %v4050, 1.0
      %v4254 = vadd.f32 %v4090, 1.0
      %v4255 = vadd.f32 %v4130, 1.0
      %v4256 = vadd.f32 %v4170, 1.0
      %v4257 = vadd.f32 %v4210, 1.0
      %v4258 = vadd.f32 %v4250, 1.0
      %v4259 = vmul.f32 %v3915, %v4251
      %v4260 = vmul.f32 %v3916, %v4252
      %v4261 = vmul.f32 %v3917, %v4253
      %v4262 = vmul.f32 %v3918, %v4254
      %v4263 = vmul.f32 %v3919, %v4255
      %v4264 = vmul.f32 %v3920, %v4256
      %v4265 = vmul.f32 %v3921, %v4257
      %v4266 = vmul.f32 %v3922, %v4258
      %v4267 = vld [vmem:[%s11] sm:$0xff]
      %v4268 = vld [vmem:[%s11 + $0x8] sm:$0xff]
      %v4269 = vld [vmem:[%s11 + $0x10] sm:$0xff]
      %v4270 = vld [vmem:[%s12] sm:$0x1]
      %v4272 = vperm.slane %v4270, 0
      %vm4274 = vcmask 195584
      %v4276 = vsel %vm4274, %v4259, 0
      %v4279 = vsel %vm4274, %v4260, 0
      %v4282 = vsel %vm4274, %v4261, 0
      %v4285 = vsel %vm4274, %v4262, 0
      %v4288 = vsel %vm4274, %v4263, 0
      %v4291 = vsel %vm4274, %v4264, 0
      %v4294 = vsel %vm4274, %v4265, 0
      %v4297 = vsel %vm4274, %v4266, 0
      %4299 = vmatpush.msra.mxu0 0.0
      %4300 = vmatpush.msra.mxu0 0.0
      %4301 = vmatpush.msra.mxu0 0.0
      %4302 = vmatpush.msra.mxu0 0.0
      %4303 = vmatpush.msra.mxu0 0.0
      %4304 = vmatpush.msra.mxu0 0.0
      %4305 = vmatpush.msra.mxu0 0.0
      %4306 = vmatpush.msra.mxu0 0.0
      %4307 = vmatpush.msra.mxu0 0.0
      %4308 = vmatpush.msra.mxu0 0.0
      %4309 = vmatpush.msra.mxu0 0.0
      %4310 = vmatpush.msra.mxu0 0.0
      %4311 = vmatpush.msra.mxu0 0.0
      %4312 = vmatpush.msra.mxu0 %v4269
      %4313 = vmatpush.msra.mxu0 %v4268
      %4314 = vmatpush.msra.mxu0 %v4267
      %4315 = vmatmul.f32.gmra.mxu0 %v4276
      %v4316 = vpop.f32.mrf.mxu0
      %v4317 = vadd.f32 %v4272, %v4316
      %4318 = vmatmul.f32.gmra.mxu0 %v4279
      %v4319 = vpop.f32.mrf.mxu0
      %v4320 = vadd.f32 %v4272, %v4319
      %4321 = vmatmul.f32.gmra.mxu0 %v4282
      %v4322 = vpop.f32.mrf.mxu0
      %v4323 = vadd.f32 %v4272, %v4322
      %4324 = vmatmul.f32.gmra.mxu0 %v4285
      %v4325 = vpop.f32.mrf.mxu0
      %v4326 = vadd.f32 %v4272, %v4325
      %4327 = vmatmul.f32.gmra.mxu0 %v4288
      %v4328 = vpop.f32.mrf.mxu0
      %v4329 = vadd.f32 %v4272, %v4328
      %4330 = vmatmul.f32.gmra.mxu0 %v4291
      %v4331 = vpop.f32.mrf.mxu0
      %v4332 = vadd.f32 %v4272, %v4331
      %4333 = vmatmul.f32.gmra.mxu0 %v4294
      %v4334 = vpop.f32.mrf.mxu0
      %v4335 = vadd.f32 %v4272, %v4334
      %4336 = vmatmul.f32.gmra.mxu0 %v4297
      %v4337 = vpop.f32.mrf.mxu0
      %v4338 = vadd.f32 %v4272, %v4337
      %4339 = vdwg.mxu0
      %v4340 = vadd.f32 %v4317, %v3633
      %v4341 = vadd.f32 %v4320, %v3634
      %v4342 = vadd.f32 %v4323, %v3635
      %v4343 = vadd.f32 %v4326, %v3636
      %v4344 = vadd.f32 %v4329, %v3637
      %v4345 = vadd.f32 %v4332, %v3638
      %v4346 = vadd.f32 %v4335, %v3639
      %v4347 = vadd.f32 %v4338, %v3640
      %4348 = vst.msk [vmem:[%s447] sm:$0xff] %vm459, %v4340
      %4349 = vst.msk [vmem:[%s447 + $0x8] sm:$0xff] %vm459, %v4341
      %4350 = vst.msk [vmem:[%s447 + $0x10] sm:$0xff] %vm459, %v4342
      %4351 = vst.msk [vmem:[%s447 + $0x18] sm:$0xff] %vm459, %v4343
      %4352 = vst.msk [vmem:[%s447 + $0x20] sm:$0xff] %vm459, %v4344
      %4353 = vst.msk [vmem:[%s447 + $0x28] sm:$0xff] %vm459, %v4345
      %4354 = vst.msk [vmem:[%s447 + $0x30] sm:$0xff] %vm459, %v4346
      %4355 = vst.msk [vmem:[%s447 + $0x38] sm:$0xff] %vm459, %v4347
      %s4356 = smul.u32 4, %s24
      %p4357 = scmp.lt.s32.totalorder %s4356, 7
      %s4358 = scalar_select %p4357, %s4356, 7
      %s4359 = smul.addr %s4358, 2
      %s4360 = smul.addr %s4359, 8
      %s4361 = scalar_lea.vmem %s13, %s4360
      // Predicated region
      $region73: #{_lambda_.6} parent=71 // pred_check
        %p4362 = pneg %p320
      $region74: #{_lambda_.6} parent=71 // pred_check_branch
        %4364 = sbr.rel (%p4362) target = $region76
      $region75: #{_lambda_.6} parent=71 // pred_region
        %s4365 = smul.u32 4, %s24
      $region76: #{_lambda_.6} parent=71 // pred_fallthru
        _
    $region72: #{_lambda_.6} parent=5 // pred_fallthru
      _
    %p4366 = scmp.le.s32.totalorder 2, %s19
    // Predicated region
    $region77: #{_lambda_.6} parent=5 // pred_check
      %p4367 = pneg %p4366
    $region78: #{_lambda_.6} parent=5 // pred_check_branch
      %4369 = sbr.rel (%p4367) target = $region80
    $region79: #{_lambda_.6} parent=5 // pred_region
      %s4370 = ssub.s32 %s19, 2
      // Predicated region
      $region81: #{_lambda_.6} parent=79 // pred_check
        %p4371 = pneg %p326
      $region82: #{_lambda_.6} parent=79 // pred_check_branch
        %4373 = sbr.rel (%p4371) target = $region84
      $region83: #{_lambda_.6} parent=79 // pred_region
        %s4374 = smul.u32 4, %s25
        %p4375 = scmp.lt.s32.totalorder %s4374, 7
        %s4376 = scalar_select %p4375, %s4374, 7
        %s4377 = smul.addr %s4376, 2
        %s4378 = smul.addr %s4377, 8
        %s4379 = scalar_lea.vmem %s13, %s4378
      $region84: #{_lambda_.6} parent=79 // pred_fallthru
        _
    $region80: #{_lambda_.6} parent=5 // pred_fallthru
      _
  $region6: #{_lambda_.6} parent=0 // loop_footer
    %s23 = sadd.s32 1, %s19
  $region7: #{_lambda_.6} parent=0 // loop_footer_branch
    %18 = sbr.rel target = $region3
  $region8: #{_lambda_.6} parent=0 // loop_exit
    _

</llo_original>
